<compile_context>
chip_gen: v6e
topology: v6e:2x2x1
jax: 0.10.0
libtpu: 0.0.40
codegen_flags: <defaults>
</compile_context>

<pallas_src>
import numpy as np
import jax
import jax.numpy as jnp
from jax import lax
from jax.experimental import pallas as pl
from jax.experimental.pallas import tpu as pltpu

BN_EPS = 1e-5
TILE_M = 512  # row-tile target (multiple of 8); worst K=4096 bf16 tile = 4 MiB/buffer

# (kernel_size, stride, final_layer) for the 4 blocks, mirroring Decoder.make_block.
_LAYER_CFG = ((3, 2, False), (4, 1, False), (3, 2, False), (4, 2, True))


def _round_up(x, m):
    return (x + m - 1) // m * m


def _tiling(rows):
    """Pick the row tile (multiple of 8) and the zero-padded row count."""
    rows8 = _round_up(rows, 8)
    if rows8 <= TILE_M:
        return rows8, rows8
    return TILE_M, _round_up(rows, TILE_M)


def _compiler_params():
    return pltpu.CompilerParams(
        dimension_semantics=("parallel",),       # independent row tiles -> v7x megacore
        vmem_limit_bytes=32 * 1024 * 1024)


# ---------------------------------------------------------------------------
# Pallas kernels
# ---------------------------------------------------------------------------
def _mm_stats_kernel(p_ref, w_ref, y_ref, sum_ref, sq_ref):
    """bf16 matmul (MXU, f32 accumulate) + per-tile per-column BN statistics.

    p_ref   (TILE, K)  bf16 patches tile (streamed, double-buffered)
    w_ref   (K, C)     bf16 flattened weight (resident block)
    y_ref   (TILE, C)  f32 pre-BN output tile
    sum_ref (1, 1, C)  f32 column sums of this tile
    sq_ref  (1, 1, C)  f32 column sums-of-squares of this tile
    """
    y = jnp.dot(p_ref[...], w_ref[...], preferred_element_type=jnp.float32)
    y_ref[...] = y
    c = y.shape[1]
    sum_ref[...] = jnp.sum(y, axis=0, keepdims=True).reshape(1, 1, c)
    sq_ref[...] = jnp.sum(y * y, axis=0, keepdims=True).reshape(1, 1, c)


def _scale_shift_relu_kernel(y_ref, sc_ref, sh_ref, o_ref):
    """Finalize training-mode BN + ReLU: o = max(y*scale + shift, 0) -> bf16."""
    o_ref[...] = jnp.maximum(
        y_ref[...] * sc_ref[...] + sh_ref[...], 0.0).astype(o_ref.dtype)


def _mm_bias_sigmoid_kernel(p_ref, w_ref, b_ref, o_ref):
    """Final block: bf16 matmul + bias + sigmoid (exp and approx recip on EUP)."""
    y = jnp.dot(p_ref[...], w_ref[...], preferred_element_type=jnp.float32)
    y = y + b_ref[...]
    o_ref[...] = pl.reciprocal(1.0 + jnp.exp(-y), approx=True)


# ---------------------------------------------------------------------------
# Sub-pixel (output-phase) decomposition of ConvTranspose2d — plain-JAX glue
# ---------------------------------------------------------------------------
def _phase_patches(x_nhwc, k, s):
    """ConvT(k, stride=s, pad=0): output phase (rh,rw) at per-phase position
    (qh,qw) (oh = s*qh + rh) reads input positions {q - t, t=0..T}, T=(k-1)//s,
    so ONE (T+1)^2-tap patch serves all s*s phases — no zero insertion.

    Returns patches (N*Qh*Qw, (T+1)^2*Cin), Qh, Qw, T.
    """
    N, IH, IW, Cin = x_nhwc.shape
    T = (k - 1) // s
    Qh, Qw = IH + T, IW + T
    xp = jnp.pad(x_nhwc, ((0, 0), (T, T), (T, T), (0, 0)))
    cols = []
    for th in range(T + 1):
        for tw in range(T + 1):
            cols.append(xp[:, T - th:T - th + Qh, T - tw:T - tw + Qw, :])
    patches = jnp.stack(cols, axis=3)                  # (N, Qh, Qw, (T+1)^2, Cin)
    return patches.reshape(N * Qh * Qw, (T + 1) * (T + 1) * Cin), Qh, Qw, T


def _phase_weight(w, k, s, T):
    """(Cin, Cout, k, k) -> ((T+1)^2*Cin, s*s*Cout) with
    W[(th,tw,ci),(rh,rw,co)] = w[ci, co, s*th+rh, s*tw+rw] (zero if tap >= k)."""
    Cin, Cout = w.shape[0], w.shape[1]
    Tp = T + 1
    kp = s * Tp
    wp = jnp.pad(w, ((0, 0), (0, 0), (0, kp - k), (0, kp - k)))
    wp = wp.reshape(Cin, Cout, Tp, s, Tp, s)
    wp = wp.transpose(2, 4, 0, 3, 5, 1)                # (th, tw, Cin, rh, rw, Cout)
    return wp.reshape(Tp * Tp * Cin, s * s * Cout)


def _scatter_phases(y, N, Qh, Qw, s, Cout, OH, OW):
    """(N*Qh*Qw, s*s*Cout) -> (N, OH, OW, Cout): out[n, s*q+r, s*q'+r'] = y[...]."""
    y = y.reshape(N, Qh, Qw, s, s, Cout).transpose(0, 1, 3, 2, 4, 5)
    y = y.reshape(N, Qh * s, Qw * s, Cout)
    return y[:, :OH, :OW, :]


# ---------------------------------------------------------------------------
# One decoder block (NHWC in / NHWC out)
# ---------------------------------------------------------------------------
def _convt_block(x_nhwc, lp, k, s, final):
    N, IH, IW, _ = x_nhwc.shape
    Cout = lp["w"].shape[1]
    OH = (IH - 1) * s + k
    OW = (IW - 1) * s + k

    patches, Qh, Qw, T = _phase_patches(x_nhwc.astype(jnp.bfloat16), k, s)
    wmat = _phase_weight(lp["w"], k, s, T).astype(jnp.bfloat16)
    rows = N * Qh * Qw
    K = patches.shape[1]                 # 128-aligned for every layer
    C = s * s * Cout                     # (phase, channel) output columns

    tile_m, rows_pad = _tiling(rows)
    if rows_pad != rows:
        patches = jnp.pad(patches, ((0, rows_pad - rows), (0, 0)))
    n_tiles = rows_pad // tile_m

    mm_flops = 2 * rows_pad * K * C
    mm_bytes = rows_pad * K * 2 + K * C * 2 + rows_pad * C * 4

    if final:
        # ConvT + bias + sigmoid, fused.
        bias_cols = jnp.tile(lp["b"], s * s).reshape(1, C).astype(jnp.float32)
        out = pl.pallas_call(
            _mm_bias_sigmoid_kernel,
            out_shape=jax.ShapeDtypeStruct((rows_pad, C), jnp.float32),
            grid=(n_tiles,),
            in_specs=[
                pl.BlockSpec((tile_m, K), lambda i: (i, 0)),
                pl.BlockSpec((K, C), lambda i: (0, 0)),
                pl.BlockSpec((1, C), lambda i: (0, 0)),
            ],
            out_specs=pl.BlockSpec((tile_m, C), lambda i: (i, 0)),
            compiler_params=_compiler_params(),
            cost_estimate=pl.CostEstimate(flops=mm_flops,
                                          transcendentals=rows_pad * C,
                                          bytes_accessed=mm_bytes),
        )(patches, wmat, bias_cols)
        out = out[:rows]
        return _scatter_phases(out, N, Qh, Qw, s, Cout, OH, OW)

    # --- pass 1: matmul + per-tile BN statistics (conv bias dropped: it is
    #     exactly cancelled by the training-mode BN mean subtraction).
    y, tsum, tsq = pl.pallas_call(
        _mm_stats_kernel,
        out_shape=(jax.ShapeDtypeStruct((rows_pad, C), jnp.float32),
                   jax.ShapeDtypeStruct((n_tiles, 1, C), jnp.float32),
                   jax.ShapeDtypeStruct((n_tiles, 1, C), jnp.float32)),
        grid=(n_tiles,),
        in_specs=[
            pl.BlockSpec((tile_m, K), lambda i: (i, 0)),
            pl.BlockSpec((K, C), lambda i: (0, 0)),
        ],
        out_specs=(pl.BlockSpec((tile_m, C), lambda i: (i, 0)),
                   pl.BlockSpec((1, 1, C), lambda i: (i, 0, 0)),
                   pl.BlockSpec((1, 1, C), lambda i: (i, 0, 0))),
        compiler_params=_compiler_params(),
        cost_estimate=pl.CostEstimate(flops=mm_flops, transcendentals=0,
                                      bytes_accessed=mm_bytes + 2 * n_tiles * C * 4),
    )(patches, wmat)

    # --- tiny cross-tile reduction -> per-channel scale/shift (training BN).
    # Zero-padded rows and cropped (out-of-range) phase positions contribute
    # exact zeros, so dividing by the true element count N*OH*OW is exact.
    col_sum = jnp.sum(tsum, axis=(0, 1)).reshape(s * s, Cout)
    col_sq = jnp.sum(tsq, axis=(0, 1)).reshape(s * s, Cout)
    cnt = float(N * OH * OW)
    mean = jnp.sum(col_sum, axis=0) / cnt
    var = jnp.maximum(jnp.sum(col_sq, axis=0) / cnt - mean * mean, 0.0)
    scale = lp["gamma"] * lax.rsqrt(var + BN_EPS)
    shift = lp["beta"] - mean * scale
    col_scale = jnp.tile(scale, s * s).reshape(1, C)
    col_shift = jnp.tile(shift, s * s).reshape(1, C)

    # --- pass 2: apply BN affine + ReLU, emit bf16 activations for next layer.
    out = pl.pallas_call(
        _scale_shift_relu_kernel,
        out_shape=jax.ShapeDtypeStruct((rows_pad, C), jnp.bfloat16),
        grid=(n_tiles,),
        in_specs=[
            pl.BlockSpec((tile_m, C), lambda i: (i, 0)),
            pl.BlockSpec((1, C), lambda i: (0, 0)),
            pl.BlockSpec((1, C), lambda i: (0, 0)),
        ],
        out_specs=pl.BlockSpec((tile_m, C), lambda i: (i, 0)),
        compiler_params=_compiler_params(),
    )(y, col_scale, col_shift)
    out = out[:rows]
    return _scatter_phases(out, N, Qh, Qw, s, Cout, OH, OW)


# ---------------------------------------------------------------------------
# Decoder: parameters + forward
# ---------------------------------------------------------------------------
def init_decoder_params(key, z_dim, image_channels=1, hidden_dim=64):
    chans = [z_dim, hidden_dim * 4, hidden_dim * 2, hidden_dim, image_channels]
    params = []
    for i, (k, s, final) in enumerate(_LAYER_CFG):
        cin, cout = chans[i], chans[i + 1]
        kw, kb, kg, kbeta = jax.random.split(jax.random.fold_in(key, i), 4)
        layer = dict(
            w=0.05 * jax.random.normal(kw, (cin, cout, k, k), jnp.float32),
            b=0.05 * jax.random.normal(kb, (cout,), jnp.float32))
        if not final:
            layer["gamma"] = 1.0 + 0.1 * jax.random.normal(kg, (cout,), jnp.float32)
            layer["beta"] = 0.1 * jax.random.normal(kbeta, (cout,), jnp.float32)
        params.append(layer)
    return params


def decoder_forward(noise, params):
    """noise (N, z_dim) f32 -> (N, image_channels, 28, 28) f32 (NCHW)."""
    N, z_dim = noise.shape
    x = noise.reshape(N, 1, 1, z_dim)           # NHWC internally
    for lp, (k, s, final) in zip(params, _LAYER_CFG):
        x = _convt_block(x, lp, k, s, final)
    return x.astype(jnp.float32).transpose(0, 3, 1, 2)


# ---------------------------------------------------------------------------
# Pure-JAX reference (NCHW) for numerical checks
# ---------------------------------------------------------------------------
def _ref_convT(x, w, b, s, operand_dtype=None):
    k = w.shape[2]
    if operand_dtype is not None:
        x = x.astype(operand_dtype)
        w = w.astype(operand_dtype)
    y = lax.conv_general_dilated(
        x, jnp.flip(w, (2, 3)).transpose(1, 0, 2, 3),
        window_strides=(1, 1),
        padding=[(k - 1, k - 1), (k - 1, k - 1)],
        lhs_dilation=(s, s),
        dimension_numbers=("NCHW", "OIHW", "NCHW"),
        preferred_element_type=jnp.float32,
        precision=lax.Precision.HIGHEST)
    return y + b[None, :, None, None]


def _ref_bn_relu(x, g, beta):
    mean = x.mean(axis=(0, 2, 3), keepdims=True)
    var = jnp.square(x - mean).mean(axis=(0, 2, 3), keepdims=True)
    xn = (x - mean) * lax.rsqrt(var + BN_EPS)
    return jnp.maximum(xn * g[None, :, None, None] + beta[None, :, None, None], 0.0)


def decoder_reference(noise, params, operand_dtype=None):
    N, z_dim = noise.shape
    x = noise.reshape(N, z_dim, 1, 1)
    for lp, (k, s, final) in zip(params, _LAYER_CFG):
        x = _ref_convT(x, lp["w"], lp["b"], s, operand_dtype)
        if final:
            x = jax.nn.sigmoid(x)
        else:
            x = _ref_bn_relu(x, lp["gamma"], lp["beta"])
    return x


# ---------------------------------------------------------------------------
if __name__ == "__main__":
    key = jax.random.PRNGKey(0)
    z_dim, batch = 32, 2

    params = init_decoder_params(jax.random.fold_in(key, 100), z_dim)
    noise = jax.random.normal(jax.random.fold_in(key, 200), (batch, z_dim),
                              jnp.float32)

    fwd = jax.jit(decoder_forward)
    out = jax.block_until_ready(fwd(noise, params))
    assert out.shape == (batch, 1, 28, 28), out.shape

    # Tight check vs. a reference using the same bf16 matmul operands.
    ref_bf16 = jax.block_until_ready(decoder_reference(noise, params, jnp.bfloat16))
    np.testing.assert_allclose(np.asarray(out), np.asarray(ref_bf16),
                               rtol=0.0, atol=2e-2)

    # Loose sanity check vs. the full-f32 reference (bf16 MXU operands only
    # perturb the sigmoid outputs slightly).
    ref_f32 = jax.block_until_ready(decoder_reference(noise, params))
    np.testing.assert_allclose(np.asarray(out), np.asarray(ref_f32),
                               rtol=0.0, atol=1e-1)

    print("KERNEL_OK")
</pallas_src>

<mosaic_0001>
module attributes {stable_mosaic.version = 11 : i64} {
  func.func @_mm_stats_kernel(%arg0: i32, %arg1: memref<8x128xbf16, #tpu.memory_space<vmem>>, %arg2: memref<128x1024xbf16, #tpu.memory_space<vmem>>, %arg3: memref<8x1024xf32, #tpu.memory_space<vmem>>, %arg4: memref<1x1x1024xf32, #tpu.memory_space<vmem>>, %arg5: memref<1x1x1024xf32, #tpu.memory_space<vmem>>) attributes {dimension_semantics = [#tpu.dimension_semantics<parallel>], iteration_bounds = array<i64: 1>, scalar_prefetch = 0 : i64, scratch_operands = 0 : i64, tpu.core_type = #tpu.core_type<tc>, window_params = [{transform_indices = @transform_0, window_bounds = array<i64: 8, 128>}, {pipeline_mode = #tpu.pipeline_mode<synchronous>, transform_indices = @transform_1, window_bounds = array<i64: 128, 1024>}, {transform_indices = @transform_2, window_bounds = array<i64: 8, 1024>}, {transform_indices = @transform_3, window_bounds = array<i64: 1, 1, 1024>}, {transform_indices = @transform_4, window_bounds = array<i64: 1, 1, 1024>}]} {
    %c0 = arith.constant 0 : index
    %c0_0 = arith.constant 0 : index
    %0 = vector.load %arg1[%c0, %c0_0] : memref<8x128xbf16, #tpu.memory_space<vmem>>, vector<8x128xbf16>
    %c0_1 = arith.constant 0 : index
    %c0_2 = arith.constant 0 : index
    %1 = vector.load %arg2[%c0_1, %c0_2] : memref<128x1024xbf16, #tpu.memory_space<vmem>>, vector<128x1024xbf16>
    %cst = arith.constant dense<0.000000e+00> : vector<8x1024xf32>
    %2 = tpu.matmul %0, %1, %cst {dimension_numbers = #tpu.dot_dimension_numbers<[1], [0], [0], [1], [0, 0, 1, 1], [], []>} : vector<8x128xbf16>, vector<128x1024xbf16>, vector<8x1024xf32> -> vector<8x1024xf32>
    %c0_3 = arith.constant 0 : index
    %c0_4 = arith.constant 0 : index
    %3 = vector.load %arg3[%c0_3, %c0_4] : memref<8x1024xf32, #tpu.memory_space<vmem>>, vector<8x1024xf32>
    tpu.vector_store %arg3[%c0_3, %c0_4], %2 {strides = array<i32>} : memref<8x1024xf32, #tpu.memory_space<vmem>>, vector<8x1024xf32>,
    %cst_5 = arith.constant dense<0.000000e+00> : vector<1024xf32>
    %4 = vector.multi_reduction <add>, %2, %cst_5 [0] : vector<8x1024xf32> to vector<1024xf32>
    %5 = vector.shape_cast %4 : vector<1024xf32> to vector<1x1024xf32>
    %6 = vector.shape_cast %5 : vector<1x1024xf32> to vector<1x1x1024xf32>
    %c0_6 = arith.constant 0 : index
    %c0_7 = arith.constant 0 : index
    %c0_8 = arith.constant 0 : index
    %7 = vector.load %arg4[%c0_6, %c0_7, %c0_8] : memref<1x1x1024xf32, #tpu.memory_space<vmem>>, vector<1x1x1024xf32>
    tpu.vector_store %arg4[%c0_6, %c0_7, %c0_8], %6 {strides = array<i32>} : memref<1x1x1024xf32, #tpu.memory_space<vmem>>, vector<1x1x1024xf32>,
    %8 = arith.mulf %2, %2 : vector<8x1024xf32>
    %cst_9 = arith.constant dense<0.000000e+00> : vector<1024xf32>
    %9 = vector.multi_reduction <add>, %8, %cst_9 [0] : vector<8x1024xf32> to vector<1024xf32>
    %10 = vector.shape_cast %9 : vector<1024xf32> to vector<1x1024xf32>
    %11 = vector.shape_cast %10 : vector<1x1024xf32> to vector<1x1x1024xf32>
    %c0_10 = arith.constant 0 : index
    %c0_11 = arith.constant 0 : index
    %c0_12 = arith.constant 0 : index
    %12 = vector.load %arg5[%c0_10, %c0_11, %c0_12] : memref<1x1x1024xf32, #tpu.memory_space<vmem>>, vector<1x1x1024xf32>
    tpu.vector_store %arg5[%c0_10, %c0_11, %c0_12], %11 {strides = array<i32>} : memref<1x1x1024xf32, #tpu.memory_space<vmem>>, vector<1x1x1024xf32>,
    return
  }
  func.func @transform_0(%arg0: i32) -> (i32, i32) {
    %c0_i32 = arith.constant 0 : i32
    %c0_i32_0 = arith.constant 0 : i32
    return %arg0, %c0_i32 : i32, i32
  }
  func.func @transform_1(%arg0: i32) -> (i32, i32) {
    %c0_i32 = arith.constant 0 : i32
    %c0_i32_0 = arith.constant 0 : i32
    %c0_i32_1 = arith.constant 0 : i32
    return %c0_i32, %c0_i32_0 : i32, i32
  }
  func.func @transform_2(%arg0: i32) -> (i32, i32) {
    %c0_i32 = arith.constant 0 : i32
    %c0_i32_0 = arith.constant 0 : i32
    return %arg0, %c0_i32 : i32, i32
  }
  func.func @transform_3(%arg0: i32) -> (i32, i32, i32) {
    %c0_i32 = arith.constant 0 : i32
    %c0_i32_0 = arith.constant 0 : i32
    %c0_i32_1 = arith.constant 0 : i32
    return %arg0, %c0_i32, %c0_i32_0 : i32, i32, i32
  }
  func.func @transform_4(%arg0: i32) -> (i32, i32, i32) {
    %c0_i32 = arith.constant 0 : i32
    %c0_i32_0 = arith.constant 0 : i32
    %c0_i32_1 = arith.constant 0 : i32
    return %arg0, %c0_i32, %c0_i32_0 : i32, i32, i32
  }
}

module attributes {stable_mosaic.version = 11 : i64} {
  func.func @_scale_shift_relu_kernel(%arg0: i32, %arg1: memref<8x1024xf32, #tpu.memory_space<vmem>>, %arg2: memref<1x1024xf32, #tpu.memory_space<vmem>>, %arg3: memref<1x1024xf32, #tpu.memory_space<vmem>>, %arg4: memref<8x1024xbf16, #tpu.memory_space<vmem>>) attributes {dimension_semantics = [#tpu.dimension_semantics<parallel>], iteration_bounds = array<i64: 1>, scalar_prefetch = 0 : i64, scratch_operands = 0 : i64, tpu.core_type = #tpu.core_type<tc>, window_params = [{transform_indices = @transform_0, window_bounds = array<i64: 8, 1024>}, {pipeline_mode = #tpu.pipeline_mode<synchronous>, transform_indices = @transform_1, window_bounds = array<i64: 1, 1024>}, {pipeline_mode = #tpu.pipeline_mode<synchronous>, transform_indices = @transform_2, window_bounds = array<i64: 1, 1024>}, {transform_indices = @transform_3, window_bounds = array<i64: 8, 1024>}]} {
    %c0 = arith.constant 0 : index
    %c0_0 = arith.constant 0 : index
    %0 = vector.load %arg1[%c0, %c0_0] : memref<8x1024xf32, #tpu.memory_space<vmem>>, vector<8x1024xf32>
    %c0_1 = arith.constant 0 : index
    %c0_2 = arith.constant 0 : index
    %1 = vector.load %arg2[%c0_1, %c0_2] : memref<1x1024xf32, #tpu.memory_space<vmem>>, vector<1x1024xf32>
    %2 = vector.broadcast %1 : vector<1x1024xf32> to vector<8x1024xf32>
    %3 = arith.mulf %0, %2 : vector<8x1024xf32>
    %c0_3 = arith.constant 0 : index
    %c0_4 = arith.constant 0 : index
    %4 = vector.load %arg3[%c0_3, %c0_4] : memref<1x1024xf32, #tpu.memory_space<vmem>>, vector<1x1024xf32>
    %5 = vector.broadcast %4 : vector<1x1024xf32> to vector<8x1024xf32>
    %6 = arith.addf %3, %5 : vector<8x1024xf32>
    %cst = arith.constant 0.000000e+00 : f32
    %7 = vector.broadcast %cst : f32 to vector<8x1024xf32>
    %8 = arith.maximumf %6, %7 : vector<8x1024xf32>
    %9 = arith.truncf %8 : vector<8x1024xf32> to vector<8x1024xbf16>
    %c0_5 = arith.constant 0 : index
    %c0_6 = arith.constant 0 : index
    %10 = vector.load %arg4[%c0_5, %c0_6] : memref<8x1024xbf16, #tpu.memory_space<vmem>>, vector<8x1024xbf16>
    tpu.vector_store %arg4[%c0_5, %c0_6], %9 {strides = array<i32>} : memref<8x1024xbf16, #tpu.memory_space<vmem>>, vector<8x1024xbf16>,
    return
  }
  func.func @transform_0(%arg0: i32) -> (i32, i32) {
    %c0_i32 = arith.constant 0 : i32
    %c0_i32_0 = arith.constant 0 : i32
    return %arg0, %c0_i32 : i32, i32
  }
  func.func @transform_1(%arg0: i32) -> (i32, i32) {
    %c0_i32 = arith.constant 0 : i32
    %c0_i32_0 = arith.constant 0 : i32
    %c0_i32_1 = arith.constant 0 : i32
    return %c0_i32, %c0_i32_0 : i32, i32
  }
  func.func @transform_2(%arg0: i32) -> (i32, i32) {
    %c0_i32 = arith.constant 0 : i32
    %c0_i32_0 = arith.constant 0 : i32
    %c0_i32_1 = arith.constant 0 : i32
    return %c0_i32, %c0_i32_0 : i32, i32
  }
  func.func @transform_3(%arg0: i32) -> (i32, i32) {
    %c0_i32 = arith.constant 0 : i32
    %c0_i32_0 = arith.constant 0 : i32
    return %arg0, %c0_i32 : i32, i32
  }
}

module attributes {stable_mosaic.version = 11 : i64} {
  func.func @_mm_stats_kernel(%arg0: i32, %arg1: memref<72x4096xbf16, #tpu.memory_space<vmem>>, %arg2: memref<4096x128xbf16, #tpu.memory_space<vmem>>, %arg3: memref<72x128xf32, #tpu.memory_space<vmem>>, %arg4: memref<1x1x128xf32, #tpu.memory_space<vmem>>, %arg5: memref<1x1x128xf32, #tpu.memory_space<vmem>>) attributes {dimension_semantics = [#tpu.dimension_semantics<parallel>], iteration_bounds = array<i64: 1>, scalar_prefetch = 0 : i64, scratch_operands = 0 : i64, tpu.core_type = #tpu.core_type<tc>, window_params = [{transform_indices = @transform_0, window_bounds = array<i64: 72, 4096>}, {pipeline_mode = #tpu.pipeline_mode<synchronous>, transform_indices = @transform_1, window_bounds = array<i64: 4096, 128>}, {transform_indices = @transform_2, window_bounds = array<i64: 72, 128>}, {transform_indices = @transform_3, window_bounds = array<i64: 1, 1, 128>}, {transform_indices = @transform_4, window_bounds = array<i64: 1, 1, 128>}]} {
    %c0 = arith.constant 0 : index
    %c0_0 = arith.constant 0 : index
    %0 = vector.load %arg1[%c0, %c0_0] : memref<72x4096xbf16, #tpu.memory_space<vmem>>, vector<72x4096xbf16>
    %c0_1 = arith.constant 0 : index
    %c0_2 = arith.constant 0 : index
    %1 = vector.load %arg2[%c0_1, %c0_2] : memref<4096x128xbf16, #tpu.memory_space<vmem>>, vector<4096x128xbf16>
    %cst = arith.constant dense<0.000000e+00> : vector<72x128xf32>
    %2 = tpu.matmul %0, %1, %cst {dimension_numbers = #tpu.dot_dimension_numbers<[1], [0], [0], [1], [0, 0, 1, 1], [], []>} : vector<72x4096xbf16>, vector<4096x128xbf16>, vector<72x128xf32> -> vector<72x128xf32>
    %c0_3 = arith.constant 0 : index
    %c0_4 = arith.constant 0 : index
    %3 = vector.load %arg3[%c0_3, %c0_4] : memref<72x128xf32, #tpu.memory_space<vmem>>, vector<72x128xf32>
    tpu.vector_store %arg3[%c0_3, %c0_4], %2 {strides = array<i32>} : memref<72x128xf32, #tpu.memory_space<vmem>>, vector<72x128xf32>,
    %cst_5 = arith.constant dense<0.000000e+00> : vector<128xf32>
    %4 = vector.multi_reduction <add>, %2, %cst_5 [0] : vector<72x128xf32> to vector<128xf32>
    %5 = vector.shape_cast %4 : vector<128xf32> to vector<1x128xf32>
    %6 = vector.shape_cast %5 : vector<1x128xf32> to vector<1x1x128xf32>
    %c0_6 = arith.constant 0 : index
    %c0_7 = arith.constant 0 : index
    %c0_8 = arith.constant 0 : index
    %7 = vector.load %arg4[%c0_6, %c0_7, %c0_8] : memref<1x1x128xf32, #tpu.memory_space<vmem>>, vector<1x1x128xf32>
    tpu.vector_store %arg4[%c0_6, %c0_7, %c0_8], %6 {strides = array<i32>} : memref<1x1x128xf32, #tpu.memory_space<vmem>>, vector<1x1x128xf32>,
    %8 = arith.mulf %2, %2 : vector<72x128xf32>
    %cst_9 = arith.constant dense<0.000000e+00> : vector<128xf32>
    %9 = vector.multi_reduction <add>, %8, %cst_9 [0] : vector<72x128xf32> to vector<128xf32>
    %10 = vector.shape_cast %9 : vector<128xf32> to vector<1x128xf32>
    %11 = vector.shape_cast %10 : vector<1x128xf32> to vector<1x1x128xf32>
    %c0_10 = arith.constant 0 : index
    %c0_11 = arith.constant 0 : index
    %c0_12 = arith.constant 0 : index
    %12 = vector.load %arg5[%c0_10, %c0_11, %c0_12] : memref<1x1x128xf32, #tpu.memory_space<vmem>>, vector<1x1x128xf32>
    tpu.vector_store %arg5[%c0_10, %c0_11, %c0_12], %11 {strides = array<i32>} : memref<1x1x128xf32, #tpu.memory_space<vmem>>, vector<1x1x128xf32>,
    return
  }
  func.func @transform_0(%arg0: i32) -> (i32, i32) {
    %c0_i32 = arith.constant 0 : i32
    %c0_i32_0 = arith.constant 0 : i32
    return %arg0, %c0_i32 : i32, i32
  }
  func.func @transform_1(%arg0: i32) -> (i32, i32) {
    %c0_i32 = arith.constant 0 : i32
    %c0_i32_0 = arith.constant 0 : i32
    %c0_i32_1 = arith.constant 0 : i32
    return %c0_i32, %c0_i32_0 : i32, i32
  }
  func.func @transform_2(%arg0: i32) -> (i32, i32) {
    %c0_i32 = arith.constant 0 : i32
    %c0_i32_0 = arith.constant 0 : i32
    return %arg0, %c0_i32 : i32, i32
  }
  func.func @transform_3(%arg0: i32) -> (i32, i32, i32) {
    %c0_i32 = arith.constant 0 : i32
    %c0_i32_0 = arith.constant 0 : i32
    %c0_i32_1 = arith.constant 0 : i32
    return %arg0, %c0_i32, %c0_i32_0 : i32, i32, i32
  }
  func.func @transform_4(%arg0: i32) -> (i32, i32, i32) {
    %c0_i32 = arith.constant 0 : i32
    %c0_i32_0 = arith.constant 0 : i32
    %c0_i32_1 = arith.constant 0 : i32
    return %arg0, %c0_i32, %c0_i32_0 : i32, i32, i32
  }
}

module attributes {stable_mosaic.version = 11 : i64} {
  func.func @_scale_shift_relu_kernel(%arg0: i32, %arg1: memref<72x128xf32, #tpu.memory_space<vmem>>, %arg2: memref<1x128xf32, #tpu.memory_space<vmem>>, %arg3: memref<1x128xf32, #tpu.memory_space<vmem>>, %arg4: memref<72x128xbf16, #tpu.memory_space<vmem>>) attributes {dimension_semantics = [#tpu.dimension_semantics<parallel>], iteration_bounds = array<i64: 1>, scalar_prefetch = 0 : i64, scratch_operands = 0 : i64, tpu.core_type = #tpu.core_type<tc>, window_params = [{transform_indices = @transform_0, window_bounds = array<i64: 72, 128>}, {pipeline_mode = #tpu.pipeline_mode<synchronous>, transform_indices = @transform_1, window_bounds = array<i64: 1, 128>}, {pipeline_mode = #tpu.pipeline_mode<synchronous>, transform_indices = @transform_2, window_bounds = array<i64: 1, 128>}, {transform_indices = @transform_3, window_bounds = array<i64: 72, 128>}]} {
    %c0 = arith.constant 0 : index
    %c0_0 = arith.constant 0 : index
    %0 = vector.load %arg1[%c0, %c0_0] : memref<72x128xf32, #tpu.memory_space<vmem>>, vector<72x128xf32>
    %c0_1 = arith.constant 0 : index
    %c0_2 = arith.constant 0 : index
    %1 = vector.load %arg2[%c0_1, %c0_2] : memref<1x128xf32, #tpu.memory_space<vmem>>, vector<1x128xf32>
    %2 = vector.broadcast %1 : vector<1x128xf32> to vector<72x128xf32>
    %3 = arith.mulf %0, %2 : vector<72x128xf32>
    %c0_3 = arith.constant 0 : index
    %c0_4 = arith.constant 0 : index
    %4 = vector.load %arg3[%c0_3, %c0_4] : memref<1x128xf32, #tpu.memory_space<vmem>>, vector<1x128xf32>
    %5 = vector.broadcast %4 : vector<1x128xf32> to vector<72x128xf32>
    %6 = arith.addf %3, %5 : vector<72x128xf32>
    %cst = arith.constant 0.000000e+00 : f32
    %7 = vector.broadcast %cst : f32 to vector<72x128xf32>
    %8 = arith.maximumf %6, %7 : vector<72x128xf32>
    %9 = arith.truncf %8 : vector<72x128xf32> to vector<72x128xbf16>
    %c0_5 = arith.constant 0 : index
    %c0_6 = arith.constant 0 : index
    %10 = vector.load %arg4[%c0_5, %c0_6] : memref<72x128xbf16, #tpu.memory_space<vmem>>, vector<72x128xbf16>
    tpu.vector_store %arg4[%c0_5, %c0_6], %9 {strides = array<i32>} : memref<72x128xbf16, #tpu.memory_space<vmem>>, vector<72x128xbf16>,
    return
  }
  func.func @transform_0(%arg0: i32) -> (i32, i32) {
    %c0_i32 = arith.constant 0 : i32
    %c0_i32_0 = arith.constant 0 : i32
    return %arg0, %c0_i32 : i32, i32
  }
  func.func @transform_1(%arg0: i32) -> (i32, i32) {
    %c0_i32 = arith.constant 0 : i32
    %c0_i32_0 = arith.constant 0 : i32
    %c0_i32_1 = arith.constant 0 : i32
    return %c0_i32, %c0_i32_0 : i32, i32
  }
  func.func @transform_2(%arg0: i32) -> (i32, i32) {
    %c0_i32 = arith.constant 0 : i32
    %c0_i32_0 = arith.constant 0 : i32
    %c0_i32_1 = arith.constant 0 : i32
    return %c0_i32, %c0_i32_0 : i32, i32
  }
  func.func @transform_3(%arg0: i32) -> (i32, i32) {
    %c0_i32 = arith.constant 0 : i32
    %c0_i32_0 = arith.constant 0 : i32
    return %arg0, %c0_i32 : i32, i32
  }
}

module attributes {stable_mosaic.version = 11 : i64} {
  func.func @_mm_stats_kernel(%arg0: i32, %arg1: memref<104x512xbf16, #tpu.memory_space<vmem>>, %arg2: memref<512x256xbf16, #tpu.memory_space<vmem>>, %arg3: memref<104x256xf32, #tpu.memory_space<vmem>>, %arg4: memref<1x1x256xf32, #tpu.memory_space<vmem>>, %arg5: memref<1x1x256xf32, #tpu.memory_space<vmem>>) attributes {dimension_semantics = [#tpu.dimension_semantics<parallel>], iteration_bounds = array<i64: 1>, scalar_prefetch = 0 : i64, scratch_operands = 0 : i64, tpu.core_type = #tpu.core_type<tc>, window_params = [{transform_indices = @transform_0, window_bounds = array<i64: 104, 512>}, {pipeline_mode = #tpu.pipeline_mode<synchronous>, transform_indices = @transform_1, window_bounds = array<i64: 512, 256>}, {transform_indices = @transform_2, window_bounds = array<i64: 104, 256>}, {transform_indices = @transform_3, window_bounds = array<i64: 1, 1, 256>}, {transform_indices = @transform_4, window_bounds = array<i64: 1, 1, 256>}]} {
    %c0 = arith.constant 0 : index
    %c0_0 = arith.constant 0 : index
    %0 = vector.load %arg1[%c0, %c0_0] : memref<104x512xbf16, #tpu.memory_space<vmem>>, vector<104x512xbf16>
    %c0_1 = arith.constant 0 : index
    %c0_2 = arith.constant 0 : index
    %1 = vector.load %arg2[%c0_1, %c0_2] : memref<512x256xbf16, #tpu.memory_space<vmem>>, vector<512x256xbf16>
    %cst = arith.constant dense<0.000000e+00> : vector<104x256xf32>
    %2 = tpu.matmul %0, %1, %cst {dimension_numbers = #tpu.dot_dimension_numbers<[1], [0], [0], [1], [0, 0, 1, 1], [], []>} : vector<104x512xbf16>, vector<512x256xbf16>, vector<104x256xf32> -> vector<104x256xf32>
    %c0_3 = arith.constant 0 : index
    %c0_4 = arith.constant 0 : index
    %3 = vector.load %arg3[%c0_3, %c0_4] : memref<104x256xf32, #tpu.memory_space<vmem>>, vector<104x256xf32>
    tpu.vector_store %arg3[%c0_3, %c0_4], %2 {strides = array<i32>} : memref<104x256xf32, #tpu.memory_space<vmem>>, vector<104x256xf32>,
    %cst_5 = arith.constant dense<0.000000e+00> : vector<256xf32>
    %4 = vector.multi_reduction <add>, %2, %cst_5 [0] : vector<104x256xf32> to vector<256xf32>
    %5 = vector.shape_cast %4 : vector<256xf32> to vector<1x256xf32>
    %6 = vector.shape_cast %5 : vector<1x256xf32> to vector<1x1x256xf32>
    %c0_6 = arith.constant 0 : index
    %c0_7 = arith.constant 0 : index
    %c0_8 = arith.constant 0 : index
    %7 = vector.load %arg4[%c0_6, %c0_7, %c0_8] : memref<1x1x256xf32, #tpu.memory_space<vmem>>, vector<1x1x256xf32>
    tpu.vector_store %arg4[%c0_6, %c0_7, %c0_8], %6 {strides = array<i32>} : memref<1x1x256xf32, #tpu.memory_space<vmem>>, vector<1x1x256xf32>,
    %8 = arith.mulf %2, %2 : vector<104x256xf32>
    %cst_9 = arith.constant dense<0.000000e+00> : vector<256xf32>
    %9 = vector.multi_reduction <add>, %8, %cst_9 [0] : vector<104x256xf32> to vector<256xf32>
    %10 = vector.shape_cast %9 : vector<256xf32> to vector<1x256xf32>
    %11 = vector.shape_cast %10 : vector<1x256xf32> to vector<1x1x256xf32>
    %c0_10 = arith.constant 0 : index
    %c0_11 = arith.constant 0 : index
    %c0_12 = arith.constant 0 : index
    %12 = vector.load %arg5[%c0_10, %c0_11, %c0_12] : memref<1x1x256xf32, #tpu.memory_space<vmem>>, vector<1x1x256xf32>
    tpu.vector_store %arg5[%c0_10, %c0_11, %c0_12], %11 {strides = array<i32>} : memref<1x1x256xf32, #tpu.memory_space<vmem>>, vector<1x1x256xf32>,
    return
  }
  func.func @transform_0(%arg0: i32) -> (i32, i32) {
    %c0_i32 = arith.constant 0 : i32
    %c0_i32_0 = arith.constant 0 : i32
    return %arg0, %c0_i32 : i32, i32
  }
  func.func @transform_1(%arg0: i32) -> (i32, i32) {
    %c0_i32 = arith.constant 0 : i32
    %c0_i32_0 = arith.constant 0 : i32
    %c0_i32_1 = arith.constant 0 : i32
    return %c0_i32, %c0_i32_0 : i32, i32
  }
  func.func @transform_2(%arg0: i32) -> (i32, i32) {
    %c0_i32 = arith.constant 0 : i32
    %c0_i32_0 = arith.constant 0 : i32
    return %arg0, %c0_i32 : i32, i32
  }
  func.func @transform_3(%arg0: i32) -> (i32, i32, i32) {
    %c0_i32 = arith.constant 0 : i32
    %c0_i32_0 = arith.constant 0 : i32
    %c0_i32_1 = arith.constant 0 : i32
    return %arg0, %c0_i32, %c0_i32_0 : i32, i32, i32
  }
  func.func @transform_4(%arg0: i32) -> (i32, i32, i32) {
    %c0_i32 = arith.constant 0 : i32
    %c0_i32_0 = arith.constant 0 : i32
    %c0_i32_1 = arith.constant 0 : i32
    return %arg0, %c0_i32, %c0_i32_0 : i32, i32, i32
  }
}

module attributes {stable_mosaic.version = 11 : i64} {
  func.func @_scale_shift_relu_kernel(%arg0: i32, %arg1: memref<104x256xf32, #tpu.memory_space<vmem>>, %arg2: memref<1x256xf32, #tpu.memory_space<vmem>>, %arg3: memref<1x256xf32, #tpu.memory_space<vmem>>, %arg4: memref<104x256xbf16, #tpu.memory_space<vmem>>) attributes {dimension_semantics = [#tpu.dimension_semantics<parallel>], iteration_bounds = array<i64: 1>, scalar_prefetch = 0 : i64, scratch_operands = 0 : i64, tpu.core_type = #tpu.core_type<tc>, window_params = [{transform_indices = @transform_0, window_bounds = array<i64: 104, 256>}, {pipeline_mode = #tpu.pipeline_mode<synchronous>, transform_indices = @transform_1, window_bounds = array<i64: 1, 256>}, {pipeline_mode = #tpu.pipeline_mode<synchronous>, transform_indices = @transform_2, window_bounds = array<i64: 1, 256>}, {transform_indices = @transform_3, window_bounds = array<i64: 104, 256>}]} {
    %c0 = arith.constant 0 : index
    %c0_0 = arith.constant 0 : index
    %0 = vector.load %arg1[%c0, %c0_0] : memref<104x256xf32, #tpu.memory_space<vmem>>, vector<104x256xf32>
    %c0_1 = arith.constant 0 : index
    %c0_2 = arith.constant 0 : index
    %1 = vector.load %arg2[%c0_1, %c0_2] : memref<1x256xf32, #tpu.memory_space<vmem>>, vector<1x256xf32>
    %2 = vector.broadcast %1 : vector<1x256xf32> to vector<104x256xf32>
    %3 = arith.mulf %0, %2 : vector<104x256xf32>
    %c0_3 = arith.constant 0 : index
    %c0_4 = arith.constant 0 : index
    %4 = vector.load %arg3[%c0_3, %c0_4] : memref<1x256xf32, #tpu.memory_space<vmem>>, vector<1x256xf32>
    %5 = vector.broadcast %4 : vector<1x256xf32> to vector<104x256xf32>
    %6 = arith.addf %3, %5 : vector<104x256xf32>
    %cst = arith.constant 0.000000e+00 : f32
    %7 = vector.broadcast %cst : f32 to vector<104x256xf32>
    %8 = arith.maximumf %6, %7 : vector<104x256xf32>
    %9 = arith.truncf %8 : vector<104x256xf32> to vector<104x256xbf16>
    %c0_5 = arith.constant 0 : index
    %c0_6 = arith.constant 0 : index
    %10 = vector.load %arg4[%c0_5, %c0_6] : memref<104x256xbf16, #tpu.memory_space<vmem>>, vector<104x256xbf16>
    tpu.vector_store %arg4[%c0_5, %c0_6], %9 {strides = array<i32>} : memref<104x256xbf16, #tpu.memory_space<vmem>>, vector<104x256xbf16>,
    return
  }
  func.func @transform_0(%arg0: i32) -> (i32, i32) {
    %c0_i32 = arith.constant 0 : i32
    %c0_i32_0 = arith.constant 0 : i32
    return %arg0, %c0_i32 : i32, i32
  }
  func.func @transform_1(%arg0: i32) -> (i32, i32) {
    %c0_i32 = arith.constant 0 : i32
    %c0_i32_0 = arith.constant 0 : i32
    %c0_i32_1 = arith.constant 0 : i32
    return %c0_i32, %c0_i32_0 : i32, i32
  }
  func.func @transform_2(%arg0: i32) -> (i32, i32) {
    %c0_i32 = arith.constant 0 : i32
    %c0_i32_0 = arith.constant 0 : i32
    %c0_i32_1 = arith.constant 0 : i32
    return %c0_i32, %c0_i32_0 : i32, i32
  }
  func.func @transform_3(%arg0: i32) -> (i32, i32) {
    %c0_i32 = arith.constant 0 : i32
    %c0_i32_0 = arith.constant 0 : i32
    return %arg0, %c0_i32 : i32, i32
  }
}

module attributes {stable_mosaic.version = 11 : i64} {
  func.func @_mm_bias_sigmoid_kernel(%arg0: i32, %arg1: memref<392x256xbf16, #tpu.memory_space<vmem>>, %arg2: memref<256x4xbf16, #tpu.memory_space<vmem>>, %arg3: memref<1x4xf32, #tpu.memory_space<vmem>>, %arg4: memref<392x4xf32, #tpu.memory_space<vmem>>) attributes {dimension_semantics = [#tpu.dimension_semantics<parallel>], iteration_bounds = array<i64: 1>, scalar_prefetch = 0 : i64, scratch_operands = 0 : i64, tpu.core_type = #tpu.core_type<tc>, window_params = [{transform_indices = @transform_0, window_bounds = array<i64: 392, 256>}, {pipeline_mode = #tpu.pipeline_mode<synchronous>, transform_indices = @transform_1, window_bounds = array<i64: 256, 4>}, {pipeline_mode = #tpu.pipeline_mode<synchronous>, transform_indices = @transform_2, window_bounds = array<i64: 1, 4>}, {transform_indices = @transform_3, window_bounds = array<i64: 392, 4>}]} {
    %c0 = arith.constant 0 : index
    %c0_0 = arith.constant 0 : index
    %0 = vector.load %arg1[%c0, %c0_0] : memref<392x256xbf16, #tpu.memory_space<vmem>>, vector<392x256xbf16>
    %c0_1 = arith.constant 0 : index
    %c0_2 = arith.constant 0 : index
    %1 = vector.load %arg2[%c0_1, %c0_2] : memref<256x4xbf16, #tpu.memory_space<vmem>>, vector<256x4xbf16>
    %cst = arith.constant dense<0.000000e+00> : vector<392x4xf32>
    %2 = tpu.matmul %0, %1, %cst {dimension_numbers = #tpu.dot_dimension_numbers<[1], [0], [0], [1], [0, 0, 1, 1], [], []>} : vector<392x256xbf16>, vector<256x4xbf16>, vector<392x4xf32> -> vector<392x4xf32>
    %c0_3 = arith.constant 0 : index
    %c0_4 = arith.constant 0 : index
    %3 = vector.load %arg3[%c0_3, %c0_4] : memref<1x4xf32, #tpu.memory_space<vmem>>, vector<1x4xf32>
    %4 = vector.broadcast %3 : vector<1x4xf32> to vector<392x4xf32>
    %5 = arith.addf %2, %4 : vector<392x4xf32>
    %cst_5 = arith.constant 0.000000e+00 : f32
    %6 = vector.broadcast %cst_5 : f32 to vector<392x4xf32>
    %7 = arith.subf %6, %5 : vector<392x4xf32>
    %8 = math.exp %7 : vector<392x4xf32>
    %cst_6 = arith.constant 1.000000e+00 : f32
    %9 = vector.broadcast %cst_6 : f32 to vector<392x4xf32>
    %10 = arith.addf %9, %8 : vector<392x4xf32>
    %11 = tpu.reciprocal %10 {approx = true} : vector<392x4xf32> -> vector<392x4xf32>
    %c0_7 = arith.constant 0 : index
    %c0_8 = arith.constant 0 : index
    %12 = vector.load %arg4[%c0_7, %c0_8] : memref<392x4xf32, #tpu.memory_space<vmem>>, vector<392x4xf32>
    tpu.vector_store %arg4[%c0_7, %c0_8], %11 {strides = array<i32>} : memref<392x4xf32, #tpu.memory_space<vmem>>, vector<392x4xf32>,
    return
  }
  func.func @transform_0(%arg0: i32) -> (i32, i32) {
    %c0_i32 = arith.constant 0 : i32
    %c0_i32_0 = arith.constant 0 : i32
    return %arg0, %c0_i32 : i32, i32
  }
  func.func @transform_1(%arg0: i32) -> (i32, i32) {
    %c0_i32 = arith.constant 0 : i32
    %c0_i32_0 = arith.constant 0 : i32
    %c0_i32_1 = arith.constant 0 : i32
    return %c0_i32, %c0_i32_0 : i32, i32
  }
  func.func @transform_2(%arg0: i32) -> (i32, i32) {
    %c0_i32 = arith.constant 0 : i32
    %c0_i32_0 = arith.constant 0 : i32
    %c0_i32_1 = arith.constant 0 : i32
    return %c0_i32, %c0_i32_0 : i32, i32
  }
  func.func @transform_3(%arg0: i32) -> (i32, i32) {
    %c0_i32 = arith.constant 0 : i32
    %c0_i32_0 = arith.constant 0 : i32
    return %arg0, %c0_i32 : i32, i32
  }
}

</mosaic_0001>

<llo_original>
// kernel: decoder_forward.8
$region0: #{decoder_forward.8}
  #allocation0 [shape = 'u32[]', space=smem, size = 0x4, offset = 0x4, fixed_abs, tag = 'smem constant byte address 0x4 - core index']
  #allocation1 [shape = 'u32[144,128]{1,0:T(1,128)}', space=vmem, size = 0x12000, scoped, tag = 'internal scratch']
  %s0 = inlined_call_operand.vmem [shape: f32[8,1024], index: 0, kind: input, shape index: {}]
  %s1 = inlined_call_operand.vmem [shape: f32[1,1024], index: 1, kind: input, shape index: {}]
  %s2 = inlined_call_operand.vmem [shape: f32[1,1024], index: 2, kind: input, shape index: {}]
  %s3 = inlined_call_operand.vmem [shape: bf16[8,1024], index: 3, kind: output, shape index: {}]
  %s4 = sld [smem:[#allocation0]]
  $region22: #{decoder_forward.8} parent=0
    _
  %s6 = ssub.s32 1, %s4
  %s7 = scalar_select 0, %s6, %s4
  // Predicated region
  $region2: #{decoder_forward.8} parent=0 // pred_check
    _
  $region3: #{decoder_forward.8} parent=0 // pred_check_branch
    %9 = sbr.rel (0) target = $region5
  $region4: #{decoder_forward.8} parent=0 // pred_region
    _
  $region5: #{decoder_forward.8} parent=0 // pred_fallthru
    _
  // Predicated region
  $region6: #{decoder_forward.8} parent=0 // pred_check
    _
  $region7: #{decoder_forward.8} parent=0 // pred_check_branch
    %11 = sbr.rel (0) target = $region9
  $region8: #{decoder_forward.8} parent=0 // pred_region
    _
  $region9: #{decoder_forward.8} parent=0 // pred_fallthru
    _
  // Predicated region
  $region10: #{decoder_forward.8} parent=0 // pred_check
    _
  $region11: #{decoder_forward.8} parent=0 // pred_check_branch
    %13 = sbr.rel (0) target = $region13
  $region12: #{decoder_forward.8} parent=0 // pred_region
    _
  $region13: #{decoder_forward.8} parent=0 // pred_fallthru
    _
  %v14 = vld [vmem:[%s0] sm:$0xff]
  %v15 = vld [vmem:[%s0 + $0x8] sm:$0xff]
  %v16 = vld [vmem:[%s0 + $0x10] sm:$0xff]
  %v17 = vld [vmem:[%s0 + $0x18] sm:$0xff]
  %v18 = vld [vmem:[%s0 + $0x20] sm:$0xff]
  %v19 = vld [vmem:[%s0 + $0x28] sm:$0xff]
  %v20 = vld [vmem:[%s0 + $0x30] sm:$0xff]
  %v21 = vld [vmem:[%s0 + $0x38] sm:$0xff]
  %v22 = vld [vmem:[%s1] sm:$0xff]
  %v24 = vlaneseq
  %v25 = vshrl.u32 %v24, 7
  %v26 = vsub.s32 0, %v25
  %v27 = vrot.slane %v22, %v26
  %v28 = vlaneseq
  %v29 = vshrl.u32 %v28, 7
  %v30 = vsub.s32 1, %v29
  %v31 = vrot.slane %v22, %v30
  %v32 = vlaneseq
  %v33 = vshrl.u32 %v32, 7
  %v34 = vsub.s32 2, %v33
  %v35 = vrot.slane %v22, %v34
  %v36 = vlaneseq
  %v37 = vshrl.u32 %v36, 7
  %v38 = vsub.s32 3, %v37
  %v39 = vrot.slane %v22, %v38
  %v40 = vlaneseq
  %v41 = vshrl.u32 %v40, 7
  %v42 = vsub.s32 4, %v41
  %v43 = vrot.slane %v22, %v42
  %v44 = vlaneseq
  %v45 = vshrl.u32 %v44, 7
  %v46 = vsub.s32 5, %v45
  %v47 = vrot.slane %v22, %v46
  %v48 = vlaneseq
  %v49 = vshrl.u32 %v48, 7
  %v50 = vsub.s32 6, %v49
  %v51 = vrot.slane %v22, %v50
  %v52 = vlaneseq
  %v53 = vshrl.u32 %v52, 7
  %v54 = vsub.s32 7, %v53
  %v55 = vrot.slane %v22, %v54
  %v64 = vmul.f32 %v14, %v27
  %v65 = vmul.f32 %v15, %v31
  %v66 = vmul.f32 %v16, %v35
  %v67 = vmul.f32 %v17, %v39
  %v68 = vmul.f32 %v18, %v43
  %v69 = vmul.f32 %v19, %v47
  %v70 = vmul.f32 %v20, %v51
  %v71 = vmul.f32 %v21, %v55
  %v72 = vld [vmem:[%s2] sm:$0xff]
  %v74 = vlaneseq
  %v75 = vshrl.u32 %v74, 7
  %v76 = vsub.s32 0, %v75
  %v77 = vrot.slane %v72, %v76
  %v78 = vlaneseq
  %v79 = vshrl.u32 %v78, 7
  %v80 = vsub.s32 1, %v79
  %v81 = vrot.slane %v72, %v80
  %v82 = vlaneseq
  %v83 = vshrl.u32 %v82, 7
  %v84 = vsub.s32 2, %v83
  %v85 = vrot.slane %v72, %v84
  %v86 = vlaneseq
  %v87 = vshrl.u32 %v86, 7
  %v88 = vsub.s32 3, %v87
  %v89 = vrot.slane %v72, %v88
  %v90 = vlaneseq
  %v91 = vshrl.u32 %v90, 7
  %v92 = vsub.s32 4, %v91
  %v93 = vrot.slane %v72, %v92
  %v94 = vlaneseq
  %v95 = vshrl.u32 %v94, 7
  %v96 = vsub.s32 5, %v95
  %v97 = vrot.slane %v72, %v96
  %v98 = vlaneseq
  %v99 = vshrl.u32 %v98, 7
  %v100 = vsub.s32 6, %v99
  %v101 = vrot.slane %v72, %v100
  %v102 = vlaneseq
  %v103 = vshrl.u32 %v102, 7
  %v104 = vsub.s32 7, %v103
  %v105 = vrot.slane %v72, %v104
  %v114 = vadd.f32 %v64, %v77
  %v115 = vadd.f32 %v65, %v81
  %v116 = vadd.f32 %v66, %v85
  %v117 = vadd.f32 %v67, %v89
  %v118 = vadd.f32 %v68, %v93
  %v119 = vadd.f32 %v69, %v97
  %v120 = vadd.f32 %v70, %v101
  %v121 = vadd.f32 %v71, %v105
  %v122 = vmax.f32 %v114, 0.0
  %v123 = vmax.f32 %v115, 0.0
  %v124 = vmax.f32 %v116, 0.0
  %v125 = vmax.f32 %v117, 0.0
  %v126 = vmax.f32 %v118, 0.0
  %v127 = vmax.f32 %v119, 0.0
  %v128 = vmax.f32 %v120, 0.0
  %v129 = vmax.f32 %v121, 0.0
  %v130 = vpack.c.bf16 %v122, %v122
  %v131 = vpack.c.bf16 %v123, %v123
  %v132 = vpack.c.bf16 %v124, %v124
  %v133 = vpack.c.bf16 %v125, %v125
  %v134 = vpack.c.bf16 %v126, %v126
  %v135 = vpack.c.bf16 %v127, %v127
  %v136 = vpack.c.bf16 %v128, %v128
  %v137 = vpack.c.bf16 %v129, %v129
  %v146 = vunpack.c.l.b16 %v130
  %v147 = vunpack.c.l.b16 %v131
  %v148 = vunpack.c.l.b16 %v132
  %v149 = vunpack.c.l.b16 %v133
  %v150 = vunpack.c.l.b16 %v134
  %v151 = vunpack.c.l.b16 %v135
  %v152 = vunpack.c.l.b16 %v136
  %v153 = vunpack.c.l.b16 %v137
  %v154 = vpack.c.b16 %v147, %v146
  %v155 = vpack.c.b16 %v149, %v148
  %v156 = vpack.c.b16 %v151, %v150
  %v157 = vpack.c.b16 %v153, %v152
  %162 = vst [vmem:[%s3] sm:$0xff] %v154
  %163 = vst [vmem:[%s3 + $0x8] sm:$0xff] %v155
  %164 = vst [vmem:[%s3 + $0x10] sm:$0xff] %v156
  %165 = vst [vmem:[%s3 + $0x18] sm:$0xff] %v157
  // Predicated region
  $region14: #{decoder_forward.8} parent=0 // pred_check
    _
  $region15: #{decoder_forward.8} parent=0 // pred_check_branch
    %167 = sbr.rel (0) target = $region17
  $region16: #{decoder_forward.8} parent=0 // pred_region
    _
  $region17: #{decoder_forward.8} parent=0 // pred_fallthru
    _
  // Predicated region
  $region18: #{decoder_forward.8} parent=0 // pred_check
    _
  $region19: #{decoder_forward.8} parent=0 // pred_check_branch
    %169 = sbr.rel (0) target = $region21
  $region20: #{decoder_forward.8} parent=0 // pred_region
    _
  $region21: #{decoder_forward.8} parent=0 // pred_fallthru
    _

// kernel: decoder_forward.7
$region0: #{decoder_forward.7}
  #allocation0 [shape = 'u32[]', space=smem, size = 0x4, offset = 0x4, fixed_abs, tag = 'smem constant byte address 0x4 - core index']
  #allocation1 [shape = 'u32[144,128]{1,0:T(1,128)}', space=vmem, size = 0x12000, scoped, tag = 'internal scratch']
  %s0 = inlined_call_operand.vmem [shape: bf16[8,128], index: 0, kind: input, shape index: {}]
  %s1 = inlined_call_operand.vmem [shape: bf16[128,1024], index: 1, kind: input, shape index: {}]
  %s2 = inlined_call_operand.vmem [shape: f32[8,1024], index: 2, kind: output, shape index: {0}]
  %s3 = inlined_call_operand.vmem [shape: f32[1,1,1024], index: 3, kind: output, shape index: {1}]
  %s4 = inlined_call_operand.vmem [shape: f32[1,1,1024], index: 4, kind: output, shape index: {2}]
  %5 = xla_tuple %s2, %s3, %s4
  %s6 = sld [smem:[#allocation0]]
  $region34: #{decoder_forward.7} parent=0
    _
  %s8 = ssub.s32 1, %s6
  %s9 = scalar_select 0, %s8, %s6
  // Predicated region
  $region2: #{decoder_forward.7} parent=0 // pred_check
    _
  $region3: #{decoder_forward.7} parent=0 // pred_check_branch
    %11 = sbr.rel (0) target = $region5
  $region4: #{decoder_forward.7} parent=0 // pred_region
    _
  $region5: #{decoder_forward.7} parent=0 // pred_fallthru
    _
  // Predicated region
  $region6: #{decoder_forward.7} parent=0 // pred_check
    _
  $region7: #{decoder_forward.7} parent=0 // pred_check_branch
    %13 = sbr.rel (0) target = $region9
  $region8: #{decoder_forward.7} parent=0 // pred_region
    _
  $region9: #{decoder_forward.7} parent=0 // pred_fallthru
    _
  %v15 = vld [vmem:[%s0] sm:$0xf]
  %v16 = vld [vmem:[%s1] sm:$0xff]
  %v17 = vld [vmem:[%s1 + $0x8] sm:$0xff]
  %v18 = vld [vmem:[%s1 + $0x10] sm:$0xff]
  %v19 = vld [vmem:[%s1 + $0x18] sm:$0xff]
  %v20 = vld [vmem:[%s1 + $0x20] sm:$0xff]
  %v21 = vld [vmem:[%s1 + $0x28] sm:$0xff]
  %v22 = vld [vmem:[%s1 + $0x30] sm:$0xff]
  %v23 = vld [vmem:[%s1 + $0x38] sm:$0xff]
  %v24 = vld [vmem:[%s1 + $0x40] sm:$0xff]
  %v25 = vld [vmem:[%s1 + $0x48] sm:$0xff]
  %v26 = vld [vmem:[%s1 + $0x50] sm:$0xff]
  %v27 = vld [vmem:[%s1 + $0x58] sm:$0xff]
  %v28 = vld [vmem:[%s1 + $0x60] sm:$0xff]
  %v29 = vld [vmem:[%s1 + $0x68] sm:$0xff]
  %v30 = vld [vmem:[%s1 + $0x70] sm:$0xff]
  %v31 = vld [vmem:[%s1 + $0x78] sm:$0xff]
  %v32 = vld [vmem:[%s1 + $0x80] sm:$0xff]
  %v33 = vld [vmem:[%s1 + $0x88] sm:$0xff]
  %v34 = vld [vmem:[%s1 + $0x90] sm:$0xff]
  %v35 = vld [vmem:[%s1 + $0x98] sm:$0xff]
  %v36 = vld [vmem:[%s1 + $0xa0] sm:$0xff]
  %v37 = vld [vmem:[%s1 + $0xa8] sm:$0xff]
  %v38 = vld [vmem:[%s1 + $0xb0] sm:$0xff]
  %v39 = vld [vmem:[%s1 + $0xb8] sm:$0xff]
  %v40 = vld [vmem:[%s1 + $0xc0] sm:$0xff]
  %v41 = vld [vmem:[%s1 + $0xc8] sm:$0xff]
  %v42 = vld [vmem:[%s1 + $0xd0] sm:$0xff]
  %v43 = vld [vmem:[%s1 + $0xd8] sm:$0xff]
  %v44 = vld [vmem:[%s1 + $0xe0] sm:$0xff]
  %v45 = vld [vmem:[%s1 + $0xe8] sm:$0xff]
  %v46 = vld [vmem:[%s1 + $0xf0] sm:$0xff]
  %v47 = vld [vmem:[%s1 + $0xf8] sm:$0xff]
  %v48 = vld [vmem:[%s1 + $0x100] sm:$0xff]
  %v49 = vld [vmem:[%s1 + $0x108] sm:$0xff]
  %v50 = vld [vmem:[%s1 + $0x110] sm:$0xff]
  %v51 = vld [vmem:[%s1 + $0x118] sm:$0xff]
  %v52 = vld [vmem:[%s1 + $0x120] sm:$0xff]
  %v53 = vld [vmem:[%s1 + $0x128] sm:$0xff]
  %v54 = vld [vmem:[%s1 + $0x130] sm:$0xff]
  %v55 = vld [vmem:[%s1 + $0x138] sm:$0xff]
  %v56 = vld [vmem:[%s1 + $0x140] sm:$0xff]
  %v57 = vld [vmem:[%s1 + $0x148] sm:$0xff]
  %v58 = vld [vmem:[%s1 + $0x150] sm:$0xff]
  %v59 = vld [vmem:[%s1 + $0x158] sm:$0xff]
  %v60 = vld [vmem:[%s1 + $0x160] sm:$0xff]
  %v61 = vld [vmem:[%s1 + $0x168] sm:$0xff]
  %v62 = vld [vmem:[%s1 + $0x170] sm:$0xff]
  %v63 = vld [vmem:[%s1 + $0x178] sm:$0xff]
  %v64 = vld [vmem:[%s1 + $0x180] sm:$0xff]
  %v65 = vld [vmem:[%s1 + $0x188] sm:$0xff]
  %v66 = vld [vmem:[%s1 + $0x190] sm:$0xff]
  %v67 = vld [vmem:[%s1 + $0x198] sm:$0xff]
  %v68 = vld [vmem:[%s1 + $0x1a0] sm:$0xff]
  %v69 = vld [vmem:[%s1 + $0x1a8] sm:$0xff]
  %v70 = vld [vmem:[%s1 + $0x1b0] sm:$0xff]
  %v71 = vld [vmem:[%s1 + $0x1b8] sm:$0xff]
  %v72 = vld [vmem:[%s1 + $0x1c0] sm:$0xff]
  %v73 = vld [vmem:[%s1 + $0x1c8] sm:$0xff]
  %v74 = vld [vmem:[%s1 + $0x1d0] sm:$0xff]
  %v75 = vld [vmem:[%s1 + $0x1d8] sm:$0xff]
  %v76 = vld [vmem:[%s1 + $0x1e0] sm:$0xff]
  %v77 = vld [vmem:[%s1 + $0x1e8] sm:$0xff]
  %v78 = vld [vmem:[%s1 + $0x1f0] sm:$0xff]
  %v79 = vld [vmem:[%s1 + $0x1f8] sm:$0xff]
  %v144 = vunpack.c.l.b16 %v16
  %v145 = vunpack.c.h.b16 %v16
  %v146 = vunpack.c.l.b16 %v17
  %v147 = vunpack.c.h.b16 %v17
  %v148 = vunpack.c.l.b16 %v18
  %v149 = vunpack.c.h.b16 %v18
  %v150 = vunpack.c.l.b16 %v19
  %v151 = vunpack.c.h.b16 %v19
  %v152 = vunpack.c.l.b16 %v20
  %v153 = vunpack.c.h.b16 %v20
  %v154 = vunpack.c.l.b16 %v21
  %v155 = vunpack.c.h.b16 %v21
  %v156 = vunpack.c.l.b16 %v22
  %v157 = vunpack.c.h.b16 %v22
  %v158 = vunpack.c.l.b16 %v23
  %v159 = vunpack.c.h.b16 %v23
  %v160 = vunpack.c.l.b16 %v24
  %v161 = vunpack.c.h.b16 %v24
  %v162 = vunpack.c.l.b16 %v25
  %v163 = vunpack.c.h.b16 %v25
  %v164 = vunpack.c.l.b16 %v26
  %v165 = vunpack.c.h.b16 %v26
  %v166 = vunpack.c.l.b16 %v27
  %v167 = vunpack.c.h.b16 %v27
  %v168 = vunpack.c.l.b16 %v28
  %v169 = vunpack.c.h.b16 %v28
  %v170 = vunpack.c.l.b16 %v29
  %v171 = vunpack.c.h.b16 %v29
  %v172 = vunpack.c.l.b16 %v30
  %v173 = vunpack.c.h.b16 %v30
  %v174 = vunpack.c.l.b16 %v31
  %v175 = vunpack.c.h.b16 %v31
  %v176 = vunpack.c.l.b16 %v32
  %v177 = vunpack.c.h.b16 %v32
  %v178 = vunpack.c.l.b16 %v33
  %v179 = vunpack.c.h.b16 %v33
  %v180 = vunpack.c.l.b16 %v34
  %v181 = vunpack.c.h.b16 %v34
  %v182 = vunpack.c.l.b16 %v35
  %v183 = vunpack.c.h.b16 %v35
  %v184 = vunpack.c.l.b16 %v36
  %v185 = vunpack.c.h.b16 %v36
  %v186 = vunpack.c.l.b16 %v37
  %v187 = vunpack.c.h.b16 %v37
  %v188 = vunpack.c.l.b16 %v38
  %v189 = vunpack.c.h.b16 %v38
  %v190 = vunpack.c.l.b16 %v39
  %v191 = vunpack.c.h.b16 %v39
  %v192 = vunpack.c.l.b16 %v40
  %v193 = vunpack.c.h.b16 %v40
  %v194 = vunpack.c.l.b16 %v41
  %v195 = vunpack.c.h.b16 %v41
  %v196 = vunpack.c.l.b16 %v42
  %v197 = vunpack.c.h.b16 %v42
  %v198 = vunpack.c.l.b16 %v43
  %v199 = vunpack.c.h.b16 %v43
  %v200 = vunpack.c.l.b16 %v44
  %v201 = vunpack.c.h.b16 %v44
  %v202 = vunpack.c.l.b16 %v45
  %v203 = vunpack.c.h.b16 %v45
  %v204 = vunpack.c.l.b16 %v46
  %v205 = vunpack.c.h.b16 %v46
  %v206 = vunpack.c.l.b16 %v47
  %v207 = vunpack.c.h.b16 %v47
  %v208 = vunpack.c.l.b16 %v48
  %v209 = vunpack.c.h.b16 %v48
  %v210 = vunpack.c.l.b16 %v49
  %v211 = vunpack.c.h.b16 %v49
  %v212 = vunpack.c.l.b16 %v50
  %v213 = vunpack.c.h.b16 %v50
  %v214 = vunpack.c.l.b16 %v51
  %v215 = vunpack.c.h.b16 %v51
  %v216 = vunpack.c.l.b16 %v52
  %v217 = vunpack.c.h.b16 %v52
  %v218 = vunpack.c.l.b16 %v53
  %v219 = vunpack.c.h.b16 %v53
  %v220 = vunpack.c.l.b16 %v54
  %v221 = vunpack.c.h.b16 %v54
  %v222 = vunpack.c.l.b16 %v55
  %v223 = vunpack.c.h.b16 %v55
  %v224 = vunpack.c.l.b16 %v56
  %v225 = vunpack.c.h.b16 %v56
  %v226 = vunpack.c.l.b16 %v57
  %v227 = vunpack.c.h.b16 %v57
  %v228 = vunpack.c.l.b16 %v58
  %v229 = vunpack.c.h.b16 %v58
  %v230 = vunpack.c.l.b16 %v59
  %v231 = vunpack.c.h.b16 %v59
  %v232 = vunpack.c.l.b16 %v60
  %v233 = vunpack.c.h.b16 %v60
  %v234 = vunpack.c.l.b16 %v61
  %v235 = vunpack.c.h.b16 %v61
  %v236 = vunpack.c.l.b16 %v62
  %v237 = vunpack.c.h.b16 %v62
  %v238 = vunpack.c.l.b16 %v63
  %v239 = vunpack.c.h.b16 %v63
  %v240 = vunpack.c.l.b16 %v64
  %v241 = vunpack.c.h.b16 %v64
  %v242 = vunpack.c.l.b16 %v65
  %v243 = vunpack.c.h.b16 %v65
  %v244 = vunpack.c.l.b16 %v66
  %v245 = vunpack.c.h.b16 %v66
  %v246 = vunpack.c.l.b16 %v67
  %v247 = vunpack.c.h.b16 %v67
  %v248 = vunpack.c.l.b16 %v68
  %v249 = vunpack.c.h.b16 %v68
  %v250 = vunpack.c.l.b16 %v69
  %v251 = vunpack.c.h.b16 %v69
  %v252 = vunpack.c.l.b16 %v70
  %v253 = vunpack.c.h.b16 %v70
  %v254 = vunpack.c.l.b16 %v71
  %v255 = vunpack.c.h.b16 %v71
  %v256 = vunpack.c.l.b16 %v72
  %v257 = vunpack.c.h.b16 %v72
  %v258 = vunpack.c.l.b16 %v73
  %v259 = vunpack.c.h.b16 %v73
  %v260 = vunpack.c.l.b16 %v74
  %v261 = vunpack.c.h.b16 %v74
  %v262 = vunpack.c.l.b16 %v75
  %v263 = vunpack.c.h.b16 %v75
  %v264 = vunpack.c.l.b16 %v76
  %v265 = vunpack.c.h.b16 %v76
  %v266 = vunpack.c.l.b16 %v77
  %v267 = vunpack.c.h.b16 %v77
  %v268 = vunpack.c.l.b16 %v78
  %v269 = vunpack.c.h.b16 %v78
  %v270 = vunpack.c.l.b16 %v79
  %v271 = vunpack.c.h.b16 %v79
  %v272 = vpack.c.b16 %v152, %v144
  %v273 = vpack.c.b16 %v153, %v145
  %v274 = vpack.c.b16 %v154, %v146
  %v275 = vpack.c.b16 %v155, %v147
  %v276 = vpack.c.b16 %v156, %v148
  %v277 = vpack.c.b16 %v157, %v149
  %v278 = vpack.c.b16 %v158, %v150
  %v279 = vpack.c.b16 %v159, %v151
  %v280 = vpack.c.b16 %v168, %v160
  %v281 = vpack.c.b16 %v169, %v161
  %v282 = vpack.c.b16 %v170, %v162
  %v283 = vpack.c.b16 %v171, %v163
  %v284 = vpack.c.b16 %v172, %v164
  %v285 = vpack.c.b16 %v173, %v165
  %v286 = vpack.c.b16 %v174, %v166
  %v287 = vpack.c.b16 %v175, %v167
  %v288 = vpack.c.b16 %v184, %v176
  %v289 = vpack.c.b16 %v185, %v177
  %v290 = vpack.c.b16 %v186, %v178
  %v291 = vpack.c.b16 %v187, %v179
  %v292 = vpack.c.b16 %v188, %v180
  %v293 = vpack.c.b16 %v189, %v181
  %v294 = vpack.c.b16 %v190, %v182
  %v295 = vpack.c.b16 %v191, %v183
  %v296 = vpack.c.b16 %v200, %v192
  %v297 = vpack.c.b16 %v201, %v193
  %v298 = vpack.c.b16 %v202, %v194
  %v299 = vpack.c.b16 %v203, %v195
  %v300 = vpack.c.b16 %v204, %v196
  %v301 = vpack.c.b16 %v205, %v197
  %v302 = vpack.c.b16 %v206, %v198
  %v303 = vpack.c.b16 %v207, %v199
  %v304 = vpack.c.b16 %v216, %v208
  %v305 = vpack.c.b16 %v217, %v209
  %v306 = vpack.c.b16 %v218, %v210
  %v307 = vpack.c.b16 %v219, %v211
  %v308 = vpack.c.b16 %v220, %v212
  %v309 = vpack.c.b16 %v221, %v213
  %v310 = vpack.c.b16 %v222, %v214
  %v311 = vpack.c.b16 %v223, %v215
  %v312 = vpack.c.b16 %v232, %v224
  %v313 = vpack.c.b16 %v233, %v225
  %v314 = vpack.c.b16 %v234, %v226
  %v315 = vpack.c.b16 %v235, %v227
  %v316 = vpack.c.b16 %v236, %v228
  %v317 = vpack.c.b16 %v237, %v229
  %v318 = vpack.c.b16 %v238, %v230
  %v319 = vpack.c.b16 %v239, %v231
  %v320 = vpack.c.b16 %v248, %v240
  %v321 = vpack.c.b16 %v249, %v241
  %v322 = vpack.c.b16 %v250, %v242
  %v323 = vpack.c.b16 %v251, %v243
  %v324 = vpack.c.b16 %v252, %v244
  %v325 = vpack.c.b16 %v253, %v245
  %v326 = vpack.c.b16 %v254, %v246
  %v327 = vpack.c.b16 %v255, %v247
  %v328 = vpack.c.b16 %v264, %v256
  %v329 = vpack.c.b16 %v265, %v257
  %v330 = vpack.c.b16 %v266, %v258
  %v331 = vpack.c.b16 %v267, %v259
  %v332 = vpack.c.b16 %v268, %v260
  %v333 = vpack.c.b16 %v269, %v261
  %v334 = vpack.c.b16 %v270, %v262
  %v335 = vpack.c.b16 %v271, %v263
  %400 = vmatprep.subr.bf16.mxu0 %v329
  %401 = vmatpush1.bf16.msra.mxu0 %v328
  %402 = vmatprep.subr.bf16.mxu0 %v321
  %403 = vmatpush1.bf16.msra.mxu0 %v320
  %404 = vmatprep.subr.bf16.mxu0 %v313
  %405 = vmatpush1.bf16.msra.mxu0 %v312
  %406 = vmatprep.subr.bf16.mxu0 %v305
  %407 = vmatpush1.bf16.msra.mxu0 %v304
  %408 = vmatprep.subr.bf16.mxu0 %v297
  %409 = vmatpush1.bf16.msra.mxu0 %v296
  %410 = vmatprep.subr.bf16.mxu0 %v289
  %411 = vmatpush1.bf16.msra.mxu0 %v288
  %412 = vmatprep.subr.bf16.mxu0 %v281
  %413 = vmatpush1.bf16.msra.mxu0 %v280
  %414 = vmatprep.subr.bf16.mxu0 %v273
  %415 = vmatpush1.bf16.msra.mxu0 %v272
  %416 = vmatprep.subr.bf16.mxu0 0
  %417 = vmatpush2.bf16.msra.mxu0 0
  %418 = vmatprep.subr.bf16.mxu0 0
  %419 = vmatpush2.bf16.msra.mxu0 0
  %420 = vmatprep.subr.bf16.mxu0 0
  %421 = vmatpush2.bf16.msra.mxu0 0
  %422 = vmatprep.subr.bf16.mxu0 0
  %423 = vmatpush2.bf16.msra.mxu0 0
  %424 = vmatprep.subr.bf16.mxu0 0
  %425 = vmatpush2.bf16.msra.mxu0 0
  %426 = vmatprep.subr.bf16.mxu0 0
  %427 = vmatpush2.bf16.msra.mxu0 0
  %428 = vmatprep.subr.bf16.mxu0 0
  %429 = vmatpush2.bf16.msra.mxu0 0
  %430 = vmatprep.subr.bf16.mxu0 0
  %431 = vmatpush2.bf16.msra.mxu0 0
  %432 = vmatprep.mubr.bf16.mxu0 0
  %433 = vmatmul.mubr.bf16.gmra.mxu0 %v15
  %v434 = vpop.f32.mrf.mxu0
  %v435 = vadd.f32 0.0, %v434
  %v436 = vpop.f32.mrf.mxu0
  %v437 = vadd.f32 0.0, %v436
  %v438 = vpop.f32.mrf.mxu0
  %v439 = vpop.f32.mrf.mxu0
  %440 = vdwg.mxu0
  %441 = vmatprep.subr.bf16.mxu0 %v331
  %442 = vmatpush1.bf16.msra.mxu0 %v330
  %443 = vmatprep.subr.bf16.mxu0 %v323
  %444 = vmatpush1.bf16.msra.mxu0 %v322
  %445 = vmatprep.subr.bf16.mxu0 %v315
  %446 = vmatpush1.bf16.msra.mxu0 %v314
  %447 = vmatprep.subr.bf16.mxu0 %v307
  %448 = vmatpush1.bf16.msra.mxu0 %v306
  %449 = vmatprep.subr.bf16.mxu0 %v299
  %450 = vmatpush1.bf16.msra.mxu0 %v298
  %451 = vmatprep.subr.bf16.mxu0 %v291
  %452 = vmatpush1.bf16.msra.mxu0 %v290
  %453 = vmatprep.subr.bf16.mxu0 %v283
  %454 = vmatpush1.bf16.msra.mxu0 %v282
  %455 = vmatprep.subr.bf16.mxu0 %v275
  %456 = vmatpush1.bf16.msra.mxu0 %v274
  %457 = vmatprep.subr.bf16.mxu0 0
  %458 = vmatpush2.bf16.msra.mxu0 0
  %459 = vmatprep.subr.bf16.mxu0 0
  %460 = vmatpush2.bf16.msra.mxu0 0
  %461 = vmatprep.subr.bf16.mxu0 0
  %462 = vmatpush2.bf16.msra.mxu0 0
  %463 = vmatprep.subr.bf16.mxu0 0
  %464 = vmatpush2.bf16.msra.mxu0 0
  %465 = vmatprep.subr.bf16.mxu0 0
  %466 = vmatpush2.bf16.msra.mxu0 0
  %467 = vmatprep.subr.bf16.mxu0 0
  %468 = vmatpush2.bf16.msra.mxu0 0
  %469 = vmatprep.subr.bf16.mxu0 0
  %470 = vmatpush2.bf16.msra.mxu0 0
  %471 = vmatprep.subr.bf16.mxu0 0
  %472 = vmatpush2.bf16.msra.mxu0 0
  %473 = vmatprep.mubr.bf16.mxu0 0
  %474 = vmatmul.mubr.bf16.gmra.mxu0 %v15
  %v475 = vpop.f32.mrf.mxu0
  %v476 = vadd.f32 0.0, %v475
  %v477 = vpop.f32.mrf.mxu0
  %v478 = vadd.f32 0.0, %v477
  %v479 = vpop.f32.mrf.mxu0
  %v480 = vpop.f32.mrf.mxu0
  %481 = vdwg.mxu0
  %482 = vmatprep.subr.bf16.mxu0 %v333
  %483 = vmatpush1.bf16.msra.mxu0 %v332
  %484 = vmatprep.subr.bf16.mxu0 %v325
  %485 = vmatpush1.bf16.msra.mxu0 %v324
  %486 = vmatprep.subr.bf16.mxu0 %v317
  %487 = vmatpush1.bf16.msra.mxu0 %v316
  %488 = vmatprep.subr.bf16.mxu0 %v309
  %489 = vmatpush1.bf16.msra.mxu0 %v308
  %490 = vmatprep.subr.bf16.mxu0 %v301
  %491 = vmatpush1.bf16.msra.mxu0 %v300
  %492 = vmatprep.subr.bf16.mxu0 %v293
  %493 = vmatpush1.bf16.msra.mxu0 %v292
  %494 = vmatprep.subr.bf16.mxu0 %v285
  %495 = vmatpush1.bf16.msra.mxu0 %v284
  %496 = vmatprep.subr.bf16.mxu0 %v277
  %497 = vmatpush1.bf16.msra.mxu0 %v276
  %498 = vmatprep.subr.bf16.mxu0 0
  %499 = vmatpush2.bf16.msra.mxu0 0
  %500 = vmatprep.subr.bf16.mxu0 0
  %501 = vmatpush2.bf16.msra.mxu0 0
  %502 = vmatprep.subr.bf16.mxu0 0
  %503 = vmatpush2.bf16.msra.mxu0 0
  %504 = vmatprep.subr.bf16.mxu0 0
  %505 = vmatpush2.bf16.msra.mxu0 0
  %506 = vmatprep.subr.bf16.mxu0 0
  %507 = vmatpush2.bf16.msra.mxu0 0
  %508 = vmatprep.subr.bf16.mxu0 0
  %509 = vmatpush2.bf16.msra.mxu0 0
  %510 = vmatprep.subr.bf16.mxu0 0
  %511 = vmatpush2.bf16.msra.mxu0 0
  %512 = vmatprep.subr.bf16.mxu0 0
  %513 = vmatpush2.bf16.msra.mxu0 0
  %514 = vmatprep.mubr.bf16.mxu0 0
  %515 = vmatmul.mubr.bf16.gmra.mxu0 %v15
  %v516 = vpop.f32.mrf.mxu0
  %v517 = vadd.f32 0.0, %v516
  %v518 = vpop.f32.mrf.mxu0
  %v519 = vadd.f32 0.0, %v518
  %v520 = vpop.f32.mrf.mxu0
  %v521 = vpop.f32.mrf.mxu0
  %522 = vdwg.mxu0
  %523 = vmatprep.subr.bf16.mxu0 %v335
  %524 = vmatpush1.bf16.msra.mxu0 %v334
  %525 = vmatprep.subr.bf16.mxu0 %v327
  %526 = vmatpush1.bf16.msra.mxu0 %v326
  %527 = vmatprep.subr.bf16.mxu0 %v319
  %528 = vmatpush1.bf16.msra.mxu0 %v318
  %529 = vmatprep.subr.bf16.mxu0 %v311
  %530 = vmatpush1.bf16.msra.mxu0 %v310
  %531 = vmatprep.subr.bf16.mxu0 %v303
  %532 = vmatpush1.bf16.msra.mxu0 %v302
  %533 = vmatprep.subr.bf16.mxu0 %v295
  %534 = vmatpush1.bf16.msra.mxu0 %v294
  %535 = vmatprep.subr.bf16.mxu0 %v287
  %536 = vmatpush1.bf16.msra.mxu0 %v286
  %537 = vmatprep.subr.bf16.mxu0 %v279
  %538 = vmatpush1.bf16.msra.mxu0 %v278
  %539 = vmatprep.subr.bf16.mxu0 0
  %540 = vmatpush2.bf16.msra.mxu0 0
  %541 = vmatprep.subr.bf16.mxu0 0
  %542 = vmatpush2.bf16.msra.mxu0 0
  %543 = vmatprep.subr.bf16.mxu0 0
  %544 = vmatpush2.bf16.msra.mxu0 0
  %545 = vmatprep.subr.bf16.mxu0 0
  %546 = vmatpush2.bf16.msra.mxu0 0
  %547 = vmatprep.subr.bf16.mxu0 0
  %548 = vmatpush2.bf16.msra.mxu0 0
  %549 = vmatprep.subr.bf16.mxu0 0
  %550 = vmatpush2.bf16.msra.mxu0 0
  %551 = vmatprep.subr.bf16.mxu0 0
  %552 = vmatpush2.bf16.msra.mxu0 0
  %553 = vmatprep.subr.bf16.mxu0 0
  %554 = vmatpush2.bf16.msra.mxu0 0
  %555 = vmatprep.mubr.bf16.mxu0 0
  %556 = vmatmul.mubr.bf16.gmra.mxu0 %v15
  %v557 = vpop.f32.mrf.mxu0
  %v558 = vadd.f32 0.0, %v557
  %v559 = vpop.f32.mrf.mxu0
  %v560 = vadd.f32 0.0, %v559
  %v561 = vpop.f32.mrf.mxu0
  %v562 = vpop.f32.mrf.mxu0
  %563 = vdwg.mxu0
  %564 = vst [vmem:[%s2] sm:$0xff] %v435
  %565 = vst [vmem:[%s2 + $0x8] sm:$0xff] %v437
  %566 = vst [vmem:[%s2 + $0x10] sm:$0xff] %v476
  %567 = vst [vmem:[%s2 + $0x18] sm:$0xff] %v478
  %568 = vst [vmem:[%s2 + $0x20] sm:$0xff] %v517
  %569 = vst [vmem:[%s2 + $0x28] sm:$0xff] %v519
  %570 = vst [vmem:[%s2 + $0x30] sm:$0xff] %v558
  %571 = vst [vmem:[%s2 + $0x38] sm:$0xff] %v560
  %v572 = vrot.slane %v435, 4
  %v573 = vadd.f32 %v435, %v572
  %v574 = vrot.slane %v573, 2
  %v575 = vadd.f32 %v573, %v574
  %v576 = vrot.slane %v575, 1
  %v577 = vadd.f32 %v575, %v576
  %v578 = vrot.slane %v437, 4
  %v579 = vadd.f32 %v437, %v578
  %v580 = vrot.slane %v579, 2
  %v581 = vadd.f32 %v579, %v580
  %v582 = vrot.slane %v581, 1
  %v583 = vadd.f32 %v581, %v582
  %v584 = vrot.slane %v476, 4
  %v585 = vadd.f32 %v476, %v584
  %v586 = vrot.slane %v585, 2
  %v587 = vadd.f32 %v585, %v586
  %v588 = vrot.slane %v587, 1
  %v589 = vadd.f32 %v587, %v588
  %v590 = vrot.slane %v478, 4
  %v591 = vadd.f32 %v478, %v590
  %v592 = vrot.slane %v591, 2
  %v593 = vadd.f32 %v591, %v592
  %v594 = vrot.slane %v593, 1
  %v595 = vadd.f32 %v593, %v594
  %v596 = vrot.slane %v517, 4
  %v597 = vadd.f32 %v517, %v596
  %v598 = vrot.slane %v597, 2
  %v599 = vadd.f32 %v597, %v598
  %v600 = vrot.slane %v599, 1
  %v601 = vadd.f32 %v599, %v600
  %v602 = vrot.slane %v519, 4
  %v603 = vadd.f32 %v519, %v602
  %v604 = vrot.slane %v603, 2
  %v605 = vadd.f32 %v603, %v604
  %v606 = vrot.slane %v605, 1
  %v607 = vadd.f32 %v605, %v606
  %v608 = vrot.slane %v558, 4
  %v609 = vadd.f32 %v558, %v608
  %v610 = vrot.slane %v609, 2
  %v611 = vadd.f32 %v609, %v610
  %v612 = vrot.slane %v611, 1
  %v613 = vadd.f32 %v611, %v612
  %v614 = vrot.slane %v560, 4
  %v615 = vadd.f32 %v560, %v614
  %v616 = vrot.slane %v615, 2
  %v617 = vadd.f32 %v615, %v616
  %v618 = vrot.slane %v617, 1
  %v619 = vadd.f32 %v617, %v618
  %v628 = vcombine.low %v577, %v583
  %v629 = vcombine.low %v589, %v595
  %v630 = vcombine.low %v601, %v607
  %v631 = vcombine.low %v613, %v619
  %v633 = vunpack.c.l.s4 1966171168
  %v634 = vunpack.c.0.s8 %v633
  %v635 = vlaneseq
  %v636 = vshrl.u32 %v635, 7
  %v637 = vsub.s32 %v634, %v636
  %v638 = vrot.slane %v628, %v637
  %v640 = vunpack.c.l.s4 1966171168
  %v641 = vunpack.c.0.s8 %v640
  %v642 = vlaneseq
  %v643 = vshrl.u32 %v642, 7
  %v644 = vsub.s32 %v641, %v643
  %v645 = vrot.slane %v629, %v644
  %v647 = vunpack.c.l.s4 1966171168
  %v648 = vunpack.c.0.s8 %v647
  %v649 = vlaneseq
  %v650 = vshrl.u32 %v649, 7
  %v651 = vsub.s32 %v648, %v650
  %v652 = vrot.slane %v630, %v651
  %v654 = vunpack.c.l.s4 1966171168
  %v655 = vunpack.c.0.s8 %v654
  %v656 = vlaneseq
  %v657 = vshrl.u32 %v656, 7
  %v658 = vsub.s32 %v655, %v657
  %v659 = vrot.slane %v631, %v658
  %v660 = vcombine.low %v638, %v645
  %v661 = vcombine.low %v652, %v659
  %v663 = vunpack.c.l.s4 1966171168
  %v664 = vunpack.c.0.s8 %v663
  %v665 = vlaneseq
  %v666 = vshrl.u32 %v665, 7
  %v667 = vsub.s32 %v664, %v666
  %v668 = vrot.slane %v660, %v667
  %v670 = vunpack.c.l.s4 1966171168
  %v671 = vunpack.c.0.s8 %v670
  %v672 = vlaneseq
  %v673 = vshrl.u32 %v672, 7
  %v674 = vsub.s32 %v671, %v673
  %v675 = vrot.slane %v661, %v674
  %v676 = vcombine.low %v668, %v675
  %678 = vst [vmem:[%s3] sm:$0xff] %v676
  %v679 = vmul.f32 %v435, %v435
  %v680 = vmul.f32 %v437, %v437
  %v681 = vmul.f32 %v476, %v476
  %v682 = vmul.f32 %v478, %v478
  %v683 = vmul.f32 %v517, %v517
  %v684 = vmul.f32 %v519, %v519
  %v685 = vmul.f32 %v558, %v558
  %v686 = vmul.f32 %v560, %v560
  %v687 = vrot.slane %v679, 4
  %v688 = vadd.f32 %v679, %v687
  %v689 = vrot.slane %v688, 2
  %v690 = vadd.f32 %v688, %v689
  %v691 = vrot.slane %v690, 1
  %v692 = vadd.f32 %v690, %v691
  %v693 = vrot.slane %v680, 4
  %v694 = vadd.f32 %v680, %v693
  %v695 = vrot.slane %v694, 2
  %v696 = vadd.f32 %v694, %v695
  %v697 = vrot.slane %v696, 1
  %v698 = vadd.f32 %v696, %v697
  %v699 = vrot.slane %v681, 4
  %v700 = vadd.f32 %v681, %v699
  %v701 = vrot.slane %v700, 2
  %v702 = vadd.f32 %v700, %v701
  %v703 = vrot.slane %v702, 1
  %v704 = vadd.f32 %v702, %v703
  %v705 = vrot.slane %v682, 4
  %v706 = vadd.f32 %v682, %v705
  %v707 = vrot.slane %v706, 2
  %v708 = vadd.f32 %v706, %v707
  %v709 = vrot.slane %v708, 1
  %v710 = vadd.f32 %v708, %v709
  %v711 = vrot.slane %v683, 4
  %v712 = vadd.f32 %v683, %v711
  %v713 = vrot.slane %v712, 2
  %v714 = vadd.f32 %v712, %v713
  %v715 = vrot.slane %v714, 1
  %v716 = vadd.f32 %v714, %v715
  %v717 = vrot.slane %v684, 4
  %v718 = vadd.f32 %v684, %v717
  %v719 = vrot.slane %v718, 2
  %v720 = vadd.f32 %v718, %v719
  %v721 = vrot.slane %v720, 1
  %v722 = vadd.f32 %v720, %v721
  %v723 = vrot.slane %v685, 4
  %v724 = vadd.f32 %v685, %v723
  %v725 = vrot.slane %v724, 2
  %v726 = vadd.f32 %v724, %v725
  %v727 = vrot.slane %v726, 1
  %v728 = vadd.f32 %v726, %v727
  %v729 = vrot.slane %v686, 4
  %v730 = vadd.f32 %v686, %v729
  %v731 = vrot.slane %v730, 2
  %v732 = vadd.f32 %v730, %v731
  %v733 = vrot.slane %v732, 1
  %v734 = vadd.f32 %v732, %v733
  %v743 = vcombine.low %v692, %v698
  %v744 = vcombine.low %v704, %v710
  %v745 = vcombine.low %v716, %v722
  %v746 = vcombine.low %v728, %v734
  %v748 = vunpack.c.l.s4 1966171168
  %v749 = vunpack.c.0.s8 %v748
  %v750 = vlaneseq
  %v751 = vshrl.u32 %v750, 7
  %v752 = vsub.s32 %v749, %v751
  %v753 = vrot.slane %v743, %v752
  %v755 = vunpack.c.l.s4 1966171168
  %v756 = vunpack.c.0.s8 %v755
  %v757 = vlaneseq
  %v758 = vshrl.u32 %v757, 7
  %v759 = vsub.s32 %v756, %v758
  %v760 = vrot.slane %v744, %v759
  %v762 = vunpack.c.l.s4 1966171168
  %v763 = vunpack.c.0.s8 %v762
  %v764 = vlaneseq
  %v765 = vshrl.u32 %v764, 7
  %v766 = vsub.s32 %v763, %v765
  %v767 = vrot.slane %v745, %v766
  %v769 = vunpack.c.l.s4 1966171168
  %v770 = vunpack.c.0.s8 %v769
  %v771 = vlaneseq
  %v772 = vshrl.u32 %v771, 7
  %v773 = vsub.s32 %v770, %v772
  %v774 = vrot.slane %v746, %v773
  %v775 = vcombine.low %v753, %v760
  %v776 = vcombine.low %v767, %v774
  %v778 = vunpack.c.l.s4 1966171168
  %v779 = vunpack.c.0.s8 %v778
  %v780 = vlaneseq
  %v781 = vshrl.u32 %v780, 7
  %v782 = vsub.s32 %v779, %v781
  %v783 = vrot.slane %v775, %v782
  %v785 = vunpack.c.l.s4 1966171168
  %v786 = vunpack.c.0.s8 %v785
  %v787 = vlaneseq
  %v788 = vshrl.u32 %v787, 7
  %v789 = vsub.s32 %v786, %v788
  %v790 = vrot.slane %v776, %v789
  %v791 = vcombine.low %v783, %v790
  %793 = vst [vmem:[%s4] sm:$0xff] %v791
  // Predicated region
  $region10: #{decoder_forward.7} parent=0 // pred_check
    _
  $region11: #{decoder_forward.7} parent=0 // pred_check_branch
    %795 = sbr.rel (0) target = $region13
  $region12: #{decoder_forward.7} parent=0 // pred_region
    _
  $region13: #{decoder_forward.7} parent=0 // pred_fallthru
    _
  // Predicated region
  $region14: #{decoder_forward.7} parent=0 // pred_check
    _
  $region15: #{decoder_forward.7} parent=0 // pred_check_branch
    %797 = sbr.rel (0) target = $region17
  $region16: #{decoder_forward.7} parent=0 // pred_region
    _
  $region17: #{decoder_forward.7} parent=0 // pred_fallthru
    _
  // Predicated region
  $region18: #{decoder_forward.7} parent=0 // pred_check
    _
  $region19: #{decoder_forward.7} parent=0 // pred_check_branch
    %799 = sbr.rel (0) target = $region21
  $region20: #{decoder_forward.7} parent=0 // pred_region
    _
  $region21: #{decoder_forward.7} parent=0 // pred_fallthru
    _
  // Predicated region
  $region22: #{decoder_forward.7} parent=0 // pred_check
    _
  $region23: #{decoder_forward.7} parent=0 // pred_check_branch
    %801 = sbr.rel (0) target = $region25
  $region24: #{decoder_forward.7} parent=0 // pred_region
    _
  $region25: #{decoder_forward.7} parent=0 // pred_fallthru
    _
  // Predicated region
  $region26: #{decoder_forward.7} parent=0 // pred_check
    _
  $region27: #{decoder_forward.7} parent=0 // pred_check_branch
    %803 = sbr.rel (0) target = $region29
  $region28: #{decoder_forward.7} parent=0 // pred_region
    _
  $region29: #{decoder_forward.7} parent=0 // pred_fallthru
    _
  // Predicated region
  $region30: #{decoder_forward.7} parent=0 // pred_check
    _
  $region31: #{decoder_forward.7} parent=0 // pred_check_branch
    %805 = sbr.rel (0) target = $region33
  $region32: #{decoder_forward.7} parent=0 // pred_region
    _
  $region33: #{decoder_forward.7} parent=0 // pred_fallthru
    _

// kernel: decoder_forward.10
$region0: #{decoder_forward.10}
  #allocation0 [shape = 'u32[]', space=smem, size = 0x4, offset = 0x4, fixed_abs, tag = 'smem constant byte address 0x4 - core index']
  #allocation1 [shape = 'u32[144,128]{1,0:T(1,128)}', space=vmem, size = 0x12000, scoped, tag = 'internal scratch']
  %s0 = inlined_call_operand.vmem [shape: f32[72,128], index: 0, kind: input, shape index: {}]
  %s1 = inlined_call_operand.vmem [shape: f32[1,128], index: 1, kind: input, shape index: {}]
  %s2 = inlined_call_operand.vmem [shape: f32[1,128], index: 2, kind: input, shape index: {}]
  %s3 = inlined_call_operand.vmem [shape: bf16[72,128], index: 3, kind: output, shape index: {}]
  %s4 = sld [smem:[#allocation0]]
  $region22: #{decoder_forward.10} parent=0
    _
  %s6 = ssub.s32 1, %s4
  %s7 = scalar_select 0, %s6, %s4
  // Predicated region
  $region2: #{decoder_forward.10} parent=0 // pred_check
    _
  $region3: #{decoder_forward.10} parent=0 // pred_check_branch
    %9 = sbr.rel (0) target = $region5
  $region4: #{decoder_forward.10} parent=0 // pred_region
    _
  $region5: #{decoder_forward.10} parent=0 // pred_fallthru
    _
  // Predicated region
  $region6: #{decoder_forward.10} parent=0 // pred_check
    _
  $region7: #{decoder_forward.10} parent=0 // pred_check_branch
    %11 = sbr.rel (0) target = $region9
  $region8: #{decoder_forward.10} parent=0 // pred_region
    _
  $region9: #{decoder_forward.10} parent=0 // pred_fallthru
    _
  // Predicated region
  $region10: #{decoder_forward.10} parent=0 // pred_check
    _
  $region11: #{decoder_forward.10} parent=0 // pred_check_branch
    %13 = sbr.rel (0) target = $region13
  $region12: #{decoder_forward.10} parent=0 // pred_region
    _
  $region13: #{decoder_forward.10} parent=0 // pred_fallthru
    _
  %v14 = vld [vmem:[%s0] sm:$0xff]
  %v15 = vld [vmem:[%s0 + $0x8] sm:$0xff]
  %v16 = vld [vmem:[%s0 + $0x10] sm:$0xff]
  %v17 = vld [vmem:[%s0 + $0x18] sm:$0xff]
  %v18 = vld [vmem:[%s0 + $0x20] sm:$0xff]
  %v19 = vld [vmem:[%s0 + $0x28] sm:$0xff]
  %v20 = vld [vmem:[%s0 + $0x30] sm:$0xff]
  %v21 = vld [vmem:[%s0 + $0x38] sm:$0xff]
  %v22 = vld [vmem:[%s0 + $0x40] sm:$0xff]
  %v23 = vld [vmem:[%s1] sm:$0x1]
  %v25 = vlaneseq
  %v26 = vshrl.u32 %v25, 7
  %v27 = vsub.s32 0, %v26
  %v28 = vrot.slane %v23, %v27
  %v30 = vmul.f32 %v14, %v28
  %v31 = vmul.f32 %v15, %v28
  %v32 = vmul.f32 %v16, %v28
  %v33 = vmul.f32 %v17, %v28
  %v34 = vmul.f32 %v18, %v28
  %v35 = vmul.f32 %v19, %v28
  %v36 = vmul.f32 %v20, %v28
  %v37 = vmul.f32 %v21, %v28
  %v38 = vmul.f32 %v22, %v28
  %v39 = vld [vmem:[%s2] sm:$0x1]
  %v41 = vlaneseq
  %v42 = vshrl.u32 %v41, 7
  %v43 = vsub.s32 0, %v42
  %v44 = vrot.slane %v39, %v43
  %v46 = vadd.f32 %v30, %v44
  %v47 = vadd.f32 %v31, %v44
  %v48 = vadd.f32 %v32, %v44
  %v49 = vadd.f32 %v33, %v44
  %v50 = vadd.f32 %v34, %v44
  %v51 = vadd.f32 %v35, %v44
  %v52 = vadd.f32 %v36, %v44
  %v53 = vadd.f32 %v37, %v44
  %v54 = vadd.f32 %v38, %v44
  %v55 = vmax.f32 %v46, 0.0
  %v56 = vmax.f32 %v47, 0.0
  %v57 = vmax.f32 %v48, 0.0
  %v58 = vmax.f32 %v49, 0.0
  %v59 = vmax.f32 %v50, 0.0
  %v60 = vmax.f32 %v51, 0.0
  %v61 = vmax.f32 %v52, 0.0
  %v62 = vmax.f32 %v53, 0.0
  %v63 = vmax.f32 %v54, 0.0
  %v64 = vpack.c.bf16 %v56, %v55
  %v65 = vpack.c.bf16 %v58, %v57
  %v66 = vpack.c.bf16 %v60, %v59
  %v67 = vpack.c.bf16 %v62, %v61
  %v68 = vpack.c.bf16 %v63, %v63
  %v74 = vunpack.c.l.b16 %v64
  %v75 = vunpack.c.h.b16 %v64
  %v76 = vunpack.c.l.b16 %v65
  %v77 = vunpack.c.h.b16 %v65
  %v78 = vunpack.c.l.b16 %v66
  %v79 = vunpack.c.h.b16 %v66
  %v80 = vunpack.c.l.b16 %v67
  %v81 = vunpack.c.h.b16 %v67
  %v82 = vunpack.c.l.b16 %v68
  %v83 = vpack.c.b16 %v74, %v74
  %v84 = vpack.c.b16 %v75, %v75
  %v85 = vpack.c.b16 %v76, %v76
  %v86 = vpack.c.b16 %v77, %v77
  %v87 = vpack.c.b16 %v78, %v78
  %v88 = vpack.c.b16 %v79, %v79
  %v89 = vpack.c.b16 %v80, %v80
  %v90 = vpack.c.b16 %v81, %v81
  %v91 = vpack.c.b16 %v82, %v82
  %101 = vst [vmem:[%s3] sm:$0xf] %v83
  %102 = vst [vmem:[%s3 + $0x4] sm:$0xf] %v84
  %103 = vst [vmem:[%s3 + $0x8] sm:$0xf] %v85
  %104 = vst [vmem:[%s3 + $0xc] sm:$0xf] %v86
  %105 = vst [vmem:[%s3 + $0x10] sm:$0xf] %v87
  %106 = vst [vmem:[%s3 + $0x14] sm:$0xf] %v88
  %107 = vst [vmem:[%s3 + $0x18] sm:$0xf] %v89
  %108 = vst [vmem:[%s3 + $0x1c] sm:$0xf] %v90
  %109 = vst [vmem:[%s3 + $0x20] sm:$0xf] %v91
  // Predicated region
  $region14: #{decoder_forward.10} parent=0 // pred_check
    _
  $region15: #{decoder_forward.10} parent=0 // pred_check_branch
    %111 = sbr.rel (0) target = $region17
  $region16: #{decoder_forward.10} parent=0 // pred_region
    _
  $region17: #{decoder_forward.10} parent=0 // pred_fallthru
    _
  // Predicated region
  $region18: #{decoder_forward.10} parent=0 // pred_check
    _
  $region19: #{decoder_forward.10} parent=0 // pred_check_branch
    %113 = sbr.rel (0) target = $region21
  $region20: #{decoder_forward.10} parent=0 // pred_region
    _
  $region21: #{decoder_forward.10} parent=0 // pred_fallthru
    _

// kernel: decoder_forward.9
$region0: #{decoder_forward.9}
  #allocation0 [shape = 'u32[]', space=smem, size = 0x4, offset = 0x4, fixed_abs, tag = 'smem constant byte address 0x4 - core index']
  #allocation1 [shape = 'u32[144,128]{1,0:T(1,128)}', space=vmem, size = 0x12000, scoped, tag = 'internal scratch']
  %s0 = inlined_call_operand.vmem [shape: bf16[72,4096], index: 0, kind: input, shape index: {}]
  %s1 = inlined_call_operand.vmem [shape: bf16[4096,128], index: 1, kind: input, shape index: {}]
  %s2 = inlined_call_operand.vmem [shape: f32[72,128], index: 2, kind: output, shape index: {0}]
  %s3 = inlined_call_operand.vmem [shape: f32[1,1,128], index: 3, kind: output, shape index: {1}]
  %s4 = inlined_call_operand.vmem [shape: f32[1,1,128], index: 4, kind: output, shape index: {2}]
  %5 = xla_tuple %s2, %s3, %s4
  %s6 = sld [smem:[#allocation0]]
  $region34: #{decoder_forward.9} parent=0
    _
  %s8 = ssub.s32 1, %s6
  %s9 = scalar_select 0, %s8, %s6
  // Predicated region
  $region2: #{decoder_forward.9} parent=0 // pred_check
    _
  $region3: #{decoder_forward.9} parent=0 // pred_check_branch
    %11 = sbr.rel (0) target = $region5
  $region4: #{decoder_forward.9} parent=0 // pred_region
    _
  $region5: #{decoder_forward.9} parent=0 // pred_fallthru
    _
  // Predicated region
  $region6: #{decoder_forward.9} parent=0 // pred_check
    _
  $region7: #{decoder_forward.9} parent=0 // pred_check_branch
    %13 = sbr.rel (0) target = $region9
  $region8: #{decoder_forward.9} parent=0 // pred_region
    _
  $region9: #{decoder_forward.9} parent=0 // pred_fallthru
    _
  %v15 = vld [vmem:[%s0] sm:$0xff]
  %v16 = vld [vmem:[%s0 + $0x8] sm:$0xff]
  %v17 = vld [vmem:[%s0 + $0x10] sm:$0xff]
  %v18 = vld [vmem:[%s0 + $0x18] sm:$0xff]
  %v19 = vld [vmem:[%s0 + $0x20] sm:$0xff]
  %v20 = vld [vmem:[%s0 + $0x28] sm:$0xff]
  %v21 = vld [vmem:[%s0 + $0x30] sm:$0xff]
  %v22 = vld [vmem:[%s0 + $0x38] sm:$0xff]
  %v23 = vld [vmem:[%s0 + $0x40] sm:$0xff]
  %v24 = vld [vmem:[%s0 + $0x48] sm:$0xff]
  %v25 = vld [vmem:[%s0 + $0x50] sm:$0xff]
  %v26 = vld [vmem:[%s0 + $0x58] sm:$0xff]
  %v27 = vld [vmem:[%s0 + $0x60] sm:$0xff]
  %v28 = vld [vmem:[%s0 + $0x68] sm:$0xff]
  %v29 = vld [vmem:[%s0 + $0x70] sm:$0xff]
  %v30 = vld [vmem:[%s0 + $0x78] sm:$0xff]
  %v31 = vld [vmem:[%s0 + $0x80] sm:$0xff]
  %v32 = vld [vmem:[%s0 + $0x88] sm:$0xff]
  %v33 = vld [vmem:[%s0 + $0x90] sm:$0xff]
  %v34 = vld [vmem:[%s0 + $0x98] sm:$0xff]
  %v35 = vld [vmem:[%s0 + $0xa0] sm:$0xff]
  %v36 = vld [vmem:[%s0 + $0xa8] sm:$0xff]
  %v37 = vld [vmem:[%s0 + $0xb0] sm:$0xff]
  %v38 = vld [vmem:[%s0 + $0xb8] sm:$0xff]
  %v39 = vld [vmem:[%s0 + $0xc0] sm:$0xff]
  %v40 = vld [vmem:[%s0 + $0xc8] sm:$0xff]
  %v41 = vld [vmem:[%s0 + $0xd0] sm:$0xff]
  %v42 = vld [vmem:[%s0 + $0xd8] sm:$0xff]
  %v43 = vld [vmem:[%s0 + $0xe0] sm:$0xff]
  %v44 = vld [vmem:[%s0 + $0xe8] sm:$0xff]
  %v45 = vld [vmem:[%s0 + $0xf0] sm:$0xff]
  %v46 = vld [vmem:[%s0 + $0xf8] sm:$0xff]
  %v47 = vld [vmem:[%s0 + $0x100] sm:$0xff]
  %v48 = vld [vmem:[%s0 + $0x108] sm:$0xff]
  %v49 = vld [vmem:[%s0 + $0x110] sm:$0xff]
  %v50 = vld [vmem:[%s0 + $0x118] sm:$0xff]
  %v51 = vld [vmem:[%s0 + $0x120] sm:$0xff]
  %v52 = vld [vmem:[%s0 + $0x128] sm:$0xff]
  %v53 = vld [vmem:[%s0 + $0x130] sm:$0xff]
  %v54 = vld [vmem:[%s0 + $0x138] sm:$0xff]
  %v55 = vld [vmem:[%s0 + $0x140] sm:$0xff]
  %v56 = vld [vmem:[%s0 + $0x148] sm:$0xff]
  %v57 = vld [vmem:[%s0 + $0x150] sm:$0xff]
  %v58 = vld [vmem:[%s0 + $0x158] sm:$0xff]
  %v59 = vld [vmem:[%s0 + $0x160] sm:$0xff]
  %v60 = vld [vmem:[%s0 + $0x168] sm:$0xff]
  %v61 = vld [vmem:[%s0 + $0x170] sm:$0xff]
  %v62 = vld [vmem:[%s0 + $0x178] sm:$0xff]
  %v63 = vld [vmem:[%s0 + $0x180] sm:$0xff]
  %v64 = vld [vmem:[%s0 + $0x188] sm:$0xff]
  %v65 = vld [vmem:[%s0 + $0x190] sm:$0xff]
  %v66 = vld [vmem:[%s0 + $0x198] sm:$0xff]
  %v67 = vld [vmem:[%s0 + $0x1a0] sm:$0xff]
  %v68 = vld [vmem:[%s0 + $0x1a8] sm:$0xff]
  %v69 = vld [vmem:[%s0 + $0x1b0] sm:$0xff]
  %v70 = vld [vmem:[%s0 + $0x1b8] sm:$0xff]
  %v71 = vld [vmem:[%s0 + $0x1c0] sm:$0xff]
  %v72 = vld [vmem:[%s0 + $0x1c8] sm:$0xff]
  %v73 = vld [vmem:[%s0 + $0x1d0] sm:$0xff]
  %v74 = vld [vmem:[%s0 + $0x1d8] sm:$0xff]
  %v75 = vld [vmem:[%s0 + $0x1e0] sm:$0xff]
  %v76 = vld [vmem:[%s0 + $0x1e8] sm:$0xff]
  %v77 = vld [vmem:[%s0 + $0x1f0] sm:$0xff]
  %v78 = vld [vmem:[%s0 + $0x1f8] sm:$0xff]
  %v79 = vld [vmem:[%s0 + $0x200] sm:$0xff]
  %v80 = vld [vmem:[%s0 + $0x208] sm:$0xff]
  %v81 = vld [vmem:[%s0 + $0x210] sm:$0xff]
  %v82 = vld [vmem:[%s0 + $0x218] sm:$0xff]
  %v83 = vld [vmem:[%s0 + $0x220] sm:$0xff]
  %v84 = vld [vmem:[%s0 + $0x228] sm:$0xff]
  %v85 = vld [vmem:[%s0 + $0x230] sm:$0xff]
  %v86 = vld [vmem:[%s0 + $0x238] sm:$0xff]
  %v87 = vld [vmem:[%s0 + $0x240] sm:$0xff]
  %v88 = vld [vmem:[%s0 + $0x248] sm:$0xff]
  %v89 = vld [vmem:[%s0 + $0x250] sm:$0xff]
  %v90 = vld [vmem:[%s0 + $0x258] sm:$0xff]
  %v91 = vld [vmem:[%s0 + $0x260] sm:$0xff]
  %v92 = vld [vmem:[%s0 + $0x268] sm:$0xff]
  %v93 = vld [vmem:[%s0 + $0x270] sm:$0xff]
  %v94 = vld [vmem:[%s0 + $0x278] sm:$0xff]
  %v95 = vld [vmem:[%s0 + $0x280] sm:$0xff]
  %v96 = vld [vmem:[%s0 + $0x288] sm:$0xff]
  %v97 = vld [vmem:[%s0 + $0x290] sm:$0xff]
  %v98 = vld [vmem:[%s0 + $0x298] sm:$0xff]
  %v99 = vld [vmem:[%s0 + $0x2a0] sm:$0xff]
  %v100 = vld [vmem:[%s0 + $0x2a8] sm:$0xff]
  %v101 = vld [vmem:[%s0 + $0x2b0] sm:$0xff]
  %v102 = vld [vmem:[%s0 + $0x2b8] sm:$0xff]
  %v103 = vld [vmem:[%s0 + $0x2c0] sm:$0xff]
  %v104 = vld [vmem:[%s0 + $0x2c8] sm:$0xff]
  %v105 = vld [vmem:[%s0 + $0x2d0] sm:$0xff]
  %v106 = vld [vmem:[%s0 + $0x2d8] sm:$0xff]
  %v107 = vld [vmem:[%s0 + $0x2e0] sm:$0xff]
  %v108 = vld [vmem:[%s0 + $0x2e8] sm:$0xff]
  %v109 = vld [vmem:[%s0 + $0x2f0] sm:$0xff]
  %v110 = vld [vmem:[%s0 + $0x2f8] sm:$0xff]
  %v111 = vld [vmem:[%s0 + $0x300] sm:$0xff]
  %v112 = vld [vmem:[%s0 + $0x308] sm:$0xff]
  %v113 = vld [vmem:[%s0 + $0x310] sm:$0xff]
  %v114 = vld [vmem:[%s0 + $0x318] sm:$0xff]
  %v115 = vld [vmem:[%s0 + $0x320] sm:$0xff]
  %v116 = vld [vmem:[%s0 + $0x328] sm:$0xff]
  %v117 = vld [vmem:[%s0 + $0x330] sm:$0xff]
  %v118 = vld [vmem:[%s0 + $0x338] sm:$0xff]
  %v119 = vld [vmem:[%s0 + $0x340] sm:$0xff]
  %v120 = vld [vmem:[%s0 + $0x348] sm:$0xff]
  %v121 = vld [vmem:[%s0 + $0x350] sm:$0xff]
  %v122 = vld [vmem:[%s0 + $0x358] sm:$0xff]
  %v123 = vld [vmem:[%s0 + $0x360] sm:$0xff]
  %v124 = vld [vmem:[%s0 + $0x368] sm:$0xff]
  %v125 = vld [vmem:[%s0 + $0x370] sm:$0xff]
  %v126 = vld [vmem:[%s0 + $0x378] sm:$0xff]
  %v127 = vld [vmem:[%s0 + $0x380] sm:$0xff]
  %v128 = vld [vmem:[%s0 + $0x388] sm:$0xff]
  %v129 = vld [vmem:[%s0 + $0x390] sm:$0xff]
  %v130 = vld [vmem:[%s0 + $0x398] sm:$0xff]
  %v131 = vld [vmem:[%s0 + $0x3a0] sm:$0xff]
  %v132 = vld [vmem:[%s0 + $0x3a8] sm:$0xff]
  %v133 = vld [vmem:[%s0 + $0x3b0] sm:$0xff]
  %v134 = vld [vmem:[%s0 + $0x3b8] sm:$0xff]
  %v135 = vld [vmem:[%s0 + $0x3c0] sm:$0xff]
  %v136 = vld [vmem:[%s0 + $0x3c8] sm:$0xff]
  %v137 = vld [vmem:[%s0 + $0x3d0] sm:$0xff]
  %v138 = vld [vmem:[%s0 + $0x3d8] sm:$0xff]
  %v139 = vld [vmem:[%s0 + $0x3e0] sm:$0xff]
  %v140 = vld [vmem:[%s0 + $0x3e8] sm:$0xff]
  %v141 = vld [vmem:[%s0 + $0x3f0] sm:$0xff]
  %v142 = vld [vmem:[%s0 + $0x3f8] sm:$0xff]
  %v143 = vld [vmem:[%s0 + $0x400] sm:$0xff]
  %v144 = vld [vmem:[%s0 + $0x408] sm:$0xff]
  %v145 = vld [vmem:[%s0 + $0x410] sm:$0xff]
  %v146 = vld [vmem:[%s0 + $0x418] sm:$0xff]
  %v147 = vld [vmem:[%s0 + $0x420] sm:$0xff]
  %v148 = vld [vmem:[%s0 + $0x428] sm:$0xff]
  %v149 = vld [vmem:[%s0 + $0x430] sm:$0xff]
  %v150 = vld [vmem:[%s0 + $0x438] sm:$0xff]
  %v151 = vld [vmem:[%s0 + $0x440] sm:$0xff]
  %v152 = vld [vmem:[%s0 + $0x448] sm:$0xff]
  %v153 = vld [vmem:[%s0 + $0x450] sm:$0xff]
  %v154 = vld [vmem:[%s0 + $0x458] sm:$0xff]
  %v155 = vld [vmem:[%s0 + $0x460] sm:$0xff]
  %v156 = vld [vmem:[%s0 + $0x468] sm:$0xff]
  %v157 = vld [vmem:[%s0 + $0x470] sm:$0xff]
  %v158 = vld [vmem:[%s0 + $0x478] sm:$0xff]
  %v159 = vld [vmem:[%s1] sm:$0xf]
  %v160 = vld [vmem:[%s1 + $0x4] sm:$0xf]
  %v161 = vld [vmem:[%s1 + $0x8] sm:$0xf]
  %v162 = vld [vmem:[%s1 + $0xc] sm:$0xf]
  %v163 = vld [vmem:[%s1 + $0x10] sm:$0xf]
  %v164 = vld [vmem:[%s1 + $0x14] sm:$0xf]
  %v165 = vld [vmem:[%s1 + $0x18] sm:$0xf]
  %v166 = vld [vmem:[%s1 + $0x1c] sm:$0xf]
  %v167 = vld [vmem:[%s1 + $0x20] sm:$0xf]
  %v168 = vld [vmem:[%s1 + $0x24] sm:$0xf]
  %v169 = vld [vmem:[%s1 + $0x28] sm:$0xf]
  %v170 = vld [vmem:[%s1 + $0x2c] sm:$0xf]
  %v171 = vld [vmem:[%s1 + $0x30] sm:$0xf]
  %v172 = vld [vmem:[%s1 + $0x34] sm:$0xf]
  %v173 = vld [vmem:[%s1 + $0x38] sm:$0xf]
  %v174 = vld [vmem:[%s1 + $0x3c] sm:$0xf]
  %v175 = vld [vmem:[%s1 + $0x40] sm:$0xf]
  %v176 = vld [vmem:[%s1 + $0x44] sm:$0xf]
  %v177 = vld [vmem:[%s1 + $0x48] sm:$0xf]
  %v178 = vld [vmem:[%s1 + $0x4c] sm:$0xf]
  %v179 = vld [vmem:[%s1 + $0x50] sm:$0xf]
  %v180 = vld [vmem:[%s1 + $0x54] sm:$0xf]
  %v181 = vld [vmem:[%s1 + $0x58] sm:$0xf]
  %v182 = vld [vmem:[%s1 + $0x5c] sm:$0xf]
  %v183 = vld [vmem:[%s1 + $0x60] sm:$0xf]
  %v184 = vld [vmem:[%s1 + $0x64] sm:$0xf]
  %v185 = vld [vmem:[%s1 + $0x68] sm:$0xf]
  %v186 = vld [vmem:[%s1 + $0x6c] sm:$0xf]
  %v187 = vld [vmem:[%s1 + $0x70] sm:$0xf]
  %v188 = vld [vmem:[%s1 + $0x74] sm:$0xf]
  %v189 = vld [vmem:[%s1 + $0x78] sm:$0xf]
  %v190 = vld [vmem:[%s1 + $0x7c] sm:$0xf]
  %v191 = vld [vmem:[%s1 + $0x80] sm:$0xf]
  %v192 = vld [vmem:[%s1 + $0x84] sm:$0xf]
  %v193 = vld [vmem:[%s1 + $0x88] sm:$0xf]
  %v194 = vld [vmem:[%s1 + $0x8c] sm:$0xf]
  %v195 = vld [vmem:[%s1 + $0x90] sm:$0xf]
  %v196 = vld [vmem:[%s1 + $0x94] sm:$0xf]
  %v197 = vld [vmem:[%s1 + $0x98] sm:$0xf]
  %v198 = vld [vmem:[%s1 + $0x9c] sm:$0xf]
  %v199 = vld [vmem:[%s1 + $0xa0] sm:$0xf]
  %v200 = vld [vmem:[%s1 + $0xa4] sm:$0xf]
  %v201 = vld [vmem:[%s1 + $0xa8] sm:$0xf]
  %v202 = vld [vmem:[%s1 + $0xac] sm:$0xf]
  %v203 = vld [vmem:[%s1 + $0xb0] sm:$0xf]
  %v204 = vld [vmem:[%s1 + $0xb4] sm:$0xf]
  %v205 = vld [vmem:[%s1 + $0xb8] sm:$0xf]
  %v206 = vld [vmem:[%s1 + $0xbc] sm:$0xf]
  %v207 = vld [vmem:[%s1 + $0xc0] sm:$0xf]
  %v208 = vld [vmem:[%s1 + $0xc4] sm:$0xf]
  %v209 = vld [vmem:[%s1 + $0xc8] sm:$0xf]
  %v210 = vld [vmem:[%s1 + $0xcc] sm:$0xf]
  %v211 = vld [vmem:[%s1 + $0xd0] sm:$0xf]
  %v212 = vld [vmem:[%s1 + $0xd4] sm:$0xf]
  %v213 = vld [vmem:[%s1 + $0xd8] sm:$0xf]
  %v214 = vld [vmem:[%s1 + $0xdc] sm:$0xf]
  %v215 = vld [vmem:[%s1 + $0xe0] sm:$0xf]
  %v216 = vld [vmem:[%s1 + $0xe4] sm:$0xf]
  %v217 = vld [vmem:[%s1 + $0xe8] sm:$0xf]
  %v218 = vld [vmem:[%s1 + $0xec] sm:$0xf]
  %v219 = vld [vmem:[%s1 + $0xf0] sm:$0xf]
  %v220 = vld [vmem:[%s1 + $0xf4] sm:$0xf]
  %v221 = vld [vmem:[%s1 + $0xf8] sm:$0xf]
  %v222 = vld [vmem:[%s1 + $0xfc] sm:$0xf]
  %v223 = vld [vmem:[%s1 + $0x100] sm:$0xf]
  %v224 = vld [vmem:[%s1 + $0x104] sm:$0xf]
  %v225 = vld [vmem:[%s1 + $0x108] sm:$0xf]
  %v226 = vld [vmem:[%s1 + $0x10c] sm:$0xf]
  %v227 = vld [vmem:[%s1 + $0x110] sm:$0xf]
  %v228 = vld [vmem:[%s1 + $0x114] sm:$0xf]
  %v229 = vld [vmem:[%s1 + $0x118] sm:$0xf]
  %v230 = vld [vmem:[%s1 + $0x11c] sm:$0xf]
  %v231 = vld [vmem:[%s1 + $0x120] sm:$0xf]
  %v232 = vld [vmem:[%s1 + $0x124] sm:$0xf]
  %v233 = vld [vmem:[%s1 + $0x128] sm:$0xf]
  %v234 = vld [vmem:[%s1 + $0x12c] sm:$0xf]
  %v235 = vld [vmem:[%s1 + $0x130] sm:$0xf]
  %v236 = vld [vmem:[%s1 + $0x134] sm:$0xf]
  %v237 = vld [vmem:[%s1 + $0x138] sm:$0xf]
  %v238 = vld [vmem:[%s1 + $0x13c] sm:$0xf]
  %v239 = vld [vmem:[%s1 + $0x140] sm:$0xf]
  %v240 = vld [vmem:[%s1 + $0x144] sm:$0xf]
  %v241 = vld [vmem:[%s1 + $0x148] sm:$0xf]
  %v242 = vld [vmem:[%s1 + $0x14c] sm:$0xf]
  %v243 = vld [vmem:[%s1 + $0x150] sm:$0xf]
  %v244 = vld [vmem:[%s1 + $0x154] sm:$0xf]
  %v245 = vld [vmem:[%s1 + $0x158] sm:$0xf]
  %v246 = vld [vmem:[%s1 + $0x15c] sm:$0xf]
  %v247 = vld [vmem:[%s1 + $0x160] sm:$0xf]
  %v248 = vld [vmem:[%s1 + $0x164] sm:$0xf]
  %v249 = vld [vmem:[%s1 + $0x168] sm:$0xf]
  %v250 = vld [vmem:[%s1 + $0x16c] sm:$0xf]
  %v251 = vld [vmem:[%s1 + $0x170] sm:$0xf]
  %v252 = vld [vmem:[%s1 + $0x174] sm:$0xf]
  %v253 = vld [vmem:[%s1 + $0x178] sm:$0xf]
  %v254 = vld [vmem:[%s1 + $0x17c] sm:$0xf]
  %v255 = vld [vmem:[%s1 + $0x180] sm:$0xf]
  %v256 = vld [vmem:[%s1 + $0x184] sm:$0xf]
  %v257 = vld [vmem:[%s1 + $0x188] sm:$0xf]
  %v258 = vld [vmem:[%s1 + $0x18c] sm:$0xf]
  %v259 = vld [vmem:[%s1 + $0x190] sm:$0xf]
  %v260 = vld [vmem:[%s1 + $0x194] sm:$0xf]
  %v261 = vld [vmem:[%s1 + $0x198] sm:$0xf]
  %v262 = vld [vmem:[%s1 + $0x19c] sm:$0xf]
  %v263 = vld [vmem:[%s1 + $0x1a0] sm:$0xf]
  %v264 = vld [vmem:[%s1 + $0x1a4] sm:$0xf]
  %v265 = vld [vmem:[%s1 + $0x1a8] sm:$0xf]
  %v266 = vld [vmem:[%s1 + $0x1ac] sm:$0xf]
  %v267 = vld [vmem:[%s1 + $0x1b0] sm:$0xf]
  %v268 = vld [vmem:[%s1 + $0x1b4] sm:$0xf]
  %v269 = vld [vmem:[%s1 + $0x1b8] sm:$0xf]
  %v270 = vld [vmem:[%s1 + $0x1bc] sm:$0xf]
  %v271 = vld [vmem:[%s1 + $0x1c0] sm:$0xf]
  %v272 = vld [vmem:[%s1 + $0x1c4] sm:$0xf]
  %v273 = vld [vmem:[%s1 + $0x1c8] sm:$0xf]
  %v274 = vld [vmem:[%s1 + $0x1cc] sm:$0xf]
  %v275 = vld [vmem:[%s1 + $0x1d0] sm:$0xf]
  %v276 = vld [vmem:[%s1 + $0x1d4] sm:$0xf]
  %v277 = vld [vmem:[%s1 + $0x1d8] sm:$0xf]
  %v278 = vld [vmem:[%s1 + $0x1dc] sm:$0xf]
  %v279 = vld [vmem:[%s1 + $0x1e0] sm:$0xf]
  %v280 = vld [vmem:[%s1 + $0x1e4] sm:$0xf]
  %v281 = vld [vmem:[%s1 + $0x1e8] sm:$0xf]
  %v282 = vld [vmem:[%s1 + $0x1ec] sm:$0xf]
  %v283 = vld [vmem:[%s1 + $0x1f0] sm:$0xf]
  %v284 = vld [vmem:[%s1 + $0x1f4] sm:$0xf]
  %v285 = vld [vmem:[%s1 + $0x1f8] sm:$0xf]
  %v286 = vld [vmem:[%s1 + $0x1fc] sm:$0xf]
  %v287 = vld [vmem:[%s1 + $0x200] sm:$0xf]
  %v288 = vld [vmem:[%s1 + $0x204] sm:$0xf]
  %v289 = vld [vmem:[%s1 + $0x208] sm:$0xf]
  %v290 = vld [vmem:[%s1 + $0x20c] sm:$0xf]
  %v291 = vld [vmem:[%s1 + $0x210] sm:$0xf]
  %v292 = vld [vmem:[%s1 + $0x214] sm:$0xf]
  %v293 = vld [vmem:[%s1 + $0x218] sm:$0xf]
  %v294 = vld [vmem:[%s1 + $0x21c] sm:$0xf]
  %v295 = vld [vmem:[%s1 + $0x220] sm:$0xf]
  %v296 = vld [vmem:[%s1 + $0x224] sm:$0xf]
  %v297 = vld [vmem:[%s1 + $0x228] sm:$0xf]
  %v298 = vld [vmem:[%s1 + $0x22c] sm:$0xf]
  %v299 = vld [vmem:[%s1 + $0x230] sm:$0xf]
  %v300 = vld [vmem:[%s1 + $0x234] sm:$0xf]
  %v301 = vld [vmem:[%s1 + $0x238] sm:$0xf]
  %v302 = vld [vmem:[%s1 + $0x23c] sm:$0xf]
  %v303 = vld [vmem:[%s1 + $0x240] sm:$0xf]
  %v304 = vld [vmem:[%s1 + $0x244] sm:$0xf]
  %v305 = vld [vmem:[%s1 + $0x248] sm:$0xf]
  %v306 = vld [vmem:[%s1 + $0x24c] sm:$0xf]
  %v307 = vld [vmem:[%s1 + $0x250] sm:$0xf]
  %v308 = vld [vmem:[%s1 + $0x254] sm:$0xf]
  %v309 = vld [vmem:[%s1 + $0x258] sm:$0xf]
  %v310 = vld [vmem:[%s1 + $0x25c] sm:$0xf]
  %v311 = vld [vmem:[%s1 + $0x260] sm:$0xf]
  %v312 = vld [vmem:[%s1 + $0x264] sm:$0xf]
  %v313 = vld [vmem:[%s1 + $0x268] sm:$0xf]
  %v314 = vld [vmem:[%s1 + $0x26c] sm:$0xf]
  %v315 = vld [vmem:[%s1 + $0x270] sm:$0xf]
  %v316 = vld [vmem:[%s1 + $0x274] sm:$0xf]
  %v317 = vld [vmem:[%s1 + $0x278] sm:$0xf]
  %v318 = vld [vmem:[%s1 + $0x27c] sm:$0xf]
  %v319 = vld [vmem:[%s1 + $0x280] sm:$0xf]
  %v320 = vld [vmem:[%s1 + $0x284] sm:$0xf]
  %v321 = vld [vmem:[%s1 + $0x288] sm:$0xf]
  %v322 = vld [vmem:[%s1 + $0x28c] sm:$0xf]
  %v323 = vld [vmem:[%s1 + $0x290] sm:$0xf]
  %v324 = vld [vmem:[%s1 + $0x294] sm:$0xf]
  %v325 = vld [vmem:[%s1 + $0x298] sm:$0xf]
  %v326 = vld [vmem:[%s1 + $0x29c] sm:$0xf]
  %v327 = vld [vmem:[%s1 + $0x2a0] sm:$0xf]
  %v328 = vld [vmem:[%s1 + $0x2a4] sm:$0xf]
  %v329 = vld [vmem:[%s1 + $0x2a8] sm:$0xf]
  %v330 = vld [vmem:[%s1 + $0x2ac] sm:$0xf]
  %v331 = vld [vmem:[%s1 + $0x2b0] sm:$0xf]
  %v332 = vld [vmem:[%s1 + $0x2b4] sm:$0xf]
  %v333 = vld [vmem:[%s1 + $0x2b8] sm:$0xf]
  %v334 = vld [vmem:[%s1 + $0x2bc] sm:$0xf]
  %v335 = vld [vmem:[%s1 + $0x2c0] sm:$0xf]
  %v336 = vld [vmem:[%s1 + $0x2c4] sm:$0xf]
  %v337 = vld [vmem:[%s1 + $0x2c8] sm:$0xf]
  %v338 = vld [vmem:[%s1 + $0x2cc] sm:$0xf]
  %v339 = vld [vmem:[%s1 + $0x2d0] sm:$0xf]
  %v340 = vld [vmem:[%s1 + $0x2d4] sm:$0xf]
  %v341 = vld [vmem:[%s1 + $0x2d8] sm:$0xf]
  %v342 = vld [vmem:[%s1 + $0x2dc] sm:$0xf]
  %v343 = vld [vmem:[%s1 + $0x2e0] sm:$0xf]
  %v344 = vld [vmem:[%s1 + $0x2e4] sm:$0xf]
  %v345 = vld [vmem:[%s1 + $0x2e8] sm:$0xf]
  %v346 = vld [vmem:[%s1 + $0x2ec] sm:$0xf]
  %v347 = vld [vmem:[%s1 + $0x2f0] sm:$0xf]
  %v348 = vld [vmem:[%s1 + $0x2f4] sm:$0xf]
  %v349 = vld [vmem:[%s1 + $0x2f8] sm:$0xf]
  %v350 = vld [vmem:[%s1 + $0x2fc] sm:$0xf]
  %v351 = vld [vmem:[%s1 + $0x300] sm:$0xf]
  %v352 = vld [vmem:[%s1 + $0x304] sm:$0xf]
  %v353 = vld [vmem:[%s1 + $0x308] sm:$0xf]
  %v354 = vld [vmem:[%s1 + $0x30c] sm:$0xf]
  %v355 = vld [vmem:[%s1 + $0x310] sm:$0xf]
  %v356 = vld [vmem:[%s1 + $0x314] sm:$0xf]
  %v357 = vld [vmem:[%s1 + $0x318] sm:$0xf]
  %v358 = vld [vmem:[%s1 + $0x31c] sm:$0xf]
  %v359 = vld [vmem:[%s1 + $0x320] sm:$0xf]
  %v360 = vld [vmem:[%s1 + $0x324] sm:$0xf]
  %v361 = vld [vmem:[%s1 + $0x328] sm:$0xf]
  %v362 = vld [vmem:[%s1 + $0x32c] sm:$0xf]
  %v363 = vld [vmem:[%s1 + $0x330] sm:$0xf]
  %v364 = vld [vmem:[%s1 + $0x334] sm:$0xf]
  %v365 = vld [vmem:[%s1 + $0x338] sm:$0xf]
  %v366 = vld [vmem:[%s1 + $0x33c] sm:$0xf]
  %v367 = vld [vmem:[%s1 + $0x340] sm:$0xf]
  %v368 = vld [vmem:[%s1 + $0x344] sm:$0xf]
  %v369 = vld [vmem:[%s1 + $0x348] sm:$0xf]
  %v370 = vld [vmem:[%s1 + $0x34c] sm:$0xf]
  %v371 = vld [vmem:[%s1 + $0x350] sm:$0xf]
  %v372 = vld [vmem:[%s1 + $0x354] sm:$0xf]
  %v373 = vld [vmem:[%s1 + $0x358] sm:$0xf]
  %v374 = vld [vmem:[%s1 + $0x35c] sm:$0xf]
  %v375 = vld [vmem:[%s1 + $0x360] sm:$0xf]
  %v376 = vld [vmem:[%s1 + $0x364] sm:$0xf]
  %v377 = vld [vmem:[%s1 + $0x368] sm:$0xf]
  %v378 = vld [vmem:[%s1 + $0x36c] sm:$0xf]
  %v379 = vld [vmem:[%s1 + $0x370] sm:$0xf]
  %v380 = vld [vmem:[%s1 + $0x374] sm:$0xf]
  %v381 = vld [vmem:[%s1 + $0x378] sm:$0xf]
  %v382 = vld [vmem:[%s1 + $0x37c] sm:$0xf]
  %v383 = vld [vmem:[%s1 + $0x380] sm:$0xf]
  %v384 = vld [vmem:[%s1 + $0x384] sm:$0xf]
  %v385 = vld [vmem:[%s1 + $0x388] sm:$0xf]
  %v386 = vld [vmem:[%s1 + $0x38c] sm:$0xf]
  %v387 = vld [vmem:[%s1 + $0x390] sm:$0xf]
  %v388 = vld [vmem:[%s1 + $0x394] sm:$0xf]
  %v389 = vld [vmem:[%s1 + $0x398] sm:$0xf]
  %v390 = vld [vmem:[%s1 + $0x39c] sm:$0xf]
  %v391 = vld [vmem:[%s1 + $0x3a0] sm:$0xf]
  %v392 = vld [vmem:[%s1 + $0x3a4] sm:$0xf]
  %v393 = vld [vmem:[%s1 + $0x3a8] sm:$0xf]
  %v394 = vld [vmem:[%s1 + $0x3ac] sm:$0xf]
  %v395 = vld [vmem:[%s1 + $0x3b0] sm:$0xf]
  %v396 = vld [vmem:[%s1 + $0x3b4] sm:$0xf]
  %v397 = vld [vmem:[%s1 + $0x3b8] sm:$0xf]
  %v398 = vld [vmem:[%s1 + $0x3bc] sm:$0xf]
  %v399 = vld [vmem:[%s1 + $0x3c0] sm:$0xf]
  %v400 = vld [vmem:[%s1 + $0x3c4] sm:$0xf]
  %v401 = vld [vmem:[%s1 + $0x3c8] sm:$0xf]
  %v402 = vld [vmem:[%s1 + $0x3cc] sm:$0xf]
  %v403 = vld [vmem:[%s1 + $0x3d0] sm:$0xf]
  %v404 = vld [vmem:[%s1 + $0x3d4] sm:$0xf]
  %v405 = vld [vmem:[%s1 + $0x3d8] sm:$0xf]
  %v406 = vld [vmem:[%s1 + $0x3dc] sm:$0xf]
  %v407 = vld [vmem:[%s1 + $0x3e0] sm:$0xf]
  %v408 = vld [vmem:[%s1 + $0x3e4] sm:$0xf]
  %v409 = vld [vmem:[%s1 + $0x3e8] sm:$0xf]
  %v410 = vld [vmem:[%s1 + $0x3ec] sm:$0xf]
  %v411 = vld [vmem:[%s1 + $0x3f0] sm:$0xf]
  %v412 = vld [vmem:[%s1 + $0x3f4] sm:$0xf]
  %v413 = vld [vmem:[%s1 + $0x3f8] sm:$0xf]
  %v414 = vld [vmem:[%s1 + $0x3fc] sm:$0xf]
  %v415 = vld [vmem:[%s1 + $0x400] sm:$0xf]
  %v416 = vld [vmem:[%s1 + $0x404] sm:$0xf]
  %v417 = vld [vmem:[%s1 + $0x408] sm:$0xf]
  %v418 = vld [vmem:[%s1 + $0x40c] sm:$0xf]
  %v419 = vld [vmem:[%s1 + $0x410] sm:$0xf]
  %v420 = vld [vmem:[%s1 + $0x414] sm:$0xf]
  %v421 = vld [vmem:[%s1 + $0x418] sm:$0xf]
  %v422 = vld [vmem:[%s1 + $0x41c] sm:$0xf]
  %v423 = vld [vmem:[%s1 + $0x420] sm:$0xf]
  %v424 = vld [vmem:[%s1 + $0x424] sm:$0xf]
  %v425 = vld [vmem:[%s1 + $0x428] sm:$0xf]
  %v426 = vld [vmem:[%s1 + $0x42c] sm:$0xf]
  %v427 = vld [vmem:[%s1 + $0x430] sm:$0xf]
  %v428 = vld [vmem:[%s1 + $0x434] sm:$0xf]
  %v429 = vld [vmem:[%s1 + $0x438] sm:$0xf]
  %v430 = vld [vmem:[%s1 + $0x43c] sm:$0xf]
  %v431 = vld [vmem:[%s1 + $0x440] sm:$0xf]
  %v432 = vld [vmem:[%s1 + $0x444] sm:$0xf]
  %v433 = vld [vmem:[%s1 + $0x448] sm:$0xf]
  %v434 = vld [vmem:[%s1 + $0x44c] sm:$0xf]
  %v435 = vld [vmem:[%s1 + $0x450] sm:$0xf]
  %v436 = vld [vmem:[%s1 + $0x454] sm:$0xf]
  %v437 = vld [vmem:[%s1 + $0x458] sm:$0xf]
  %v438 = vld [vmem:[%s1 + $0x45c] sm:$0xf]
  %v439 = vld [vmem:[%s1 + $0x460] sm:$0xf]
  %v440 = vld [vmem:[%s1 + $0x464] sm:$0xf]
  %v441 = vld [vmem:[%s1 + $0x468] sm:$0xf]
  %v442 = vld [vmem:[%s1 + $0x46c] sm:$0xf]
  %v443 = vld [vmem:[%s1 + $0x470] sm:$0xf]
  %v444 = vld [vmem:[%s1 + $0x474] sm:$0xf]
  %v445 = vld [vmem:[%s1 + $0x478] sm:$0xf]
  %v446 = vld [vmem:[%s1 + $0x47c] sm:$0xf]
  %v447 = vld [vmem:[%s1 + $0x480] sm:$0xf]
  %v448 = vld [vmem:[%s1 + $0x484] sm:$0xf]
  %v449 = vld [vmem:[%s1 + $0x488] sm:$0xf]
  %v450 = vld [vmem:[%s1 + $0x48c] sm:$0xf]
  %v451 = vld [vmem:[%s1 + $0x490] sm:$0xf]
  %v452 = vld [vmem:[%s1 + $0x494] sm:$0xf]
  %v453 = vld [vmem:[%s1 + $0x498] sm:$0xf]
  %v454 = vld [vmem:[%s1 + $0x49c] sm:$0xf]
  %v455 = vld [vmem:[%s1 + $0x4a0] sm:$0xf]
  %v456 = vld [vmem:[%s1 + $0x4a4] sm:$0xf]
  %v457 = vld [vmem:[%s1 + $0x4a8] sm:$0xf]
  %v458 = vld [vmem:[%s1 + $0x4ac] sm:$0xf]
  %v459 = vld [vmem:[%s1 + $0x4b0] sm:$0xf]
  %v460 = vld [vmem:[%s1 + $0x4b4] sm:$0xf]
  %v461 = vld [vmem:[%s1 + $0x4b8] sm:$0xf]
  %v462 = vld [vmem:[%s1 + $0x4bc] sm:$0xf]
  %v463 = vld [vmem:[%s1 + $0x4c0] sm:$0xf]
  %v464 = vld [vmem:[%s1 + $0x4c4] sm:$0xf]
  %v465 = vld [vmem:[%s1 + $0x4c8] sm:$0xf]
  %v466 = vld [vmem:[%s1 + $0x4cc] sm:$0xf]
  %v467 = vld [vmem:[%s1 + $0x4d0] sm:$0xf]
  %v468 = vld [vmem:[%s1 + $0x4d4] sm:$0xf]
  %v469 = vld [vmem:[%s1 + $0x4d8] sm:$0xf]
  %v470 = vld [vmem:[%s1 + $0x4dc] sm:$0xf]
  %v471 = vld [vmem:[%s1 + $0x4e0] sm:$0xf]
  %v472 = vld [vmem:[%s1 + $0x4e4] sm:$0xf]
  %v473 = vld [vmem:[%s1 + $0x4e8] sm:$0xf]
  %v474 = vld [vmem:[%s1 + $0x4ec] sm:$0xf]
  %v475 = vld [vmem:[%s1 + $0x4f0] sm:$0xf]
  %v476 = vld [vmem:[%s1 + $0x4f4] sm:$0xf]
  %v477 = vld [vmem:[%s1 + $0x4f8] sm:$0xf]
  %v478 = vld [vmem:[%s1 + $0x4fc] sm:$0xf]
  %v479 = vld [vmem:[%s1 + $0x500] sm:$0xf]
  %v480 = vld [vmem:[%s1 + $0x504] sm:$0xf]
  %v481 = vld [vmem:[%s1 + $0x508] sm:$0xf]
  %v482 = vld [vmem:[%s1 + $0x50c] sm:$0xf]
  %v483 = vld [vmem:[%s1 + $0x510] sm:$0xf]
  %v484 = vld [vmem:[%s1 + $0x514] sm:$0xf]
  %v485 = vld [vmem:[%s1 + $0x518] sm:$0xf]
  %v486 = vld [vmem:[%s1 + $0x51c] sm:$0xf]
  %v487 = vld [vmem:[%s1 + $0x520] sm:$0xf]
  %v488 = vld [vmem:[%s1 + $0x524] sm:$0xf]
  %v489 = vld [vmem:[%s1 + $0x528] sm:$0xf]
  %v490 = vld [vmem:[%s1 + $0x52c] sm:$0xf]
  %v491 = vld [vmem:[%s1 + $0x530] sm:$0xf]
  %v492 = vld [vmem:[%s1 + $0x534] sm:$0xf]
  %v493 = vld [vmem:[%s1 + $0x538] sm:$0xf]
  %v494 = vld [vmem:[%s1 + $0x53c] sm:$0xf]
  %v495 = vld [vmem:[%s1 + $0x540] sm:$0xf]
  %v496 = vld [vmem:[%s1 + $0x544] sm:$0xf]
  %v497 = vld [vmem:[%s1 + $0x548] sm:$0xf]
  %v498 = vld [vmem:[%s1 + $0x54c] sm:$0xf]
  %v499 = vld [vmem:[%s1 + $0x550] sm:$0xf]
  %v500 = vld [vmem:[%s1 + $0x554] sm:$0xf]
  %v501 = vld [vmem:[%s1 + $0x558] sm:$0xf]
  %v502 = vld [vmem:[%s1 + $0x55c] sm:$0xf]
  %v503 = vld [vmem:[%s1 + $0x560] sm:$0xf]
  %v504 = vld [vmem:[%s1 + $0x564] sm:$0xf]
  %v505 = vld [vmem:[%s1 + $0x568] sm:$0xf]
  %v506 = vld [vmem:[%s1 + $0x56c] sm:$0xf]
  %v507 = vld [vmem:[%s1 + $0x570] sm:$0xf]
  %v508 = vld [vmem:[%s1 + $0x574] sm:$0xf]
  %v509 = vld [vmem:[%s1 + $0x578] sm:$0xf]
  %v510 = vld [vmem:[%s1 + $0x57c] sm:$0xf]
  %v511 = vld [vmem:[%s1 + $0x580] sm:$0xf]
  %v512 = vld [vmem:[%s1 + $0x584] sm:$0xf]
  %v513 = vld [vmem:[%s1 + $0x588] sm:$0xf]
  %v514 = vld [vmem:[%s1 + $0x58c] sm:$0xf]
  %v515 = vld [vmem:[%s1 + $0x590] sm:$0xf]
  %v516 = vld [vmem:[%s1 + $0x594] sm:$0xf]
  %v517 = vld [vmem:[%s1 + $0x598] sm:$0xf]
  %v518 = vld [vmem:[%s1 + $0x59c] sm:$0xf]
  %v519 = vld [vmem:[%s1 + $0x5a0] sm:$0xf]
  %v520 = vld [vmem:[%s1 + $0x5a4] sm:$0xf]
  %v521 = vld [vmem:[%s1 + $0x5a8] sm:$0xf]
  %v522 = vld [vmem:[%s1 + $0x5ac] sm:$0xf]
  %v523 = vld [vmem:[%s1 + $0x5b0] sm:$0xf]
  %v524 = vld [vmem:[%s1 + $0x5b4] sm:$0xf]
  %v525 = vld [vmem:[%s1 + $0x5b8] sm:$0xf]
  %v526 = vld [vmem:[%s1 + $0x5bc] sm:$0xf]
  %v527 = vld [vmem:[%s1 + $0x5c0] sm:$0xf]
  %v528 = vld [vmem:[%s1 + $0x5c4] sm:$0xf]
  %v529 = vld [vmem:[%s1 + $0x5c8] sm:$0xf]
  %v530 = vld [vmem:[%s1 + $0x5cc] sm:$0xf]
  %v531 = vld [vmem:[%s1 + $0x5d0] sm:$0xf]
  %v532 = vld [vmem:[%s1 + $0x5d4] sm:$0xf]
  %v533 = vld [vmem:[%s1 + $0x5d8] sm:$0xf]
  %v534 = vld [vmem:[%s1 + $0x5dc] sm:$0xf]
  %v535 = vld [vmem:[%s1 + $0x5e0] sm:$0xf]
  %v536 = vld [vmem:[%s1 + $0x5e4] sm:$0xf]
  %v537 = vld [vmem:[%s1 + $0x5e8] sm:$0xf]
  %v538 = vld [vmem:[%s1 + $0x5ec] sm:$0xf]
  %v539 = vld [vmem:[%s1 + $0x5f0] sm:$0xf]
  %v540 = vld [vmem:[%s1 + $0x5f4] sm:$0xf]
  %v541 = vld [vmem:[%s1 + $0x5f8] sm:$0xf]
  %v542 = vld [vmem:[%s1 + $0x5fc] sm:$0xf]
  %v543 = vld [vmem:[%s1 + $0x600] sm:$0xf]
  %v544 = vld [vmem:[%s1 + $0x604] sm:$0xf]
  %v545 = vld [vmem:[%s1 + $0x608] sm:$0xf]
  %v546 = vld [vmem:[%s1 + $0x60c] sm:$0xf]
  %v547 = vld [vmem:[%s1 + $0x610] sm:$0xf]
  %v548 = vld [vmem:[%s1 + $0x614] sm:$0xf]
  %v549 = vld [vmem:[%s1 + $0x618] sm:$0xf]
  %v550 = vld [vmem:[%s1 + $0x61c] sm:$0xf]
  %v551 = vld [vmem:[%s1 + $0x620] sm:$0xf]
  %v552 = vld [vmem:[%s1 + $0x624] sm:$0xf]
  %v553 = vld [vmem:[%s1 + $0x628] sm:$0xf]
  %v554 = vld [vmem:[%s1 + $0x62c] sm:$0xf]
  %v555 = vld [vmem:[%s1 + $0x630] sm:$0xf]
  %v556 = vld [vmem:[%s1 + $0x634] sm:$0xf]
  %v557 = vld [vmem:[%s1 + $0x638] sm:$0xf]
  %v558 = vld [vmem:[%s1 + $0x63c] sm:$0xf]
  %v559 = vld [vmem:[%s1 + $0x640] sm:$0xf]
  %v560 = vld [vmem:[%s1 + $0x644] sm:$0xf]
  %v561 = vld [vmem:[%s1 + $0x648] sm:$0xf]
  %v562 = vld [vmem:[%s1 + $0x64c] sm:$0xf]
  %v563 = vld [vmem:[%s1 + $0x650] sm:$0xf]
  %v564 = vld [vmem:[%s1 + $0x654] sm:$0xf]
  %v565 = vld [vmem:[%s1 + $0x658] sm:$0xf]
  %v566 = vld [vmem:[%s1 + $0x65c] sm:$0xf]
  %v567 = vld [vmem:[%s1 + $0x660] sm:$0xf]
  %v568 = vld [vmem:[%s1 + $0x664] sm:$0xf]
  %v569 = vld [vmem:[%s1 + $0x668] sm:$0xf]
  %v570 = vld [vmem:[%s1 + $0x66c] sm:$0xf]
  %v571 = vld [vmem:[%s1 + $0x670] sm:$0xf]
  %v572 = vld [vmem:[%s1 + $0x674] sm:$0xf]
  %v573 = vld [vmem:[%s1 + $0x678] sm:$0xf]
  %v574 = vld [vmem:[%s1 + $0x67c] sm:$0xf]
  %v575 = vld [vmem:[%s1 + $0x680] sm:$0xf]
  %v576 = vld [vmem:[%s1 + $0x684] sm:$0xf]
  %v577 = vld [vmem:[%s1 + $0x688] sm:$0xf]
  %v578 = vld [vmem:[%s1 + $0x68c] sm:$0xf]
  %v579 = vld [vmem:[%s1 + $0x690] sm:$0xf]
  %v580 = vld [vmem:[%s1 + $0x694] sm:$0xf]
  %v581 = vld [vmem:[%s1 + $0x698] sm:$0xf]
  %v582 = vld [vmem:[%s1 + $0x69c] sm:$0xf]
  %v583 = vld [vmem:[%s1 + $0x6a0] sm:$0xf]
  %v584 = vld [vmem:[%s1 + $0x6a4] sm:$0xf]
  %v585 = vld [vmem:[%s1 + $0x6a8] sm:$0xf]
  %v586 = vld [vmem:[%s1 + $0x6ac] sm:$0xf]
  %v587 = vld [vmem:[%s1 + $0x6b0] sm:$0xf]
  %v588 = vld [vmem:[%s1 + $0x6b4] sm:$0xf]
  %v589 = vld [vmem:[%s1 + $0x6b8] sm:$0xf]
  %v590 = vld [vmem:[%s1 + $0x6bc] sm:$0xf]
  %v591 = vld [vmem:[%s1 + $0x6c0] sm:$0xf]
  %v592 = vld [vmem:[%s1 + $0x6c4] sm:$0xf]
  %v593 = vld [vmem:[%s1 + $0x6c8] sm:$0xf]
  %v594 = vld [vmem:[%s1 + $0x6cc] sm:$0xf]
  %v595 = vld [vmem:[%s1 + $0x6d0] sm:$0xf]
  %v596 = vld [vmem:[%s1 + $0x6d4] sm:$0xf]
  %v597 = vld [vmem:[%s1 + $0x6d8] sm:$0xf]
  %v598 = vld [vmem:[%s1 + $0x6dc] sm:$0xf]
  %v599 = vld [vmem:[%s1 + $0x6e0] sm:$0xf]
  %v600 = vld [vmem:[%s1 + $0x6e4] sm:$0xf]
  %v601 = vld [vmem:[%s1 + $0x6e8] sm:$0xf]
  %v602 = vld [vmem:[%s1 + $0x6ec] sm:$0xf]
  %v603 = vld [vmem:[%s1 + $0x6f0] sm:$0xf]
  %v604 = vld [vmem:[%s1 + $0x6f4] sm:$0xf]
  %v605 = vld [vmem:[%s1 + $0x6f8] sm:$0xf]
  %v606 = vld [vmem:[%s1 + $0x6fc] sm:$0xf]
  %v607 = vld [vmem:[%s1 + $0x700] sm:$0xf]
  %v608 = vld [vmem:[%s1 + $0x704] sm:$0xf]
  %v609 = vld [vmem:[%s1 + $0x708] sm:$0xf]
  %v610 = vld [vmem:[%s1 + $0x70c] sm:$0xf]
  %v611 = vld [vmem:[%s1 + $0x710] sm:$0xf]
  %v612 = vld [vmem:[%s1 + $0x714] sm:$0xf]
  %v613 = vld [vmem:[%s1 + $0x718] sm:$0xf]
  %v614 = vld [vmem:[%s1 + $0x71c] sm:$0xf]
  %v615 = vld [vmem:[%s1 + $0x720] sm:$0xf]
  %v616 = vld [vmem:[%s1 + $0x724] sm:$0xf]
  %v617 = vld [vmem:[%s1 + $0x728] sm:$0xf]
  %v618 = vld [vmem:[%s1 + $0x72c] sm:$0xf]
  %v619 = vld [vmem:[%s1 + $0x730] sm:$0xf]
  %v620 = vld [vmem:[%s1 + $0x734] sm:$0xf]
  %v621 = vld [vmem:[%s1 + $0x738] sm:$0xf]
  %v622 = vld [vmem:[%s1 + $0x73c] sm:$0xf]
  %v623 = vld [vmem:[%s1 + $0x740] sm:$0xf]
  %v624 = vld [vmem:[%s1 + $0x744] sm:$0xf]
  %v625 = vld [vmem:[%s1 + $0x748] sm:$0xf]
  %v626 = vld [vmem:[%s1 + $0x74c] sm:$0xf]
  %v627 = vld [vmem:[%s1 + $0x750] sm:$0xf]
  %v628 = vld [vmem:[%s1 + $0x754] sm:$0xf]
  %v629 = vld [vmem:[%s1 + $0x758] sm:$0xf]
  %v630 = vld [vmem:[%s1 + $0x75c] sm:$0xf]
  %v631 = vld [vmem:[%s1 + $0x760] sm:$0xf]
  %v632 = vld [vmem:[%s1 + $0x764] sm:$0xf]
  %v633 = vld [vmem:[%s1 + $0x768] sm:$0xf]
  %v634 = vld [vmem:[%s1 + $0x76c] sm:$0xf]
  %v635 = vld [vmem:[%s1 + $0x770] sm:$0xf]
  %v636 = vld [vmem:[%s1 + $0x774] sm:$0xf]
  %v637 = vld [vmem:[%s1 + $0x778] sm:$0xf]
  %v638 = vld [vmem:[%s1 + $0x77c] sm:$0xf]
  %v639 = vld [vmem:[%s1 + $0x780] sm:$0xf]
  %v640 = vld [vmem:[%s1 + $0x784] sm:$0xf]
  %v641 = vld [vmem:[%s1 + $0x788] sm:$0xf]
  %v642 = vld [vmem:[%s1 + $0x78c] sm:$0xf]
  %v643 = vld [vmem:[%s1 + $0x790] sm:$0xf]
  %v644 = vld [vmem:[%s1 + $0x794] sm:$0xf]
  %v645 = vld [vmem:[%s1 + $0x798] sm:$0xf]
  %v646 = vld [vmem:[%s1 + $0x79c] sm:$0xf]
  %v647 = vld [vmem:[%s1 + $0x7a0] sm:$0xf]
  %v648 = vld [vmem:[%s1 + $0x7a4] sm:$0xf]
  %v649 = vld [vmem:[%s1 + $0x7a8] sm:$0xf]
  %v650 = vld [vmem:[%s1 + $0x7ac] sm:$0xf]
  %v651 = vld [vmem:[%s1 + $0x7b0] sm:$0xf]
  %v652 = vld [vmem:[%s1 + $0x7b4] sm:$0xf]
  %v653 = vld [vmem:[%s1 + $0x7b8] sm:$0xf]
  %v654 = vld [vmem:[%s1 + $0x7bc] sm:$0xf]
  %v655 = vld [vmem:[%s1 + $0x7c0] sm:$0xf]
  %v656 = vld [vmem:[%s1 + $0x7c4] sm:$0xf]
  %v657 = vld [vmem:[%s1 + $0x7c8] sm:$0xf]
  %v658 = vld [vmem:[%s1 + $0x7cc] sm:$0xf]
  %v659 = vld [vmem:[%s1 + $0x7d0] sm:$0xf]
  %v660 = vld [vmem:[%s1 + $0x7d4] sm:$0xf]
  %v661 = vld [vmem:[%s1 + $0x7d8] sm:$0xf]
  %v662 = vld [vmem:[%s1 + $0x7dc] sm:$0xf]
  %v663 = vld [vmem:[%s1 + $0x7e0] sm:$0xf]
  %v664 = vld [vmem:[%s1 + $0x7e4] sm:$0xf]
  %v665 = vld [vmem:[%s1 + $0x7e8] sm:$0xf]
  %v666 = vld [vmem:[%s1 + $0x7ec] sm:$0xf]
  %v667 = vld [vmem:[%s1 + $0x7f0] sm:$0xf]
  %v668 = vld [vmem:[%s1 + $0x7f4] sm:$0xf]
  %v669 = vld [vmem:[%s1 + $0x7f8] sm:$0xf]
  %v670 = vld [vmem:[%s1 + $0x7fc] sm:$0xf]
  %v815 = vunpack.c.l.b16 %v15
  %v816 = vunpack.c.h.b16 %v15
  %v817 = vunpack.c.l.b16 %v16
  %v818 = vunpack.c.h.b16 %v16
  %v819 = vunpack.c.l.b16 %v17
  %v820 = vunpack.c.h.b16 %v17
  %v821 = vunpack.c.l.b16 %v18
  %v822 = vunpack.c.h.b16 %v18
  %v823 = vunpack.c.l.b16 %v19
  %v824 = vunpack.c.h.b16 %v19
  %v825 = vunpack.c.l.b16 %v20
  %v826 = vunpack.c.h.b16 %v20
  %v827 = vunpack.c.l.b16 %v21
  %v828 = vunpack.c.h.b16 %v21
  %v829 = vunpack.c.l.b16 %v22
  %v830 = vunpack.c.h.b16 %v22
  %v831 = vunpack.c.l.b16 %v23
  %v832 = vunpack.c.h.b16 %v23
  %v833 = vunpack.c.l.b16 %v24
  %v834 = vunpack.c.h.b16 %v24
  %v835 = vunpack.c.l.b16 %v25
  %v836 = vunpack.c.h.b16 %v25
  %v837 = vunpack.c.l.b16 %v26
  %v838 = vunpack.c.h.b16 %v26
  %v839 = vunpack.c.l.b16 %v27
  %v840 = vunpack.c.h.b16 %v27
  %v841 = vunpack.c.l.b16 %v28
  %v842 = vunpack.c.h.b16 %v28
  %v843 = vunpack.c.l.b16 %v29
  %v844 = vunpack.c.h.b16 %v29
  %v845 = vunpack.c.l.b16 %v30
  %v846 = vunpack.c.h.b16 %v30
  %v847 = vunpack.c.l.b16 %v31
  %v848 = vunpack.c.h.b16 %v31
  %v849 = vunpack.c.l.b16 %v32
  %v850 = vunpack.c.h.b16 %v32
  %v851 = vunpack.c.l.b16 %v33
  %v852 = vunpack.c.h.b16 %v33
  %v853 = vunpack.c.l.b16 %v34
  %v854 = vunpack.c.h.b16 %v34
  %v855 = vunpack.c.l.b16 %v35
  %v856 = vunpack.c.h.b16 %v35
  %v857 = vunpack.c.l.b16 %v36
  %v858 = vunpack.c.h.b16 %v36
  %v859 = vunpack.c.l.b16 %v37
  %v860 = vunpack.c.h.b16 %v37
  %v861 = vunpack.c.l.b16 %v38
  %v862 = vunpack.c.h.b16 %v38
  %v863 = vunpack.c.l.b16 %v39
  %v864 = vunpack.c.h.b16 %v39
  %v865 = vunpack.c.l.b16 %v40
  %v866 = vunpack.c.h.b16 %v40
  %v867 = vunpack.c.l.b16 %v41
  %v868 = vunpack.c.h.b16 %v41
  %v869 = vunpack.c.l.b16 %v42
  %v870 = vunpack.c.h.b16 %v42
  %v871 = vunpack.c.l.b16 %v43
  %v872 = vunpack.c.h.b16 %v43
  %v873 = vunpack.c.l.b16 %v44
  %v874 = vunpack.c.h.b16 %v44
  %v875 = vunpack.c.l.b16 %v45
  %v876 = vunpack.c.h.b16 %v45
  %v877 = vunpack.c.l.b16 %v46
  %v878 = vunpack.c.h.b16 %v46
  %v879 = vunpack.c.l.b16 %v47
  %v880 = vunpack.c.h.b16 %v47
  %v881 = vunpack.c.l.b16 %v48
  %v882 = vunpack.c.h.b16 %v48
  %v883 = vunpack.c.l.b16 %v49
  %v884 = vunpack.c.h.b16 %v49
  %v885 = vunpack.c.l.b16 %v50
  %v886 = vunpack.c.h.b16 %v50
  %v887 = vunpack.c.l.b16 %v51
  %v888 = vunpack.c.h.b16 %v51
  %v889 = vunpack.c.l.b16 %v52
  %v890 = vunpack.c.h.b16 %v52
  %v891 = vunpack.c.l.b16 %v53
  %v892 = vunpack.c.h.b16 %v53
  %v893 = vunpack.c.l.b16 %v54
  %v894 = vunpack.c.h.b16 %v54
  %v895 = vunpack.c.l.b16 %v55
  %v896 = vunpack.c.h.b16 %v55
  %v897 = vunpack.c.l.b16 %v56
  %v898 = vunpack.c.h.b16 %v56
  %v899 = vunpack.c.l.b16 %v57
  %v900 = vunpack.c.h.b16 %v57
  %v901 = vunpack.c.l.b16 %v58
  %v902 = vunpack.c.h.b16 %v58
  %v903 = vunpack.c.l.b16 %v59
  %v904 = vunpack.c.h.b16 %v59
  %v905 = vunpack.c.l.b16 %v60
  %v906 = vunpack.c.h.b16 %v60
  %v907 = vunpack.c.l.b16 %v61
  %v908 = vunpack.c.h.b16 %v61
  %v909 = vunpack.c.l.b16 %v62
  %v910 = vunpack.c.h.b16 %v62
  %v911 = vunpack.c.l.b16 %v63
  %v912 = vunpack.c.h.b16 %v63
  %v913 = vunpack.c.l.b16 %v64
  %v914 = vunpack.c.h.b16 %v64
  %v915 = vunpack.c.l.b16 %v65
  %v916 = vunpack.c.h.b16 %v65
  %v917 = vunpack.c.l.b16 %v66
  %v918 = vunpack.c.h.b16 %v66
  %v919 = vunpack.c.l.b16 %v67
  %v920 = vunpack.c.h.b16 %v67
  %v921 = vunpack.c.l.b16 %v68
  %v922 = vunpack.c.h.b16 %v68
  %v923 = vunpack.c.l.b16 %v69
  %v924 = vunpack.c.h.b16 %v69
  %v925 = vunpack.c.l.b16 %v70
  %v926 = vunpack.c.h.b16 %v70
  %v927 = vunpack.c.l.b16 %v71
  %v928 = vunpack.c.h.b16 %v71
  %v929 = vunpack.c.l.b16 %v72
  %v930 = vunpack.c.h.b16 %v72
  %v931 = vunpack.c.l.b16 %v73
  %v932 = vunpack.c.h.b16 %v73
  %v933 = vunpack.c.l.b16 %v74
  %v934 = vunpack.c.h.b16 %v74
  %v935 = vunpack.c.l.b16 %v75
  %v936 = vunpack.c.h.b16 %v75
  %v937 = vunpack.c.l.b16 %v76
  %v938 = vunpack.c.h.b16 %v76
  %v939 = vunpack.c.l.b16 %v77
  %v940 = vunpack.c.h.b16 %v77
  %v941 = vunpack.c.l.b16 %v78
  %v942 = vunpack.c.h.b16 %v78
  %v943 = vunpack.c.l.b16 %v79
  %v944 = vunpack.c.h.b16 %v79
  %v945 = vunpack.c.l.b16 %v80
  %v946 = vunpack.c.h.b16 %v80
  %v947 = vunpack.c.l.b16 %v81
  %v948 = vunpack.c.h.b16 %v81
  %v949 = vunpack.c.l.b16 %v82
  %v950 = vunpack.c.h.b16 %v82
  %v951 = vunpack.c.l.b16 %v83
  %v952 = vunpack.c.h.b16 %v83
  %v953 = vunpack.c.l.b16 %v84
  %v954 = vunpack.c.h.b16 %v84
  %v955 = vunpack.c.l.b16 %v85
  %v956 = vunpack.c.h.b16 %v85
  %v957 = vunpack.c.l.b16 %v86
  %v958 = vunpack.c.h.b16 %v86
  %v959 = vunpack.c.l.b16 %v87
  %v960 = vunpack.c.h.b16 %v87
  %v961 = vunpack.c.l.b16 %v88
  %v962 = vunpack.c.h.b16 %v88
  %v963 = vunpack.c.l.b16 %v89
  %v964 = vunpack.c.h.b16 %v89
  %v965 = vunpack.c.l.b16 %v90
  %v966 = vunpack.c.h.b16 %v90
  %v967 = vunpack.c.l.b16 %v91
  %v968 = vunpack.c.h.b16 %v91
  %v969 = vunpack.c.l.b16 %v92
  %v970 = vunpack.c.h.b16 %v92
  %v971 = vunpack.c.l.b16 %v93
  %v972 = vunpack.c.h.b16 %v93
  %v973 = vunpack.c.l.b16 %v94
  %v974 = vunpack.c.h.b16 %v94
  %v975 = vunpack.c.l.b16 %v95
  %v976 = vunpack.c.h.b16 %v95
  %v977 = vunpack.c.l.b16 %v96
  %v978 = vunpack.c.h.b16 %v96
  %v979 = vunpack.c.l.b16 %v97
  %v980 = vunpack.c.h.b16 %v97
  %v981 = vunpack.c.l.b16 %v98
  %v982 = vunpack.c.h.b16 %v98
  %v983 = vunpack.c.l.b16 %v99
  %v984 = vunpack.c.h.b16 %v99
  %v985 = vunpack.c.l.b16 %v100
  %v986 = vunpack.c.h.b16 %v100
  %v987 = vunpack.c.l.b16 %v101
  %v988 = vunpack.c.h.b16 %v101
  %v989 = vunpack.c.l.b16 %v102
  %v990 = vunpack.c.h.b16 %v102
  %v991 = vunpack.c.l.b16 %v103
  %v992 = vunpack.c.h.b16 %v103
  %v993 = vunpack.c.l.b16 %v104
  %v994 = vunpack.c.h.b16 %v104
  %v995 = vunpack.c.l.b16 %v105
  %v996 = vunpack.c.h.b16 %v105
  %v997 = vunpack.c.l.b16 %v106
  %v998 = vunpack.c.h.b16 %v106
  %v999 = vunpack.c.l.b16 %v107
  %v1000 = vunpack.c.h.b16 %v107
  %v1001 = vunpack.c.l.b16 %v108
  %v1002 = vunpack.c.h.b16 %v108
  %v1003 = vunpack.c.l.b16 %v109
  %v1004 = vunpack.c.h.b16 %v109
  %v1005 = vunpack.c.l.b16 %v110
  %v1006 = vunpack.c.h.b16 %v110
  %v1007 = vunpack.c.l.b16 %v111
  %v1008 = vunpack.c.h.b16 %v111
  %v1009 = vunpack.c.l.b16 %v112
  %v1010 = vunpack.c.h.b16 %v112
  %v1011 = vunpack.c.l.b16 %v113
  %v1012 = vunpack.c.h.b16 %v113
  %v1013 = vunpack.c.l.b16 %v114
  %v1014 = vunpack.c.h.b16 %v114
  %v1015 = vunpack.c.l.b16 %v115
  %v1016 = vunpack.c.h.b16 %v115
  %v1017 = vunpack.c.l.b16 %v116
  %v1018 = vunpack.c.h.b16 %v116
  %v1019 = vunpack.c.l.b16 %v117
  %v1020 = vunpack.c.h.b16 %v117
  %v1021 = vunpack.c.l.b16 %v118
  %v1022 = vunpack.c.h.b16 %v118
  %v1023 = vunpack.c.l.b16 %v119
  %v1024 = vunpack.c.h.b16 %v119
  %v1025 = vunpack.c.l.b16 %v120
  %v1026 = vunpack.c.h.b16 %v120
  %v1027 = vunpack.c.l.b16 %v121
  %v1028 = vunpack.c.h.b16 %v121
  %v1029 = vunpack.c.l.b16 %v122
  %v1030 = vunpack.c.h.b16 %v122
  %v1031 = vunpack.c.l.b16 %v123
  %v1032 = vunpack.c.h.b16 %v123
  %v1033 = vunpack.c.l.b16 %v124
  %v1034 = vunpack.c.h.b16 %v124
  %v1035 = vunpack.c.l.b16 %v125
  %v1036 = vunpack.c.h.b16 %v125
  %v1037 = vunpack.c.l.b16 %v126
  %v1038 = vunpack.c.h.b16 %v126
  %v1039 = vunpack.c.l.b16 %v127
  %v1040 = vunpack.c.h.b16 %v127
  %v1041 = vunpack.c.l.b16 %v128
  %v1042 = vunpack.c.h.b16 %v128
  %v1043 = vunpack.c.l.b16 %v129
  %v1044 = vunpack.c.h.b16 %v129
  %v1045 = vunpack.c.l.b16 %v130
  %v1046 = vunpack.c.h.b16 %v130
  %v1047 = vunpack.c.l.b16 %v131
  %v1048 = vunpack.c.h.b16 %v131
  %v1049 = vunpack.c.l.b16 %v132
  %v1050 = vunpack.c.h.b16 %v132
  %v1051 = vunpack.c.l.b16 %v133
  %v1052 = vunpack.c.h.b16 %v133
  %v1053 = vunpack.c.l.b16 %v134
  %v1054 = vunpack.c.h.b16 %v134
  %v1055 = vunpack.c.l.b16 %v135
  %v1056 = vunpack.c.h.b16 %v135
  %v1057 = vunpack.c.l.b16 %v136
  %v1058 = vunpack.c.h.b16 %v136
  %v1059 = vunpack.c.l.b16 %v137
  %v1060 = vunpack.c.h.b16 %v137
  %v1061 = vunpack.c.l.b16 %v138
  %v1062 = vunpack.c.h.b16 %v138
  %v1063 = vunpack.c.l.b16 %v139
  %v1064 = vunpack.c.h.b16 %v139
  %v1065 = vunpack.c.l.b16 %v140
  %v1066 = vunpack.c.h.b16 %v140
  %v1067 = vunpack.c.l.b16 %v141
  %v1068 = vunpack.c.h.b16 %v141
  %v1069 = vunpack.c.l.b16 %v142
  %v1070 = vunpack.c.h.b16 %v142
  %v1071 = vunpack.c.l.b16 %v143
  %v1072 = vunpack.c.h.b16 %v143
  %v1073 = vunpack.c.l.b16 %v144
  %v1074 = vunpack.c.h.b16 %v144
  %v1075 = vunpack.c.l.b16 %v145
  %v1076 = vunpack.c.h.b16 %v145
  %v1077 = vunpack.c.l.b16 %v146
  %v1078 = vunpack.c.h.b16 %v146
  %v1079 = vunpack.c.l.b16 %v147
  %v1080 = vunpack.c.h.b16 %v147
  %v1081 = vunpack.c.l.b16 %v148
  %v1082 = vunpack.c.h.b16 %v148
  %v1083 = vunpack.c.l.b16 %v149
  %v1084 = vunpack.c.h.b16 %v149
  %v1085 = vunpack.c.l.b16 %v150
  %v1086 = vunpack.c.h.b16 %v150
  %v1087 = vunpack.c.l.b16 %v151
  %v1088 = vunpack.c.h.b16 %v151
  %v1089 = vunpack.c.l.b16 %v152
  %v1090 = vunpack.c.h.b16 %v152
  %v1091 = vunpack.c.l.b16 %v153
  %v1092 = vunpack.c.h.b16 %v153
  %v1093 = vunpack.c.l.b16 %v154
  %v1094 = vunpack.c.h.b16 %v154
  %v1095 = vunpack.c.l.b16 %v155
  %v1096 = vunpack.c.h.b16 %v155
  %v1097 = vunpack.c.l.b16 %v156
  %v1098 = vunpack.c.h.b16 %v156
  %v1099 = vunpack.c.l.b16 %v157
  %v1100 = vunpack.c.h.b16 %v157
  %v1101 = vunpack.c.l.b16 %v158
  %v1102 = vunpack.c.h.b16 %v158
  %v1103 = vpack.c.b16 %v847, %v815
  %v1104 = vpack.c.b16 %v848, %v816
  %v1105 = vpack.c.b16 %v849, %v817
  %v1106 = vpack.c.b16 %v850, %v818
  %v1107 = vpack.c.b16 %v851, %v819
  %v1108 = vpack.c.b16 %v852, %v820
  %v1109 = vpack.c.b16 %v853, %v821
  %v1110 = vpack.c.b16 %v854, %v822
  %v1111 = vpack.c.b16 %v855, %v823
  %v1112 = vpack.c.b16 %v856, %v824
  %v1113 = vpack.c.b16 %v857, %v825
  %v1114 = vpack.c.b16 %v858, %v826
  %v1115 = vpack.c.b16 %v859, %v827
  %v1116 = vpack.c.b16 %v860, %v828
  %v1117 = vpack.c.b16 %v861, %v829
  %v1118 = vpack.c.b16 %v862, %v830
  %v1119 = vpack.c.b16 %v863, %v831
  %v1120 = vpack.c.b16 %v864, %v832
  %v1121 = vpack.c.b16 %v865, %v833
  %v1122 = vpack.c.b16 %v866, %v834
  %v1123 = vpack.c.b16 %v867, %v835
  %v1124 = vpack.c.b16 %v868, %v836
  %v1125 = vpack.c.b16 %v869, %v837
  %v1126 = vpack.c.b16 %v870, %v838
  %v1127 = vpack.c.b16 %v871, %v839
  %v1128 = vpack.c.b16 %v872, %v840
  %v1129 = vpack.c.b16 %v873, %v841
  %v1130 = vpack.c.b16 %v874, %v842
  %v1131 = vpack.c.b16 %v875, %v843
  %v1132 = vpack.c.b16 %v876, %v844
  %v1133 = vpack.c.b16 %v877, %v845
  %v1134 = vpack.c.b16 %v878, %v846
  %v1135 = vpack.c.b16 %v911, %v879
  %v1136 = vpack.c.b16 %v912, %v880
  %v1137 = vpack.c.b16 %v913, %v881
  %v1138 = vpack.c.b16 %v914, %v882
  %v1139 = vpack.c.b16 %v915, %v883
  %v1140 = vpack.c.b16 %v916, %v884
  %v1141 = vpack.c.b16 %v917, %v885
  %v1142 = vpack.c.b16 %v918, %v886
  %v1143 = vpack.c.b16 %v919, %v887
  %v1144 = vpack.c.b16 %v920, %v888
  %v1145 = vpack.c.b16 %v921, %v889
  %v1146 = vpack.c.b16 %v922, %v890
  %v1147 = vpack.c.b16 %v923, %v891
  %v1148 = vpack.c.b16 %v924, %v892
  %v1149 = vpack.c.b16 %v925, %v893
  %v1150 = vpack.c.b16 %v926, %v894
  %v1151 = vpack.c.b16 %v927, %v895
  %v1152 = vpack.c.b16 %v928, %v896
  %v1153 = vpack.c.b16 %v929, %v897
  %v1154 = vpack.c.b16 %v930, %v898
  %v1155 = vpack.c.b16 %v931, %v899
  %v1156 = vpack.c.b16 %v932, %v900
  %v1157 = vpack.c.b16 %v933, %v901
  %v1158 = vpack.c.b16 %v934, %v902
  %v1159 = vpack.c.b16 %v935, %v903
  %v1160 = vpack.c.b16 %v936, %v904
  %v1161 = vpack.c.b16 %v937, %v905
  %v1162 = vpack.c.b16 %v938, %v906
  %v1163 = vpack.c.b16 %v939, %v907
  %v1164 = vpack.c.b16 %v940, %v908
  %v1165 = vpack.c.b16 %v941, %v909
  %v1166 = vpack.c.b16 %v942, %v910
  %v1167 = vpack.c.b16 %v975, %v943
  %v1168 = vpack.c.b16 %v976, %v944
  %v1169 = vpack.c.b16 %v977, %v945
  %v1170 = vpack.c.b16 %v978, %v946
  %v1171 = vpack.c.b16 %v979, %v947
  %v1172 = vpack.c.b16 %v980, %v948
  %v1173 = vpack.c.b16 %v981, %v949
  %v1174 = vpack.c.b16 %v982, %v950
  %v1175 = vpack.c.b16 %v983, %v951
  %v1176 = vpack.c.b16 %v984, %v952
  %v1177 = vpack.c.b16 %v985, %v953
  %v1178 = vpack.c.b16 %v986, %v954
  %v1179 = vpack.c.b16 %v987, %v955
  %v1180 = vpack.c.b16 %v988, %v956
  %v1181 = vpack.c.b16 %v989, %v957
  %v1182 = vpack.c.b16 %v990, %v958
  %v1183 = vpack.c.b16 %v991, %v959
  %v1184 = vpack.c.b16 %v992, %v960
  %v1185 = vpack.c.b16 %v993, %v961
  %v1186 = vpack.c.b16 %v994, %v962
  %v1187 = vpack.c.b16 %v995, %v963
  %v1188 = vpack.c.b16 %v996, %v964
  %v1189 = vpack.c.b16 %v997, %v965
  %v1190 = vpack.c.b16 %v998, %v966
  %v1191 = vpack.c.b16 %v999, %v967
  %v1192 = vpack.c.b16 %v1000, %v968
  %v1193 = vpack.c.b16 %v1001, %v969
  %v1194 = vpack.c.b16 %v1002, %v970
  %v1195 = vpack.c.b16 %v1003, %v971
  %v1196 = vpack.c.b16 %v1004, %v972
  %v1197 = vpack.c.b16 %v1005, %v973
  %v1198 = vpack.c.b16 %v1006, %v974
  %v1199 = vpack.c.b16 %v1039, %v1007
  %v1200 = vpack.c.b16 %v1040, %v1008
  %v1201 = vpack.c.b16 %v1041, %v1009
  %v1202 = vpack.c.b16 %v1042, %v1010
  %v1203 = vpack.c.b16 %v1043, %v1011
  %v1204 = vpack.c.b16 %v1044, %v1012
  %v1205 = vpack.c.b16 %v1045, %v1013
  %v1206 = vpack.c.b16 %v1046, %v1014
  %v1207 = vpack.c.b16 %v1047, %v1015
  %v1208 = vpack.c.b16 %v1048, %v1016
  %v1209 = vpack.c.b16 %v1049, %v1017
  %v1210 = vpack.c.b16 %v1050, %v1018
  %v1211 = vpack.c.b16 %v1051, %v1019
  %v1212 = vpack.c.b16 %v1052, %v1020
  %v1213 = vpack.c.b16 %v1053, %v1021
  %v1214 = vpack.c.b16 %v1054, %v1022
  %v1215 = vpack.c.b16 %v1055, %v1023
  %v1216 = vpack.c.b16 %v1056, %v1024
  %v1217 = vpack.c.b16 %v1057, %v1025
  %v1218 = vpack.c.b16 %v1058, %v1026
  %v1219 = vpack.c.b16 %v1059, %v1027
  %v1220 = vpack.c.b16 %v1060, %v1028
  %v1221 = vpack.c.b16 %v1061, %v1029
  %v1222 = vpack.c.b16 %v1062, %v1030
  %v1223 = vpack.c.b16 %v1063, %v1031
  %v1224 = vpack.c.b16 %v1064, %v1032
  %v1225 = vpack.c.b16 %v1065, %v1033
  %v1226 = vpack.c.b16 %v1066, %v1034
  %v1227 = vpack.c.b16 %v1067, %v1035
  %v1228 = vpack.c.b16 %v1068, %v1036
  %v1229 = vpack.c.b16 %v1069, %v1037
  %v1230 = vpack.c.b16 %v1070, %v1038
  %v1231 = vpack.c.b16 %v1071, %v1071
  %v1232 = vpack.c.b16 %v1072, %v1072
  %v1233 = vpack.c.b16 %v1073, %v1073
  %v1234 = vpack.c.b16 %v1074, %v1074
  %v1235 = vpack.c.b16 %v1075, %v1075
  %v1236 = vpack.c.b16 %v1076, %v1076
  %v1237 = vpack.c.b16 %v1077, %v1077
  %v1238 = vpack.c.b16 %v1078, %v1078
  %v1239 = vpack.c.b16 %v1079, %v1079
  %v1240 = vpack.c.b16 %v1080, %v1080
  %v1241 = vpack.c.b16 %v1081, %v1081
  %v1242 = vpack.c.b16 %v1082, %v1082
  %v1243 = vpack.c.b16 %v1083, %v1083
  %v1244 = vpack.c.b16 %v1084, %v1084
  %v1245 = vpack.c.b16 %v1085, %v1085
  %v1246 = vpack.c.b16 %v1086, %v1086
  %v1247 = vpack.c.b16 %v1087, %v1087
  %v1248 = vpack.c.b16 %v1088, %v1088
  %v1249 = vpack.c.b16 %v1089, %v1089
  %v1250 = vpack.c.b16 %v1090, %v1090
  %v1251 = vpack.c.b16 %v1091, %v1091
  %v1252 = vpack.c.b16 %v1092, %v1092
  %v1253 = vpack.c.b16 %v1093, %v1093
  %v1254 = vpack.c.b16 %v1094, %v1094
  %v1255 = vpack.c.b16 %v1095, %v1095
  %v1256 = vpack.c.b16 %v1096, %v1096
  %v1257 = vpack.c.b16 %v1097, %v1097
  %v1258 = vpack.c.b16 %v1098, %v1098
  %v1259 = vpack.c.b16 %v1099, %v1099
  %v1260 = vpack.c.b16 %v1100, %v1100
  %v1261 = vpack.c.b16 %v1101, %v1101
  %v1262 = vpack.c.b16 %v1102, %v1102
  %v1935 = vunpack.c.l.b16 %v159
  %v1936 = vunpack.c.l.b16 %v160
  %v1937 = vunpack.c.l.b16 %v161
  %v1938 = vunpack.c.l.b16 %v162
  %v1939 = vunpack.c.l.b16 %v163
  %v1940 = vunpack.c.l.b16 %v164
  %v1941 = vunpack.c.l.b16 %v165
  %v1942 = vunpack.c.l.b16 %v166
  %v1943 = vunpack.c.l.b16 %v167
  %v1944 = vunpack.c.l.b16 %v168
  %v1945 = vunpack.c.l.b16 %v169
  %v1946 = vunpack.c.l.b16 %v170
  %v1947 = vunpack.c.l.b16 %v171
  %v1948 = vunpack.c.l.b16 %v172
  %v1949 = vunpack.c.l.b16 %v173
  %v1950 = vunpack.c.l.b16 %v174
  %v1951 = vunpack.c.l.b16 %v175
  %v1952 = vunpack.c.l.b16 %v176
  %v1953 = vunpack.c.l.b16 %v177
  %v1954 = vunpack.c.l.b16 %v178
  %v1955 = vunpack.c.l.b16 %v179
  %v1956 = vunpack.c.l.b16 %v180
  %v1957 = vunpack.c.l.b16 %v181
  %v1958 = vunpack.c.l.b16 %v182
  %v1959 = vunpack.c.l.b16 %v183
  %v1960 = vunpack.c.l.b16 %v184
  %v1961 = vunpack.c.l.b16 %v185
  %v1962 = vunpack.c.l.b16 %v186
  %v1963 = vunpack.c.l.b16 %v187
  %v1964 = vunpack.c.l.b16 %v188
  %v1965 = vunpack.c.l.b16 %v189
  %v1966 = vunpack.c.l.b16 %v190
  %v1967 = vunpack.c.l.b16 %v191
  %v1968 = vunpack.c.l.b16 %v192
  %v1969 = vunpack.c.l.b16 %v193
  %v1970 = vunpack.c.l.b16 %v194
  %v1971 = vunpack.c.l.b16 %v195
  %v1972 = vunpack.c.l.b16 %v196
  %v1973 = vunpack.c.l.b16 %v197
  %v1974 = vunpack.c.l.b16 %v198
  %v1975 = vunpack.c.l.b16 %v199
  %v1976 = vunpack.c.l.b16 %v200
  %v1977 = vunpack.c.l.b16 %v201
  %v1978 = vunpack.c.l.b16 %v202
  %v1979 = vunpack.c.l.b16 %v203
  %v1980 = vunpack.c.l.b16 %v204
  %v1981 = vunpack.c.l.b16 %v205
  %v1982 = vunpack.c.l.b16 %v206
  %v1983 = vunpack.c.l.b16 %v207
  %v1984 = vunpack.c.l.b16 %v208
  %v1985 = vunpack.c.l.b16 %v209
  %v1986 = vunpack.c.l.b16 %v210
  %v1987 = vunpack.c.l.b16 %v211
  %v1988 = vunpack.c.l.b16 %v212
  %v1989 = vunpack.c.l.b16 %v213
  %v1990 = vunpack.c.l.b16 %v214
  %v1991 = vunpack.c.l.b16 %v215
  %v1992 = vunpack.c.l.b16 %v216
  %v1993 = vunpack.c.l.b16 %v217
  %v1994 = vunpack.c.l.b16 %v218
  %v1995 = vunpack.c.l.b16 %v219
  %v1996 = vunpack.c.l.b16 %v220
  %v1997 = vunpack.c.l.b16 %v221
  %v1998 = vunpack.c.l.b16 %v222
  %v1999 = vunpack.c.l.b16 %v223
  %v2000 = vunpack.c.l.b16 %v224
  %v2001 = vunpack.c.l.b16 %v225
  %v2002 = vunpack.c.l.b16 %v226
  %v2003 = vunpack.c.l.b16 %v227
  %v2004 = vunpack.c.l.b16 %v228
  %v2005 = vunpack.c.l.b16 %v229
  %v2006 = vunpack.c.l.b16 %v230
  %v2007 = vunpack.c.l.b16 %v231
  %v2008 = vunpack.c.l.b16 %v232
  %v2009 = vunpack.c.l.b16 %v233
  %v2010 = vunpack.c.l.b16 %v234
  %v2011 = vunpack.c.l.b16 %v235
  %v2012 = vunpack.c.l.b16 %v236
  %v2013 = vunpack.c.l.b16 %v237
  %v2014 = vunpack.c.l.b16 %v238
  %v2015 = vunpack.c.l.b16 %v239
  %v2016 = vunpack.c.l.b16 %v240
  %v2017 = vunpack.c.l.b16 %v241
  %v2018 = vunpack.c.l.b16 %v242
  %v2019 = vunpack.c.l.b16 %v243
  %v2020 = vunpack.c.l.b16 %v244
  %v2021 = vunpack.c.l.b16 %v245
  %v2022 = vunpack.c.l.b16 %v246
  %v2023 = vunpack.c.l.b16 %v247
  %v2024 = vunpack.c.l.b16 %v248
  %v2025 = vunpack.c.l.b16 %v249
  %v2026 = vunpack.c.l.b16 %v250
  %v2027 = vunpack.c.l.b16 %v251
  %v2028 = vunpack.c.l.b16 %v252
  %v2029 = vunpack.c.l.b16 %v253
  %v2030 = vunpack.c.l.b16 %v254
  %v2031 = vunpack.c.l.b16 %v255
  %v2032 = vunpack.c.l.b16 %v256
  %v2033 = vunpack.c.l.b16 %v257
  %v2034 = vunpack.c.l.b16 %v258
  %v2035 = vunpack.c.l.b16 %v259
  %v2036 = vunpack.c.l.b16 %v260
  %v2037 = vunpack.c.l.b16 %v261
  %v2038 = vunpack.c.l.b16 %v262
  %v2039 = vunpack.c.l.b16 %v263
  %v2040 = vunpack.c.l.b16 %v264
  %v2041 = vunpack.c.l.b16 %v265
  %v2042 = vunpack.c.l.b16 %v266
  %v2043 = vunpack.c.l.b16 %v267
  %v2044 = vunpack.c.l.b16 %v268
  %v2045 = vunpack.c.l.b16 %v269
  %v2046 = vunpack.c.l.b16 %v270
  %v2047 = vunpack.c.l.b16 %v271
  %v2048 = vunpack.c.l.b16 %v272
  %v2049 = vunpack.c.l.b16 %v273
  %v2050 = vunpack.c.l.b16 %v274
  %v2051 = vunpack.c.l.b16 %v275
  %v2052 = vunpack.c.l.b16 %v276
  %v2053 = vunpack.c.l.b16 %v277
  %v2054 = vunpack.c.l.b16 %v278
  %v2055 = vunpack.c.l.b16 %v279
  %v2056 = vunpack.c.l.b16 %v280
  %v2057 = vunpack.c.l.b16 %v281
  %v2058 = vunpack.c.l.b16 %v282
  %v2059 = vunpack.c.l.b16 %v283
  %v2060 = vunpack.c.l.b16 %v284
  %v2061 = vunpack.c.l.b16 %v285
  %v2062 = vunpack.c.l.b16 %v286
  %v2063 = vunpack.c.l.b16 %v287
  %v2064 = vunpack.c.l.b16 %v288
  %v2065 = vunpack.c.l.b16 %v289
  %v2066 = vunpack.c.l.b16 %v290
  %v2067 = vunpack.c.l.b16 %v291
  %v2068 = vunpack.c.l.b16 %v292
  %v2069 = vunpack.c.l.b16 %v293
  %v2070 = vunpack.c.l.b16 %v294
  %v2071 = vunpack.c.l.b16 %v295
  %v2072 = vunpack.c.l.b16 %v296
  %v2073 = vunpack.c.l.b16 %v297
  %v2074 = vunpack.c.l.b16 %v298
  %v2075 = vunpack.c.l.b16 %v299
  %v2076 = vunpack.c.l.b16 %v300
  %v2077 = vunpack.c.l.b16 %v301
  %v2078 = vunpack.c.l.b16 %v302
  %v2079 = vunpack.c.l.b16 %v303
  %v2080 = vunpack.c.l.b16 %v304
  %v2081 = vunpack.c.l.b16 %v305
  %v2082 = vunpack.c.l.b16 %v306
  %v2083 = vunpack.c.l.b16 %v307
  %v2084 = vunpack.c.l.b16 %v308
  %v2085 = vunpack.c.l.b16 %v309
  %v2086 = vunpack.c.l.b16 %v310
  %v2087 = vunpack.c.l.b16 %v311
  %v2088 = vunpack.c.l.b16 %v312
  %v2089 = vunpack.c.l.b16 %v313
  %v2090 = vunpack.c.l.b16 %v314
  %v2091 = vunpack.c.l.b16 %v315
  %v2092 = vunpack.c.l.b16 %v316
  %v2093 = vunpack.c.l.b16 %v317
  %v2094 = vunpack.c.l.b16 %v318
  %v2095 = vunpack.c.l.b16 %v319
  %v2096 = vunpack.c.l.b16 %v320
  %v2097 = vunpack.c.l.b16 %v321
  %v2098 = vunpack.c.l.b16 %v322
  %v2099 = vunpack.c.l.b16 %v323
  %v2100 = vunpack.c.l.b16 %v324
  %v2101 = vunpack.c.l.b16 %v325
  %v2102 = vunpack.c.l.b16 %v326
  %v2103 = vunpack.c.l.b16 %v327
  %v2104 = vunpack.c.l.b16 %v328
  %v2105 = vunpack.c.l.b16 %v329
  %v2106 = vunpack.c.l.b16 %v330
  %v2107 = vunpack.c.l.b16 %v331
  %v2108 = vunpack.c.l.b16 %v332
  %v2109 = vunpack.c.l.b16 %v333
  %v2110 = vunpack.c.l.b16 %v334
  %v2111 = vunpack.c.l.b16 %v335
  %v2112 = vunpack.c.l.b16 %v336
  %v2113 = vunpack.c.l.b16 %v337
  %v2114 = vunpack.c.l.b16 %v338
  %v2115 = vunpack.c.l.b16 %v339
  %v2116 = vunpack.c.l.b16 %v340
  %v2117 = vunpack.c.l.b16 %v341
  %v2118 = vunpack.c.l.b16 %v342
  %v2119 = vunpack.c.l.b16 %v343
  %v2120 = vunpack.c.l.b16 %v344
  %v2121 = vunpack.c.l.b16 %v345
  %v2122 = vunpack.c.l.b16 %v346
  %v2123 = vunpack.c.l.b16 %v347
  %v2124 = vunpack.c.l.b16 %v348
  %v2125 = vunpack.c.l.b16 %v349
  %v2126 = vunpack.c.l.b16 %v350
  %v2127 = vunpack.c.l.b16 %v351
  %v2128 = vunpack.c.l.b16 %v352
  %v2129 = vunpack.c.l.b16 %v353
  %v2130 = vunpack.c.l.b16 %v354
  %v2131 = vunpack.c.l.b16 %v355
  %v2132 = vunpack.c.l.b16 %v356
  %v2133 = vunpack.c.l.b16 %v357
  %v2134 = vunpack.c.l.b16 %v358
  %v2135 = vunpack.c.l.b16 %v359
  %v2136 = vunpack.c.l.b16 %v360
  %v2137 = vunpack.c.l.b16 %v361
  %v2138 = vunpack.c.l.b16 %v362
  %v2139 = vunpack.c.l.b16 %v363
  %v2140 = vunpack.c.l.b16 %v364
  %v2141 = vunpack.c.l.b16 %v365
  %v2142 = vunpack.c.l.b16 %v366
  %v2143 = vunpack.c.l.b16 %v367
  %v2144 = vunpack.c.l.b16 %v368
  %v2145 = vunpack.c.l.b16 %v369
  %v2146 = vunpack.c.l.b16 %v370
  %v2147 = vunpack.c.l.b16 %v371
  %v2148 = vunpack.c.l.b16 %v372
  %v2149 = vunpack.c.l.b16 %v373
  %v2150 = vunpack.c.l.b16 %v374
  %v2151 = vunpack.c.l.b16 %v375
  %v2152 = vunpack.c.l.b16 %v376
  %v2153 = vunpack.c.l.b16 %v377
  %v2154 = vunpack.c.l.b16 %v378
  %v2155 = vunpack.c.l.b16 %v379
  %v2156 = vunpack.c.l.b16 %v380
  %v2157 = vunpack.c.l.b16 %v381
  %v2158 = vunpack.c.l.b16 %v382
  %v2159 = vunpack.c.l.b16 %v383
  %v2160 = vunpack.c.l.b16 %v384
  %v2161 = vunpack.c.l.b16 %v385
  %v2162 = vunpack.c.l.b16 %v386
  %v2163 = vunpack.c.l.b16 %v387
  %v2164 = vunpack.c.l.b16 %v388
  %v2165 = vunpack.c.l.b16 %v389
  %v2166 = vunpack.c.l.b16 %v390
  %v2167 = vunpack.c.l.b16 %v391
  %v2168 = vunpack.c.l.b16 %v392
  %v2169 = vunpack.c.l.b16 %v393
  %v2170 = vunpack.c.l.b16 %v394
  %v2171 = vunpack.c.l.b16 %v395
  %v2172 = vunpack.c.l.b16 %v396
  %v2173 = vunpack.c.l.b16 %v397
  %v2174 = vunpack.c.l.b16 %v398
  %v2175 = vunpack.c.l.b16 %v399
  %v2176 = vunpack.c.l.b16 %v400
  %v2177 = vunpack.c.l.b16 %v401
  %v2178 = vunpack.c.l.b16 %v402
  %v2179 = vunpack.c.l.b16 %v403
  %v2180 = vunpack.c.l.b16 %v404
  %v2181 = vunpack.c.l.b16 %v405
  %v2182 = vunpack.c.l.b16 %v406
  %v2183 = vunpack.c.l.b16 %v407
  %v2184 = vunpack.c.l.b16 %v408
  %v2185 = vunpack.c.l.b16 %v409
  %v2186 = vunpack.c.l.b16 %v410
  %v2187 = vunpack.c.l.b16 %v411
  %v2188 = vunpack.c.l.b16 %v412
  %v2189 = vunpack.c.l.b16 %v413
  %v2190 = vunpack.c.l.b16 %v414
  %v2191 = vunpack.c.l.b16 %v415
  %v2192 = vunpack.c.l.b16 %v416
  %v2193 = vunpack.c.l.b16 %v417
  %v2194 = vunpack.c.l.b16 %v418
  %v2195 = vunpack.c.l.b16 %v419
  %v2196 = vunpack.c.l.b16 %v420
  %v2197 = vunpack.c.l.b16 %v421
  %v2198 = vunpack.c.l.b16 %v422
  %v2199 = vunpack.c.l.b16 %v423
  %v2200 = vunpack.c.l.b16 %v424
  %v2201 = vunpack.c.l.b16 %v425
  %v2202 = vunpack.c.l.b16 %v426
  %v2203 = vunpack.c.l.b16 %v427
  %v2204 = vunpack.c.l.b16 %v428
  %v2205 = vunpack.c.l.b16 %v429
  %v2206 = vunpack.c.l.b16 %v430
  %v2207 = vunpack.c.l.b16 %v431
  %v2208 = vunpack.c.l.b16 %v432
  %v2209 = vunpack.c.l.b16 %v433
  %v2210 = vunpack.c.l.b16 %v434
  %v2211 = vunpack.c.l.b16 %v435
  %v2212 = vunpack.c.l.b16 %v436
  %v2213 = vunpack.c.l.b16 %v437
  %v2214 = vunpack.c.l.b16 %v438
  %v2215 = vunpack.c.l.b16 %v439
  %v2216 = vunpack.c.l.b16 %v440
  %v2217 = vunpack.c.l.b16 %v441
  %v2218 = vunpack.c.l.b16 %v442
  %v2219 = vunpack.c.l.b16 %v443
  %v2220 = vunpack.c.l.b16 %v444
  %v2221 = vunpack.c.l.b16 %v445
  %v2222 = vunpack.c.l.b16 %v446
  %v2223 = vunpack.c.l.b16 %v447
  %v2224 = vunpack.c.l.b16 %v448
  %v2225 = vunpack.c.l.b16 %v449
  %v2226 = vunpack.c.l.b16 %v450
  %v2227 = vunpack.c.l.b16 %v451
  %v2228 = vunpack.c.l.b16 %v452
  %v2229 = vunpack.c.l.b16 %v453
  %v2230 = vunpack.c.l.b16 %v454
  %v2231 = vunpack.c.l.b16 %v455
  %v2232 = vunpack.c.l.b16 %v456
  %v2233 = vunpack.c.l.b16 %v457
  %v2234 = vunpack.c.l.b16 %v458
  %v2235 = vunpack.c.l.b16 %v459
  %v2236 = vunpack.c.l.b16 %v460
  %v2237 = vunpack.c.l.b16 %v461
  %v2238 = vunpack.c.l.b16 %v462
  %v2239 = vunpack.c.l.b16 %v463
  %v2240 = vunpack.c.l.b16 %v464
  %v2241 = vunpack.c.l.b16 %v465
  %v2242 = vunpack.c.l.b16 %v466
  %v2243 = vunpack.c.l.b16 %v467
  %v2244 = vunpack.c.l.b16 %v468
  %v2245 = vunpack.c.l.b16 %v469
  %v2246 = vunpack.c.l.b16 %v470
  %v2247 = vunpack.c.l.b16 %v471
  %v2248 = vunpack.c.l.b16 %v472
  %v2249 = vunpack.c.l.b16 %v473
  %v2250 = vunpack.c.l.b16 %v474
  %v2251 = vunpack.c.l.b16 %v475
  %v2252 = vunpack.c.l.b16 %v476
  %v2253 = vunpack.c.l.b16 %v477
  %v2254 = vunpack.c.l.b16 %v478
  %v2255 = vunpack.c.l.b16 %v479
  %v2256 = vunpack.c.l.b16 %v480
  %v2257 = vunpack.c.l.b16 %v481
  %v2258 = vunpack.c.l.b16 %v482
  %v2259 = vunpack.c.l.b16 %v483
  %v2260 = vunpack.c.l.b16 %v484
  %v2261 = vunpack.c.l.b16 %v485
  %v2262 = vunpack.c.l.b16 %v486
  %v2263 = vunpack.c.l.b16 %v487
  %v2264 = vunpack.c.l.b16 %v488
  %v2265 = vunpack.c.l.b16 %v489
  %v2266 = vunpack.c.l.b16 %v490
  %v2267 = vunpack.c.l.b16 %v491
  %v2268 = vunpack.c.l.b16 %v492
  %v2269 = vunpack.c.l.b16 %v493
  %v2270 = vunpack.c.l.b16 %v494
  %v2271 = vunpack.c.l.b16 %v495
  %v2272 = vunpack.c.l.b16 %v496
  %v2273 = vunpack.c.l.b16 %v497
  %v2274 = vunpack.c.l.b16 %v498
  %v2275 = vunpack.c.l.b16 %v499
  %v2276 = vunpack.c.l.b16 %v500
  %v2277 = vunpack.c.l.b16 %v501
  %v2278 = vunpack.c.l.b16 %v502
  %v2279 = vunpack.c.l.b16 %v503
  %v2280 = vunpack.c.l.b16 %v504
  %v2281 = vunpack.c.l.b16 %v505
  %v2282 = vunpack.c.l.b16 %v506
  %v2283 = vunpack.c.l.b16 %v507
  %v2284 = vunpack.c.l.b16 %v508
  %v2285 = vunpack.c.l.b16 %v509
  %v2286 = vunpack.c.l.b16 %v510
  %v2287 = vunpack.c.l.b16 %v511
  %v2288 = vunpack.c.l.b16 %v512
  %v2289 = vunpack.c.l.b16 %v513
  %v2290 = vunpack.c.l.b16 %v514
  %v2291 = vunpack.c.l.b16 %v515
  %v2292 = vunpack.c.l.b16 %v516
  %v2293 = vunpack.c.l.b16 %v517
  %v2294 = vunpack.c.l.b16 %v518
  %v2295 = vunpack.c.l.b16 %v519
  %v2296 = vunpack.c.l.b16 %v520
  %v2297 = vunpack.c.l.b16 %v521
  %v2298 = vunpack.c.l.b16 %v522
  %v2299 = vunpack.c.l.b16 %v523
  %v2300 = vunpack.c.l.b16 %v524
  %v2301 = vunpack.c.l.b16 %v525
  %v2302 = vunpack.c.l.b16 %v526
  %v2303 = vunpack.c.l.b16 %v527
  %v2304 = vunpack.c.l.b16 %v528
  %v2305 = vunpack.c.l.b16 %v529
  %v2306 = vunpack.c.l.b16 %v530
  %v2307 = vunpack.c.l.b16 %v531
  %v2308 = vunpack.c.l.b16 %v532
  %v2309 = vunpack.c.l.b16 %v533
  %v2310 = vunpack.c.l.b16 %v534
  %v2311 = vunpack.c.l.b16 %v535
  %v2312 = vunpack.c.l.b16 %v536
  %v2313 = vunpack.c.l.b16 %v537
  %v2314 = vunpack.c.l.b16 %v538
  %v2315 = vunpack.c.l.b16 %v539
  %v2316 = vunpack.c.l.b16 %v540
  %v2317 = vunpack.c.l.b16 %v541
  %v2318 = vunpack.c.l.b16 %v542
  %v2319 = vunpack.c.l.b16 %v543
  %v2320 = vunpack.c.l.b16 %v544
  %v2321 = vunpack.c.l.b16 %v545
  %v2322 = vunpack.c.l.b16 %v546
  %v2323 = vunpack.c.l.b16 %v547
  %v2324 = vunpack.c.l.b16 %v548
  %v2325 = vunpack.c.l.b16 %v549
  %v2326 = vunpack.c.l.b16 %v550
  %v2327 = vunpack.c.l.b16 %v551
  %v2328 = vunpack.c.l.b16 %v552
  %v2329 = vunpack.c.l.b16 %v553
  %v2330 = vunpack.c.l.b16 %v554
  %v2331 = vunpack.c.l.b16 %v555
  %v2332 = vunpack.c.l.b16 %v556
  %v2333 = vunpack.c.l.b16 %v557
  %v2334 = vunpack.c.l.b16 %v558
  %v2335 = vunpack.c.l.b16 %v559
  %v2336 = vunpack.c.l.b16 %v560
  %v2337 = vunpack.c.l.b16 %v561
  %v2338 = vunpack.c.l.b16 %v562
  %v2339 = vunpack.c.l.b16 %v563
  %v2340 = vunpack.c.l.b16 %v564
  %v2341 = vunpack.c.l.b16 %v565
  %v2342 = vunpack.c.l.b16 %v566
  %v2343 = vunpack.c.l.b16 %v567
  %v2344 = vunpack.c.l.b16 %v568
  %v2345 = vunpack.c.l.b16 %v569
  %v2346 = vunpack.c.l.b16 %v570
  %v2347 = vunpack.c.l.b16 %v571
  %v2348 = vunpack.c.l.b16 %v572
  %v2349 = vunpack.c.l.b16 %v573
  %v2350 = vunpack.c.l.b16 %v574
  %v2351 = vunpack.c.l.b16 %v575
  %v2352 = vunpack.c.l.b16 %v576
  %v2353 = vunpack.c.l.b16 %v577
  %v2354 = vunpack.c.l.b16 %v578
  %v2355 = vunpack.c.l.b16 %v579
  %v2356 = vunpack.c.l.b16 %v580
  %v2357 = vunpack.c.l.b16 %v581
  %v2358 = vunpack.c.l.b16 %v582
  %v2359 = vunpack.c.l.b16 %v583
  %v2360 = vunpack.c.l.b16 %v584
  %v2361 = vunpack.c.l.b16 %v585
  %v2362 = vunpack.c.l.b16 %v586
  %v2363 = vunpack.c.l.b16 %v587
  %v2364 = vunpack.c.l.b16 %v588
  %v2365 = vunpack.c.l.b16 %v589
  %v2366 = vunpack.c.l.b16 %v590
  %v2367 = vunpack.c.l.b16 %v591
  %v2368 = vunpack.c.l.b16 %v592
  %v2369 = vunpack.c.l.b16 %v593
  %v2370 = vunpack.c.l.b16 %v594
  %v2371 = vunpack.c.l.b16 %v595
  %v2372 = vunpack.c.l.b16 %v596
  %v2373 = vunpack.c.l.b16 %v597
  %v2374 = vunpack.c.l.b16 %v598
  %v2375 = vunpack.c.l.b16 %v599
  %v2376 = vunpack.c.l.b16 %v600
  %v2377 = vunpack.c.l.b16 %v601
  %v2378 = vunpack.c.l.b16 %v602
  %v2379 = vunpack.c.l.b16 %v603
  %v2380 = vunpack.c.l.b16 %v604
  %v2381 = vunpack.c.l.b16 %v605
  %v2382 = vunpack.c.l.b16 %v606
  %v2383 = vunpack.c.l.b16 %v607
  %v2384 = vunpack.c.l.b16 %v608
  %v2385 = vunpack.c.l.b16 %v609
  %v2386 = vunpack.c.l.b16 %v610
  %v2387 = vunpack.c.l.b16 %v611
  %v2388 = vunpack.c.l.b16 %v612
  %v2389 = vunpack.c.l.b16 %v613
  %v2390 = vunpack.c.l.b16 %v614
  %v2391 = vunpack.c.l.b16 %v615
  %v2392 = vunpack.c.l.b16 %v616
  %v2393 = vunpack.c.l.b16 %v617
  %v2394 = vunpack.c.l.b16 %v618
  %v2395 = vunpack.c.l.b16 %v619
  %v2396 = vunpack.c.l.b16 %v620
  %v2397 = vunpack.c.l.b16 %v621
  %v2398 = vunpack.c.l.b16 %v622
  %v2399 = vunpack.c.l.b16 %v623
  %v2400 = vunpack.c.l.b16 %v624
  %v2401 = vunpack.c.l.b16 %v625
  %v2402 = vunpack.c.l.b16 %v626
  %v2403 = vunpack.c.l.b16 %v627
  %v2404 = vunpack.c.l.b16 %v628
  %v2405 = vunpack.c.l.b16 %v629
  %v2406 = vunpack.c.l.b16 %v630
  %v2407 = vunpack.c.l.b16 %v631
  %v2408 = vunpack.c.l.b16 %v632
  %v2409 = vunpack.c.l.b16 %v633
  %v2410 = vunpack.c.l.b16 %v634
  %v2411 = vunpack.c.l.b16 %v635
  %v2412 = vunpack.c.l.b16 %v636
  %v2413 = vunpack.c.l.b16 %v637
  %v2414 = vunpack.c.l.b16 %v638
  %v2415 = vunpack.c.l.b16 %v639
  %v2416 = vunpack.c.l.b16 %v640
  %v2417 = vunpack.c.l.b16 %v641
  %v2418 = vunpack.c.l.b16 %v642
  %v2419 = vunpack.c.l.b16 %v643
  %v2420 = vunpack.c.l.b16 %v644
  %v2421 = vunpack.c.l.b16 %v645
  %v2422 = vunpack.c.l.b16 %v646
  %v2423 = vunpack.c.l.b16 %v647
  %v2424 = vunpack.c.l.b16 %v648
  %v2425 = vunpack.c.l.b16 %v649
  %v2426 = vunpack.c.l.b16 %v650
  %v2427 = vunpack.c.l.b16 %v651
  %v2428 = vunpack.c.l.b16 %v652
  %v2429 = vunpack.c.l.b16 %v653
  %v2430 = vunpack.c.l.b16 %v654
  %v2431 = vunpack.c.l.b16 %v655
  %v2432 = vunpack.c.l.b16 %v656
  %v2433 = vunpack.c.l.b16 %v657
  %v2434 = vunpack.c.l.b16 %v658
  %v2435 = vunpack.c.l.b16 %v659
  %v2436 = vunpack.c.l.b16 %v660
  %v2437 = vunpack.c.l.b16 %v661
  %v2438 = vunpack.c.l.b16 %v662
  %v2439 = vunpack.c.l.b16 %v663
  %v2440 = vunpack.c.l.b16 %v664
  %v2441 = vunpack.c.l.b16 %v665
  %v2442 = vunpack.c.l.b16 %v666
  %v2443 = vunpack.c.l.b16 %v667
  %v2444 = vunpack.c.l.b16 %v668
  %v2445 = vunpack.c.l.b16 %v669
  %v2446 = vunpack.c.l.b16 %v670
  %v2447 = vpack.c.b16 %v1936, %v1935
  %v2448 = vpack.c.b16 %v1938, %v1937
  %v2449 = vpack.c.b16 %v1940, %v1939
  %v2450 = vpack.c.b16 %v1942, %v1941
  %v2451 = vpack.c.b16 %v1944, %v1943
  %v2452 = vpack.c.b16 %v1946, %v1945
  %v2453 = vpack.c.b16 %v1948, %v1947
  %v2454 = vpack.c.b16 %v1950, %v1949
  %v2455 = vpack.c.b16 %v1952, %v1951
  %v2456 = vpack.c.b16 %v1954, %v1953
  %v2457 = vpack.c.b16 %v1956, %v1955
  %v2458 = vpack.c.b16 %v1958, %v1957
  %v2459 = vpack.c.b16 %v1960, %v1959
  %v2460 = vpack.c.b16 %v1962, %v1961
  %v2461 = vpack.c.b16 %v1964, %v1963
  %v2462 = vpack.c.b16 %v1966, %v1965
  %v2463 = vpack.c.b16 %v1968, %v1967
  %v2464 = vpack.c.b16 %v1970, %v1969
  %v2465 = vpack.c.b16 %v1972, %v1971
  %v2466 = vpack.c.b16 %v1974, %v1973
  %v2467 = vpack.c.b16 %v1976, %v1975
  %v2468 = vpack.c.b16 %v1978, %v1977
  %v2469 = vpack.c.b16 %v1980, %v1979
  %v2470 = vpack.c.b16 %v1982, %v1981
  %v2471 = vpack.c.b16 %v1984, %v1983
  %v2472 = vpack.c.b16 %v1986, %v1985
  %v2473 = vpack.c.b16 %v1988, %v1987
  %v2474 = vpack.c.b16 %v1990, %v1989
  %v2475 = vpack.c.b16 %v1992, %v1991
  %v2476 = vpack.c.b16 %v1994, %v1993
  %v2477 = vpack.c.b16 %v1996, %v1995
  %v2478 = vpack.c.b16 %v1998, %v1997
  %v2479 = vpack.c.b16 %v2000, %v1999
  %v2480 = vpack.c.b16 %v2002, %v2001
  %v2481 = vpack.c.b16 %v2004, %v2003
  %v2482 = vpack.c.b16 %v2006, %v2005
  %v2483 = vpack.c.b16 %v2008, %v2007
  %v2484 = vpack.c.b16 %v2010, %v2009
  %v2485 = vpack.c.b16 %v2012, %v2011
  %v2486 = vpack.c.b16 %v2014, %v2013
  %v2487 = vpack.c.b16 %v2016, %v2015
  %v2488 = vpack.c.b16 %v2018, %v2017
  %v2489 = vpack.c.b16 %v2020, %v2019
  %v2490 = vpack.c.b16 %v2022, %v2021
  %v2491 = vpack.c.b16 %v2024, %v2023
  %v2492 = vpack.c.b16 %v2026, %v2025
  %v2493 = vpack.c.b16 %v2028, %v2027
  %v2494 = vpack.c.b16 %v2030, %v2029
  %v2495 = vpack.c.b16 %v2032, %v2031
  %v2496 = vpack.c.b16 %v2034, %v2033
  %v2497 = vpack.c.b16 %v2036, %v2035
  %v2498 = vpack.c.b16 %v2038, %v2037
  %v2499 = vpack.c.b16 %v2040, %v2039
  %v2500 = vpack.c.b16 %v2042, %v2041
  %v2501 = vpack.c.b16 %v2044, %v2043
  %v2502 = vpack.c.b16 %v2046, %v2045
  %v2503 = vpack.c.b16 %v2048, %v2047
  %v2504 = vpack.c.b16 %v2050, %v2049
  %v2505 = vpack.c.b16 %v2052, %v2051
  %v2506 = vpack.c.b16 %v2054, %v2053
  %v2507 = vpack.c.b16 %v2056, %v2055
  %v2508 = vpack.c.b16 %v2058, %v2057
  %v2509 = vpack.c.b16 %v2060, %v2059
  %v2510 = vpack.c.b16 %v2062, %v2061
  %v2511 = vpack.c.b16 %v2064, %v2063
  %v2512 = vpack.c.b16 %v2066, %v2065
  %v2513 = vpack.c.b16 %v2068, %v2067
  %v2514 = vpack.c.b16 %v2070, %v2069
  %v2515 = vpack.c.b16 %v2072, %v2071
  %v2516 = vpack.c.b16 %v2074, %v2073
  %v2517 = vpack.c.b16 %v2076, %v2075
  %v2518 = vpack.c.b16 %v2078, %v2077
  %v2519 = vpack.c.b16 %v2080, %v2079
  %v2520 = vpack.c.b16 %v2082, %v2081
  %v2521 = vpack.c.b16 %v2084, %v2083
  %v2522 = vpack.c.b16 %v2086, %v2085
  %v2523 = vpack.c.b16 %v2088, %v2087
  %v2524 = vpack.c.b16 %v2090, %v2089
  %v2525 = vpack.c.b16 %v2092, %v2091
  %v2526 = vpack.c.b16 %v2094, %v2093
  %v2527 = vpack.c.b16 %v2096, %v2095
  %v2528 = vpack.c.b16 %v2098, %v2097
  %v2529 = vpack.c.b16 %v2100, %v2099
  %v2530 = vpack.c.b16 %v2102, %v2101
  %v2531 = vpack.c.b16 %v2104, %v2103
  %v2532 = vpack.c.b16 %v2106, %v2105
  %v2533 = vpack.c.b16 %v2108, %v2107
  %v2534 = vpack.c.b16 %v2110, %v2109
  %v2535 = vpack.c.b16 %v2112, %v2111
  %v2536 = vpack.c.b16 %v2114, %v2113
  %v2537 = vpack.c.b16 %v2116, %v2115
  %v2538 = vpack.c.b16 %v2118, %v2117
  %v2539 = vpack.c.b16 %v2120, %v2119
  %v2540 = vpack.c.b16 %v2122, %v2121
  %v2541 = vpack.c.b16 %v2124, %v2123
  %v2542 = vpack.c.b16 %v2126, %v2125
  %v2543 = vpack.c.b16 %v2128, %v2127
  %v2544 = vpack.c.b16 %v2130, %v2129
  %v2545 = vpack.c.b16 %v2132, %v2131
  %v2546 = vpack.c.b16 %v2134, %v2133
  %v2547 = vpack.c.b16 %v2136, %v2135
  %v2548 = vpack.c.b16 %v2138, %v2137
  %v2549 = vpack.c.b16 %v2140, %v2139
  %v2550 = vpack.c.b16 %v2142, %v2141
  %v2551 = vpack.c.b16 %v2144, %v2143
  %v2552 = vpack.c.b16 %v2146, %v2145
  %v2553 = vpack.c.b16 %v2148, %v2147
  %v2554 = vpack.c.b16 %v2150, %v2149
  %v2555 = vpack.c.b16 %v2152, %v2151
  %v2556 = vpack.c.b16 %v2154, %v2153
  %v2557 = vpack.c.b16 %v2156, %v2155
  %v2558 = vpack.c.b16 %v2158, %v2157
  %v2559 = vpack.c.b16 %v2160, %v2159
  %v2560 = vpack.c.b16 %v2162, %v2161
  %v2561 = vpack.c.b16 %v2164, %v2163
  %v2562 = vpack.c.b16 %v2166, %v2165
  %v2563 = vpack.c.b16 %v2168, %v2167
  %v2564 = vpack.c.b16 %v2170, %v2169
  %v2565 = vpack.c.b16 %v2172, %v2171
  %v2566 = vpack.c.b16 %v2174, %v2173
  %v2567 = vpack.c.b16 %v2176, %v2175
  %v2568 = vpack.c.b16 %v2178, %v2177
  %v2569 = vpack.c.b16 %v2180, %v2179
  %v2570 = vpack.c.b16 %v2182, %v2181
  %v2571 = vpack.c.b16 %v2184, %v2183
  %v2572 = vpack.c.b16 %v2186, %v2185
  %v2573 = vpack.c.b16 %v2188, %v2187
  %v2574 = vpack.c.b16 %v2190, %v2189
  %v2575 = vpack.c.b16 %v2192, %v2191
  %v2576 = vpack.c.b16 %v2194, %v2193
  %v2577 = vpack.c.b16 %v2196, %v2195
  %v2578 = vpack.c.b16 %v2198, %v2197
  %v2579 = vpack.c.b16 %v2200, %v2199
  %v2580 = vpack.c.b16 %v2202, %v2201
  %v2581 = vpack.c.b16 %v2204, %v2203
  %v2582 = vpack.c.b16 %v2206, %v2205
  %v2583 = vpack.c.b16 %v2208, %v2207
  %v2584 = vpack.c.b16 %v2210, %v2209
  %v2585 = vpack.c.b16 %v2212, %v2211
  %v2586 = vpack.c.b16 %v2214, %v2213
  %v2587 = vpack.c.b16 %v2216, %v2215
  %v2588 = vpack.c.b16 %v2218, %v2217
  %v2589 = vpack.c.b16 %v2220, %v2219
  %v2590 = vpack.c.b16 %v2222, %v2221
  %v2591 = vpack.c.b16 %v2224, %v2223
  %v2592 = vpack.c.b16 %v2226, %v2225
  %v2593 = vpack.c.b16 %v2228, %v2227
  %v2594 = vpack.c.b16 %v2230, %v2229
  %v2595 = vpack.c.b16 %v2232, %v2231
  %v2596 = vpack.c.b16 %v2234, %v2233
  %v2597 = vpack.c.b16 %v2236, %v2235
  %v2598 = vpack.c.b16 %v2238, %v2237
  %v2599 = vpack.c.b16 %v2240, %v2239
  %v2600 = vpack.c.b16 %v2242, %v2241
  %v2601 = vpack.c.b16 %v2244, %v2243
  %v2602 = vpack.c.b16 %v2246, %v2245
  %v2603 = vpack.c.b16 %v2248, %v2247
  %v2604 = vpack.c.b16 %v2250, %v2249
  %v2605 = vpack.c.b16 %v2252, %v2251
  %v2606 = vpack.c.b16 %v2254, %v2253
  %v2607 = vpack.c.b16 %v2256, %v2255
  %v2608 = vpack.c.b16 %v2258, %v2257
  %v2609 = vpack.c.b16 %v2260, %v2259
  %v2610 = vpack.c.b16 %v2262, %v2261
  %v2611 = vpack.c.b16 %v2264, %v2263
  %v2612 = vpack.c.b16 %v2266, %v2265
  %v2613 = vpack.c.b16 %v2268, %v2267
  %v2614 = vpack.c.b16 %v2270, %v2269
  %v2615 = vpack.c.b16 %v2272, %v2271
  %v2616 = vpack.c.b16 %v2274, %v2273
  %v2617 = vpack.c.b16 %v2276, %v2275
  %v2618 = vpack.c.b16 %v2278, %v2277
  %v2619 = vpack.c.b16 %v2280, %v2279
  %v2620 = vpack.c.b16 %v2282, %v2281
  %v2621 = vpack.c.b16 %v2284, %v2283
  %v2622 = vpack.c.b16 %v2286, %v2285
  %v2623 = vpack.c.b16 %v2288, %v2287
  %v2624 = vpack.c.b16 %v2290, %v2289
  %v2625 = vpack.c.b16 %v2292, %v2291
  %v2626 = vpack.c.b16 %v2294, %v2293
  %v2627 = vpack.c.b16 %v2296, %v2295
  %v2628 = vpack.c.b16 %v2298, %v2297
  %v2629 = vpack.c.b16 %v2300, %v2299
  %v2630 = vpack.c.b16 %v2302, %v2301
  %v2631 = vpack.c.b16 %v2304, %v2303
  %v2632 = vpack.c.b16 %v2306, %v2305
  %v2633 = vpack.c.b16 %v2308, %v2307
  %v2634 = vpack.c.b16 %v2310, %v2309
  %v2635 = vpack.c.b16 %v2312, %v2311
  %v2636 = vpack.c.b16 %v2314, %v2313
  %v2637 = vpack.c.b16 %v2316, %v2315
  %v2638 = vpack.c.b16 %v2318, %v2317
  %v2639 = vpack.c.b16 %v2320, %v2319
  %v2640 = vpack.c.b16 %v2322, %v2321
  %v2641 = vpack.c.b16 %v2324, %v2323
  %v2642 = vpack.c.b16 %v2326, %v2325
  %v2643 = vpack.c.b16 %v2328, %v2327
  %v2644 = vpack.c.b16 %v2330, %v2329
  %v2645 = vpack.c.b16 %v2332, %v2331
  %v2646 = vpack.c.b16 %v2334, %v2333
  %v2647 = vpack.c.b16 %v2336, %v2335
  %v2648 = vpack.c.b16 %v2338, %v2337
  %v2649 = vpack.c.b16 %v2340, %v2339
  %v2650 = vpack.c.b16 %v2342, %v2341
  %v2651 = vpack.c.b16 %v2344, %v2343
  %v2652 = vpack.c.b16 %v2346, %v2345
  %v2653 = vpack.c.b16 %v2348, %v2347
  %v2654 = vpack.c.b16 %v2350, %v2349
  %v2655 = vpack.c.b16 %v2352, %v2351
  %v2656 = vpack.c.b16 %v2354, %v2353
  %v2657 = vpack.c.b16 %v2356, %v2355
  %v2658 = vpack.c.b16 %v2358, %v2357
  %v2659 = vpack.c.b16 %v2360, %v2359
  %v2660 = vpack.c.b16 %v2362, %v2361
  %v2661 = vpack.c.b16 %v2364, %v2363
  %v2662 = vpack.c.b16 %v2366, %v2365
  %v2663 = vpack.c.b16 %v2368, %v2367
  %v2664 = vpack.c.b16 %v2370, %v2369
  %v2665 = vpack.c.b16 %v2372, %v2371
  %v2666 = vpack.c.b16 %v2374, %v2373
  %v2667 = vpack.c.b16 %v2376, %v2375
  %v2668 = vpack.c.b16 %v2378, %v2377
  %v2669 = vpack.c.b16 %v2380, %v2379
  %v2670 = vpack.c.b16 %v2382, %v2381
  %v2671 = vpack.c.b16 %v2384, %v2383
  %v2672 = vpack.c.b16 %v2386, %v2385
  %v2673 = vpack.c.b16 %v2388, %v2387
  %v2674 = vpack.c.b16 %v2390, %v2389
  %v2675 = vpack.c.b16 %v2392, %v2391
  %v2676 = vpack.c.b16 %v2394, %v2393
  %v2677 = vpack.c.b16 %v2396, %v2395
  %v2678 = vpack.c.b16 %v2398, %v2397
  %v2679 = vpack.c.b16 %v2400, %v2399
  %v2680 = vpack.c.b16 %v2402, %v2401
  %v2681 = vpack.c.b16 %v2404, %v2403
  %v2682 = vpack.c.b16 %v2406, %v2405
  %v2683 = vpack.c.b16 %v2408, %v2407
  %v2684 = vpack.c.b16 %v2410, %v2409
  %v2685 = vpack.c.b16 %v2412, %v2411
  %v2686 = vpack.c.b16 %v2414, %v2413
  %v2687 = vpack.c.b16 %v2416, %v2415
  %v2688 = vpack.c.b16 %v2418, %v2417
  %v2689 = vpack.c.b16 %v2420, %v2419
  %v2690 = vpack.c.b16 %v2422, %v2421
  %v2691 = vpack.c.b16 %v2424, %v2423
  %v2692 = vpack.c.b16 %v2426, %v2425
  %v2693 = vpack.c.b16 %v2428, %v2427
  %v2694 = vpack.c.b16 %v2430, %v2429
  %v2695 = vpack.c.b16 %v2432, %v2431
  %v2696 = vpack.c.b16 %v2434, %v2433
  %v2697 = vpack.c.b16 %v2436, %v2435
  %v2698 = vpack.c.b16 %v2438, %v2437
  %v2699 = vpack.c.b16 %v2440, %v2439
  %v2700 = vpack.c.b16 %v2442, %v2441
  %v2701 = vpack.c.b16 %v2444, %v2443
  %v2702 = vpack.c.b16 %v2446, %v2445
  %2959 = vmatprep.subr.bf16.mxu0 0
  %2960 = vmatpush1.bf16.msra.mxu0 %v2454
  %2961 = vmatprep.subr.bf16.mxu0 0
  %2962 = vmatpush1.bf16.msra.mxu0 %v2453
  %2963 = vmatprep.subr.bf16.mxu0 0
  %2964 = vmatpush1.bf16.msra.mxu0 %v2452
  %2965 = vmatprep.subr.bf16.mxu0 0
  %2966 = vmatpush1.bf16.msra.mxu0 %v2451
  %2967 = vmatprep.subr.bf16.mxu0 0
  %2968 = vmatpush1.bf16.msra.mxu0 %v2450
  %2969 = vmatprep.subr.bf16.mxu0 0
  %2970 = vmatpush1.bf16.msra.mxu0 %v2449
  %2971 = vmatprep.subr.bf16.mxu0 0
  %2972 = vmatpush1.bf16.msra.mxu0 %v2448
  %2973 = vmatprep.subr.bf16.mxu0 0
  %2974 = vmatpush1.bf16.msra.mxu0 %v2447
  %2975 = vmatprep.subr.bf16.mxu0 0
  %2976 = vmatpush2.bf16.msra.mxu0 %v2462
  %2977 = vmatprep.subr.bf16.mxu0 0
  %2978 = vmatpush2.bf16.msra.mxu0 %v2461
  %2979 = vmatprep.subr.bf16.mxu0 0
  %2980 = vmatpush2.bf16.msra.mxu0 %v2460
  %2981 = vmatprep.subr.bf16.mxu0 0
  %2982 = vmatpush2.bf16.msra.mxu0 %v2459
  %2983 = vmatprep.subr.bf16.mxu0 0
  %2984 = vmatpush2.bf16.msra.mxu0 %v2458
  %2985 = vmatprep.subr.bf16.mxu0 0
  %2986 = vmatpush2.bf16.msra.mxu0 %v2457
  %2987 = vmatprep.subr.bf16.mxu0 0
  %2988 = vmatpush2.bf16.msra.mxu0 %v2456
  %2989 = vmatprep.subr.bf16.mxu0 0
  %2990 = vmatpush2.bf16.msra.mxu0 %v2455
  %2991 = vmatprep.mubr.bf16.mxu0 %v1104
  %2992 = vmatmul.mubr.bf16.gmra.mxu0 %v1103
  %v2993 = vpop.f32.mrf.mxu0
  %v2994 = vadd.f32 0.0, %v2993
  %v2995 = vpop.f32.mrf.mxu0
  %v2996 = vpop.f32.mrf.mxu0
  %v2997 = vadd.f32 0.0, %v2996
  %v2998 = vpop.f32.mrf.mxu0
  %2999 = vmatprep.mubr.bf16.mxu0 %v1136
  %3000 = vmatmul.mubr.bf16.gmra.mxu0 %v1135
  %v3001 = vpop.f32.mrf.mxu0
  %v3002 = vadd.f32 0.0, %v3001
  %v3003 = vpop.f32.mrf.mxu0
  %v3004 = vpop.f32.mrf.mxu0
  %v3005 = vadd.f32 0.0, %v3004
  %v3006 = vpop.f32.mrf.mxu0
  %3007 = vmatprep.mubr.bf16.mxu0 %v1168
  %3008 = vmatmul.mubr.bf16.gmra.mxu0 %v1167
  %v3009 = vpop.f32.mrf.mxu0
  %v3010 = vadd.f32 0.0, %v3009
  %v3011 = vpop.f32.mrf.mxu0
  %v3012 = vpop.f32.mrf.mxu0
  %v3013 = vadd.f32 0.0, %v3012
  %v3014 = vpop.f32.mrf.mxu0
  %3015 = vmatprep.mubr.bf16.mxu0 %v1200
  %3016 = vmatmul.mubr.bf16.gmra.mxu0 %v1199
  %v3017 = vpop.f32.mrf.mxu0
  %v3018 = vadd.f32 0.0, %v3017
  %v3019 = vpop.f32.mrf.mxu0
  %v3020 = vpop.f32.mrf.mxu0
  %v3021 = vadd.f32 0.0, %v3020
  %v3022 = vpop.f32.mrf.mxu0
  %3023 = vmatprep.mubr.bf16.mxu0 %v1232
  %3024 = vmatmul.mubr.bf16.gmra.mxu0 %v1231
  %v3025 = vpop.f32.mrf.mxu0
  %v3026 = vadd.f32 0.0, %v3025
  %v3027 = vpop.f32.mrf.mxu0
  %v3028 = vpop.f32.mrf.mxu0
  %v3029 = vpop.f32.mrf.mxu0
  %3030 = vdwg.mxu0
  %3031 = vmatprep.subr.bf16.mxu0 0
  %3032 = vmatpush1.bf16.msra.mxu0 %v2470
  %3033 = vmatprep.subr.bf16.mxu0 0
  %3034 = vmatpush1.bf16.msra.mxu0 %v2469
  %3035 = vmatprep.subr.bf16.mxu0 0
  %3036 = vmatpush1.bf16.msra.mxu0 %v2468
  %3037 = vmatprep.subr.bf16.mxu0 0
  %3038 = vmatpush1.bf16.msra.mxu0 %v2467
  %3039 = vmatprep.subr.bf16.mxu0 0
  %3040 = vmatpush1.bf16.msra.mxu0 %v2466
  %3041 = vmatprep.subr.bf16.mxu0 0
  %3042 = vmatpush1.bf16.msra.mxu0 %v2465
  %3043 = vmatprep.subr.bf16.mxu0 0
  %3044 = vmatpush1.bf16.msra.mxu0 %v2464
  %3045 = vmatprep.subr.bf16.mxu0 0
  %3046 = vmatpush1.bf16.msra.mxu0 %v2463
  %3047 = vmatprep.subr.bf16.mxu0 0
  %3048 = vmatpush2.bf16.msra.mxu0 %v2478
  %3049 = vmatprep.subr.bf16.mxu0 0
  %3050 = vmatpush2.bf16.msra.mxu0 %v2477
  %3051 = vmatprep.subr.bf16.mxu0 0
  %3052 = vmatpush2.bf16.msra.mxu0 %v2476
  %3053 = vmatprep.subr.bf16.mxu0 0
  %3054 = vmatpush2.bf16.msra.mxu0 %v2475
  %3055 = vmatprep.subr.bf16.mxu0 0
  %3056 = vmatpush2.bf16.msra.mxu0 %v2474
  %3057 = vmatprep.subr.bf16.mxu0 0
  %3058 = vmatpush2.bf16.msra.mxu0 %v2473
  %3059 = vmatprep.subr.bf16.mxu0 0
  %3060 = vmatpush2.bf16.msra.mxu0 %v2472
  %3061 = vmatprep.subr.bf16.mxu0 0
  %3062 = vmatpush2.bf16.msra.mxu0 %v2471
  %3063 = vmatprep.mubr.bf16.mxu0 %v1106
  %3064 = vmatmul.mubr.bf16.gmra.mxu0 %v1105
  %v3065 = vpop.f32.mrf.mxu0
  %v3066 = vadd.f32 %v2994, %v3065
  %v3067 = vpop.f32.mrf.mxu0
  %v3068 = vpop.f32.mrf.mxu0
  %v3069 = vadd.f32 %v2997, %v3068
  %v3070 = vpop.f32.mrf.mxu0
  %3071 = vmatprep.mubr.bf16.mxu0 %v1138
  %3072 = vmatmul.mubr.bf16.gmra.mxu0 %v1137
  %v3073 = vpop.f32.mrf.mxu0
  %v3074 = vadd.f32 %v3002, %v3073
  %v3075 = vpop.f32.mrf.mxu0
  %v3076 = vpop.f32.mrf.mxu0
  %v3077 = vadd.f32 %v3005, %v3076
  %v3078 = vpop.f32.mrf.mxu0
  %3079 = vmatprep.mubr.bf16.mxu0 %v1170
  %3080 = vmatmul.mubr.bf16.gmra.mxu0 %v1169
  %v3081 = vpop.f32.mrf.mxu0
  %v3082 = vadd.f32 %v3010, %v3081
  %v3083 = vpop.f32.mrf.mxu0
  %v3084 = vpop.f32.mrf.mxu0
  %v3085 = vadd.f32 %v3013, %v3084
  %v3086 = vpop.f32.mrf.mxu0
  %3087 = vmatprep.mubr.bf16.mxu0 %v1202
  %3088 = vmatmul.mubr.bf16.gmra.mxu0 %v1201
  %v3089 = vpop.f32.mrf.mxu0
  %v3090 = vadd.f32 %v3018, %v3089
  %v3091 = vpop.f32.mrf.mxu0
  %v3092 = vpop.f32.mrf.mxu0
  %v3093 = vadd.f32 %v3021, %v3092
  %v3094 = vpop.f32.mrf.mxu0
  %3095 = vmatprep.mubr.bf16.mxu0 %v1234
  %3096 = vmatmul.mubr.bf16.gmra.mxu0 %v1233
  %v3097 = vpop.f32.mrf.mxu0
  %v3098 = vadd.f32 %v3026, %v3097
  %v3099 = vpop.f32.mrf.mxu0
  %v3100 = vpop.f32.mrf.mxu0
  %v3101 = vpop.f32.mrf.mxu0
  %3102 = vdwg.mxu0
  %3103 = vmatprep.subr.bf16.mxu0 0
  %3104 = vmatpush1.bf16.msra.mxu0 %v2486
  %3105 = vmatprep.subr.bf16.mxu0 0
  %3106 = vmatpush1.bf16.msra.mxu0 %v2485
  %3107 = vmatprep.subr.bf16.mxu0 0
  %3108 = vmatpush1.bf16.msra.mxu0 %v2484
  %3109 = vmatprep.subr.bf16.mxu0 0
  %3110 = vmatpush1.bf16.msra.mxu0 %v2483
  %3111 = vmatprep.subr.bf16.mxu0 0
  %3112 = vmatpush1.bf16.msra.mxu0 %v2482
  %3113 = vmatprep.subr.bf16.mxu0 0
  %3114 = vmatpush1.bf16.msra.mxu0 %v2481
  %3115 = vmatprep.subr.bf16.mxu0 0
  %3116 = vmatpush1.bf16.msra.mxu0 %v2480
  %3117 = vmatprep.subr.bf16.mxu0 0
  %3118 = vmatpush1.bf16.msra.mxu0 %v2479
  %3119 = vmatprep.subr.bf16.mxu0 0
  %3120 = vmatpush2.bf16.msra.mxu0 %v2494
  %3121 = vmatprep.subr.bf16.mxu0 0
  %3122 = vmatpush2.bf16.msra.mxu0 %v2493
  %3123 = vmatprep.subr.bf16.mxu0 0
  %3124 = vmatpush2.bf16.msra.mxu0 %v2492
  %3125 = vmatprep.subr.bf16.mxu0 0
  %3126 = vmatpush2.bf16.msra.mxu0 %v2491
  %3127 = vmatprep.subr.bf16.mxu0 0
  %3128 = vmatpush2.bf16.msra.mxu0 %v2490
  %3129 = vmatprep.subr.bf16.mxu0 0
  %3130 = vmatpush2.bf16.msra.mxu0 %v2489
  %3131 = vmatprep.subr.bf16.mxu0 0
  %3132 = vmatpush2.bf16.msra.mxu0 %v2488
  %3133 = vmatprep.subr.bf16.mxu0 0
  %3134 = vmatpush2.bf16.msra.mxu0 %v2487
  %3135 = vmatprep.mubr.bf16.mxu0 %v1108
  %3136 = vmatmul.mubr.bf16.gmra.mxu0 %v1107
  %v3137 = vpop.f32.mrf.mxu0
  %v3138 = vadd.f32 %v3066, %v3137
  %v3139 = vpop.f32.mrf.mxu0
  %v3140 = vpop.f32.mrf.mxu0
  %v3141 = vadd.f32 %v3069, %v3140
  %v3142 = vpop.f32.mrf.mxu0
  %3143 = vmatprep.mubr.bf16.mxu0 %v1140
  %3144 = vmatmul.mubr.bf16.gmra.mxu0 %v1139
  %v3145 = vpop.f32.mrf.mxu0
  %v3146 = vadd.f32 %v3074, %v3145
  %v3147 = vpop.f32.mrf.mxu0
  %v3148 = vpop.f32.mrf.mxu0
  %v3149 = vadd.f32 %v3077, %v3148
  %v3150 = vpop.f32.mrf.mxu0
  %3151 = vmatprep.mubr.bf16.mxu0 %v1172
  %3152 = vmatmul.mubr.bf16.gmra.mxu0 %v1171
  %v3153 = vpop.f32.mrf.mxu0
  %v3154 = vadd.f32 %v3082, %v3153
  %v3155 = vpop.f32.mrf.mxu0
  %v3156 = vpop.f32.mrf.mxu0
  %v3157 = vadd.f32 %v3085, %v3156
  %v3158 = vpop.f32.mrf.mxu0
  %3159 = vmatprep.mubr.bf16.mxu0 %v1204
  %3160 = vmatmul.mubr.bf16.gmra.mxu0 %v1203
  %v3161 = vpop.f32.mrf.mxu0
  %v3162 = vadd.f32 %v3090, %v3161
  %v3163 = vpop.f32.mrf.mxu0
  %v3164 = vpop.f32.mrf.mxu0
  %v3165 = vadd.f32 %v3093, %v3164
  %v3166 = vpop.f32.mrf.mxu0
  %3167 = vmatprep.mubr.bf16.mxu0 %v1236
  %3168 = vmatmul.mubr.bf16.gmra.mxu0 %v1235
  %v3169 = vpop.f32.mrf.mxu0
  %v3170 = vadd.f32 %v3098, %v3169
  %v3171 = vpop.f32.mrf.mxu0
  %v3172 = vpop.f32.mrf.mxu0
  %v3173 = vpop.f32.mrf.mxu0
  %3174 = vdwg.mxu0
  %3175 = vmatprep.subr.bf16.mxu0 0
  %3176 = vmatpush1.bf16.msra.mxu0 %v2502
  %3177 = vmatprep.subr.bf16.mxu0 0
  %3178 = vmatpush1.bf16.msra.mxu0 %v2501
  %3179 = vmatprep.subr.bf16.mxu0 0
  %3180 = vmatpush1.bf16.msra.mxu0 %v2500
  %3181 = vmatprep.subr.bf16.mxu0 0
  %3182 = vmatpush1.bf16.msra.mxu0 %v2499
  %3183 = vmatprep.subr.bf16.mxu0 0
  %3184 = vmatpush1.bf16.msra.mxu0 %v2498
  %3185 = vmatprep.subr.bf16.mxu0 0
  %3186 = vmatpush1.bf16.msra.mxu0 %v2497
  %3187 = vmatprep.subr.bf16.mxu0 0
  %3188 = vmatpush1.bf16.msra.mxu0 %v2496
  %3189 = vmatprep.subr.bf16.mxu0 0
  %3190 = vmatpush1.bf16.msra.mxu0 %v2495
  %3191 = vmatprep.subr.bf16.mxu0 0
  %3192 = vmatpush2.bf16.msra.mxu0 %v2510
  %3193 = vmatprep.subr.bf16.mxu0 0
  %3194 = vmatpush2.bf16.msra.mxu0 %v2509
  %3195 = vmatprep.subr.bf16.mxu0 0
  %3196 = vmatpush2.bf16.msra.mxu0 %v2508
  %3197 = vmatprep.subr.bf16.mxu0 0
  %3198 = vmatpush2.bf16.msra.mxu0 %v2507
  %3199 = vmatprep.subr.bf16.mxu0 0
  %3200 = vmatpush2.bf16.msra.mxu0 %v2506
  %3201 = vmatprep.subr.bf16.mxu0 0
  %3202 = vmatpush2.bf16.msra.mxu0 %v2505
  %3203 = vmatprep.subr.bf16.mxu0 0
  %3204 = vmatpush2.bf16.msra.mxu0 %v2504
  %3205 = vmatprep.subr.bf16.mxu0 0
  %3206 = vmatpush2.bf16.msra.mxu0 %v2503
  %3207 = vmatprep.mubr.bf16.mxu0 %v1110
  %3208 = vmatmul.mubr.bf16.gmra.mxu0 %v1109
  %v3209 = vpop.f32.mrf.mxu0
  %v3210 = vadd.f32 %v3138, %v3209
  %v3211 = vpop.f32.mrf.mxu0
  %v3212 = vpop.f32.mrf.mxu0
  %v3213 = vadd.f32 %v3141, %v3212
  %v3214 = vpop.f32.mrf.mxu0
  %3215 = vmatprep.mubr.bf16.mxu0 %v1142
  %3216 = vmatmul.mubr.bf16.gmra.mxu0 %v1141
  %v3217 = vpop.f32.mrf.mxu0
  %v3218 = vadd.f32 %v3146, %v3217
  %v3219 = vpop.f32.mrf.mxu0
  %v3220 = vpop.f32.mrf.mxu0
  %v3221 = vadd.f32 %v3149, %v3220
  %v3222 = vpop.f32.mrf.mxu0
  %3223 = vmatprep.mubr.bf16.mxu0 %v1174
  %3224 = vmatmul.mubr.bf16.gmra.mxu0 %v1173
  %v3225 = vpop.f32.mrf.mxu0
  %v3226 = vadd.f32 %v3154, %v3225
  %v3227 = vpop.f32.mrf.mxu0
  %v3228 = vpop.f32.mrf.mxu0
  %v3229 = vadd.f32 %v3157, %v3228
  %v3230 = vpop.f32.mrf.mxu0
  %3231 = vmatprep.mubr.bf16.mxu0 %v1206
  %3232 = vmatmul.mubr.bf16.gmra.mxu0 %v1205
  %v3233 = vpop.f32.mrf.mxu0
  %v3234 = vadd.f32 %v3162, %v3233
  %v3235 = vpop.f32.mrf.mxu0
  %v3236 = vpop.f32.mrf.mxu0
  %v3237 = vadd.f32 %v3165, %v3236
  %v3238 = vpop.f32.mrf.mxu0
  %3239 = vmatprep.mubr.bf16.mxu0 %v1238
  %3240 = vmatmul.mubr.bf16.gmra.mxu0 %v1237
  %v3241 = vpop.f32.mrf.mxu0
  %v3242 = vadd.f32 %v3170, %v3241
  %v3243 = vpop.f32.mrf.mxu0
  %v3244 = vpop.f32.mrf.mxu0
  %v3245 = vpop.f32.mrf.mxu0
  %3246 = vdwg.mxu0
  %3247 = vmatprep.subr.bf16.mxu0 0
  %3248 = vmatpush1.bf16.msra.mxu0 %v2518
  %3249 = vmatprep.subr.bf16.mxu0 0
  %3250 = vmatpush1.bf16.msra.mxu0 %v2517
  %3251 = vmatprep.subr.bf16.mxu0 0
  %3252 = vmatpush1.bf16.msra.mxu0 %v2516
  %3253 = vmatprep.subr.bf16.mxu0 0
  %3254 = vmatpush1.bf16.msra.mxu0 %v2515
  %3255 = vmatprep.subr.bf16.mxu0 0
  %3256 = vmatpush1.bf16.msra.mxu0 %v2514
  %3257 = vmatprep.subr.bf16.mxu0 0
  %3258 = vmatpush1.bf16.msra.mxu0 %v2513
  %3259 = vmatprep.subr.bf16.mxu0 0
  %3260 = vmatpush1.bf16.msra.mxu0 %v2512
  %3261 = vmatprep.subr.bf16.mxu0 0
  %3262 = vmatpush1.bf16.msra.mxu0 %v2511
  %3263 = vmatprep.subr.bf16.mxu0 0
  %3264 = vmatpush2.bf16.msra.mxu0 %v2526
  %3265 = vmatprep.subr.bf16.mxu0 0
  %3266 = vmatpush2.bf16.msra.mxu0 %v2525
  %3267 = vmatprep.subr.bf16.mxu0 0
  %3268 = vmatpush2.bf16.msra.mxu0 %v2524
  %3269 = vmatprep.subr.bf16.mxu0 0
  %3270 = vmatpush2.bf16.msra.mxu0 %v2523
  %3271 = vmatprep.subr.bf16.mxu0 0
  %3272 = vmatpush2.bf16.msra.mxu0 %v2522
  %3273 = vmatprep.subr.bf16.mxu0 0
  %3274 = vmatpush2.bf16.msra.mxu0 %v2521
  %3275 = vmatprep.subr.bf16.mxu0 0
  %3276 = vmatpush2.bf16.msra.mxu0 %v2520
  %3277 = vmatprep.subr.bf16.mxu0 0
  %3278 = vmatpush2.bf16.msra.mxu0 %v2519
  %3279 = vmatprep.mubr.bf16.mxu0 %v1112
  %3280 = vmatmul.mubr.bf16.gmra.mxu0 %v1111
  %v3281 = vpop.f32.mrf.mxu0
  %v3282 = vadd.f32 %v3210, %v3281
  %v3283 = vpop.f32.mrf.mxu0
  %v3284 = vpop.f32.mrf.mxu0
  %v3285 = vadd.f32 %v3213, %v3284
  %v3286 = vpop.f32.mrf.mxu0
  %3287 = vmatprep.mubr.bf16.mxu0 %v1144
  %3288 = vmatmul.mubr.bf16.gmra.mxu0 %v1143
  %v3289 = vpop.f32.mrf.mxu0
  %v3290 = vadd.f32 %v3218, %v3289
  %v3291 = vpop.f32.mrf.mxu0
  %v3292 = vpop.f32.mrf.mxu0
  %v3293 = vadd.f32 %v3221, %v3292
  %v3294 = vpop.f32.mrf.mxu0
  %3295 = vmatprep.mubr.bf16.mxu0 %v1176
  %3296 = vmatmul.mubr.bf16.gmra.mxu0 %v1175
  %v3297 = vpop.f32.mrf.mxu0
  %v3298 = vadd.f32 %v3226, %v3297
  %v3299 = vpop.f32.mrf.mxu0
  %v3300 = vpop.f32.mrf.mxu0
  %v3301 = vadd.f32 %v3229, %v3300
  %v3302 = vpop.f32.mrf.mxu0
  %3303 = vmatprep.mubr.bf16.mxu0 %v1208
  %3304 = vmatmul.mubr.bf16.gmra.mxu0 %v1207
  %v3305 = vpop.f32.mrf.mxu0
  %v3306 = vadd.f32 %v3234, %v3305
  %v3307 = vpop.f32.mrf.mxu0
  %v3308 = vpop.f32.mrf.mxu0
  %v3309 = vadd.f32 %v3237, %v3308
  %v3310 = vpop.f32.mrf.mxu0
  %3311 = vmatprep.mubr.bf16.mxu0 %v1240
  %3312 = vmatmul.mubr.bf16.gmra.mxu0 %v1239
  %v3313 = vpop.f32.mrf.mxu0
  %v3314 = vadd.f32 %v3242, %v3313
  %v3315 = vpop.f32.mrf.mxu0
  %v3316 = vpop.f32.mrf.mxu0
  %v3317 = vpop.f32.mrf.mxu0
  %3318 = vdwg.mxu0
  %3319 = vmatprep.subr.bf16.mxu0 0
  %3320 = vmatpush1.bf16.msra.mxu0 %v2534
  %3321 = vmatprep.subr.bf16.mxu0 0
  %3322 = vmatpush1.bf16.msra.mxu0 %v2533
  %3323 = vmatprep.subr.bf16.mxu0 0
  %3324 = vmatpush1.bf16.msra.mxu0 %v2532
  %3325 = vmatprep.subr.bf16.mxu0 0
  %3326 = vmatpush1.bf16.msra.mxu0 %v2531
  %3327 = vmatprep.subr.bf16.mxu0 0
  %3328 = vmatpush1.bf16.msra.mxu0 %v2530
  %3329 = vmatprep.subr.bf16.mxu0 0
  %3330 = vmatpush1.bf16.msra.mxu0 %v2529
  %3331 = vmatprep.subr.bf16.mxu0 0
  %3332 = vmatpush1.bf16.msra.mxu0 %v2528
  %3333 = vmatprep.subr.bf16.mxu0 0
  %3334 = vmatpush1.bf16.msra.mxu0 %v2527
  %3335 = vmatprep.subr.bf16.mxu0 0
  %3336 = vmatpush2.bf16.msra.mxu0 %v2542
  %3337 = vmatprep.subr.bf16.mxu0 0
  %3338 = vmatpush2.bf16.msra.mxu0 %v2541
  %3339 = vmatprep.subr.bf16.mxu0 0
  %3340 = vmatpush2.bf16.msra.mxu0 %v2540
  %3341 = vmatprep.subr.bf16.mxu0 0
  %3342 = vmatpush2.bf16.msra.mxu0 %v2539
  %3343 = vmatprep.subr.bf16.mxu0 0
  %3344 = vmatpush2.bf16.msra.mxu0 %v2538
  %3345 = vmatprep.subr.bf16.mxu0 0
  %3346 = vmatpush2.bf16.msra.mxu0 %v2537
  %3347 = vmatprep.subr.bf16.mxu0 0
  %3348 = vmatpush2.bf16.msra.mxu0 %v2536
  %3349 = vmatprep.subr.bf16.mxu0 0
  %3350 = vmatpush2.bf16.msra.mxu0 %v2535
  %3351 = vmatprep.mubr.bf16.mxu0 %v1114
  %3352 = vmatmul.mubr.bf16.gmra.mxu0 %v1113
  %v3353 = vpop.f32.mrf.mxu0
  %v3354 = vadd.f32 %v3282, %v3353
  %v3355 = vpop.f32.mrf.mxu0
  %v3356 = vpop.f32.mrf.mxu0
  %v3357 = vadd.f32 %v3285, %v3356
  %v3358 = vpop.f32.mrf.mxu0
  %3359 = vmatprep.mubr.bf16.mxu0 %v1146
  %3360 = vmatmul.mubr.bf16.gmra.mxu0 %v1145
  %v3361 = vpop.f32.mrf.mxu0
  %v3362 = vadd.f32 %v3290, %v3361
  %v3363 = vpop.f32.mrf.mxu0
  %v3364 = vpop.f32.mrf.mxu0
  %v3365 = vadd.f32 %v3293, %v3364
  %v3366 = vpop.f32.mrf.mxu0
  %3367 = vmatprep.mubr.bf16.mxu0 %v1178
  %3368 = vmatmul.mubr.bf16.gmra.mxu0 %v1177
  %v3369 = vpop.f32.mrf.mxu0
  %v3370 = vadd.f32 %v3298, %v3369
  %v3371 = vpop.f32.mrf.mxu0
  %v3372 = vpop.f32.mrf.mxu0
  %v3373 = vadd.f32 %v3301, %v3372
  %v3374 = vpop.f32.mrf.mxu0
  %3375 = vmatprep.mubr.bf16.mxu0 %v1210
  %3376 = vmatmul.mubr.bf16.gmra.mxu0 %v1209
  %v3377 = vpop.f32.mrf.mxu0
  %v3378 = vadd.f32 %v3306, %v3377
  %v3379 = vpop.f32.mrf.mxu0
  %v3380 = vpop.f32.mrf.mxu0
  %v3381 = vadd.f32 %v3309, %v3380
  %v3382 = vpop.f32.mrf.mxu0
  %3383 = vmatprep.mubr.bf16.mxu0 %v1242
  %3384 = vmatmul.mubr.bf16.gmra.mxu0 %v1241
  %v3385 = vpop.f32.mrf.mxu0
  %v3386 = vadd.f32 %v3314, %v3385
  %v3387 = vpop.f32.mrf.mxu0
  %v3388 = vpop.f32.mrf.mxu0
  %v3389 = vpop.f32.mrf.mxu0
  %3390 = vdwg.mxu0
  %3391 = vmatprep.subr.bf16.mxu0 0
  %3392 = vmatpush1.bf16.msra.mxu0 %v2550
  %3393 = vmatprep.subr.bf16.mxu0 0
  %3394 = vmatpush1.bf16.msra.mxu0 %v2549
  %3395 = vmatprep.subr.bf16.mxu0 0
  %3396 = vmatpush1.bf16.msra.mxu0 %v2548
  %3397 = vmatprep.subr.bf16.mxu0 0
  %3398 = vmatpush1.bf16.msra.mxu0 %v2547
  %3399 = vmatprep.subr.bf16.mxu0 0
  %3400 = vmatpush1.bf16.msra.mxu0 %v2546
  %3401 = vmatprep.subr.bf16.mxu0 0
  %3402 = vmatpush1.bf16.msra.mxu0 %v2545
  %3403 = vmatprep.subr.bf16.mxu0 0
  %3404 = vmatpush1.bf16.msra.mxu0 %v2544
  %3405 = vmatprep.subr.bf16.mxu0 0
  %3406 = vmatpush1.bf16.msra.mxu0 %v2543
  %3407 = vmatprep.subr.bf16.mxu0 0
  %3408 = vmatpush2.bf16.msra.mxu0 %v2558
  %3409 = vmatprep.subr.bf16.mxu0 0
  %3410 = vmatpush2.bf16.msra.mxu0 %v2557
  %3411 = vmatprep.subr.bf16.mxu0 0
  %3412 = vmatpush2.bf16.msra.mxu0 %v2556
  %3413 = vmatprep.subr.bf16.mxu0 0
  %3414 = vmatpush2.bf16.msra.mxu0 %v2555
  %3415 = vmatprep.subr.bf16.mxu0 0
  %3416 = vmatpush2.bf16.msra.mxu0 %v2554
  %3417 = vmatprep.subr.bf16.mxu0 0
  %3418 = vmatpush2.bf16.msra.mxu0 %v2553
  %3419 = vmatprep.subr.bf16.mxu0 0
  %3420 = vmatpush2.bf16.msra.mxu0 %v2552
  %3421 = vmatprep.subr.bf16.mxu0 0
  %3422 = vmatpush2.bf16.msra.mxu0 %v2551
  %3423 = vmatprep.mubr.bf16.mxu0 %v1116
  %3424 = vmatmul.mubr.bf16.gmra.mxu0 %v1115
  %v3425 = vpop.f32.mrf.mxu0
  %v3426 = vadd.f32 %v3354, %v3425
  %v3427 = vpop.f32.mrf.mxu0
  %v3428 = vpop.f32.mrf.mxu0
  %v3429 = vadd.f32 %v3357, %v3428
  %v3430 = vpop.f32.mrf.mxu0
  %3431 = vmatprep.mubr.bf16.mxu0 %v1148
  %3432 = vmatmul.mubr.bf16.gmra.mxu0 %v1147
  %v3433 = vpop.f32.mrf.mxu0
  %v3434 = vadd.f32 %v3362, %v3433
  %v3435 = vpop.f32.mrf.mxu0
  %v3436 = vpop.f32.mrf.mxu0
  %v3437 = vadd.f32 %v3365, %v3436
  %v3438 = vpop.f32.mrf.mxu0
  %3439 = vmatprep.mubr.bf16.mxu0 %v1180
  %3440 = vmatmul.mubr.bf16.gmra.mxu0 %v1179
  %v3441 = vpop.f32.mrf.mxu0
  %v3442 = vadd.f32 %v3370, %v3441
  %v3443 = vpop.f32.mrf.mxu0
  %v3444 = vpop.f32.mrf.mxu0
  %v3445 = vadd.f32 %v3373, %v3444
  %v3446 = vpop.f32.mrf.mxu0
  %3447 = vmatprep.mubr.bf16.mxu0 %v1212
  %3448 = vmatmul.mubr.bf16.gmra.mxu0 %v1211
  %v3449 = vpop.f32.mrf.mxu0
  %v3450 = vadd.f32 %v3378, %v3449
  %v3451 = vpop.f32.mrf.mxu0
  %v3452 = vpop.f32.mrf.mxu0
  %v3453 = vadd.f32 %v3381, %v3452
  %v3454 = vpop.f32.mrf.mxu0
  %3455 = vmatprep.mubr.bf16.mxu0 %v1244
  %3456 = vmatmul.mubr.bf16.gmra.mxu0 %v1243
  %v3457 = vpop.f32.mrf.mxu0
  %v3458 = vadd.f32 %v3386, %v3457
  %v3459 = vpop.f32.mrf.mxu0
  %v3460 = vpop.f32.mrf.mxu0
  %v3461 = vpop.f32.mrf.mxu0
  %3462 = vdwg.mxu0
  %3463 = vmatprep.subr.bf16.mxu0 0
  %3464 = vmatpush1.bf16.msra.mxu0 %v2566
  %3465 = vmatprep.subr.bf16.mxu0 0
  %3466 = vmatpush1.bf16.msra.mxu0 %v2565
  %3467 = vmatprep.subr.bf16.mxu0 0
  %3468 = vmatpush1.bf16.msra.mxu0 %v2564
  %3469 = vmatprep.subr.bf16.mxu0 0
  %3470 = vmatpush1.bf16.msra.mxu0 %v2563
  %3471 = vmatprep.subr.bf16.mxu0 0
  %3472 = vmatpush1.bf16.msra.mxu0 %v2562
  %3473 = vmatprep.subr.bf16.mxu0 0
  %3474 = vmatpush1.bf16.msra.mxu0 %v2561
  %3475 = vmatprep.subr.bf16.mxu0 0
  %3476 = vmatpush1.bf16.msra.mxu0 %v2560
  %3477 = vmatprep.subr.bf16.mxu0 0
  %3478 = vmatpush1.bf16.msra.mxu0 %v2559
  %3479 = vmatprep.subr.bf16.mxu0 0
  %3480 = vmatpush2.bf16.msra.mxu0 %v2574
  %3481 = vmatprep.subr.bf16.mxu0 0
  %3482 = vmatpush2.bf16.msra.mxu0 %v2573
  %3483 = vmatprep.subr.bf16.mxu0 0
  %3484 = vmatpush2.bf16.msra.mxu0 %v2572
  %3485 = vmatprep.subr.bf16.mxu0 0
  %3486 = vmatpush2.bf16.msra.mxu0 %v2571
  %3487 = vmatprep.subr.bf16.mxu0 0
  %3488 = vmatpush2.bf16.msra.mxu0 %v2570
  %3489 = vmatprep.subr.bf16.mxu0 0
  %3490 = vmatpush2.bf16.msra.mxu0 %v2569
  %3491 = vmatprep.subr.bf16.mxu0 0
  %3492 = vmatpush2.bf16.msra.mxu0 %v2568
  %3493 = vmatprep.subr.bf16.mxu0 0
  %3494 = vmatpush2.bf16.msra.mxu0 %v2567
  %3495 = vmatprep.mubr.bf16.mxu0 %v1118
  %3496 = vmatmul.mubr.bf16.gmra.mxu0 %v1117
  %v3497 = vpop.f32.mrf.mxu0
  %v3498 = vadd.f32 %v3426, %v3497
  %v3499 = vpop.f32.mrf.mxu0
  %v3500 = vpop.f32.mrf.mxu0
  %v3501 = vadd.f32 %v3429, %v3500
  %v3502 = vpop.f32.mrf.mxu0
  %3503 = vmatprep.mubr.bf16.mxu0 %v1150
  %3504 = vmatmul.mubr.bf16.gmra.mxu0 %v1149
  %v3505 = vpop.f32.mrf.mxu0
  %v3506 = vadd.f32 %v3434, %v3505
  %v3507 = vpop.f32.mrf.mxu0
  %v3508 = vpop.f32.mrf.mxu0
  %v3509 = vadd.f32 %v3437, %v3508
  %v3510 = vpop.f32.mrf.mxu0
  %3511 = vmatprep.mubr.bf16.mxu0 %v1182
  %3512 = vmatmul.mubr.bf16.gmra.mxu0 %v1181
  %v3513 = vpop.f32.mrf.mxu0
  %v3514 = vadd.f32 %v3442, %v3513
  %v3515 = vpop.f32.mrf.mxu0
  %v3516 = vpop.f32.mrf.mxu0
  %v3517 = vadd.f32 %v3445, %v3516
  %v3518 = vpop.f32.mrf.mxu0
  %3519 = vmatprep.mubr.bf16.mxu0 %v1214
  %3520 = vmatmul.mubr.bf16.gmra.mxu0 %v1213
  %v3521 = vpop.f32.mrf.mxu0
  %v3522 = vadd.f32 %v3450, %v3521
  %v3523 = vpop.f32.mrf.mxu0
  %v3524 = vpop.f32.mrf.mxu0
  %v3525 = vadd.f32 %v3453, %v3524
  %v3526 = vpop.f32.mrf.mxu0
  %3527 = vmatprep.mubr.bf16.mxu0 %v1246
  %3528 = vmatmul.mubr.bf16.gmra.mxu0 %v1245
  %v3529 = vpop.f32.mrf.mxu0
  %v3530 = vadd.f32 %v3458, %v3529
  %v3531 = vpop.f32.mrf.mxu0
  %v3532 = vpop.f32.mrf.mxu0
  %v3533 = vpop.f32.mrf.mxu0
  %3534 = vdwg.mxu0
  %3535 = vmatprep.subr.bf16.mxu0 0
  %3536 = vmatpush1.bf16.msra.mxu0 %v2582
  %3537 = vmatprep.subr.bf16.mxu0 0
  %3538 = vmatpush1.bf16.msra.mxu0 %v2581
  %3539 = vmatprep.subr.bf16.mxu0 0
  %3540 = vmatpush1.bf16.msra.mxu0 %v2580
  %3541 = vmatprep.subr.bf16.mxu0 0
  %3542 = vmatpush1.bf16.msra.mxu0 %v2579
  %3543 = vmatprep.subr.bf16.mxu0 0
  %3544 = vmatpush1.bf16.msra.mxu0 %v2578
  %3545 = vmatprep.subr.bf16.mxu0 0
  %3546 = vmatpush1.bf16.msra.mxu0 %v2577
  %3547 = vmatprep.subr.bf16.mxu0 0
  %3548 = vmatpush1.bf16.msra.mxu0 %v2576
  %3549 = vmatprep.subr.bf16.mxu0 0
  %3550 = vmatpush1.bf16.msra.mxu0 %v2575
  %3551 = vmatprep.subr.bf16.mxu0 0
  %3552 = vmatpush2.bf16.msra.mxu0 %v2590
  %3553 = vmatprep.subr.bf16.mxu0 0
  %3554 = vmatpush2.bf16.msra.mxu0 %v2589
  %3555 = vmatprep.subr.bf16.mxu0 0
  %3556 = vmatpush2.bf16.msra.mxu0 %v2588
  %3557 = vmatprep.subr.bf16.mxu0 0
  %3558 = vmatpush2.bf16.msra.mxu0 %v2587
  %3559 = vmatprep.subr.bf16.mxu0 0
  %3560 = vmatpush2.bf16.msra.mxu0 %v2586
  %3561 = vmatprep.subr.bf16.mxu0 0
  %3562 = vmatpush2.bf16.msra.mxu0 %v2585
  %3563 = vmatprep.subr.bf16.mxu0 0
  %3564 = vmatpush2.bf16.msra.mxu0 %v2584
  %3565 = vmatprep.subr.bf16.mxu0 0
  %3566 = vmatpush2.bf16.msra.mxu0 %v2583
  %3567 = vmatprep.mubr.bf16.mxu0 %v1120
  %3568 = vmatmul.mubr.bf16.gmra.mxu0 %v1119
  %v3569 = vpop.f32.mrf.mxu0
  %v3570 = vadd.f32 %v3498, %v3569
  %v3571 = vpop.f32.mrf.mxu0
  %v3572 = vpop.f32.mrf.mxu0
  %v3573 = vadd.f32 %v3501, %v3572
  %v3574 = vpop.f32.mrf.mxu0
  %3575 = vmatprep.mubr.bf16.mxu0 %v1152
  %3576 = vmatmul.mubr.bf16.gmra.mxu0 %v1151
  %v3577 = vpop.f32.mrf.mxu0
  %v3578 = vadd.f32 %v3506, %v3577
  %v3579 = vpop.f32.mrf.mxu0
  %v3580 = vpop.f32.mrf.mxu0
  %v3581 = vadd.f32 %v3509, %v3580
  %v3582 = vpop.f32.mrf.mxu0
  %3583 = vmatprep.mubr.bf16.mxu0 %v1184
  %3584 = vmatmul.mubr.bf16.gmra.mxu0 %v1183
  %v3585 = vpop.f32.mrf.mxu0
  %v3586 = vadd.f32 %v3514, %v3585
  %v3587 = vpop.f32.mrf.mxu0
  %v3588 = vpop.f32.mrf.mxu0
  %v3589 = vadd.f32 %v3517, %v3588
  %v3590 = vpop.f32.mrf.mxu0
  %3591 = vmatprep.mubr.bf16.mxu0 %v1216
  %3592 = vmatmul.mubr.bf16.gmra.mxu0 %v1215
  %v3593 = vpop.f32.mrf.mxu0
  %v3594 = vadd.f32 %v3522, %v3593
  %v3595 = vpop.f32.mrf.mxu0
  %v3596 = vpop.f32.mrf.mxu0
  %v3597 = vadd.f32 %v3525, %v3596
  %v3598 = vpop.f32.mrf.mxu0
  %3599 = vmatprep.mubr.bf16.mxu0 %v1248
  %3600 = vmatmul.mubr.bf16.gmra.mxu0 %v1247
  %v3601 = vpop.f32.mrf.mxu0
  %v3602 = vadd.f32 %v3530, %v3601
  %v3603 = vpop.f32.mrf.mxu0
  %v3604 = vpop.f32.mrf.mxu0
  %v3605 = vpop.f32.mrf.mxu0
  %3606 = vdwg.mxu0
  %3607 = vmatprep.subr.bf16.mxu0 0
  %3608 = vmatpush1.bf16.msra.mxu0 %v2598
  %3609 = vmatprep.subr.bf16.mxu0 0
  %3610 = vmatpush1.bf16.msra.mxu0 %v2597
  %3611 = vmatprep.subr.bf16.mxu0 0
  %3612 = vmatpush1.bf16.msra.mxu0 %v2596
  %3613 = vmatprep.subr.bf16.mxu0 0
  %3614 = vmatpush1.bf16.msra.mxu0 %v2595
  %3615 = vmatprep.subr.bf16.mxu0 0
  %3616 = vmatpush1.bf16.msra.mxu0 %v2594
  %3617 = vmatprep.subr.bf16.mxu0 0
  %3618 = vmatpush1.bf16.msra.mxu0 %v2593
  %3619 = vmatprep.subr.bf16.mxu0 0
  %3620 = vmatpush1.bf16.msra.mxu0 %v2592
  %3621 = vmatprep.subr.bf16.mxu0 0
  %3622 = vmatpush1.bf16.msra.mxu0 %v2591
  %3623 = vmatprep.subr.bf16.mxu0 0
  %3624 = vmatpush2.bf16.msra.mxu0 %v2606
  %3625 = vmatprep.subr.bf16.mxu0 0
  %3626 = vmatpush2.bf16.msra.mxu0 %v2605
  %3627 = vmatprep.subr.bf16.mxu0 0
  %3628 = vmatpush2.bf16.msra.mxu0 %v2604
  %3629 = vmatprep.subr.bf16.mxu0 0
  %3630 = vmatpush2.bf16.msra.mxu0 %v2603
  %3631 = vmatprep.subr.bf16.mxu0 0
  %3632 = vmatpush2.bf16.msra.mxu0 %v2602
  %3633 = vmatprep.subr.bf16.mxu0 0
  %3634 = vmatpush2.bf16.msra.mxu0 %v2601
  %3635 = vmatprep.subr.bf16.mxu0 0
  %3636 = vmatpush2.bf16.msra.mxu0 %v2600
  %3637 = vmatprep.subr.bf16.mxu0 0
  %3638 = vmatpush2.bf16.msra.mxu0 %v2599
  %3639 = vmatprep.mubr.bf16.mxu0 %v1122
  %3640 = vmatmul.mubr.bf16.gmra.mxu0 %v1121
  %v3641 = vpop.f32.mrf.mxu0
  %v3642 = vadd.f32 %v3570, %v3641
  %v3643 = vpop.f32.mrf.mxu0
  %v3644 = vpop.f32.mrf.mxu0
  %v3645 = vadd.f32 %v3573, %v3644
  %v3646 = vpop.f32.mrf.mxu0
  %3647 = vmatprep.mubr.bf16.mxu0 %v1154
  %3648 = vmatmul.mubr.bf16.gmra.mxu0 %v1153
  %v3649 = vpop.f32.mrf.mxu0
  %v3650 = vadd.f32 %v3578, %v3649
  %v3651 = vpop.f32.mrf.mxu0
  %v3652 = vpop.f32.mrf.mxu0
  %v3653 = vadd.f32 %v3581, %v3652
  %v3654 = vpop.f32.mrf.mxu0
  %3655 = vmatprep.mubr.bf16.mxu0 %v1186
  %3656 = vmatmul.mubr.bf16.gmra.mxu0 %v1185
  %v3657 = vpop.f32.mrf.mxu0
  %v3658 = vadd.f32 %v3586, %v3657
  %v3659 = vpop.f32.mrf.mxu0
  %v3660 = vpop.f32.mrf.mxu0
  %v3661 = vadd.f32 %v3589, %v3660
  %v3662 = vpop.f32.mrf.mxu0
  %3663 = vmatprep.mubr.bf16.mxu0 %v1218
  %3664 = vmatmul.mubr.bf16.gmra.mxu0 %v1217
  %v3665 = vpop.f32.mrf.mxu0
  %v3666 = vadd.f32 %v3594, %v3665
  %v3667 = vpop.f32.mrf.mxu0
  %v3668 = vpop.f32.mrf.mxu0
  %v3669 = vadd.f32 %v3597, %v3668
  %v3670 = vpop.f32.mrf.mxu0
  %3671 = vmatprep.mubr.bf16.mxu0 %v1250
  %3672 = vmatmul.mubr.bf16.gmra.mxu0 %v1249
  %v3673 = vpop.f32.mrf.mxu0
  %v3674 = vadd.f32 %v3602, %v3673
  %v3675 = vpop.f32.mrf.mxu0
  %v3676 = vpop.f32.mrf.mxu0
  %v3677 = vpop.f32.mrf.mxu0
  %3678 = vdwg.mxu0
  %3679 = vmatprep.subr.bf16.mxu0 0
  %3680 = vmatpush1.bf16.msra.mxu0 %v2614
  %3681 = vmatprep.subr.bf16.mxu0 0
  %3682 = vmatpush1.bf16.msra.mxu0 %v2613
  %3683 = vmatprep.subr.bf16.mxu0 0
  %3684 = vmatpush1.bf16.msra.mxu0 %v2612
  %3685 = vmatprep.subr.bf16.mxu0 0
  %3686 = vmatpush1.bf16.msra.mxu0 %v2611
  %3687 = vmatprep.subr.bf16.mxu0 0
  %3688 = vmatpush1.bf16.msra.mxu0 %v2610
  %3689 = vmatprep.subr.bf16.mxu0 0
  %3690 = vmatpush1.bf16.msra.mxu0 %v2609
  %3691 = vmatprep.subr.bf16.mxu0 0
  %3692 = vmatpush1.bf16.msra.mxu0 %v2608
  %3693 = vmatprep.subr.bf16.mxu0 0
  %3694 = vmatpush1.bf16.msra.mxu0 %v2607
  %3695 = vmatprep.subr.bf16.mxu0 0
  %3696 = vmatpush2.bf16.msra.mxu0 %v2622
  %3697 = vmatprep.subr.bf16.mxu0 0
  %3698 = vmatpush2.bf16.msra.mxu0 %v2621
  %3699 = vmatprep.subr.bf16.mxu0 0
  %3700 = vmatpush2.bf16.msra.mxu0 %v2620
  %3701 = vmatprep.subr.bf16.mxu0 0
  %3702 = vmatpush2.bf16.msra.mxu0 %v2619
  %3703 = vmatprep.subr.bf16.mxu0 0
  %3704 = vmatpush2.bf16.msra.mxu0 %v2618
  %3705 = vmatprep.subr.bf16.mxu0 0
  %3706 = vmatpush2.bf16.msra.mxu0 %v2617
  %3707 = vmatprep.subr.bf16.mxu0 0
  %3708 = vmatpush2.bf16.msra.mxu0 %v2616
  %3709 = vmatprep.subr.bf16.mxu0 0
  %3710 = vmatpush2.bf16.msra.mxu0 %v2615
  %3711 = vmatprep.mubr.bf16.mxu0 %v1124
  %3712 = vmatmul.mubr.bf16.gmra.mxu0 %v1123
  %v3713 = vpop.f32.mrf.mxu0
  %v3714 = vadd.f32 %v3642, %v3713
  %v3715 = vpop.f32.mrf.mxu0
  %v3716 = vpop.f32.mrf.mxu0
  %v3717 = vadd.f32 %v3645, %v3716
  %v3718 = vpop.f32.mrf.mxu0
  %3719 = vmatprep.mubr.bf16.mxu0 %v1156
  %3720 = vmatmul.mubr.bf16.gmra.mxu0 %v1155
  %v3721 = vpop.f32.mrf.mxu0
  %v3722 = vadd.f32 %v3650, %v3721
  %v3723 = vpop.f32.mrf.mxu0
  %v3724 = vpop.f32.mrf.mxu0
  %v3725 = vadd.f32 %v3653, %v3724
  %v3726 = vpop.f32.mrf.mxu0
  %3727 = vmatprep.mubr.bf16.mxu0 %v1188
  %3728 = vmatmul.mubr.bf16.gmra.mxu0 %v1187
  %v3729 = vpop.f32.mrf.mxu0
  %v3730 = vadd.f32 %v3658, %v3729
  %v3731 = vpop.f32.mrf.mxu0
  %v3732 = vpop.f32.mrf.mxu0
  %v3733 = vadd.f32 %v3661, %v3732
  %v3734 = vpop.f32.mrf.mxu0
  %3735 = vmatprep.mubr.bf16.mxu0 %v1220
  %3736 = vmatmul.mubr.bf16.gmra.mxu0 %v1219
  %v3737 = vpop.f32.mrf.mxu0
  %v3738 = vadd.f32 %v3666, %v3737
  %v3739 = vpop.f32.mrf.mxu0
  %v3740 = vpop.f32.mrf.mxu0
  %v3741 = vadd.f32 %v3669, %v3740
  %v3742 = vpop.f32.mrf.mxu0
  %3743 = vmatprep.mubr.bf16.mxu0 %v1252
  %3744 = vmatmul.mubr.bf16.gmra.mxu0 %v1251
  %v3745 = vpop.f32.mrf.mxu0
  %v3746 = vadd.f32 %v3674, %v3745
  %v3747 = vpop.f32.mrf.mxu0
  %v3748 = vpop.f32.mrf.mxu0
  %v3749 = vpop.f32.mrf.mxu0
  %3750 = vdwg.mxu0
  %3751 = vmatprep.subr.bf16.mxu0 0
  %3752 = vmatpush1.bf16.msra.mxu0 %v2630
  %3753 = vmatprep.subr.bf16.mxu0 0
  %3754 = vmatpush1.bf16.msra.mxu0 %v2629
  %3755 = vmatprep.subr.bf16.mxu0 0
  %3756 = vmatpush1.bf16.msra.mxu0 %v2628
  %3757 = vmatprep.subr.bf16.mxu0 0
  %3758 = vmatpush1.bf16.msra.mxu0 %v2627
  %3759 = vmatprep.subr.bf16.mxu0 0
  %3760 = vmatpush1.bf16.msra.mxu0 %v2626
  %3761 = vmatprep.subr.bf16.mxu0 0
  %3762 = vmatpush1.bf16.msra.mxu0 %v2625
  %3763 = vmatprep.subr.bf16.mxu0 0
  %3764 = vmatpush1.bf16.msra.mxu0 %v2624
  %3765 = vmatprep.subr.bf16.mxu0 0
  %3766 = vmatpush1.bf16.msra.mxu0 %v2623
  %3767 = vmatprep.subr.bf16.mxu0 0
  %3768 = vmatpush2.bf16.msra.mxu0 %v2638
  %3769 = vmatprep.subr.bf16.mxu0 0
  %3770 = vmatpush2.bf16.msra.mxu0 %v2637
  %3771 = vmatprep.subr.bf16.mxu0 0
  %3772 = vmatpush2.bf16.msra.mxu0 %v2636
  %3773 = vmatprep.subr.bf16.mxu0 0
  %3774 = vmatpush2.bf16.msra.mxu0 %v2635
  %3775 = vmatprep.subr.bf16.mxu0 0
  %3776 = vmatpush2.bf16.msra.mxu0 %v2634
  %3777 = vmatprep.subr.bf16.mxu0 0
  %3778 = vmatpush2.bf16.msra.mxu0 %v2633
  %3779 = vmatprep.subr.bf16.mxu0 0
  %3780 = vmatpush2.bf16.msra.mxu0 %v2632
  %3781 = vmatprep.subr.bf16.mxu0 0
  %3782 = vmatpush2.bf16.msra.mxu0 %v2631
  %3783 = vmatprep.mubr.bf16.mxu0 %v1126
  %3784 = vmatmul.mubr.bf16.gmra.mxu0 %v1125
  %v3785 = vpop.f32.mrf.mxu0
  %v3786 = vadd.f32 %v3714, %v3785
  %v3787 = vpop.f32.mrf.mxu0
  %v3788 = vpop.f32.mrf.mxu0
  %v3789 = vadd.f32 %v3717, %v3788
  %v3790 = vpop.f32.mrf.mxu0
  %3791 = vmatprep.mubr.bf16.mxu0 %v1158
  %3792 = vmatmul.mubr.bf16.gmra.mxu0 %v1157
  %v3793 = vpop.f32.mrf.mxu0
  %v3794 = vadd.f32 %v3722, %v3793
  %v3795 = vpop.f32.mrf.mxu0
  %v3796 = vpop.f32.mrf.mxu0
  %v3797 = vadd.f32 %v3725, %v3796
  %v3798 = vpop.f32.mrf.mxu0
  %3799 = vmatprep.mubr.bf16.mxu0 %v1190
  %3800 = vmatmul.mubr.bf16.gmra.mxu0 %v1189
  %v3801 = vpop.f32.mrf.mxu0
  %v3802 = vadd.f32 %v3730, %v3801
  %v3803 = vpop.f32.mrf.mxu0
  %v3804 = vpop.f32.mrf.mxu0
  %v3805 = vadd.f32 %v3733, %v3804
  %v3806 = vpop.f32.mrf.mxu0
  %3807 = vmatprep.mubr.bf16.mxu0 %v1222
  %3808 = vmatmul.mubr.bf16.gmra.mxu0 %v1221
  %v3809 = vpop.f32.mrf.mxu0
  %v3810 = vadd.f32 %v3738, %v3809
  %v3811 = vpop.f32.mrf.mxu0
  %v3812 = vpop.f32.mrf.mxu0
  %v3813 = vadd.f32 %v3741, %v3812
  %v3814 = vpop.f32.mrf.mxu0
  %3815 = vmatprep.mubr.bf16.mxu0 %v1254
  %3816 = vmatmul.mubr.bf16.gmra.mxu0 %v1253
  %v3817 = vpop.f32.mrf.mxu0
  %v3818 = vadd.f32 %v3746, %v3817
  %v3819 = vpop.f32.mrf.mxu0
  %v3820 = vpop.f32.mrf.mxu0
  %v3821 = vpop.f32.mrf.mxu0
  %3822 = vdwg.mxu0
  %3823 = vmatprep.subr.bf16.mxu0 0
  %3824 = vmatpush1.bf16.msra.mxu0 %v2646
  %3825 = vmatprep.subr.bf16.mxu0 0
  %3826 = vmatpush1.bf16.msra.mxu0 %v2645
  %3827 = vmatprep.subr.bf16.mxu0 0
  %3828 = vmatpush1.bf16.msra.mxu0 %v2644
  %3829 = vmatprep.subr.bf16.mxu0 0
  %3830 = vmatpush1.bf16.msra.mxu0 %v2643
  %3831 = vmatprep.subr.bf16.mxu0 0
  %3832 = vmatpush1.bf16.msra.mxu0 %v2642
  %3833 = vmatprep.subr.bf16.mxu0 0
  %3834 = vmatpush1.bf16.msra.mxu0 %v2641
  %3835 = vmatprep.subr.bf16.mxu0 0
  %3836 = vmatpush1.bf16.msra.mxu0 %v2640
  %3837 = vmatprep.subr.bf16.mxu0 0
  %3838 = vmatpush1.bf16.msra.mxu0 %v2639
  %3839 = vmatprep.subr.bf16.mxu0 0
  %3840 = vmatpush2.bf16.msra.mxu0 %v2654
  %3841 = vmatprep.subr.bf16.mxu0 0
  %3842 = vmatpush2.bf16.msra.mxu0 %v2653
  %3843 = vmatprep.subr.bf16.mxu0 0
  %3844 = vmatpush2.bf16.msra.mxu0 %v2652
  %3845 = vmatprep.subr.bf16.mxu0 0
  %3846 = vmatpush2.bf16.msra.mxu0 %v2651
  %3847 = vmatprep.subr.bf16.mxu0 0
  %3848 = vmatpush2.bf16.msra.mxu0 %v2650
  %3849 = vmatprep.subr.bf16.mxu0 0
  %3850 = vmatpush2.bf16.msra.mxu0 %v2649
  %3851 = vmatprep.subr.bf16.mxu0 0
  %3852 = vmatpush2.bf16.msra.mxu0 %v2648
  %3853 = vmatprep.subr.bf16.mxu0 0
  %3854 = vmatpush2.bf16.msra.mxu0 %v2647
  %3855 = vmatprep.mubr.bf16.mxu0 %v1128
  %3856 = vmatmul.mubr.bf16.gmra.mxu0 %v1127
  %v3857 = vpop.f32.mrf.mxu0
  %v3858 = vadd.f32 %v3786, %v3857
  %v3859 = vpop.f32.mrf.mxu0
  %v3860 = vpop.f32.mrf.mxu0
  %v3861 = vadd.f32 %v3789, %v3860
  %v3862 = vpop.f32.mrf.mxu0
  %3863 = vmatprep.mubr.bf16.mxu0 %v1160
  %3864 = vmatmul.mubr.bf16.gmra.mxu0 %v1159
  %v3865 = vpop.f32.mrf.mxu0
  %v3866 = vadd.f32 %v3794, %v3865
  %v3867 = vpop.f32.mrf.mxu0
  %v3868 = vpop.f32.mrf.mxu0
  %v3869 = vadd.f32 %v3797, %v3868
  %v3870 = vpop.f32.mrf.mxu0
  %3871 = vmatprep.mubr.bf16.mxu0 %v1192
  %3872 = vmatmul.mubr.bf16.gmra.mxu0 %v1191
  %v3873 = vpop.f32.mrf.mxu0
  %v3874 = vadd.f32 %v3802, %v3873
  %v3875 = vpop.f32.mrf.mxu0
  %v3876 = vpop.f32.mrf.mxu0
  %v3877 = vadd.f32 %v3805, %v3876
  %v3878 = vpop.f32.mrf.mxu0
  %3879 = vmatprep.mubr.bf16.mxu0 %v1224
  %3880 = vmatmul.mubr.bf16.gmra.mxu0 %v1223
  %v3881 = vpop.f32.mrf.mxu0
  %v3882 = vadd.f32 %v3810, %v3881
  %v3883 = vpop.f32.mrf.mxu0
  %v3884 = vpop.f32.mrf.mxu0
  %v3885 = vadd.f32 %v3813, %v3884
  %v3886 = vpop.f32.mrf.mxu0
  %3887 = vmatprep.mubr.bf16.mxu0 %v1256
  %3888 = vmatmul.mubr.bf16.gmra.mxu0 %v1255
  %v3889 = vpop.f32.mrf.mxu0
  %v3890 = vadd.f32 %v3818, %v3889
  %v3891 = vpop.f32.mrf.mxu0
  %v3892 = vpop.f32.mrf.mxu0
  %v3893 = vpop.f32.mrf.mxu0
  %3894 = vdwg.mxu0
  %3895 = vmatprep.subr.bf16.mxu0 0
  %3896 = vmatpush1.bf16.msra.mxu0 %v2662
  %3897 = vmatprep.subr.bf16.mxu0 0
  %3898 = vmatpush1.bf16.msra.mxu0 %v2661
  %3899 = vmatprep.subr.bf16.mxu0 0
  %3900 = vmatpush1.bf16.msra.mxu0 %v2660
  %3901 = vmatprep.subr.bf16.mxu0 0
  %3902 = vmatpush1.bf16.msra.mxu0 %v2659
  %3903 = vmatprep.subr.bf16.mxu0 0
  %3904 = vmatpush1.bf16.msra.mxu0 %v2658
  %3905 = vmatprep.subr.bf16.mxu0 0
  %3906 = vmatpush1.bf16.msra.mxu0 %v2657
  %3907 = vmatprep.subr.bf16.mxu0 0
  %3908 = vmatpush1.bf16.msra.mxu0 %v2656
  %3909 = vmatprep.subr.bf16.mxu0 0
  %3910 = vmatpush1.bf16.msra.mxu0 %v2655
  %3911 = vmatprep.subr.bf16.mxu0 0
  %3912 = vmatpush2.bf16.msra.mxu0 %v2670
  %3913 = vmatprep.subr.bf16.mxu0 0
  %3914 = vmatpush2.bf16.msra.mxu0 %v2669
  %3915 = vmatprep.subr.bf16.mxu0 0
  %3916 = vmatpush2.bf16.msra.mxu0 %v2668
  %3917 = vmatprep.subr.bf16.mxu0 0
  %3918 = vmatpush2.bf16.msra.mxu0 %v2667
  %3919 = vmatprep.subr.bf16.mxu0 0
  %3920 = vmatpush2.bf16.msra.mxu0 %v2666
  %3921 = vmatprep.subr.bf16.mxu0 0
  %3922 = vmatpush2.bf16.msra.mxu0 %v2665
  %3923 = vmatprep.subr.bf16.mxu0 0
  %3924 = vmatpush2.bf16.msra.mxu0 %v2664
  %3925 = vmatprep.subr.bf16.mxu0 0
  %3926 = vmatpush2.bf16.msra.mxu0 %v2663
  %3927 = vmatprep.mubr.bf16.mxu0 %v1130
  %3928 = vmatmul.mubr.bf16.gmra.mxu0 %v1129
  %v3929 = vpop.f32.mrf.mxu0
  %v3930 = vadd.f32 %v3858, %v3929
  %v3931 = vpop.f32.mrf.mxu0
  %v3932 = vpop.f32.mrf.mxu0
  %v3933 = vadd.f32 %v3861, %v3932
  %v3934 = vpop.f32.mrf.mxu0
  %3935 = vmatprep.mubr.bf16.mxu0 %v1162
  %3936 = vmatmul.mubr.bf16.gmra.mxu0 %v1161
  %v3937 = vpop.f32.mrf.mxu0
  %v3938 = vadd.f32 %v3866, %v3937
  %v3939 = vpop.f32.mrf.mxu0
  %v3940 = vpop.f32.mrf.mxu0
  %v3941 = vadd.f32 %v3869, %v3940
  %v3942 = vpop.f32.mrf.mxu0
  %3943 = vmatprep.mubr.bf16.mxu0 %v1194
  %3944 = vmatmul.mubr.bf16.gmra.mxu0 %v1193
  %v3945 = vpop.f32.mrf.mxu0
  %v3946 = vadd.f32 %v3874, %v3945
  %v3947 = vpop.f32.mrf.mxu0
  %v3948 = vpop.f32.mrf.mxu0
  %v3949 = vadd.f32 %v3877, %v3948
  %v3950 = vpop.f32.mrf.mxu0
  %3951 = vmatprep.mubr.bf16.mxu0 %v1226
  %3952 = vmatmul.mubr.bf16.gmra.mxu0 %v1225
  %v3953 = vpop.f32.mrf.mxu0
  %v3954 = vadd.f32 %v3882, %v3953
  %v3955 = vpop.f32.mrf.mxu0
  %v3956 = vpop.f32.mrf.mxu0
  %v3957 = vadd.f32 %v3885, %v3956
  %v3958 = vpop.f32.mrf.mxu0
  %3959 = vmatprep.mubr.bf16.mxu0 %v1258
  %3960 = vmatmul.mubr.bf16.gmra.mxu0 %v1257
  %v3961 = vpop.f32.mrf.mxu0
  %v3962 = vadd.f32 %v3890, %v3961
  %v3963 = vpop.f32.mrf.mxu0
  %v3964 = vpop.f32.mrf.mxu0
  %v3965 = vpop.f32.mrf.mxu0
  %3966 = vdwg.mxu0
  %3967 = vmatprep.subr.bf16.mxu0 0
  %3968 = vmatpush1.bf16.msra.mxu0 %v2678
  %3969 = vmatprep.subr.bf16.mxu0 0
  %3970 = vmatpush1.bf16.msra.mxu0 %v2677
  %3971 = vmatprep.subr.bf16.mxu0 0
  %3972 = vmatpush1.bf16.msra.mxu0 %v2676
  %3973 = vmatprep.subr.bf16.mxu0 0
  %3974 = vmatpush1.bf16.msra.mxu0 %v2675
  %3975 = vmatprep.subr.bf16.mxu0 0
  %3976 = vmatpush1.bf16.msra.mxu0 %v2674
  %3977 = vmatprep.subr.bf16.mxu0 0
  %3978 = vmatpush1.bf16.msra.mxu0 %v2673
  %3979 = vmatprep.subr.bf16.mxu0 0
  %3980 = vmatpush1.bf16.msra.mxu0 %v2672
  %3981 = vmatprep.subr.bf16.mxu0 0
  %3982 = vmatpush1.bf16.msra.mxu0 %v2671
  %3983 = vmatprep.subr.bf16.mxu0 0
  %3984 = vmatpush2.bf16.msra.mxu0 %v2686
  %3985 = vmatprep.subr.bf16.mxu0 0
  %3986 = vmatpush2.bf16.msra.mxu0 %v2685
  %3987 = vmatprep.subr.bf16.mxu0 0
  %3988 = vmatpush2.bf16.msra.mxu0 %v2684
  %3989 = vmatprep.subr.bf16.mxu0 0
  %3990 = vmatpush2.bf16.msra.mxu0 %v2683
  %3991 = vmatprep.subr.bf16.mxu0 0
  %3992 = vmatpush2.bf16.msra.mxu0 %v2682
  %3993 = vmatprep.subr.bf16.mxu0 0
  %3994 = vmatpush2.bf16.msra.mxu0 %v2681
  %3995 = vmatprep.subr.bf16.mxu0 0
  %3996 = vmatpush2.bf16.msra.mxu0 %v2680
  %3997 = vmatprep.subr.bf16.mxu0 0
  %3998 = vmatpush2.bf16.msra.mxu0 %v2679
  %3999 = vmatprep.mubr.bf16.mxu0 %v1132
  %4000 = vmatmul.mubr.bf16.gmra.mxu0 %v1131
  %v4001 = vpop.f32.mrf.mxu0
  %v4002 = vadd.f32 %v3930, %v4001
  %v4003 = vpop.f32.mrf.mxu0
  %v4004 = vpop.f32.mrf.mxu0
  %v4005 = vadd.f32 %v3933, %v4004
  %v4006 = vpop.f32.mrf.mxu0
  %4007 = vmatprep.mubr.bf16.mxu0 %v1164
  %4008 = vmatmul.mubr.bf16.gmra.mxu0 %v1163
  %v4009 = vpop.f32.mrf.mxu0
  %v4010 = vadd.f32 %v3938, %v4009
  %v4011 = vpop.f32.mrf.mxu0
  %v4012 = vpop.f32.mrf.mxu0
  %v4013 = vadd.f32 %v3941, %v4012
  %v4014 = vpop.f32.mrf.mxu0
  %4015 = vmatprep.mubr.bf16.mxu0 %v1196
  %4016 = vmatmul.mubr.bf16.gmra.mxu0 %v1195
  %v4017 = vpop.f32.mrf.mxu0
  %v4018 = vadd.f32 %v3946, %v4017
  %v4019 = vpop.f32.mrf.mxu0
  %v4020 = vpop.f32.mrf.mxu0
  %v4021 = vadd.f32 %v3949, %v4020
  %v4022 = vpop.f32.mrf.mxu0
  %4023 = vmatprep.mubr.bf16.mxu0 %v1228
  %4024 = vmatmul.mubr.bf16.gmra.mxu0 %v1227
  %v4025 = vpop.f32.mrf.mxu0
  %v4026 = vadd.f32 %v3954, %v4025
  %v4027 = vpop.f32.mrf.mxu0
  %v4028 = vpop.f32.mrf.mxu0
  %v4029 = vadd.f32 %v3957, %v4028
  %v4030 = vpop.f32.mrf.mxu0
  %4031 = vmatprep.mubr.bf16.mxu0 %v1260
  %4032 = vmatmul.mubr.bf16.gmra.mxu0 %v1259
  %v4033 = vpop.f32.mrf.mxu0
  %v4034 = vadd.f32 %v3962, %v4033
  %v4035 = vpop.f32.mrf.mxu0
  %v4036 = vpop.f32.mrf.mxu0
  %v4037 = vpop.f32.mrf.mxu0
  %4038 = vdwg.mxu0
  %4039 = vmatprep.subr.bf16.mxu0 0
  %4040 = vmatpush1.bf16.msra.mxu0 %v2694
  %4041 = vmatprep.subr.bf16.mxu0 0
  %4042 = vmatpush1.bf16.msra.mxu0 %v2693
  %4043 = vmatprep.subr.bf16.mxu0 0
  %4044 = vmatpush1.bf16.msra.mxu0 %v2692
  %4045 = vmatprep.subr.bf16.mxu0 0
  %4046 = vmatpush1.bf16.msra.mxu0 %v2691
  %4047 = vmatprep.subr.bf16.mxu0 0
  %4048 = vmatpush1.bf16.msra.mxu0 %v2690
  %4049 = vmatprep.subr.bf16.mxu0 0
  %4050 = vmatpush1.bf16.msra.mxu0 %v2689
  %4051 = vmatprep.subr.bf16.mxu0 0
  %4052 = vmatpush1.bf16.msra.mxu0 %v2688
  %4053 = vmatprep.subr.bf16.mxu0 0
  %4054 = vmatpush1.bf16.msra.mxu0 %v2687
  %4055 = vmatprep.subr.bf16.mxu0 0
  %4056 = vmatpush2.bf16.msra.mxu0 %v2702
  %4057 = vmatprep.subr.bf16.mxu0 0
  %4058 = vmatpush2.bf16.msra.mxu0 %v2701
  %4059 = vmatprep.subr.bf16.mxu0 0
  %4060 = vmatpush2.bf16.msra.mxu0 %v2700
  %4061 = vmatprep.subr.bf16.mxu0 0
  %4062 = vmatpush2.bf16.msra.mxu0 %v2699
  %4063 = vmatprep.subr.bf16.mxu0 0
  %4064 = vmatpush2.bf16.msra.mxu0 %v2698
  %4065 = vmatprep.subr.bf16.mxu0 0
  %4066 = vmatpush2.bf16.msra.mxu0 %v2697
  %4067 = vmatprep.subr.bf16.mxu0 0
  %4068 = vmatpush2.bf16.msra.mxu0 %v2696
  %4069 = vmatprep.subr.bf16.mxu0 0
  %4070 = vmatpush2.bf16.msra.mxu0 %v2695
  %4071 = vmatprep.mubr.bf16.mxu0 %v1134
  %4072 = vmatmul.mubr.bf16.gmra.mxu0 %v1133
  %v4073 = vpop.f32.mrf.mxu0
  %v4074 = vadd.f32 %v4002, %v4073
  %v4075 = vpop.f32.mrf.mxu0
  %v4076 = vpop.f32.mrf.mxu0
  %v4077 = vadd.f32 %v4005, %v4076
  %v4078 = vpop.f32.mrf.mxu0
  %4079 = vmatprep.mubr.bf16.mxu0 %v1166
  %4080 = vmatmul.mubr.bf16.gmra.mxu0 %v1165
  %v4081 = vpop.f32.mrf.mxu0
  %v4082 = vadd.f32 %v4010, %v4081
  %v4083 = vpop.f32.mrf.mxu0
  %v4084 = vpop.f32.mrf.mxu0
  %v4085 = vadd.f32 %v4013, %v4084
  %v4086 = vpop.f32.mrf.mxu0
  %4087 = vmatprep.mubr.bf16.mxu0 %v1198
  %4088 = vmatmul.mubr.bf16.gmra.mxu0 %v1197
  %v4089 = vpop.f32.mrf.mxu0
  %v4090 = vadd.f32 %v4018, %v4089
  %v4091 = vpop.f32.mrf.mxu0
  %v4092 = vpop.f32.mrf.mxu0
  %v4093 = vadd.f32 %v4021, %v4092
  %v4094 = vpop.f32.mrf.mxu0
  %4095 = vmatprep.mubr.bf16.mxu0 %v1230
  %4096 = vmatmul.mubr.bf16.gmra.mxu0 %v1229
  %v4097 = vpop.f32.mrf.mxu0
  %v4098 = vadd.f32 %v4026, %v4097
  %v4099 = vpop.f32.mrf.mxu0
  %v4100 = vpop.f32.mrf.mxu0
  %v4101 = vadd.f32 %v4029, %v4100
  %v4102 = vpop.f32.mrf.mxu0
  %4103 = vmatprep.mubr.bf16.mxu0 %v1262
  %4104 = vmatmul.mubr.bf16.gmra.mxu0 %v1261
  %v4105 = vpop.f32.mrf.mxu0
  %v4106 = vadd.f32 %v4034, %v4105
  %v4107 = vpop.f32.mrf.mxu0
  %v4108 = vpop.f32.mrf.mxu0
  %v4109 = vpop.f32.mrf.mxu0
  %4110 = vdwg.mxu0
  %4111 = vst [vmem:[%s2] sm:$0xff] %v4074
  %4112 = vst [vmem:[%s2 + $0x8] sm:$0xff] %v4077
  %4113 = vst [vmem:[%s2 + $0x10] sm:$0xff] %v4082
  %4114 = vst [vmem:[%s2 + $0x18] sm:$0xff] %v4085
  %4115 = vst [vmem:[%s2 + $0x20] sm:$0xff] %v4090
  %4116 = vst [vmem:[%s2 + $0x28] sm:$0xff] %v4093
  %4117 = vst [vmem:[%s2 + $0x30] sm:$0xff] %v4098
  %4118 = vst [vmem:[%s2 + $0x38] sm:$0xff] %v4101
  %4119 = vst [vmem:[%s2 + $0x40] sm:$0xff] %v4106
  %v4120 = vadd.f32 %v4074, %v4077
  %v4121 = vadd.f32 %v4120, %v4082
  %v4122 = vadd.f32 %v4121, %v4085
  %v4123 = vadd.f32 %v4122, %v4090
  %v4124 = vadd.f32 %v4123, %v4093
  %v4125 = vadd.f32 %v4124, %v4098
  %v4126 = vadd.f32 %v4125, %v4101
  %v4127 = vadd.f32 %v4126, %v4106
  %v4128 = vrot.slane %v4127, 4
  %v4129 = vadd.f32 %v4127, %v4128
  %v4130 = vrot.slane %v4129, 2
  %v4131 = vadd.f32 %v4129, %v4130
  %v4132 = vrot.slane %v4131, 1
  %v4133 = vadd.f32 %v4131, %v4132
  %4134 = vst [vmem:[%s3] sm:$0x1] %v4133
  %v4135 = vmul.f32 %v4074, %v4074
  %v4136 = vmul.f32 %v4077, %v4077
  %v4137 = vmul.f32 %v4082, %v4082
  %v4138 = vmul.f32 %v4085, %v4085
  %v4139 = vmul.f32 %v4090, %v4090
  %v4140 = vmul.f32 %v4093, %v4093
  %v4141 = vmul.f32 %v4098, %v4098
  %v4142 = vmul.f32 %v4101, %v4101
  %v4143 = vmul.f32 %v4106, %v4106
  %v4144 = vadd.f32 %v4135, %v4136
  %v4145 = vadd.f32 %v4144, %v4137
  %v4146 = vadd.f32 %v4145, %v4138
  %v4147 = vadd.f32 %v4146, %v4139
  %v4148 = vadd.f32 %v4147, %v4140
  %v4149 = vadd.f32 %v4148, %v4141
  %v4150 = vadd.f32 %v4149, %v4142
  %v4151 = vadd.f32 %v4150, %v4143
  %v4152 = vrot.slane %v4151, 4
  %v4153 = vadd.f32 %v4151, %v4152
  %v4154 = vrot.slane %v4153, 2
  %v4155 = vadd.f32 %v4153, %v4154
  %v4156 = vrot.slane %v4155, 1
  %v4157 = vadd.f32 %v4155, %v4156
  %4158 = vst [vmem:[%s4] sm:$0x1] %v4157
  // Predicated region
  $region10: #{decoder_forward.9} parent=0 // pred_check
    _
  $region11: #{decoder_forward.9} parent=0 // pred_check_branch
    %4160 = sbr.rel (0) target = $region13
  $region12: #{decoder_forward.9} parent=0 // pred_region
    _
  $region13: #{decoder_forward.9} parent=0 // pred_fallthru
    _
  // Predicated region
  $region14: #{decoder_forward.9} parent=0 // pred_check
    _
  $region15: #{decoder_forward.9} parent=0 // pred_check_branch
    %4162 = sbr.rel (0) target = $region17
  $region16: #{decoder_forward.9} parent=0 // pred_region
    _
  $region17: #{decoder_forward.9} parent=0 // pred_fallthru
    _
  // Predicated region
  $region18: #{decoder_forward.9} parent=0 // pred_check
    _
  $region19: #{decoder_forward.9} parent=0 // pred_check_branch
    %4164 = sbr.rel (0) target = $region21
  $region20: #{decoder_forward.9} parent=0 // pred_region
    _
  $region21: #{decoder_forward.9} parent=0 // pred_fallthru
    _
  // Predicated region
  $region22: #{decoder_forward.9} parent=0 // pred_check
    _
  $region23: #{decoder_forward.9} parent=0 // pred_check_branch
    %4166 = sbr.rel (0) target = $region25
  $region24: #{decoder_forward.9} parent=0 // pred_region
    _
  $region25: #{decoder_forward.9} parent=0 // pred_fallthru
    _
  // Predicated region
  $region26: #{decoder_forward.9} parent=0 // pred_check
    _
  $region27: #{decoder_forward.9} parent=0 // pred_check_branch
    %4168 = sbr.rel (0) target = $region29
  $region28: #{decoder_forward.9} parent=0 // pred_region
    _
  $region29: #{decoder_forward.9} parent=0 // pred_fallthru
    _
  // Predicated region
  $region30: #{decoder_forward.9} parent=0 // pred_check
    _
  $region31: #{decoder_forward.9} parent=0 // pred_check_branch
    %4170 = sbr.rel (0) target = $region33
  $region32: #{decoder_forward.9} parent=0 // pred_region
    _
  $region33: #{decoder_forward.9} parent=0 // pred_fallthru
    _

// kernel: decoder_forward.11
$region0: #{decoder_forward.11}
  #allocation0 [shape = 'u32[]', space=smem, size = 0x4, offset = 0x4, fixed_abs, tag = 'smem constant byte address 0x4 - core index']
  #allocation1 [shape = 'u32[144,128]{1,0:T(1,128)}', space=vmem, size = 0x12000, scoped, tag = 'internal scratch']
  %s0 = inlined_call_operand.vmem [shape: bf16[104,512], index: 0, kind: input, shape index: {}]
  %s1 = inlined_call_operand.vmem [shape: bf16[512,256], index: 1, kind: input, shape index: {}]
  %s2 = inlined_call_operand.vmem [shape: f32[104,256], index: 2, kind: output, shape index: {0}]
  %s3 = inlined_call_operand.vmem [shape: f32[1,1,256], index: 3, kind: output, shape index: {1}]
  %s4 = inlined_call_operand.vmem [shape: f32[1,1,256], index: 4, kind: output, shape index: {2}]
  %5 = xla_tuple %s2, %s3, %s4
  %s6 = sld [smem:[#allocation0]]
  $region34: #{decoder_forward.11} parent=0
    _
  %s8 = ssub.s32 1, %s6
  %s9 = scalar_select 0, %s8, %s6
  // Predicated region
  $region2: #{decoder_forward.11} parent=0 // pred_check
    _
  $region3: #{decoder_forward.11} parent=0 // pred_check_branch
    %11 = sbr.rel (0) target = $region5
  $region4: #{decoder_forward.11} parent=0 // pred_region
    _
  $region5: #{decoder_forward.11} parent=0 // pred_fallthru
    _
  // Predicated region
  $region6: #{decoder_forward.11} parent=0 // pred_check
    _
  $region7: #{decoder_forward.11} parent=0 // pred_check_branch
    %13 = sbr.rel (0) target = $region9
  $region8: #{decoder_forward.11} parent=0 // pred_region
    _
  $region9: #{decoder_forward.11} parent=0 // pred_fallthru
    _
  %v14 = vld [vmem:[%s0] sm:$0xff]
  %v15 = vld [vmem:[%s0 + $0x8] sm:$0xff]
  %v16 = vld [vmem:[%s0 + $0x10] sm:$0xff]
  %v17 = vld [vmem:[%s0 + $0x18] sm:$0xff]
  %v18 = vld [vmem:[%s0 + $0x20] sm:$0xff]
  %v19 = vld [vmem:[%s0 + $0x28] sm:$0xff]
  %v20 = vld [vmem:[%s0 + $0x30] sm:$0xff]
  %v21 = vld [vmem:[%s0 + $0x38] sm:$0xff]
  %v22 = vld [vmem:[%s0 + $0x40] sm:$0xff]
  %v23 = vld [vmem:[%s0 + $0x48] sm:$0xff]
  %v24 = vld [vmem:[%s0 + $0x50] sm:$0xff]
  %v25 = vld [vmem:[%s0 + $0x58] sm:$0xff]
  %v26 = vld [vmem:[%s0 + $0x60] sm:$0xff]
  %v27 = vld [vmem:[%s0 + $0x68] sm:$0xff]
  %v28 = vld [vmem:[%s0 + $0x70] sm:$0xff]
  %v29 = vld [vmem:[%s0 + $0x78] sm:$0xff]
  %v30 = vld [vmem:[%s0 + $0x80] sm:$0xff]
  %v31 = vld [vmem:[%s0 + $0x88] sm:$0xff]
  %v32 = vld [vmem:[%s0 + $0x90] sm:$0xff]
  %v33 = vld [vmem:[%s0 + $0x98] sm:$0xff]
  %v34 = vld [vmem:[%s0 + $0xa0] sm:$0xff]
  %v35 = vld [vmem:[%s0 + $0xa8] sm:$0xff]
  %v36 = vld [vmem:[%s0 + $0xb0] sm:$0xff]
  %v37 = vld [vmem:[%s0 + $0xb8] sm:$0xff]
  %v38 = vld [vmem:[%s0 + $0xc0] sm:$0xff]
  %v39 = vld [vmem:[%s0 + $0xc8] sm:$0xff]
  %v40 = vld [vmem:[%s1] sm:$0xff]
  %v41 = vld [vmem:[%s1 + $0x8] sm:$0xff]
  %v42 = vld [vmem:[%s1 + $0x10] sm:$0xff]
  %v43 = vld [vmem:[%s1 + $0x18] sm:$0xff]
  %v44 = vld [vmem:[%s1 + $0x20] sm:$0xff]
  %v45 = vld [vmem:[%s1 + $0x28] sm:$0xff]
  %v46 = vld [vmem:[%s1 + $0x30] sm:$0xff]
  %v47 = vld [vmem:[%s1 + $0x38] sm:$0xff]
  %v48 = vld [vmem:[%s1 + $0x40] sm:$0xff]
  %v49 = vld [vmem:[%s1 + $0x48] sm:$0xff]
  %v50 = vld [vmem:[%s1 + $0x50] sm:$0xff]
  %v51 = vld [vmem:[%s1 + $0x58] sm:$0xff]
  %v52 = vld [vmem:[%s1 + $0x60] sm:$0xff]
  %v53 = vld [vmem:[%s1 + $0x68] sm:$0xff]
  %v54 = vld [vmem:[%s1 + $0x70] sm:$0xff]
  %v55 = vld [vmem:[%s1 + $0x78] sm:$0xff]
  %v56 = vld [vmem:[%s1 + $0x80] sm:$0xff]
  %v57 = vld [vmem:[%s1 + $0x88] sm:$0xff]
  %v58 = vld [vmem:[%s1 + $0x90] sm:$0xff]
  %v59 = vld [vmem:[%s1 + $0x98] sm:$0xff]
  %v60 = vld [vmem:[%s1 + $0xa0] sm:$0xff]
  %v61 = vld [vmem:[%s1 + $0xa8] sm:$0xff]
  %v62 = vld [vmem:[%s1 + $0xb0] sm:$0xff]
  %v63 = vld [vmem:[%s1 + $0xb8] sm:$0xff]
  %v64 = vld [vmem:[%s1 + $0xc0] sm:$0xff]
  %v65 = vld [vmem:[%s1 + $0xc8] sm:$0xff]
  %v66 = vld [vmem:[%s1 + $0xd0] sm:$0xff]
  %v67 = vld [vmem:[%s1 + $0xd8] sm:$0xff]
  %v68 = vld [vmem:[%s1 + $0xe0] sm:$0xff]
  %v69 = vld [vmem:[%s1 + $0xe8] sm:$0xff]
  %v70 = vld [vmem:[%s1 + $0xf0] sm:$0xff]
  %v71 = vld [vmem:[%s1 + $0xf8] sm:$0xff]
  %v72 = vld [vmem:[%s1 + $0x100] sm:$0xff]
  %v73 = vld [vmem:[%s1 + $0x108] sm:$0xff]
  %v74 = vld [vmem:[%s1 + $0x110] sm:$0xff]
  %v75 = vld [vmem:[%s1 + $0x118] sm:$0xff]
  %v76 = vld [vmem:[%s1 + $0x120] sm:$0xff]
  %v77 = vld [vmem:[%s1 + $0x128] sm:$0xff]
  %v78 = vld [vmem:[%s1 + $0x130] sm:$0xff]
  %v79 = vld [vmem:[%s1 + $0x138] sm:$0xff]
  %v80 = vld [vmem:[%s1 + $0x140] sm:$0xff]
  %v81 = vld [vmem:[%s1 + $0x148] sm:$0xff]
  %v82 = vld [vmem:[%s1 + $0x150] sm:$0xff]
  %v83 = vld [vmem:[%s1 + $0x158] sm:$0xff]
  %v84 = vld [vmem:[%s1 + $0x160] sm:$0xff]
  %v85 = vld [vmem:[%s1 + $0x168] sm:$0xff]
  %v86 = vld [vmem:[%s1 + $0x170] sm:$0xff]
  %v87 = vld [vmem:[%s1 + $0x178] sm:$0xff]
  %v88 = vld [vmem:[%s1 + $0x180] sm:$0xff]
  %v89 = vld [vmem:[%s1 + $0x188] sm:$0xff]
  %v90 = vld [vmem:[%s1 + $0x190] sm:$0xff]
  %v91 = vld [vmem:[%s1 + $0x198] sm:$0xff]
  %v92 = vld [vmem:[%s1 + $0x1a0] sm:$0xff]
  %v93 = vld [vmem:[%s1 + $0x1a8] sm:$0xff]
  %v94 = vld [vmem:[%s1 + $0x1b0] sm:$0xff]
  %v95 = vld [vmem:[%s1 + $0x1b8] sm:$0xff]
  %v96 = vld [vmem:[%s1 + $0x1c0] sm:$0xff]
  %v97 = vld [vmem:[%s1 + $0x1c8] sm:$0xff]
  %v98 = vld [vmem:[%s1 + $0x1d0] sm:$0xff]
  %v99 = vld [vmem:[%s1 + $0x1d8] sm:$0xff]
  %v100 = vld [vmem:[%s1 + $0x1e0] sm:$0xff]
  %v101 = vld [vmem:[%s1 + $0x1e8] sm:$0xff]
  %v102 = vld [vmem:[%s1 + $0x1f0] sm:$0xff]
  %v103 = vld [vmem:[%s1 + $0x1f8] sm:$0xff]
  %v130 = vunpack.c.l.b16 %v14
  %v131 = vunpack.c.h.b16 %v14
  %v132 = vunpack.c.l.b16 %v15
  %v133 = vunpack.c.h.b16 %v15
  %v134 = vunpack.c.l.b16 %v16
  %v135 = vunpack.c.h.b16 %v16
  %v136 = vunpack.c.l.b16 %v17
  %v137 = vunpack.c.h.b16 %v17
  %v138 = vunpack.c.l.b16 %v18
  %v139 = vunpack.c.h.b16 %v18
  %v140 = vunpack.c.l.b16 %v19
  %v141 = vunpack.c.h.b16 %v19
  %v142 = vunpack.c.l.b16 %v20
  %v143 = vunpack.c.h.b16 %v20
  %v144 = vunpack.c.l.b16 %v21
  %v145 = vunpack.c.h.b16 %v21
  %v146 = vunpack.c.l.b16 %v22
  %v147 = vunpack.c.h.b16 %v22
  %v148 = vunpack.c.l.b16 %v23
  %v149 = vunpack.c.h.b16 %v23
  %v150 = vunpack.c.l.b16 %v24
  %v151 = vunpack.c.h.b16 %v24
  %v152 = vunpack.c.l.b16 %v25
  %v153 = vunpack.c.h.b16 %v25
  %v154 = vunpack.c.l.b16 %v26
  %v155 = vunpack.c.h.b16 %v26
  %v156 = vunpack.c.l.b16 %v27
  %v157 = vunpack.c.h.b16 %v27
  %v158 = vunpack.c.l.b16 %v28
  %v159 = vunpack.c.h.b16 %v28
  %v160 = vunpack.c.l.b16 %v29
  %v161 = vunpack.c.h.b16 %v29
  %v162 = vunpack.c.l.b16 %v30
  %v163 = vunpack.c.h.b16 %v30
  %v164 = vunpack.c.l.b16 %v31
  %v165 = vunpack.c.h.b16 %v31
  %v166 = vunpack.c.l.b16 %v32
  %v167 = vunpack.c.h.b16 %v32
  %v168 = vunpack.c.l.b16 %v33
  %v169 = vunpack.c.h.b16 %v33
  %v170 = vunpack.c.l.b16 %v34
  %v171 = vunpack.c.h.b16 %v34
  %v172 = vunpack.c.l.b16 %v35
  %v173 = vunpack.c.h.b16 %v35
  %v174 = vunpack.c.l.b16 %v36
  %v175 = vunpack.c.h.b16 %v36
  %v176 = vunpack.c.l.b16 %v37
  %v177 = vunpack.c.h.b16 %v37
  %v178 = vunpack.c.l.b16 %v38
  %v179 = vunpack.c.h.b16 %v38
  %v180 = vunpack.c.l.b16 %v39
  %v181 = vunpack.c.h.b16 %v39
  %v182 = vpack.c.b16 %v134, %v130
  %v183 = vpack.c.b16 %v135, %v131
  %v184 = vpack.c.b16 %v136, %v132
  %v185 = vpack.c.b16 %v137, %v133
  %v186 = vpack.c.b16 %v142, %v138
  %v187 = vpack.c.b16 %v143, %v139
  %v188 = vpack.c.b16 %v144, %v140
  %v189 = vpack.c.b16 %v145, %v141
  %v190 = vpack.c.b16 %v150, %v146
  %v191 = vpack.c.b16 %v151, %v147
  %v192 = vpack.c.b16 %v152, %v148
  %v193 = vpack.c.b16 %v153, %v149
  %v194 = vpack.c.b16 %v158, %v154
  %v195 = vpack.c.b16 %v159, %v155
  %v196 = vpack.c.b16 %v160, %v156
  %v197 = vpack.c.b16 %v161, %v157
  %v198 = vpack.c.b16 %v166, %v162
  %v199 = vpack.c.b16 %v167, %v163
  %v200 = vpack.c.b16 %v168, %v164
  %v201 = vpack.c.b16 %v169, %v165
  %v202 = vpack.c.b16 %v174, %v170
  %v203 = vpack.c.b16 %v175, %v171
  %v204 = vpack.c.b16 %v176, %v172
  %v205 = vpack.c.b16 %v177, %v173
  %v206 = vpack.c.b16 %v178, %v178
  %v207 = vpack.c.b16 %v179, %v179
  %v208 = vpack.c.b16 %v180, %v180
  %v209 = vpack.c.b16 %v181, %v181
  %v302 = vunpack.c.l.b16 %v40
  %v303 = vunpack.c.h.b16 %v40
  %v304 = vunpack.c.l.b16 %v41
  %v305 = vunpack.c.h.b16 %v41
  %v306 = vunpack.c.l.b16 %v42
  %v307 = vunpack.c.h.b16 %v42
  %v308 = vunpack.c.l.b16 %v43
  %v309 = vunpack.c.h.b16 %v43
  %v310 = vunpack.c.l.b16 %v44
  %v311 = vunpack.c.h.b16 %v44
  %v312 = vunpack.c.l.b16 %v45
  %v313 = vunpack.c.h.b16 %v45
  %v314 = vunpack.c.l.b16 %v46
  %v315 = vunpack.c.h.b16 %v46
  %v316 = vunpack.c.l.b16 %v47
  %v317 = vunpack.c.h.b16 %v47
  %v318 = vunpack.c.l.b16 %v48
  %v319 = vunpack.c.h.b16 %v48
  %v320 = vunpack.c.l.b16 %v49
  %v321 = vunpack.c.h.b16 %v49
  %v322 = vunpack.c.l.b16 %v50
  %v323 = vunpack.c.h.b16 %v50
  %v324 = vunpack.c.l.b16 %v51
  %v325 = vunpack.c.h.b16 %v51
  %v326 = vunpack.c.l.b16 %v52
  %v327 = vunpack.c.h.b16 %v52
  %v328 = vunpack.c.l.b16 %v53
  %v329 = vunpack.c.h.b16 %v53
  %v330 = vunpack.c.l.b16 %v54
  %v331 = vunpack.c.h.b16 %v54
  %v332 = vunpack.c.l.b16 %v55
  %v333 = vunpack.c.h.b16 %v55
  %v334 = vunpack.c.l.b16 %v56
  %v335 = vunpack.c.h.b16 %v56
  %v336 = vunpack.c.l.b16 %v57
  %v337 = vunpack.c.h.b16 %v57
  %v338 = vunpack.c.l.b16 %v58
  %v339 = vunpack.c.h.b16 %v58
  %v340 = vunpack.c.l.b16 %v59
  %v341 = vunpack.c.h.b16 %v59
  %v342 = vunpack.c.l.b16 %v60
  %v343 = vunpack.c.h.b16 %v60
  %v344 = vunpack.c.l.b16 %v61
  %v345 = vunpack.c.h.b16 %v61
  %v346 = vunpack.c.l.b16 %v62
  %v347 = vunpack.c.h.b16 %v62
  %v348 = vunpack.c.l.b16 %v63
  %v349 = vunpack.c.h.b16 %v63
  %v350 = vunpack.c.l.b16 %v64
  %v351 = vunpack.c.h.b16 %v64
  %v352 = vunpack.c.l.b16 %v65
  %v353 = vunpack.c.h.b16 %v65
  %v354 = vunpack.c.l.b16 %v66
  %v355 = vunpack.c.h.b16 %v66
  %v356 = vunpack.c.l.b16 %v67
  %v357 = vunpack.c.h.b16 %v67
  %v358 = vunpack.c.l.b16 %v68
  %v359 = vunpack.c.h.b16 %v68
  %v360 = vunpack.c.l.b16 %v69
  %v361 = vunpack.c.h.b16 %v69
  %v362 = vunpack.c.l.b16 %v70
  %v363 = vunpack.c.h.b16 %v70
  %v364 = vunpack.c.l.b16 %v71
  %v365 = vunpack.c.h.b16 %v71
  %v366 = vunpack.c.l.b16 %v72
  %v367 = vunpack.c.h.b16 %v72
  %v368 = vunpack.c.l.b16 %v73
  %v369 = vunpack.c.h.b16 %v73
  %v370 = vunpack.c.l.b16 %v74
  %v371 = vunpack.c.h.b16 %v74
  %v372 = vunpack.c.l.b16 %v75
  %v373 = vunpack.c.h.b16 %v75
  %v374 = vunpack.c.l.b16 %v76
  %v375 = vunpack.c.h.b16 %v76
  %v376 = vunpack.c.l.b16 %v77
  %v377 = vunpack.c.h.b16 %v77
  %v378 = vunpack.c.l.b16 %v78
  %v379 = vunpack.c.h.b16 %v78
  %v380 = vunpack.c.l.b16 %v79
  %v381 = vunpack.c.h.b16 %v79
  %v382 = vunpack.c.l.b16 %v80
  %v383 = vunpack.c.h.b16 %v80
  %v384 = vunpack.c.l.b16 %v81
  %v385 = vunpack.c.h.b16 %v81
  %v386 = vunpack.c.l.b16 %v82
  %v387 = vunpack.c.h.b16 %v82
  %v388 = vunpack.c.l.b16 %v83
  %v389 = vunpack.c.h.b16 %v83
  %v390 = vunpack.c.l.b16 %v84
  %v391 = vunpack.c.h.b16 %v84
  %v392 = vunpack.c.l.b16 %v85
  %v393 = vunpack.c.h.b16 %v85
  %v394 = vunpack.c.l.b16 %v86
  %v395 = vunpack.c.h.b16 %v86
  %v396 = vunpack.c.l.b16 %v87
  %v397 = vunpack.c.h.b16 %v87
  %v398 = vunpack.c.l.b16 %v88
  %v399 = vunpack.c.h.b16 %v88
  %v400 = vunpack.c.l.b16 %v89
  %v401 = vunpack.c.h.b16 %v89
  %v402 = vunpack.c.l.b16 %v90
  %v403 = vunpack.c.h.b16 %v90
  %v404 = vunpack.c.l.b16 %v91
  %v405 = vunpack.c.h.b16 %v91
  %v406 = vunpack.c.l.b16 %v92
  %v407 = vunpack.c.h.b16 %v92
  %v408 = vunpack.c.l.b16 %v93
  %v409 = vunpack.c.h.b16 %v93
  %v410 = vunpack.c.l.b16 %v94
  %v411 = vunpack.c.h.b16 %v94
  %v412 = vunpack.c.l.b16 %v95
  %v413 = vunpack.c.h.b16 %v95
  %v414 = vunpack.c.l.b16 %v96
  %v415 = vunpack.c.h.b16 %v96
  %v416 = vunpack.c.l.b16 %v97
  %v417 = vunpack.c.h.b16 %v97
  %v418 = vunpack.c.l.b16 %v98
  %v419 = vunpack.c.h.b16 %v98
  %v420 = vunpack.c.l.b16 %v99
  %v421 = vunpack.c.h.b16 %v99
  %v422 = vunpack.c.l.b16 %v100
  %v423 = vunpack.c.h.b16 %v100
  %v424 = vunpack.c.l.b16 %v101
  %v425 = vunpack.c.h.b16 %v101
  %v426 = vunpack.c.l.b16 %v102
  %v427 = vunpack.c.h.b16 %v102
  %v428 = vunpack.c.l.b16 %v103
  %v429 = vunpack.c.h.b16 %v103
  %v430 = vpack.c.b16 %v304, %v302
  %v431 = vpack.c.b16 %v305, %v303
  %v432 = vpack.c.b16 %v308, %v306
  %v433 = vpack.c.b16 %v309, %v307
  %v434 = vpack.c.b16 %v312, %v310
  %v435 = vpack.c.b16 %v313, %v311
  %v436 = vpack.c.b16 %v316, %v314
  %v437 = vpack.c.b16 %v317, %v315
  %v438 = vpack.c.b16 %v320, %v318
  %v439 = vpack.c.b16 %v321, %v319
  %v440 = vpack.c.b16 %v324, %v322
  %v441 = vpack.c.b16 %v325, %v323
  %v442 = vpack.c.b16 %v328, %v326
  %v443 = vpack.c.b16 %v329, %v327
  %v444 = vpack.c.b16 %v332, %v330
  %v445 = vpack.c.b16 %v333, %v331
  %v446 = vpack.c.b16 %v336, %v334
  %v447 = vpack.c.b16 %v337, %v335
  %v448 = vpack.c.b16 %v340, %v338
  %v449 = vpack.c.b16 %v341, %v339
  %v450 = vpack.c.b16 %v344, %v342
  %v451 = vpack.c.b16 %v345, %v343
  %v452 = vpack.c.b16 %v348, %v346
  %v453 = vpack.c.b16 %v349, %v347
  %v454 = vpack.c.b16 %v352, %v350
  %v455 = vpack.c.b16 %v353, %v351
  %v456 = vpack.c.b16 %v356, %v354
  %v457 = vpack.c.b16 %v357, %v355
  %v458 = vpack.c.b16 %v360, %v358
  %v459 = vpack.c.b16 %v361, %v359
  %v460 = vpack.c.b16 %v364, %v362
  %v461 = vpack.c.b16 %v365, %v363
  %v462 = vpack.c.b16 %v368, %v366
  %v463 = vpack.c.b16 %v369, %v367
  %v464 = vpack.c.b16 %v372, %v370
  %v465 = vpack.c.b16 %v373, %v371
  %v466 = vpack.c.b16 %v376, %v374
  %v467 = vpack.c.b16 %v377, %v375
  %v468 = vpack.c.b16 %v380, %v378
  %v469 = vpack.c.b16 %v381, %v379
  %v470 = vpack.c.b16 %v384, %v382
  %v471 = vpack.c.b16 %v385, %v383
  %v472 = vpack.c.b16 %v388, %v386
  %v473 = vpack.c.b16 %v389, %v387
  %v474 = vpack.c.b16 %v392, %v390
  %v475 = vpack.c.b16 %v393, %v391
  %v476 = vpack.c.b16 %v396, %v394
  %v477 = vpack.c.b16 %v397, %v395
  %v478 = vpack.c.b16 %v400, %v398
  %v479 = vpack.c.b16 %v401, %v399
  %v480 = vpack.c.b16 %v404, %v402
  %v481 = vpack.c.b16 %v405, %v403
  %v482 = vpack.c.b16 %v408, %v406
  %v483 = vpack.c.b16 %v409, %v407
  %v484 = vpack.c.b16 %v412, %v410
  %v485 = vpack.c.b16 %v413, %v411
  %v486 = vpack.c.b16 %v416, %v414
  %v487 = vpack.c.b16 %v417, %v415
  %v488 = vpack.c.b16 %v420, %v418
  %v489 = vpack.c.b16 %v421, %v419
  %v490 = vpack.c.b16 %v424, %v422
  %v491 = vpack.c.b16 %v425, %v423
  %v492 = vpack.c.b16 %v428, %v426
  %v493 = vpack.c.b16 %v429, %v427
  %558 = vmatprep.subr.bf16.mxu0 %v445
  %559 = vmatpush1.bf16.msra.mxu0 %v444
  %560 = vmatprep.subr.bf16.mxu0 %v443
  %561 = vmatpush1.bf16.msra.mxu0 %v442
  %562 = vmatprep.subr.bf16.mxu0 %v441
  %563 = vmatpush1.bf16.msra.mxu0 %v440
  %564 = vmatprep.subr.bf16.mxu0 %v439
  %565 = vmatpush1.bf16.msra.mxu0 %v438
  %566 = vmatprep.subr.bf16.mxu0 %v437
  %567 = vmatpush1.bf16.msra.mxu0 %v436
  %568 = vmatprep.subr.bf16.mxu0 %v435
  %569 = vmatpush1.bf16.msra.mxu0 %v434
  %570 = vmatprep.subr.bf16.mxu0 %v433
  %571 = vmatpush1.bf16.msra.mxu0 %v432
  %572 = vmatprep.subr.bf16.mxu0 %v431
  %573 = vmatpush1.bf16.msra.mxu0 %v430
  %574 = vmatprep.subr.bf16.mxu0 %v461
  %575 = vmatpush2.bf16.msra.mxu0 %v460
  %576 = vmatprep.subr.bf16.mxu0 %v459
  %577 = vmatpush2.bf16.msra.mxu0 %v458
  %578 = vmatprep.subr.bf16.mxu0 %v457
  %579 = vmatpush2.bf16.msra.mxu0 %v456
  %580 = vmatprep.subr.bf16.mxu0 %v455
  %581 = vmatpush2.bf16.msra.mxu0 %v454
  %582 = vmatprep.subr.bf16.mxu0 %v453
  %583 = vmatpush2.bf16.msra.mxu0 %v452
  %584 = vmatprep.subr.bf16.mxu0 %v451
  %585 = vmatpush2.bf16.msra.mxu0 %v450
  %586 = vmatprep.subr.bf16.mxu0 %v449
  %587 = vmatpush2.bf16.msra.mxu0 %v448
  %588 = vmatprep.subr.bf16.mxu0 %v447
  %589 = vmatpush2.bf16.msra.mxu0 %v446
  %590 = vmatprep.mubr.bf16.mxu0 %v183
  %591 = vmatmul.mubr.bf16.gmra.mxu0 %v182
  %v592 = vpop.f32.mrf.mxu0
  %v593 = vadd.f32 0.0, %v592
  %v594 = vpop.f32.mrf.mxu0
  %v595 = vadd.f32 0.0, %v594
  %v596 = vpop.f32.mrf.mxu0
  %v597 = vadd.f32 0.0, %v596
  %v598 = vpop.f32.mrf.mxu0
  %v599 = vadd.f32 0.0, %v598
  %600 = vmatprep.mubr.bf16.mxu0 %v187
  %601 = vmatmul.mubr.bf16.gmra.mxu0 %v186
  %v602 = vpop.f32.mrf.mxu0
  %v603 = vadd.f32 0.0, %v602
  %v604 = vpop.f32.mrf.mxu0
  %v605 = vadd.f32 0.0, %v604
  %v606 = vpop.f32.mrf.mxu0
  %v607 = vadd.f32 0.0, %v606
  %v608 = vpop.f32.mrf.mxu0
  %v609 = vadd.f32 0.0, %v608
  %610 = vmatprep.mubr.bf16.mxu0 %v191
  %611 = vmatmul.mubr.bf16.gmra.mxu0 %v190
  %v612 = vpop.f32.mrf.mxu0
  %v613 = vadd.f32 0.0, %v612
  %v614 = vpop.f32.mrf.mxu0
  %v615 = vadd.f32 0.0, %v614
  %v616 = vpop.f32.mrf.mxu0
  %v617 = vadd.f32 0.0, %v616
  %v618 = vpop.f32.mrf.mxu0
  %v619 = vadd.f32 0.0, %v618
  %620 = vmatprep.mubr.bf16.mxu0 %v195
  %621 = vmatmul.mubr.bf16.gmra.mxu0 %v194
  %v622 = vpop.f32.mrf.mxu0
  %v623 = vadd.f32 0.0, %v622
  %v624 = vpop.f32.mrf.mxu0
  %v625 = vadd.f32 0.0, %v624
  %v626 = vpop.f32.mrf.mxu0
  %v627 = vadd.f32 0.0, %v626
  %v628 = vpop.f32.mrf.mxu0
  %v629 = vadd.f32 0.0, %v628
  %630 = vmatprep.mubr.bf16.mxu0 %v199
  %631 = vmatmul.mubr.bf16.gmra.mxu0 %v198
  %v632 = vpop.f32.mrf.mxu0
  %v633 = vadd.f32 0.0, %v632
  %v634 = vpop.f32.mrf.mxu0
  %v635 = vadd.f32 0.0, %v634
  %v636 = vpop.f32.mrf.mxu0
  %v637 = vadd.f32 0.0, %v636
  %v638 = vpop.f32.mrf.mxu0
  %v639 = vadd.f32 0.0, %v638
  %640 = vmatprep.mubr.bf16.mxu0 %v203
  %641 = vmatmul.mubr.bf16.gmra.mxu0 %v202
  %v642 = vpop.f32.mrf.mxu0
  %v643 = vadd.f32 0.0, %v642
  %v644 = vpop.f32.mrf.mxu0
  %v645 = vadd.f32 0.0, %v644
  %v646 = vpop.f32.mrf.mxu0
  %v647 = vadd.f32 0.0, %v646
  %v648 = vpop.f32.mrf.mxu0
  %v649 = vadd.f32 0.0, %v648
  %650 = vmatprep.mubr.bf16.mxu0 %v207
  %651 = vmatmul.mubr.bf16.gmra.mxu0 %v206
  %v652 = vpop.f32.mrf.mxu0
  %v653 = vadd.f32 0.0, %v652
  %v654 = vpop.f32.mrf.mxu0
  %v655 = vadd.f32 0.0, %v654
  %v656 = vpop.f32.mrf.mxu0
  %v657 = vpop.f32.mrf.mxu0
  %658 = vdwg.mxu0
  %659 = vmatprep.subr.bf16.mxu0 %v477
  %660 = vmatpush1.bf16.msra.mxu0 %v476
  %661 = vmatprep.subr.bf16.mxu0 %v475
  %662 = vmatpush1.bf16.msra.mxu0 %v474
  %663 = vmatprep.subr.bf16.mxu0 %v473
  %664 = vmatpush1.bf16.msra.mxu0 %v472
  %665 = vmatprep.subr.bf16.mxu0 %v471
  %666 = vmatpush1.bf16.msra.mxu0 %v470
  %667 = vmatprep.subr.bf16.mxu0 %v469
  %668 = vmatpush1.bf16.msra.mxu0 %v468
  %669 = vmatprep.subr.bf16.mxu0 %v467
  %670 = vmatpush1.bf16.msra.mxu0 %v466
  %671 = vmatprep.subr.bf16.mxu0 %v465
  %672 = vmatpush1.bf16.msra.mxu0 %v464
  %673 = vmatprep.subr.bf16.mxu0 %v463
  %674 = vmatpush1.bf16.msra.mxu0 %v462
  %675 = vmatprep.subr.bf16.mxu0 %v493
  %676 = vmatpush2.bf16.msra.mxu0 %v492
  %677 = vmatprep.subr.bf16.mxu0 %v491
  %678 = vmatpush2.bf16.msra.mxu0 %v490
  %679 = vmatprep.subr.bf16.mxu0 %v489
  %680 = vmatpush2.bf16.msra.mxu0 %v488
  %681 = vmatprep.subr.bf16.mxu0 %v487
  %682 = vmatpush2.bf16.msra.mxu0 %v486
  %683 = vmatprep.subr.bf16.mxu0 %v485
  %684 = vmatpush2.bf16.msra.mxu0 %v484
  %685 = vmatprep.subr.bf16.mxu0 %v483
  %686 = vmatpush2.bf16.msra.mxu0 %v482
  %687 = vmatprep.subr.bf16.mxu0 %v481
  %688 = vmatpush2.bf16.msra.mxu0 %v480
  %689 = vmatprep.subr.bf16.mxu0 %v479
  %690 = vmatpush2.bf16.msra.mxu0 %v478
  %691 = vmatprep.mubr.bf16.mxu0 %v185
  %692 = vmatmul.mubr.bf16.gmra.mxu0 %v184
  %v693 = vpop.f32.mrf.mxu0
  %v694 = vadd.f32 %v593, %v693
  %v695 = vpop.f32.mrf.mxu0
  %v696 = vadd.f32 %v595, %v695
  %v697 = vpop.f32.mrf.mxu0
  %v698 = vadd.f32 %v597, %v697
  %v699 = vpop.f32.mrf.mxu0
  %v700 = vadd.f32 %v599, %v699
  %701 = vmatprep.mubr.bf16.mxu0 %v189
  %702 = vmatmul.mubr.bf16.gmra.mxu0 %v188
  %v703 = vpop.f32.mrf.mxu0
  %v704 = vadd.f32 %v603, %v703
  %v705 = vpop.f32.mrf.mxu0
  %v706 = vadd.f32 %v605, %v705
  %v707 = vpop.f32.mrf.mxu0
  %v708 = vadd.f32 %v607, %v707
  %v709 = vpop.f32.mrf.mxu0
  %v710 = vadd.f32 %v609, %v709
  %711 = vmatprep.mubr.bf16.mxu0 %v193
  %712 = vmatmul.mubr.bf16.gmra.mxu0 %v192
  %v713 = vpop.f32.mrf.mxu0
  %v714 = vadd.f32 %v613, %v713
  %v715 = vpop.f32.mrf.mxu0
  %v716 = vadd.f32 %v615, %v715
  %v717 = vpop.f32.mrf.mxu0
  %v718 = vadd.f32 %v617, %v717
  %v719 = vpop.f32.mrf.mxu0
  %v720 = vadd.f32 %v619, %v719
  %721 = vmatprep.mubr.bf16.mxu0 %v197
  %722 = vmatmul.mubr.bf16.gmra.mxu0 %v196
  %v723 = vpop.f32.mrf.mxu0
  %v724 = vadd.f32 %v623, %v723
  %v725 = vpop.f32.mrf.mxu0
  %v726 = vadd.f32 %v625, %v725
  %v727 = vpop.f32.mrf.mxu0
  %v728 = vadd.f32 %v627, %v727
  %v729 = vpop.f32.mrf.mxu0
  %v730 = vadd.f32 %v629, %v729
  %731 = vmatprep.mubr.bf16.mxu0 %v201
  %732 = vmatmul.mubr.bf16.gmra.mxu0 %v200
  %v733 = vpop.f32.mrf.mxu0
  %v734 = vadd.f32 %v633, %v733
  %v735 = vpop.f32.mrf.mxu0
  %v736 = vadd.f32 %v635, %v735
  %v737 = vpop.f32.mrf.mxu0
  %v738 = vadd.f32 %v637, %v737
  %v739 = vpop.f32.mrf.mxu0
  %v740 = vadd.f32 %v639, %v739
  %741 = vmatprep.mubr.bf16.mxu0 %v205
  %742 = vmatmul.mubr.bf16.gmra.mxu0 %v204
  %v743 = vpop.f32.mrf.mxu0
  %v744 = vadd.f32 %v643, %v743
  %v745 = vpop.f32.mrf.mxu0
  %v746 = vadd.f32 %v645, %v745
  %v747 = vpop.f32.mrf.mxu0
  %v748 = vadd.f32 %v647, %v747
  %v749 = vpop.f32.mrf.mxu0
  %v750 = vadd.f32 %v649, %v749
  %751 = vmatprep.mubr.bf16.mxu0 %v209
  %752 = vmatmul.mubr.bf16.gmra.mxu0 %v208
  %v753 = vpop.f32.mrf.mxu0
  %v754 = vadd.f32 %v653, %v753
  %v755 = vpop.f32.mrf.mxu0
  %v756 = vadd.f32 %v655, %v755
  %v757 = vpop.f32.mrf.mxu0
  %v758 = vpop.f32.mrf.mxu0
  %759 = vdwg.mxu0
  %760 = vst [vmem:[%s2] sm:$0xff] %v694
  %761 = vst [vmem:[%s2 + $0x8] sm:$0xff] %v696
  %762 = vst [vmem:[%s2 + $0x10] sm:$0xff] %v698
  %763 = vst [vmem:[%s2 + $0x18] sm:$0xff] %v700
  %764 = vst [vmem:[%s2 + $0x20] sm:$0xff] %v704
  %765 = vst [vmem:[%s2 + $0x28] sm:$0xff] %v706
  %766 = vst [vmem:[%s2 + $0x30] sm:$0xff] %v708
  %767 = vst [vmem:[%s2 + $0x38] sm:$0xff] %v710
  %768 = vst [vmem:[%s2 + $0x40] sm:$0xff] %v714
  %769 = vst [vmem:[%s2 + $0x48] sm:$0xff] %v716
  %770 = vst [vmem:[%s2 + $0x50] sm:$0xff] %v718
  %771 = vst [vmem:[%s2 + $0x58] sm:$0xff] %v720
  %772 = vst [vmem:[%s2 + $0x60] sm:$0xff] %v724
  %773 = vst [vmem:[%s2 + $0x68] sm:$0xff] %v726
  %774 = vst [vmem:[%s2 + $0x70] sm:$0xff] %v728
  %775 = vst [vmem:[%s2 + $0x78] sm:$0xff] %v730
  %776 = vst [vmem:[%s2 + $0x80] sm:$0xff] %v734
  %777 = vst [vmem:[%s2 + $0x88] sm:$0xff] %v736
  %778 = vst [vmem:[%s2 + $0x90] sm:$0xff] %v738
  %779 = vst [vmem:[%s2 + $0x98] sm:$0xff] %v740
  %780 = vst [vmem:[%s2 + $0xa0] sm:$0xff] %v744
  %781 = vst [vmem:[%s2 + $0xa8] sm:$0xff] %v746
  %782 = vst [vmem:[%s2 + $0xb0] sm:$0xff] %v748
  %783 = vst [vmem:[%s2 + $0xb8] sm:$0xff] %v750
  %784 = vst [vmem:[%s2 + $0xc0] sm:$0xff] %v754
  %785 = vst [vmem:[%s2 + $0xc8] sm:$0xff] %v756
  %v786 = vadd.f32 %v694, %v698
  %v787 = vadd.f32 %v786, %v704
  %v788 = vadd.f32 %v787, %v708
  %v789 = vadd.f32 %v788, %v714
  %v790 = vadd.f32 %v789, %v718
  %v791 = vadd.f32 %v790, %v724
  %v792 = vadd.f32 %v791, %v728
  %v793 = vadd.f32 %v792, %v734
  %v794 = vadd.f32 %v793, %v738
  %v795 = vadd.f32 %v794, %v744
  %v796 = vadd.f32 %v795, %v748
  %v797 = vadd.f32 %v796, %v754
  %v798 = vrot.slane %v797, 4
  %v799 = vadd.f32 %v797, %v798
  %v800 = vrot.slane %v799, 2
  %v801 = vadd.f32 %v799, %v800
  %v802 = vrot.slane %v801, 1
  %v803 = vadd.f32 %v801, %v802
  %v804 = vadd.f32 %v696, %v700
  %v805 = vadd.f32 %v804, %v706
  %v806 = vadd.f32 %v805, %v710
  %v807 = vadd.f32 %v806, %v716
  %v808 = vadd.f32 %v807, %v720
  %v809 = vadd.f32 %v808, %v726
  %v810 = vadd.f32 %v809, %v730
  %v811 = vadd.f32 %v810, %v736
  %v812 = vadd.f32 %v811, %v740
  %v813 = vadd.f32 %v812, %v746
  %v814 = vadd.f32 %v813, %v750
  %v815 = vadd.f32 %v814, %v756
  %v816 = vrot.slane %v815, 4
  %v817 = vadd.f32 %v815, %v816
  %v818 = vrot.slane %v817, 2
  %v819 = vadd.f32 %v817, %v818
  %v820 = vrot.slane %v819, 1
  %v821 = vadd.f32 %v819, %v820
  %v824 = vcombine.low %v803, %v821
  %v826 = vunpack.c.l.s4 1966171168
  %v827 = vunpack.c.0.s8 %v826
  %v828 = vlaneseq
  %v829 = vshrl.u32 %v828, 7
  %v830 = vsub.s32 %v827, %v829
  %v831 = vrot.slane %v824, %v830
  %v833 = vunpack.c.l.s4 1966171168
  %v834 = vunpack.c.0.s8 %v833
  %v835 = vlaneseq
  %v836 = vshrl.u32 %v835, 7
  %v837 = vsub.s32 %v834, %v836
  %v838 = vrot.slane %v831, %v837
  %v840 = vlaneseq
  %vm841 = vcmp.ge.s32.totalorder %v840, 0
  %vm842 = vcmp.lt.s32.totalorder %v840, 256
  %vm843 = vmand %vm841, %vm842
  %844 = vst.msk [vmem:[%s3] sm:$0x3] %vm843, %v838
  %v845 = vmul.f32 %v694, %v694
  %v846 = vmul.f32 %v696, %v696
  %v847 = vmul.f32 %v698, %v698
  %v848 = vmul.f32 %v700, %v700
  %v849 = vmul.f32 %v704, %v704
  %v850 = vmul.f32 %v706, %v706
  %v851 = vmul.f32 %v708, %v708
  %v852 = vmul.f32 %v710, %v710
  %v853 = vmul.f32 %v714, %v714
  %v854 = vmul.f32 %v716, %v716
  %v855 = vmul.f32 %v718, %v718
  %v856 = vmul.f32 %v720, %v720
  %v857 = vmul.f32 %v724, %v724
  %v858 = vmul.f32 %v726, %v726
  %v859 = vmul.f32 %v728, %v728
  %v860 = vmul.f32 %v730, %v730
  %v861 = vmul.f32 %v734, %v734
  %v862 = vmul.f32 %v736, %v736
  %v863 = vmul.f32 %v738, %v738
  %v864 = vmul.f32 %v740, %v740
  %v865 = vmul.f32 %v744, %v744
  %v866 = vmul.f32 %v746, %v746
  %v867 = vmul.f32 %v748, %v748
  %v868 = vmul.f32 %v750, %v750
  %v869 = vmul.f32 %v754, %v754
  %v870 = vmul.f32 %v756, %v756
  %v871 = vadd.f32 %v845, %v847
  %v872 = vadd.f32 %v871, %v849
  %v873 = vadd.f32 %v872, %v851
  %v874 = vadd.f32 %v873, %v853
  %v875 = vadd.f32 %v874, %v855
  %v876 = vadd.f32 %v875, %v857
  %v877 = vadd.f32 %v876, %v859
  %v878 = vadd.f32 %v877, %v861
  %v879 = vadd.f32 %v878, %v863
  %v880 = vadd.f32 %v879, %v865
  %v881 = vadd.f32 %v880, %v867
  %v882 = vadd.f32 %v881, %v869
  %v883 = vrot.slane %v882, 4
  %v884 = vadd.f32 %v882, %v883
  %v885 = vrot.slane %v884, 2
  %v886 = vadd.f32 %v884, %v885
  %v887 = vrot.slane %v886, 1
  %v888 = vadd.f32 %v886, %v887
  %v889 = vadd.f32 %v846, %v848
  %v890 = vadd.f32 %v889, %v850
  %v891 = vadd.f32 %v890, %v852
  %v892 = vadd.f32 %v891, %v854
  %v893 = vadd.f32 %v892, %v856
  %v894 = vadd.f32 %v893, %v858
  %v895 = vadd.f32 %v894, %v860
  %v896 = vadd.f32 %v895, %v862
  %v897 = vadd.f32 %v896, %v864
  %v898 = vadd.f32 %v897, %v866
  %v899 = vadd.f32 %v898, %v868
  %v900 = vadd.f32 %v899, %v870
  %v901 = vrot.slane %v900, 4
  %v902 = vadd.f32 %v900, %v901
  %v903 = vrot.slane %v902, 2
  %v904 = vadd.f32 %v902, %v903
  %v905 = vrot.slane %v904, 1
  %v906 = vadd.f32 %v904, %v905
  %v909 = vcombine.low %v888, %v906
  %v911 = vunpack.c.l.s4 1966171168
  %v912 = vunpack.c.0.s8 %v911
  %v913 = vlaneseq
  %v914 = vshrl.u32 %v913, 7
  %v915 = vsub.s32 %v912, %v914
  %v916 = vrot.slane %v909, %v915
  %v918 = vunpack.c.l.s4 1966171168
  %v919 = vunpack.c.0.s8 %v918
  %v920 = vlaneseq
  %v921 = vshrl.u32 %v920, 7
  %v922 = vsub.s32 %v919, %v921
  %v923 = vrot.slane %v916, %v922
  %925 = vst.msk [vmem:[%s4] sm:$0x3] %vm843, %v923
  // Predicated region
  $region10: #{decoder_forward.11} parent=0 // pred_check
    _
  $region11: #{decoder_forward.11} parent=0 // pred_check_branch
    %927 = sbr.rel (0) target = $region13
  $region12: #{decoder_forward.11} parent=0 // pred_region
    _
  $region13: #{decoder_forward.11} parent=0 // pred_fallthru
    _
  // Predicated region
  $region14: #{decoder_forward.11} parent=0 // pred_check
    _
  $region15: #{decoder_forward.11} parent=0 // pred_check_branch
    %929 = sbr.rel (0) target = $region17
  $region16: #{decoder_forward.11} parent=0 // pred_region
    _
  $region17: #{decoder_forward.11} parent=0 // pred_fallthru
    _
  // Predicated region
  $region18: #{decoder_forward.11} parent=0 // pred_check
    _
  $region19: #{decoder_forward.11} parent=0 // pred_check_branch
    %931 = sbr.rel (0) target = $region21
  $region20: #{decoder_forward.11} parent=0 // pred_region
    _
  $region21: #{decoder_forward.11} parent=0 // pred_fallthru
    _
  // Predicated region
  $region22: #{decoder_forward.11} parent=0 // pred_check
    _
  $region23: #{decoder_forward.11} parent=0 // pred_check_branch
    %933 = sbr.rel (0) target = $region25
  $region24: #{decoder_forward.11} parent=0 // pred_region
    _
  $region25: #{decoder_forward.11} parent=0 // pred_fallthru
    _
  // Predicated region
  $region26: #{decoder_forward.11} parent=0 // pred_check
    _
  $region27: #{decoder_forward.11} parent=0 // pred_check_branch
    %935 = sbr.rel (0) target = $region29
  $region28: #{decoder_forward.11} parent=0 // pred_region
    _
  $region29: #{decoder_forward.11} parent=0 // pred_fallthru
    _
  // Predicated region
  $region30: #{decoder_forward.11} parent=0 // pred_check
    _
  $region31: #{decoder_forward.11} parent=0 // pred_check_branch
    %937 = sbr.rel (0) target = $region33
  $region32: #{decoder_forward.11} parent=0 // pred_region
    _
  $region33: #{decoder_forward.11} parent=0 // pred_fallthru
    _

// kernel: tile.42
$region0: #{tile.42}
  #allocation0 [shape = 's32[1]{0}', space=sflag, size = 0x4, scoped, tag = 'scoped memory for tile.42']
  %s0 = inlined_call_operand.vmem [shape: f32[64], index: 0, kind: input, shape index: {}]
  %s1 = inlined_call_operand.vmem [shape: f32[4,64], index: 1, kind: output, shape index: {}]
  // Predicated region
  $region2: #{tile.42} parent=0 // pred_check
    _
  $region3: #{tile.42} parent=0 // pred_check_branch
    %3 = sbr.rel (0) target = $region5
  $region4: #{tile.42} parent=0 // pred_region
    _
  $region5: #{tile.42} parent=0 // pred_fallthru
    _
  %v4 = vld [vmem:[%s0] ss:$0 sm:$0xff]
  %5 = vst [vmem:[%s1] sm:$0xf] %v4

// kernel: tile.43
$region0: #{tile.43}
  %s0 = inlined_call_operand.vmem [shape: f32[4,64], index: 0, kind: input, shape index: {}]
  %s1 = inlined_call_operand.vmem [shape: f32[1,256], index: 1, kind: output, shape index: {}]
  $region1: #{tile.43} parent=0
    #allocation0 [shape = 'u8[8192]{0}', space=vmem, size = 0x2000, scoped, tag = 'scoped mem for output reshape']
    #allocation1 [shape = 'u8[4096]{0}', space=vmem, size = 0x1000, scoped, tag = 'scoped mem for input reshape']
    %s3 = sshll.u32 1, 4
    %s4 = ssub.s32 %s3, 1
    %v5 = vld [vmem:[%s0] sm:%s4]
    %6 = vst [vmem:[#allocation1] sm:%s4] %v5
    %s7 = smov 3
    %v8 = vld [vmem:[#allocation1] ss:$2 sm:%s7]
    %vm9 = vcmask 523264
    %10 = vst.msk [vmem:[#allocation0] ss:$8 sm:$0x3] %vm9, %v8
    %s11 = scalar_lea.vmem [#allocation1], 1
    %s12 = smov 3
    %v13 = vld [vmem:[%s11] ss:$2 sm:%s12]
    %14 = vrot.lane.b32.xlu0 %v13, 64
    %v15 = vpop.permute.xlu0 %14
    %vm16 = vcmask 1048064
    %17 = vst.msk [vmem:[#allocation0] ss:$8 sm:$0x3] %vm16, %v15
    %s19 = sshll.u32 1, 1
    %s20 = ssub.s32 %s19, 1
    %v22 = vld [vmem:[#allocation0] sm:%s20]
    %s23 = sshll.u32 1, 1
    %s24 = ssub.s32 %s23, 1
    %25 = vst [vmem:[%s1] sm:%s24] %v22
    %s26 = scalar_lea.vmem [#allocation0], 8
    %v27 = vld [vmem:[%s26] sm:%s20]
    %s28 = sshll.u32 1, 1
    %s29 = ssub.s32 %s28, 1
    %s30 = scalar_lea.vmem %s1, 1
    %31 = vst [vmem:[%s30] sm:%s29] %v27

// kernel: decoder_forward.12
$region0: #{decoder_forward.12}
  #allocation0 [shape = 'u32[]', space=smem, size = 0x4, offset = 0x4, fixed_abs, tag = 'smem constant byte address 0x4 - core index']
  #allocation1 [shape = 'u32[144,128]{1,0:T(1,128)}', space=vmem, size = 0x12000, scoped, tag = 'internal scratch']
  %s0 = inlined_call_operand.vmem [shape: f32[104,256], index: 0, kind: input, shape index: {}]
  %s1 = inlined_call_operand.vmem [shape: f32[1,256], index: 1, kind: input, shape index: {}]
  %s2 = inlined_call_operand.vmem [shape: f32[1,256], index: 2, kind: input, shape index: {}]
  %s3 = inlined_call_operand.vmem [shape: bf16[104,256], index: 3, kind: output, shape index: {}]
  %s4 = sld [smem:[#allocation0]]
  $region22: #{decoder_forward.12} parent=0
    _
  %s6 = ssub.s32 1, %s4
  %s7 = scalar_select 0, %s6, %s4
  // Predicated region
  $region2: #{decoder_forward.12} parent=0 // pred_check
    _
  $region3: #{decoder_forward.12} parent=0 // pred_check_branch
    %9 = sbr.rel (0) target = $region5
  $region4: #{decoder_forward.12} parent=0 // pred_region
    _
  $region5: #{decoder_forward.12} parent=0 // pred_fallthru
    _
  // Predicated region
  $region6: #{decoder_forward.12} parent=0 // pred_check
    _
  $region7: #{decoder_forward.12} parent=0 // pred_check_branch
    %11 = sbr.rel (0) target = $region9
  $region8: #{decoder_forward.12} parent=0 // pred_region
    _
  $region9: #{decoder_forward.12} parent=0 // pred_fallthru
    _
  // Predicated region
  $region10: #{decoder_forward.12} parent=0 // pred_check
    _
  $region11: #{decoder_forward.12} parent=0 // pred_check_branch
    %13 = sbr.rel (0) target = $region13
  $region12: #{decoder_forward.12} parent=0 // pred_region
    _
  $region13: #{decoder_forward.12} parent=0 // pred_fallthru
    _
  %v14 = vld [vmem:[%s0] sm:$0xff]
  %v15 = vld [vmem:[%s0 + $0x8] sm:$0xff]
  %v16 = vld [vmem:[%s0 + $0x10] sm:$0xff]
  %v17 = vld [vmem:[%s0 + $0x18] sm:$0xff]
  %v18 = vld [vmem:[%s0 + $0x20] sm:$0xff]
  %v19 = vld [vmem:[%s0 + $0x28] sm:$0xff]
  %v20 = vld [vmem:[%s0 + $0x30] sm:$0xff]
  %v21 = vld [vmem:[%s0 + $0x38] sm:$0xff]
  %v22 = vld [vmem:[%s0 + $0x40] sm:$0xff]
  %v23 = vld [vmem:[%s0 + $0x48] sm:$0xff]
  %v24 = vld [vmem:[%s0 + $0x50] sm:$0xff]
  %v25 = vld [vmem:[%s0 + $0x58] sm:$0xff]
  %v26 = vld [vmem:[%s0 + $0x60] sm:$0xff]
  %v27 = vld [vmem:[%s0 + $0x68] sm:$0xff]
  %v28 = vld [vmem:[%s0 + $0x70] sm:$0xff]
  %v29 = vld [vmem:[%s0 + $0x78] sm:$0xff]
  %v30 = vld [vmem:[%s0 + $0x80] sm:$0xff]
  %v31 = vld [vmem:[%s0 + $0x88] sm:$0xff]
  %v32 = vld [vmem:[%s0 + $0x90] sm:$0xff]
  %v33 = vld [vmem:[%s0 + $0x98] sm:$0xff]
  %v34 = vld [vmem:[%s0 + $0xa0] sm:$0xff]
  %v35 = vld [vmem:[%s0 + $0xa8] sm:$0xff]
  %v36 = vld [vmem:[%s0 + $0xb0] sm:$0xff]
  %v37 = vld [vmem:[%s0 + $0xb8] sm:$0xff]
  %v38 = vld [vmem:[%s0 + $0xc0] sm:$0xff]
  %v39 = vld [vmem:[%s0 + $0xc8] sm:$0xff]
  %v40 = vld [vmem:[%s1] sm:$0x3]
  %v42 = vlaneseq
  %v43 = vshrl.u32 %v42, 7
  %v44 = vsub.s32 0, %v43
  %v45 = vrot.slane %v40, %v44
  %v46 = vlaneseq
  %v47 = vshrl.u32 %v46, 7
  %v48 = vsub.s32 1, %v47
  %v49 = vrot.slane %v40, %v48
  %v52 = vmul.f32 %v14, %v45
  %v53 = vmul.f32 %v15, %v49
  %v54 = vmul.f32 %v16, %v45
  %v55 = vmul.f32 %v17, %v49
  %v56 = vmul.f32 %v18, %v45
  %v57 = vmul.f32 %v19, %v49
  %v58 = vmul.f32 %v20, %v45
  %v59 = vmul.f32 %v21, %v49
  %v60 = vmul.f32 %v22, %v45
  %v61 = vmul.f32 %v23, %v49
  %v62 = vmul.f32 %v24, %v45
  %v63 = vmul.f32 %v25, %v49
  %v64 = vmul.f32 %v26, %v45
  %v65 = vmul.f32 %v27, %v49
  %v66 = vmul.f32 %v28, %v45
  %v67 = vmul.f32 %v29, %v49
  %v68 = vmul.f32 %v30, %v45
  %v69 = vmul.f32 %v31, %v49
  %v70 = vmul.f32 %v32, %v45
  %v71 = vmul.f32 %v33, %v49
  %v72 = vmul.f32 %v34, %v45
  %v73 = vmul.f32 %v35, %v49
  %v74 = vmul.f32 %v36, %v45
  %v75 = vmul.f32 %v37, %v49
  %v76 = vmul.f32 %v38, %v45
  %v77 = vmul.f32 %v39, %v49
  %v78 = vld [vmem:[%s2] sm:$0x3]
  %v80 = vlaneseq
  %v81 = vshrl.u32 %v80, 7
  %v82 = vsub.s32 0, %v81
  %v83 = vrot.slane %v78, %v82
  %v84 = vlaneseq
  %v85 = vshrl.u32 %v84, 7
  %v86 = vsub.s32 1, %v85
  %v87 = vrot.slane %v78, %v86
  %v90 = vadd.f32 %v52, %v83
  %v91 = vadd.f32 %v53, %v87
  %v92 = vadd.f32 %v54, %v83
  %v93 = vadd.f32 %v55, %v87
  %v94 = vadd.f32 %v56, %v83
  %v95 = vadd.f32 %v57, %v87
  %v96 = vadd.f32 %v58, %v83
  %v97 = vadd.f32 %v59, %v87
  %v98 = vadd.f32 %v60, %v83
  %v99 = vadd.f32 %v61, %v87
  %v100 = vadd.f32 %v62, %v83
  %v101 = vadd.f32 %v63, %v87
  %v102 = vadd.f32 %v64, %v83
  %v103 = vadd.f32 %v65, %v87
  %v104 = vadd.f32 %v66, %v83
  %v105 = vadd.f32 %v67, %v87
  %v106 = vadd.f32 %v68, %v83
  %v107 = vadd.f32 %v69, %v87
  %v108 = vadd.f32 %v70, %v83
  %v109 = vadd.f32 %v71, %v87
  %v110 = vadd.f32 %v72, %v83
  %v111 = vadd.f32 %v73, %v87
  %v112 = vadd.f32 %v74, %v83
  %v113 = vadd.f32 %v75, %v87
  %v114 = vadd.f32 %v76, %v83
  %v115 = vadd.f32 %v77, %v87
  %v116 = vmax.f32 %v90, 0.0
  %v117 = vmax.f32 %v91, 0.0
  %v118 = vmax.f32 %v92, 0.0
  %v119 = vmax.f32 %v93, 0.0
  %v120 = vmax.f32 %v94, 0.0
  %v121 = vmax.f32 %v95, 0.0
  %v122 = vmax.f32 %v96, 0.0
  %v123 = vmax.f32 %v97, 0.0
  %v124 = vmax.f32 %v98, 0.0
  %v125 = vmax.f32 %v99, 0.0
  %v126 = vmax.f32 %v100, 0.0
  %v127 = vmax.f32 %v101, 0.0
  %v128 = vmax.f32 %v102, 0.0
  %v129 = vmax.f32 %v103, 0.0
  %v130 = vmax.f32 %v104, 0.0
  %v131 = vmax.f32 %v105, 0.0
  %v132 = vmax.f32 %v106, 0.0
  %v133 = vmax.f32 %v107, 0.0
  %v134 = vmax.f32 %v108, 0.0
  %v135 = vmax.f32 %v109, 0.0
  %v136 = vmax.f32 %v110, 0.0
  %v137 = vmax.f32 %v111, 0.0
  %v138 = vmax.f32 %v112, 0.0
  %v139 = vmax.f32 %v113, 0.0
  %v140 = vmax.f32 %v114, 0.0
  %v141 = vmax.f32 %v115, 0.0
  %v142 = vpack.c.bf16 %v118, %v116
  %v143 = vpack.c.bf16 %v119, %v117
  %v144 = vpack.c.bf16 %v122, %v120
  %v145 = vpack.c.bf16 %v123, %v121
  %v146 = vpack.c.bf16 %v126, %v124
  %v147 = vpack.c.bf16 %v127, %v125
  %v148 = vpack.c.bf16 %v130, %v128
  %v149 = vpack.c.bf16 %v131, %v129
  %v150 = vpack.c.bf16 %v134, %v132
  %v151 = vpack.c.bf16 %v135, %v133
  %v152 = vpack.c.bf16 %v138, %v136
  %v153 = vpack.c.bf16 %v139, %v137
  %v154 = vpack.c.bf16 %v140, %v140
  %v155 = vpack.c.bf16 %v141, %v141
  %v170 = vunpack.c.l.b16 %v142
  %v171 = vunpack.c.l.b16 %v143
  %v172 = vunpack.c.h.b16 %v142
  %v173 = vunpack.c.h.b16 %v143
  %v174 = vunpack.c.l.b16 %v144
  %v175 = vunpack.c.l.b16 %v145
  %v176 = vunpack.c.h.b16 %v144
  %v177 = vunpack.c.h.b16 %v145
  %v178 = vunpack.c.l.b16 %v146
  %v179 = vunpack.c.l.b16 %v147
  %v180 = vunpack.c.h.b16 %v146
  %v181 = vunpack.c.h.b16 %v147
  %v182 = vunpack.c.l.b16 %v148
  %v183 = vunpack.c.l.b16 %v149
  %v184 = vunpack.c.h.b16 %v148
  %v185 = vunpack.c.h.b16 %v149
  %v186 = vunpack.c.l.b16 %v150
  %v187 = vunpack.c.l.b16 %v151
  %v188 = vunpack.c.h.b16 %v150
  %v189 = vunpack.c.h.b16 %v151
  %v190 = vunpack.c.l.b16 %v152
  %v191 = vunpack.c.l.b16 %v153
  %v192 = vunpack.c.h.b16 %v152
  %v193 = vunpack.c.h.b16 %v153
  %v194 = vunpack.c.l.b16 %v154
  %v195 = vunpack.c.l.b16 %v155
  %v196 = vpack.c.b16 %v171, %v170
  %v197 = vpack.c.b16 %v173, %v172
  %v198 = vpack.c.b16 %v175, %v174
  %v199 = vpack.c.b16 %v177, %v176
  %v200 = vpack.c.b16 %v179, %v178
  %v201 = vpack.c.b16 %v181, %v180
  %v202 = vpack.c.b16 %v183, %v182
  %v203 = vpack.c.b16 %v185, %v184
  %v204 = vpack.c.b16 %v187, %v186
  %v205 = vpack.c.b16 %v189, %v188
  %v206 = vpack.c.b16 %v191, %v190
  %v207 = vpack.c.b16 %v193, %v192
  %v208 = vpack.c.b16 %v195, %v194
  %222 = vst [vmem:[%s3] sm:$0xff] %v196
  %223 = vst [vmem:[%s3 + $0x8] sm:$0xff] %v197
  %224 = vst [vmem:[%s3 + $0x10] sm:$0xff] %v198
  %225 = vst [vmem:[%s3 + $0x18] sm:$0xff] %v199
  %226 = vst [vmem:[%s3 + $0x20] sm:$0xff] %v200
  %227 = vst [vmem:[%s3 + $0x28] sm:$0xff] %v201
  %228 = vst [vmem:[%s3 + $0x30] sm:$0xff] %v202
  %229 = vst [vmem:[%s3 + $0x38] sm:$0xff] %v203
  %230 = vst [vmem:[%s3 + $0x40] sm:$0xff] %v204
  %231 = vst [vmem:[%s3 + $0x48] sm:$0xff] %v205
  %232 = vst [vmem:[%s3 + $0x50] sm:$0xff] %v206
  %233 = vst [vmem:[%s3 + $0x58] sm:$0xff] %v207
  %234 = vst [vmem:[%s3 + $0x60] sm:$0xff] %v208
  // Predicated region
  $region14: #{decoder_forward.12} parent=0 // pred_check
    _
  $region15: #{decoder_forward.12} parent=0 // pred_check_branch
    %236 = sbr.rel (0) target = $region17
  $region16: #{decoder_forward.12} parent=0 // pred_region
    _
  $region17: #{decoder_forward.12} parent=0 // pred_fallthru
    _
  // Predicated region
  $region18: #{decoder_forward.12} parent=0 // pred_check
    _
  $region19: #{decoder_forward.12} parent=0 // pred_check_branch
    %238 = sbr.rel (0) target = $region21
  $region20: #{decoder_forward.12} parent=0 // pred_region
    _
  $region21: #{decoder_forward.12} parent=0 // pred_fallthru
    _

// kernel: decoder_forward.13
$region0: #{decoder_forward.13}
  #allocation0 [shape = 'u32[]', space=smem, size = 0x4, offset = 0x4, fixed_abs, tag = 'smem constant byte address 0x4 - core index']
  #allocation1 [shape = 'u32[144,128]{1,0:T(1,128)}', space=vmem, size = 0x12000, scoped, tag = 'internal scratch']
  %s0 = inlined_call_operand.vmem [shape: bf16[392,256], index: 0, kind: input, shape index: {}]
  %s1 = inlined_call_operand.vmem [shape: bf16[256,4], index: 1, kind: input, shape index: {}]
  %s2 = inlined_call_operand.vmem [shape: f32[1,4], index: 2, kind: input, shape index: {}]
  %s3 = inlined_call_operand.vmem [shape: f32[392,4], index: 3, kind: output, shape index: {}]
  %s4 = sld [smem:[#allocation0]]
  $region22: #{decoder_forward.13} parent=0
    _
  %s6 = ssub.s32 1, %s4
  %s7 = scalar_select 0, %s6, %s4
  // Predicated region
  $region2: #{decoder_forward.13} parent=0 // pred_check
    _
  $region3: #{decoder_forward.13} parent=0 // pred_check_branch
    %9 = sbr.rel (0) target = $region5
  $region4: #{decoder_forward.13} parent=0 // pred_region
    _
  $region5: #{decoder_forward.13} parent=0 // pred_fallthru
    _
  // Predicated region
  $region6: #{decoder_forward.13} parent=0 // pred_check
    _
  $region7: #{decoder_forward.13} parent=0 // pred_check_branch
    %11 = sbr.rel (0) target = $region9
  $region8: #{decoder_forward.13} parent=0 // pred_region
    _
  $region9: #{decoder_forward.13} parent=0 // pred_fallthru
    _
  // Predicated region
  $region10: #{decoder_forward.13} parent=0 // pred_check
    _
  $region11: #{decoder_forward.13} parent=0 // pred_check_branch
    %13 = sbr.rel (0) target = $region13
  $region12: #{decoder_forward.13} parent=0 // pred_region
    _
  $region13: #{decoder_forward.13} parent=0 // pred_fallthru
    _
  %v15 = vld [vmem:[%s0] sm:$0xff]
  %v16 = vld [vmem:[%s0 + $0x8] sm:$0xff]
  %v17 = vld [vmem:[%s0 + $0x10] sm:$0xff]
  %v18 = vld [vmem:[%s0 + $0x18] sm:$0xff]
  %v19 = vld [vmem:[%s0 + $0x20] sm:$0xff]
  %v20 = vld [vmem:[%s0 + $0x28] sm:$0xff]
  %v21 = vld [vmem:[%s0 + $0x30] sm:$0xff]
  %v22 = vld [vmem:[%s0 + $0x38] sm:$0xff]
  %v23 = vld [vmem:[%s0 + $0x40] sm:$0xff]
  %v24 = vld [vmem:[%s0 + $0x48] sm:$0xff]
  %v25 = vld [vmem:[%s0 + $0x50] sm:$0xff]
  %v26 = vld [vmem:[%s0 + $0x58] sm:$0xff]
  %v27 = vld [vmem:[%s0 + $0x60] sm:$0xff]
  %v28 = vld [vmem:[%s0 + $0x68] sm:$0xff]
  %v29 = vld [vmem:[%s0 + $0x70] sm:$0xff]
  %v30 = vld [vmem:[%s0 + $0x78] sm:$0xff]
  %v31 = vld [vmem:[%s0 + $0x80] sm:$0xff]
  %v32 = vld [vmem:[%s0 + $0x88] sm:$0xff]
  %v33 = vld [vmem:[%s0 + $0x90] sm:$0xff]
  %v34 = vld [vmem:[%s0 + $0x98] sm:$0xff]
  %v35 = vld [vmem:[%s0 + $0xa0] sm:$0xff]
  %v36 = vld [vmem:[%s0 + $0xa8] sm:$0xff]
  %v37 = vld [vmem:[%s0 + $0xb0] sm:$0xff]
  %v38 = vld [vmem:[%s0 + $0xb8] sm:$0xff]
  %v39 = vld [vmem:[%s0 + $0xc0] sm:$0xff]
  %v40 = vld [vmem:[%s0 + $0xc8] sm:$0xff]
  %v41 = vld [vmem:[%s0 + $0xd0] sm:$0xff]
  %v42 = vld [vmem:[%s0 + $0xd8] sm:$0xff]
  %v43 = vld [vmem:[%s0 + $0xe0] sm:$0xff]
  %v44 = vld [vmem:[%s0 + $0xe8] sm:$0xff]
  %v45 = vld [vmem:[%s0 + $0xf0] sm:$0xff]
  %v46 = vld [vmem:[%s0 + $0xf8] sm:$0xff]
  %v47 = vld [vmem:[%s0 + $0x100] sm:$0xff]
  %v48 = vld [vmem:[%s0 + $0x108] sm:$0xff]
  %v49 = vld [vmem:[%s0 + $0x110] sm:$0xff]
  %v50 = vld [vmem:[%s0 + $0x118] sm:$0xff]
  %v51 = vld [vmem:[%s0 + $0x120] sm:$0xff]
  %v52 = vld [vmem:[%s0 + $0x128] sm:$0xff]
  %v53 = vld [vmem:[%s0 + $0x130] sm:$0xff]
  %v54 = vld [vmem:[%s0 + $0x138] sm:$0xff]
  %v55 = vld [vmem:[%s0 + $0x140] sm:$0xff]
  %v56 = vld [vmem:[%s0 + $0x148] sm:$0xff]
  %v57 = vld [vmem:[%s0 + $0x150] sm:$0xff]
  %v58 = vld [vmem:[%s0 + $0x158] sm:$0xff]
  %v59 = vld [vmem:[%s0 + $0x160] sm:$0xff]
  %v60 = vld [vmem:[%s0 + $0x168] sm:$0xff]
  %v61 = vld [vmem:[%s0 + $0x170] sm:$0xff]
  %v62 = vld [vmem:[%s0 + $0x178] sm:$0xff]
  %v63 = vld [vmem:[%s0 + $0x180] sm:$0xff]
  %v64 = vld [vmem:[%s1] sm:$0xf]
  %v65 = vld [vmem:[%s1 + $0x4] sm:$0xf]
  %v66 = vld [vmem:[%s1 + $0x8] sm:$0xf]
  %v67 = vld [vmem:[%s1 + $0xc] sm:$0xf]
  %v68 = vld [vmem:[%s1 + $0x10] sm:$0xf]
  %v69 = vld [vmem:[%s1 + $0x14] sm:$0xf]
  %v70 = vld [vmem:[%s1 + $0x18] sm:$0xf]
  %v71 = vld [vmem:[%s1 + $0x1c] sm:$0xf]
  %v72 = vld [vmem:[%s1 + $0x20] sm:$0xf]
  %v73 = vld [vmem:[%s1 + $0x24] sm:$0xf]
  %v74 = vld [vmem:[%s1 + $0x28] sm:$0xf]
  %v75 = vld [vmem:[%s1 + $0x2c] sm:$0xf]
  %v76 = vld [vmem:[%s1 + $0x30] sm:$0xf]
  %v77 = vld [vmem:[%s1 + $0x34] sm:$0xf]
  %v78 = vld [vmem:[%s1 + $0x38] sm:$0xf]
  %v79 = vld [vmem:[%s1 + $0x3c] sm:$0xf]
  %v80 = vld [vmem:[%s1 + $0x40] sm:$0xf]
  %v81 = vld [vmem:[%s1 + $0x44] sm:$0xf]
  %v82 = vld [vmem:[%s1 + $0x48] sm:$0xf]
  %v83 = vld [vmem:[%s1 + $0x4c] sm:$0xf]
  %v84 = vld [vmem:[%s1 + $0x50] sm:$0xf]
  %v85 = vld [vmem:[%s1 + $0x54] sm:$0xf]
  %v86 = vld [vmem:[%s1 + $0x58] sm:$0xf]
  %v87 = vld [vmem:[%s1 + $0x5c] sm:$0xf]
  %v88 = vld [vmem:[%s1 + $0x60] sm:$0xf]
  %v89 = vld [vmem:[%s1 + $0x64] sm:$0xf]
  %v90 = vld [vmem:[%s1 + $0x68] sm:$0xf]
  %v91 = vld [vmem:[%s1 + $0x6c] sm:$0xf]
  %v92 = vld [vmem:[%s1 + $0x70] sm:$0xf]
  %v93 = vld [vmem:[%s1 + $0x74] sm:$0xf]
  %v94 = vld [vmem:[%s1 + $0x78] sm:$0xf]
  %v95 = vld [vmem:[%s1 + $0x7c] sm:$0xf]
  %v96 = vld [vmem:[%s2] sm:$0x1]
  %v98 = vlaneseq
  %v99 = vshrl.u32 %v98, 7
  %v100 = vsub.s32 0, %v99
  %v101 = vrot.slane %v96, %v100
  %v152 = vunpack.c.l.b16 %v15
  %v153 = vunpack.c.h.b16 %v15
  %v154 = vunpack.c.l.b16 %v16
  %v155 = vunpack.c.h.b16 %v16
  %v156 = vunpack.c.l.b16 %v17
  %v157 = vunpack.c.h.b16 %v17
  %v158 = vunpack.c.l.b16 %v18
  %v159 = vunpack.c.h.b16 %v18
  %v160 = vunpack.c.l.b16 %v19
  %v161 = vunpack.c.h.b16 %v19
  %v162 = vunpack.c.l.b16 %v20
  %v163 = vunpack.c.h.b16 %v20
  %v164 = vunpack.c.l.b16 %v21
  %v165 = vunpack.c.h.b16 %v21
  %v166 = vunpack.c.l.b16 %v22
  %v167 = vunpack.c.h.b16 %v22
  %v168 = vunpack.c.l.b16 %v23
  %v169 = vunpack.c.h.b16 %v23
  %v170 = vunpack.c.l.b16 %v24
  %v171 = vunpack.c.h.b16 %v24
  %v172 = vunpack.c.l.b16 %v25
  %v173 = vunpack.c.h.b16 %v25
  %v174 = vunpack.c.l.b16 %v26
  %v175 = vunpack.c.h.b16 %v26
  %v176 = vunpack.c.l.b16 %v27
  %v177 = vunpack.c.h.b16 %v27
  %v178 = vunpack.c.l.b16 %v28
  %v179 = vunpack.c.h.b16 %v28
  %v180 = vunpack.c.l.b16 %v29
  %v181 = vunpack.c.h.b16 %v29
  %v182 = vunpack.c.l.b16 %v30
  %v183 = vunpack.c.h.b16 %v30
  %v184 = vunpack.c.l.b16 %v31
  %v185 = vunpack.c.h.b16 %v31
  %v186 = vunpack.c.l.b16 %v32
  %v187 = vunpack.c.h.b16 %v32
  %v188 = vunpack.c.l.b16 %v33
  %v189 = vunpack.c.h.b16 %v33
  %v190 = vunpack.c.l.b16 %v34
  %v191 = vunpack.c.h.b16 %v34
  %v192 = vunpack.c.l.b16 %v35
  %v193 = vunpack.c.h.b16 %v35
  %v194 = vunpack.c.l.b16 %v36
  %v195 = vunpack.c.h.b16 %v36
  %v196 = vunpack.c.l.b16 %v37
  %v197 = vunpack.c.h.b16 %v37
  %v198 = vunpack.c.l.b16 %v38
  %v199 = vunpack.c.h.b16 %v38
  %v200 = vunpack.c.l.b16 %v39
  %v201 = vunpack.c.h.b16 %v39
  %v202 = vunpack.c.l.b16 %v40
  %v203 = vunpack.c.h.b16 %v40
  %v204 = vunpack.c.l.b16 %v41
  %v205 = vunpack.c.h.b16 %v41
  %v206 = vunpack.c.l.b16 %v42
  %v207 = vunpack.c.h.b16 %v42
  %v208 = vunpack.c.l.b16 %v43
  %v209 = vunpack.c.h.b16 %v43
  %v210 = vunpack.c.l.b16 %v44
  %v211 = vunpack.c.h.b16 %v44
  %v212 = vunpack.c.l.b16 %v45
  %v213 = vunpack.c.h.b16 %v45
  %v214 = vunpack.c.l.b16 %v46
  %v215 = vunpack.c.h.b16 %v46
  %v216 = vunpack.c.l.b16 %v47
  %v217 = vunpack.c.h.b16 %v47
  %v218 = vunpack.c.l.b16 %v48
  %v219 = vunpack.c.h.b16 %v48
  %v220 = vunpack.c.l.b16 %v49
  %v221 = vunpack.c.h.b16 %v49
  %v222 = vunpack.c.l.b16 %v50
  %v223 = vunpack.c.h.b16 %v50
  %v224 = vunpack.c.l.b16 %v51
  %v225 = vunpack.c.h.b16 %v51
  %v226 = vunpack.c.l.b16 %v52
  %v227 = vunpack.c.h.b16 %v52
  %v228 = vunpack.c.l.b16 %v53
  %v229 = vunpack.c.h.b16 %v53
  %v230 = vunpack.c.l.b16 %v54
  %v231 = vunpack.c.h.b16 %v54
  %v232 = vunpack.c.l.b16 %v55
  %v233 = vunpack.c.h.b16 %v55
  %v234 = vunpack.c.l.b16 %v56
  %v235 = vunpack.c.h.b16 %v56
  %v236 = vunpack.c.l.b16 %v57
  %v237 = vunpack.c.h.b16 %v57
  %v238 = vunpack.c.l.b16 %v58
  %v239 = vunpack.c.h.b16 %v58
  %v240 = vunpack.c.l.b16 %v59
  %v241 = vunpack.c.h.b16 %v59
  %v242 = vunpack.c.l.b16 %v60
  %v243 = vunpack.c.h.b16 %v60
  %v244 = vunpack.c.l.b16 %v61
  %v245 = vunpack.c.h.b16 %v61
  %v246 = vunpack.c.l.b16 %v62
  %v247 = vunpack.c.h.b16 %v62
  %v248 = vunpack.c.l.b16 %v63
  %v249 = vunpack.c.h.b16 %v63
  %v250 = vpack.c.b16 %v154, %v152
  %v251 = vpack.c.b16 %v155, %v153
  %v252 = vpack.c.b16 %v158, %v156
  %v253 = vpack.c.b16 %v159, %v157
  %v254 = vpack.c.b16 %v162, %v160
  %v255 = vpack.c.b16 %v163, %v161
  %v256 = vpack.c.b16 %v166, %v164
  %v257 = vpack.c.b16 %v167, %v165
  %v258 = vpack.c.b16 %v170, %v168
  %v259 = vpack.c.b16 %v171, %v169
  %v260 = vpack.c.b16 %v174, %v172
  %v261 = vpack.c.b16 %v175, %v173
  %v262 = vpack.c.b16 %v178, %v176
  %v263 = vpack.c.b16 %v179, %v177
  %v264 = vpack.c.b16 %v182, %v180
  %v265 = vpack.c.b16 %v183, %v181
  %v266 = vpack.c.b16 %v186, %v184
  %v267 = vpack.c.b16 %v187, %v185
  %v268 = vpack.c.b16 %v190, %v188
  %v269 = vpack.c.b16 %v191, %v189
  %v270 = vpack.c.b16 %v194, %v192
  %v271 = vpack.c.b16 %v195, %v193
  %v272 = vpack.c.b16 %v198, %v196
  %v273 = vpack.c.b16 %v199, %v197
  %v274 = vpack.c.b16 %v202, %v200
  %v275 = vpack.c.b16 %v203, %v201
  %v276 = vpack.c.b16 %v206, %v204
  %v277 = vpack.c.b16 %v207, %v205
  %v278 = vpack.c.b16 %v210, %v208
  %v279 = vpack.c.b16 %v211, %v209
  %v280 = vpack.c.b16 %v214, %v212
  %v281 = vpack.c.b16 %v215, %v213
  %v282 = vpack.c.b16 %v218, %v216
  %v283 = vpack.c.b16 %v219, %v217
  %v284 = vpack.c.b16 %v222, %v220
  %v285 = vpack.c.b16 %v223, %v221
  %v286 = vpack.c.b16 %v226, %v224
  %v287 = vpack.c.b16 %v227, %v225
  %v288 = vpack.c.b16 %v230, %v228
  %v289 = vpack.c.b16 %v231, %v229
  %v290 = vpack.c.b16 %v234, %v232
  %v291 = vpack.c.b16 %v235, %v233
  %v292 = vpack.c.b16 %v238, %v236
  %v293 = vpack.c.b16 %v239, %v237
  %v294 = vpack.c.b16 %v242, %v240
  %v295 = vpack.c.b16 %v243, %v241
  %v296 = vpack.c.b16 %v246, %v244
  %v297 = vpack.c.b16 %v247, %v245
  %v298 = vpack.c.b16 %v248, %v248
  %v299 = vpack.c.b16 %v249, %v249
  %v382 = vunpack.c.l.b16 %v64
  %v383 = vunpack.c.l.b16 %v65
  %v384 = vunpack.c.l.b16 %v66
  %v385 = vunpack.c.l.b16 %v67
  %v386 = vunpack.c.l.b16 %v68
  %v387 = vunpack.c.l.b16 %v69
  %v388 = vunpack.c.l.b16 %v70
  %v389 = vunpack.c.l.b16 %v71
  %v390 = vunpack.c.l.b16 %v72
  %v391 = vunpack.c.l.b16 %v73
  %v392 = vunpack.c.l.b16 %v74
  %v393 = vunpack.c.l.b16 %v75
  %v394 = vunpack.c.l.b16 %v76
  %v395 = vunpack.c.l.b16 %v77
  %v396 = vunpack.c.l.b16 %v78
  %v397 = vunpack.c.l.b16 %v79
  %v398 = vunpack.c.l.b16 %v80
  %v399 = vunpack.c.l.b16 %v81
  %v400 = vunpack.c.l.b16 %v82
  %v401 = vunpack.c.l.b16 %v83
  %v402 = vunpack.c.l.b16 %v84
  %v403 = vunpack.c.l.b16 %v85
  %v404 = vunpack.c.l.b16 %v86
  %v405 = vunpack.c.l.b16 %v87
  %v406 = vunpack.c.l.b16 %v88
  %v407 = vunpack.c.l.b16 %v89
  %v408 = vunpack.c.l.b16 %v90
  %v409 = vunpack.c.l.b16 %v91
  %v410 = vunpack.c.l.b16 %v92
  %v411 = vunpack.c.l.b16 %v93
  %v412 = vunpack.c.l.b16 %v94
  %v413 = vunpack.c.l.b16 %v95
  %v414 = vpack.c.b16 %v383, %v382
  %v415 = vpack.c.b16 %v385, %v384
  %v416 = vpack.c.b16 %v387, %v386
  %v417 = vpack.c.b16 %v389, %v388
  %v418 = vpack.c.b16 %v391, %v390
  %v419 = vpack.c.b16 %v393, %v392
  %v420 = vpack.c.b16 %v395, %v394
  %v421 = vpack.c.b16 %v397, %v396
  %v422 = vpack.c.b16 %v399, %v398
  %v423 = vpack.c.b16 %v401, %v400
  %v424 = vpack.c.b16 %v403, %v402
  %v425 = vpack.c.b16 %v405, %v404
  %v426 = vpack.c.b16 %v407, %v406
  %v427 = vpack.c.b16 %v409, %v408
  %v428 = vpack.c.b16 %v411, %v410
  %v429 = vpack.c.b16 %v413, %v412
  %446 = vmatprep.subr.bf16.mxu0 0
  %447 = vmatpush1.bf16.msra.mxu0 %v421
  %448 = vmatprep.subr.bf16.mxu0 0
  %449 = vmatpush1.bf16.msra.mxu0 %v420
  %450 = vmatprep.subr.bf16.mxu0 0
  %451 = vmatpush1.bf16.msra.mxu0 %v419
  %452 = vmatprep.subr.bf16.mxu0 0
  %453 = vmatpush1.bf16.msra.mxu0 %v418
  %454 = vmatprep.subr.bf16.mxu0 0
  %455 = vmatpush1.bf16.msra.mxu0 %v417
  %456 = vmatprep.subr.bf16.mxu0 0
  %457 = vmatpush1.bf16.msra.mxu0 %v416
  %458 = vmatprep.subr.bf16.mxu0 0
  %459 = vmatpush1.bf16.msra.mxu0 %v415
  %460 = vmatprep.subr.bf16.mxu0 0
  %461 = vmatpush1.bf16.msra.mxu0 %v414
  %462 = vmatprep.subr.bf16.mxu0 0
  %463 = vmatpush2.bf16.msra.mxu0 %v429
  %464 = vmatprep.subr.bf16.mxu0 0
  %465 = vmatpush2.bf16.msra.mxu0 %v428
  %466 = vmatprep.subr.bf16.mxu0 0
  %467 = vmatpush2.bf16.msra.mxu0 %v427
  %468 = vmatprep.subr.bf16.mxu0 0
  %469 = vmatpush2.bf16.msra.mxu0 %v426
  %470 = vmatprep.subr.bf16.mxu0 0
  %471 = vmatpush2.bf16.msra.mxu0 %v425
  %472 = vmatprep.subr.bf16.mxu0 0
  %473 = vmatpush2.bf16.msra.mxu0 %v424
  %474 = vmatprep.subr.bf16.mxu0 0
  %475 = vmatpush2.bf16.msra.mxu0 %v423
  %476 = vmatprep.subr.bf16.mxu0 0
  %477 = vmatpush2.bf16.msra.mxu0 %v422
  %478 = vmatprep.mubr.bf16.mxu0 %v251
  %479 = vmatmul.mubr.bf16.gmra.mxu0 %v250
  %v480 = vpop.f32.mrf.mxu0
  %v481 = vadd.f32 %v101, %v480
  %v482 = vpop.f32.mrf.mxu0
  %v483 = vpop.f32.mrf.mxu0
  %v484 = vadd.f32 %v101, %v483
  %v485 = vpop.f32.mrf.mxu0
  %486 = vmatprep.mubr.bf16.mxu0 %v253
  %487 = vmatmul.mubr.bf16.gmra.mxu0 %v252
  %v488 = vpop.f32.mrf.mxu0
  %v489 = vadd.f32 %v101, %v488
  %v490 = vpop.f32.mrf.mxu0
  %v491 = vpop.f32.mrf.mxu0
  %v492 = vadd.f32 %v101, %v491
  %v493 = vpop.f32.mrf.mxu0
  %494 = vmatprep.mubr.bf16.mxu0 %v255
  %495 = vmatmul.mubr.bf16.gmra.mxu0 %v254
  %v496 = vpop.f32.mrf.mxu0
  %v497 = vadd.f32 %v101, %v496
  %v498 = vpop.f32.mrf.mxu0
  %v499 = vpop.f32.mrf.mxu0
  %v500 = vadd.f32 %v101, %v499
  %v501 = vpop.f32.mrf.mxu0
  %502 = vmatprep.mubr.bf16.mxu0 %v257
  %503 = vmatmul.mubr.bf16.gmra.mxu0 %v256
  %v504 = vpop.f32.mrf.mxu0
  %v505 = vadd.f32 %v101, %v504
  %v506 = vpop.f32.mrf.mxu0
  %v507 = vpop.f32.mrf.mxu0
  %v508 = vadd.f32 %v101, %v507
  %v509 = vpop.f32.mrf.mxu0
  %510 = vmatprep.mubr.bf16.mxu0 %v259
  %511 = vmatmul.mubr.bf16.gmra.mxu0 %v258
  %v512 = vpop.f32.mrf.mxu0
  %v513 = vadd.f32 %v101, %v512
  %v514 = vpop.f32.mrf.mxu0
  %v515 = vpop.f32.mrf.mxu0
  %v516 = vadd.f32 %v101, %v515
  %v517 = vpop.f32.mrf.mxu0
  %518 = vmatprep.mubr.bf16.mxu0 %v261
  %519 = vmatmul.mubr.bf16.gmra.mxu0 %v260
  %v520 = vpop.f32.mrf.mxu0
  %v521 = vadd.f32 %v101, %v520
  %v522 = vpop.f32.mrf.mxu0
  %v523 = vpop.f32.mrf.mxu0
  %v524 = vadd.f32 %v101, %v523
  %v525 = vpop.f32.mrf.mxu0
  %526 = vmatprep.mubr.bf16.mxu0 %v263
  %527 = vmatmul.mubr.bf16.gmra.mxu0 %v262
  %v528 = vpop.f32.mrf.mxu0
  %v529 = vadd.f32 %v101, %v528
  %v530 = vpop.f32.mrf.mxu0
  %v531 = vpop.f32.mrf.mxu0
  %v532 = vadd.f32 %v101, %v531
  %v533 = vpop.f32.mrf.mxu0
  %534 = vmatprep.mubr.bf16.mxu0 %v265
  %535 = vmatmul.mubr.bf16.gmra.mxu0 %v264
  %v536 = vpop.f32.mrf.mxu0
  %v537 = vadd.f32 %v101, %v536
  %v538 = vpop.f32.mrf.mxu0
  %v539 = vpop.f32.mrf.mxu0
  %v540 = vadd.f32 %v101, %v539
  %v541 = vpop.f32.mrf.mxu0
  %542 = vmatprep.mubr.bf16.mxu0 %v267
  %543 = vmatmul.mubr.bf16.gmra.mxu0 %v266
  %v544 = vpop.f32.mrf.mxu0
  %v545 = vadd.f32 %v101, %v544
  %v546 = vpop.f32.mrf.mxu0
  %v547 = vpop.f32.mrf.mxu0
  %v548 = vadd.f32 %v101, %v547
  %v549 = vpop.f32.mrf.mxu0
  %550 = vmatprep.mubr.bf16.mxu0 %v269
  %551 = vmatmul.mubr.bf16.gmra.mxu0 %v268
  %v552 = vpop.f32.mrf.mxu0
  %v553 = vadd.f32 %v101, %v552
  %v554 = vpop.f32.mrf.mxu0
  %v555 = vpop.f32.mrf.mxu0
  %v556 = vadd.f32 %v101, %v555
  %v557 = vpop.f32.mrf.mxu0
  %558 = vmatprep.mubr.bf16.mxu0 %v271
  %559 = vmatmul.mubr.bf16.gmra.mxu0 %v270
  %v560 = vpop.f32.mrf.mxu0
  %v561 = vadd.f32 %v101, %v560
  %v562 = vpop.f32.mrf.mxu0
  %v563 = vpop.f32.mrf.mxu0
  %v564 = vadd.f32 %v101, %v563
  %v565 = vpop.f32.mrf.mxu0
  %566 = vmatprep.mubr.bf16.mxu0 %v273
  %567 = vmatmul.mubr.bf16.gmra.mxu0 %v272
  %v568 = vpop.f32.mrf.mxu0
  %v569 = vadd.f32 %v101, %v568
  %v570 = vpop.f32.mrf.mxu0
  %v571 = vpop.f32.mrf.mxu0
  %v572 = vadd.f32 %v101, %v571
  %v573 = vpop.f32.mrf.mxu0
  %574 = vmatprep.mubr.bf16.mxu0 %v275
  %575 = vmatmul.mubr.bf16.gmra.mxu0 %v274
  %v576 = vpop.f32.mrf.mxu0
  %v577 = vadd.f32 %v101, %v576
  %v578 = vpop.f32.mrf.mxu0
  %v579 = vpop.f32.mrf.mxu0
  %v580 = vadd.f32 %v101, %v579
  %v581 = vpop.f32.mrf.mxu0
  %582 = vmatprep.mubr.bf16.mxu0 %v277
  %583 = vmatmul.mubr.bf16.gmra.mxu0 %v276
  %v584 = vpop.f32.mrf.mxu0
  %v585 = vadd.f32 %v101, %v584
  %v586 = vpop.f32.mrf.mxu0
  %v587 = vpop.f32.mrf.mxu0
  %v588 = vadd.f32 %v101, %v587
  %v589 = vpop.f32.mrf.mxu0
  %590 = vmatprep.mubr.bf16.mxu0 %v279
  %591 = vmatmul.mubr.bf16.gmra.mxu0 %v278
  %v592 = vpop.f32.mrf.mxu0
  %v593 = vadd.f32 %v101, %v592
  %v594 = vpop.f32.mrf.mxu0
  %v595 = vpop.f32.mrf.mxu0
  %v596 = vadd.f32 %v101, %v595
  %v597 = vpop.f32.mrf.mxu0
  %598 = vmatprep.mubr.bf16.mxu0 %v281
  %599 = vmatmul.mubr.bf16.gmra.mxu0 %v280
  %v600 = vpop.f32.mrf.mxu0
  %v601 = vadd.f32 %v101, %v600
  %v602 = vpop.f32.mrf.mxu0
  %v603 = vpop.f32.mrf.mxu0
  %v604 = vadd.f32 %v101, %v603
  %v605 = vpop.f32.mrf.mxu0
  %606 = vmatprep.mubr.bf16.mxu0 %v283
  %607 = vmatmul.mubr.bf16.gmra.mxu0 %v282
  %v608 = vpop.f32.mrf.mxu0
  %v609 = vadd.f32 %v101, %v608
  %v610 = vpop.f32.mrf.mxu0
  %v611 = vpop.f32.mrf.mxu0
  %v612 = vadd.f32 %v101, %v611
  %v613 = vpop.f32.mrf.mxu0
  %614 = vmatprep.mubr.bf16.mxu0 %v285
  %615 = vmatmul.mubr.bf16.gmra.mxu0 %v284
  %v616 = vpop.f32.mrf.mxu0
  %v617 = vadd.f32 %v101, %v616
  %v618 = vpop.f32.mrf.mxu0
  %v619 = vpop.f32.mrf.mxu0
  %v620 = vadd.f32 %v101, %v619
  %v621 = vpop.f32.mrf.mxu0
  %622 = vmatprep.mubr.bf16.mxu0 %v287
  %623 = vmatmul.mubr.bf16.gmra.mxu0 %v286
  %v624 = vpop.f32.mrf.mxu0
  %v625 = vadd.f32 %v101, %v624
  %v626 = vpop.f32.mrf.mxu0
  %v627 = vpop.f32.mrf.mxu0
  %v628 = vadd.f32 %v101, %v627
  %v629 = vpop.f32.mrf.mxu0
  %630 = vmatprep.mubr.bf16.mxu0 %v289
  %631 = vmatmul.mubr.bf16.gmra.mxu0 %v288
  %v632 = vpop.f32.mrf.mxu0
  %v633 = vadd.f32 %v101, %v632
  %v634 = vpop.f32.mrf.mxu0
  %v635 = vpop.f32.mrf.mxu0
  %v636 = vadd.f32 %v101, %v635
  %v637 = vpop.f32.mrf.mxu0
  %638 = vmatprep.mubr.bf16.mxu0 %v291
  %639 = vmatmul.mubr.bf16.gmra.mxu0 %v290
  %v640 = vpop.f32.mrf.mxu0
  %v641 = vadd.f32 %v101, %v640
  %v642 = vpop.f32.mrf.mxu0
  %v643 = vpop.f32.mrf.mxu0
  %v644 = vadd.f32 %v101, %v643
  %v645 = vpop.f32.mrf.mxu0
  %646 = vmatprep.mubr.bf16.mxu0 %v293
  %647 = vmatmul.mubr.bf16.gmra.mxu0 %v292
  %v648 = vpop.f32.mrf.mxu0
  %v649 = vadd.f32 %v101, %v648
  %v650 = vpop.f32.mrf.mxu0
  %v651 = vpop.f32.mrf.mxu0
  %v652 = vadd.f32 %v101, %v651
  %v653 = vpop.f32.mrf.mxu0
  %654 = vmatprep.mubr.bf16.mxu0 %v295
  %655 = vmatmul.mubr.bf16.gmra.mxu0 %v294
  %v656 = vpop.f32.mrf.mxu0
  %v657 = vadd.f32 %v101, %v656
  %v658 = vpop.f32.mrf.mxu0
  %v659 = vpop.f32.mrf.mxu0
  %v660 = vadd.f32 %v101, %v659
  %v661 = vpop.f32.mrf.mxu0
  %662 = vmatprep.mubr.bf16.mxu0 %v297
  %663 = vmatmul.mubr.bf16.gmra.mxu0 %v296
  %v664 = vpop.f32.mrf.mxu0
  %v665 = vadd.f32 %v101, %v664
  %v666 = vpop.f32.mrf.mxu0
  %v667 = vpop.f32.mrf.mxu0
  %v668 = vadd.f32 %v101, %v667
  %v669 = vpop.f32.mrf.mxu0
  %670 = vmatprep.mubr.bf16.mxu0 %v299
  %671 = vmatmul.mubr.bf16.gmra.mxu0 %v298
  %v672 = vpop.f32.mrf.mxu0
  %v673 = vadd.f32 %v101, %v672
  %v674 = vpop.f32.mrf.mxu0
  %v675 = vpop.f32.mrf.mxu0
  %v676 = vpop.f32.mrf.mxu0
  %677 = vdwg.mxu0
  %v678 = vsub.f32 0.0, %v481
  %v679 = vsub.f32 0.0, %v484
  %v680 = vsub.f32 0.0, %v489
  %v681 = vsub.f32 0.0, %v492
  %v682 = vsub.f32 0.0, %v497
  %v683 = vsub.f32 0.0, %v500
  %v684 = vsub.f32 0.0, %v505
  %v685 = vsub.f32 0.0, %v508
  %v686 = vsub.f32 0.0, %v513
  %v687 = vsub.f32 0.0, %v516
  %v688 = vsub.f32 0.0, %v521
  %v689 = vsub.f32 0.0, %v524
  %v690 = vsub.f32 0.0, %v529
  %v691 = vsub.f32 0.0, %v532
  %v692 = vsub.f32 0.0, %v537
  %v693 = vsub.f32 0.0, %v540
  %v694 = vsub.f32 0.0, %v545
  %v695 = vsub.f32 0.0, %v548
  %v696 = vsub.f32 0.0, %v553
  %v697 = vsub.f32 0.0, %v556
  %v698 = vsub.f32 0.0, %v561
  %v699 = vsub.f32 0.0, %v564
  %v700 = vsub.f32 0.0, %v569
  %v701 = vsub.f32 0.0, %v572
  %v702 = vsub.f32 0.0, %v577
  %v703 = vsub.f32 0.0, %v580
  %v704 = vsub.f32 0.0, %v585
  %v705 = vsub.f32 0.0, %v588
  %v706 = vsub.f32 0.0, %v593
  %v707 = vsub.f32 0.0, %v596
  %v708 = vsub.f32 0.0, %v601
  %v709 = vsub.f32 0.0, %v604
  %v710 = vsub.f32 0.0, %v609
  %v711 = vsub.f32 0.0, %v612
  %v712 = vsub.f32 0.0, %v617
  %v713 = vsub.f32 0.0, %v620
  %v714 = vsub.f32 0.0, %v625
  %v715 = vsub.f32 0.0, %v628
  %v716 = vsub.f32 0.0, %v633
  %v717 = vsub.f32 0.0, %v636
  %v718 = vsub.f32 0.0, %v641
  %v719 = vsub.f32 0.0, %v644
  %v720 = vsub.f32 0.0, %v649
  %v721 = vsub.f32 0.0, %v652
  %v722 = vsub.f32 0.0, %v657
  %v723 = vsub.f32 0.0, %v660
  %v724 = vsub.f32 0.0, %v665
  %v725 = vsub.f32 0.0, %v668
  %v726 = vsub.f32 0.0, %v673
  %v727 = vmul.f32 %v678, 1.442695
  %v728 = vpow.pop %v727
  %v729 = vmul.f32 %v679, 1.442695
  %v730 = vpow.pop %v729
  %v731 = vmul.f32 %v680, 1.442695
  %v732 = vpow.pop %v731
  %v733 = vmul.f32 %v681, 1.442695
  %v734 = vpow.pop %v733
  %v735 = vmul.f32 %v682, 1.442695
  %v736 = vpow.pop %v735
  %v737 = vmul.f32 %v683, 1.442695
  %v738 = vpow.pop %v737
  %v739 = vmul.f32 %v684, 1.442695
  %v740 = vpow.pop %v739
  %v741 = vmul.f32 %v685, 1.442695
  %v742 = vpow.pop %v741
  %v743 = vmul.f32 %v686, 1.442695
  %v744 = vpow.pop %v743
  %v745 = vmul.f32 %v687, 1.442695
  %v746 = vpow.pop %v745
  %v747 = vmul.f32 %v688, 1.442695
  %v748 = vpow.pop %v747
  %v749 = vmul.f32 %v689, 1.442695
  %v750 = vpow.pop %v749
  %v751 = vmul.f32 %v690, 1.442695
  %v752 = vpow.pop %v751
  %v753 = vmul.f32 %v691, 1.442695
  %v754 = vpow.pop %v753
  %v755 = vmul.f32 %v692, 1.442695
  %v756 = vpow.pop %v755
  %v757 = vmul.f32 %v693, 1.442695
  %v758 = vpow.pop %v757
  %v759 = vmul.f32 %v694, 1.442695
  %v760 = vpow.pop %v759
  %v761 = vmul.f32 %v695, 1.442695
  %v762 = vpow.pop %v761
  %v763 = vmul.f32 %v696, 1.442695
  %v764 = vpow.pop %v763
  %v765 = vmul.f32 %v697, 1.442695
  %v766 = vpow.pop %v765
  %v767 = vmul.f32 %v698, 1.442695
  %v768 = vpow.pop %v767
  %v769 = vmul.f32 %v699, 1.442695
  %v770 = vpow.pop %v769
  %v771 = vmul.f32 %v700, 1.442695
  %v772 = vpow.pop %v771
  %v773 = vmul.f32 %v701, 1.442695
  %v774 = vpow.pop %v773
  %v775 = vmul.f32 %v702, 1.442695
  %v776 = vpow.pop %v775
  %v777 = vmul.f32 %v703, 1.442695
  %v778 = vpow.pop %v777
  %v779 = vmul.f32 %v704, 1.442695
  %v780 = vpow.pop %v779
  %v781 = vmul.f32 %v705, 1.442695
  %v782 = vpow.pop %v781
  %v783 = vmul.f32 %v706, 1.442695
  %v784 = vpow.pop %v783
  %v785 = vmul.f32 %v707, 1.442695
  %v786 = vpow.pop %v785
  %v787 = vmul.f32 %v708, 1.442695
  %v788 = vpow.pop %v787
  %v789 = vmul.f32 %v709, 1.442695
  %v790 = vpow.pop %v789
  %v791 = vmul.f32 %v710, 1.442695
  %v792 = vpow.pop %v791
  %v793 = vmul.f32 %v711, 1.442695
  %v794 = vpow.pop %v793
  %v795 = vmul.f32 %v712, 1.442695
  %v796 = vpow.pop %v795
  %v797 = vmul.f32 %v713, 1.442695
  %v798 = vpow.pop %v797
  %v799 = vmul.f32 %v714, 1.442695
  %v800 = vpow.pop %v799
  %v801 = vmul.f32 %v715, 1.442695
  %v802 = vpow.pop %v801
  %v803 = vmul.f32 %v716, 1.442695
  %v804 = vpow.pop %v803
  %v805 = vmul.f32 %v717, 1.442695
  %v806 = vpow.pop %v805
  %v807 = vmul.f32 %v718, 1.442695
  %v808 = vpow.pop %v807
  %v809 = vmul.f32 %v719, 1.442695
  %v810 = vpow.pop %v809
  %v811 = vmul.f32 %v720, 1.442695
  %v812 = vpow.pop %v811
  %v813 = vmul.f32 %v721, 1.442695
  %v814 = vpow.pop %v813
  %v815 = vmul.f32 %v722, 1.442695
  %v816 = vpow.pop %v815
  %v817 = vmul.f32 %v723, 1.442695
  %v818 = vpow.pop %v817
  %v819 = vmul.f32 %v724, 1.442695
  %v820 = vpow.pop %v819
  %v821 = vmul.f32 %v725, 1.442695
  %v822 = vpow.pop %v821
  %v823 = vmul.f32 %v726, 1.442695
  %v824 = vpow.pop %v823
  %v825 = vadd.f32 %v728, 1.0
  %v826 = vadd.f32 %v730, 1.0
  %v827 = vadd.f32 %v732, 1.0
  %v828 = vadd.f32 %v734, 1.0
  %v829 = vadd.f32 %v736, 1.0
  %v830 = vadd.f32 %v738, 1.0
  %v831 = vadd.f32 %v740, 1.0
  %v832 = vadd.f32 %v742, 1.0
  %v833 = vadd.f32 %v744, 1.0
  %v834 = vadd.f32 %v746, 1.0
  %v835 = vadd.f32 %v748, 1.0
  %v836 = vadd.f32 %v750, 1.0
  %v837 = vadd.f32 %v752, 1.0
  %v838 = vadd.f32 %v754, 1.0
  %v839 = vadd.f32 %v756, 1.0
  %v840 = vadd.f32 %v758, 1.0
  %v841 = vadd.f32 %v760, 1.0
  %v842 = vadd.f32 %v762, 1.0
  %v843 = vadd.f32 %v764, 1.0
  %v844 = vadd.f32 %v766, 1.0
  %v845 = vadd.f32 %v768, 1.0
  %v846 = vadd.f32 %v770, 1.0
  %v847 = vadd.f32 %v772, 1.0
  %v848 = vadd.f32 %v774, 1.0
  %v849 = vadd.f32 %v776, 1.0
  %v850 = vadd.f32 %v778, 1.0
  %v851 = vadd.f32 %v780, 1.0
  %v852 = vadd.f32 %v782, 1.0
  %v853 = vadd.f32 %v784, 1.0
  %v854 = vadd.f32 %v786, 1.0
  %v855 = vadd.f32 %v788, 1.0
  %v856 = vadd.f32 %v790, 1.0
  %v857 = vadd.f32 %v792, 1.0
  %v858 = vadd.f32 %v794, 1.0
  %v859 = vadd.f32 %v796, 1.0
  %v860 = vadd.f32 %v798, 1.0
  %v861 = vadd.f32 %v800, 1.0
  %v862 = vadd.f32 %v802, 1.0
  %v863 = vadd.f32 %v804, 1.0
  %v864 = vadd.f32 %v806, 1.0
  %v865 = vadd.f32 %v808, 1.0
  %v866 = vadd.f32 %v810, 1.0
  %v867 = vadd.f32 %v812, 1.0
  %v868 = vadd.f32 %v814, 1.0
  %v869 = vadd.f32 %v816, 1.0
  %v870 = vadd.f32 %v818, 1.0
  %v871 = vadd.f32 %v820, 1.0
  %v872 = vadd.f32 %v822, 1.0
  %v873 = vadd.f32 %v824, 1.0
  %v874 = vrcp.pop %v825
  %v875 = vrcp.pop %v826
  %v876 = vrcp.pop %v827
  %v877 = vrcp.pop %v828
  %v878 = vrcp.pop %v829
  %v879 = vrcp.pop %v830
  %v880 = vrcp.pop %v831
  %v881 = vrcp.pop %v832
  %v882 = vrcp.pop %v833
  %v883 = vrcp.pop %v834
  %v884 = vrcp.pop %v835
  %v885 = vrcp.pop %v836
  %v886 = vrcp.pop %v837
  %v887 = vrcp.pop %v838
  %v888 = vrcp.pop %v839
  %v889 = vrcp.pop %v840
  %v890 = vrcp.pop %v841
  %v891 = vrcp.pop %v842
  %v892 = vrcp.pop %v843
  %v893 = vrcp.pop %v844
  %v894 = vrcp.pop %v845
  %v895 = vrcp.pop %v846
  %v896 = vrcp.pop %v847
  %v897 = vrcp.pop %v848
  %v898 = vrcp.pop %v849
  %v899 = vrcp.pop %v850
  %v900 = vrcp.pop %v851
  %v901 = vrcp.pop %v852
  %v902 = vrcp.pop %v853
  %v903 = vrcp.pop %v854
  %v904 = vrcp.pop %v855
  %v905 = vrcp.pop %v856
  %v906 = vrcp.pop %v857
  %v907 = vrcp.pop %v858
  %v908 = vrcp.pop %v859
  %v909 = vrcp.pop %v860
  %v910 = vrcp.pop %v861
  %v911 = vrcp.pop %v862
  %v912 = vrcp.pop %v863
  %v913 = vrcp.pop %v864
  %v914 = vrcp.pop %v865
  %v915 = vrcp.pop %v866
  %v916 = vrcp.pop %v867
  %v917 = vrcp.pop %v868
  %v918 = vrcp.pop %v869
  %v919 = vrcp.pop %v870
  %v920 = vrcp.pop %v871
  %v921 = vrcp.pop %v872
  %v922 = vrcp.pop %v873
  %vm923 = vcmask 31744
  %924 = vst.msk [vmem:[%s3] sm:$0xff] %vm923, %v874
  %925 = vst.msk [vmem:[%s3 + $0x8] sm:$0xff] %vm923, %v875
  %926 = vst.msk [vmem:[%s3 + $0x10] sm:$0xff] %vm923, %v876
  %927 = vst.msk [vmem:[%s3 + $0x18] sm:$0xff] %vm923, %v877
  %928 = vst.msk [vmem:[%s3 + $0x20] sm:$0xff] %vm923, %v878
  %929 = vst.msk [vmem:[%s3 + $0x28] sm:$0xff] %vm923, %v879
  %930 = vst.msk [vmem:[%s3 + $0x30] sm:$0xff] %vm923, %v880
  %931 = vst.msk [vmem:[%s3 + $0x38] sm:$0xff] %vm923, %v881
  %932 = vst.msk [vmem:[%s3 + $0x40] sm:$0xff] %vm923, %v882
  %933 = vst.msk [vmem:[%s3 + $0x48] sm:$0xff] %vm923, %v883
  %934 = vst.msk [vmem:[%s3 + $0x50] sm:$0xff] %vm923, %v884
  %935 = vst.msk [vmem:[%s3 + $0x58] sm:$0xff] %vm923, %v885
  %936 = vst.msk [vmem:[%s3 + $0x60] sm:$0xff] %vm923, %v886
  %937 = vst.msk [vmem:[%s3 + $0x68] sm:$0xff] %vm923, %v887
  %938 = vst.msk [vmem:[%s3 + $0x70] sm:$0xff] %vm923, %v888
  %939 = vst.msk [vmem:[%s3 + $0x78] sm:$0xff] %vm923, %v889
  %940 = vst.msk [vmem:[%s3 + $0x80] sm:$0xff] %vm923, %v890
  %941 = vst.msk [vmem:[%s3 + $0x88] sm:$0xff] %vm923, %v891
  %942 = vst.msk [vmem:[%s3 + $0x90] sm:$0xff] %vm923, %v892
  %943 = vst.msk [vmem:[%s3 + $0x98] sm:$0xff] %vm923, %v893
  %944 = vst.msk [vmem:[%s3 + $0xa0] sm:$0xff] %vm923, %v894
  %945 = vst.msk [vmem:[%s3 + $0xa8] sm:$0xff] %vm923, %v895
  %946 = vst.msk [vmem:[%s3 + $0xb0] sm:$0xff] %vm923, %v896
  %947 = vst.msk [vmem:[%s3 + $0xb8] sm:$0xff] %vm923, %v897
  %948 = vst.msk [vmem:[%s3 + $0xc0] sm:$0xff] %vm923, %v898
  %949 = vst.msk [vmem:[%s3 + $0xc8] sm:$0xff] %vm923, %v899
  %950 = vst.msk [vmem:[%s3 + $0xd0] sm:$0xff] %vm923, %v900
  %951 = vst.msk [vmem:[%s3 + $0xd8] sm:$0xff] %vm923, %v901
  %952 = vst.msk [vmem:[%s3 + $0xe0] sm:$0xff] %vm923, %v902
  %953 = vst.msk [vmem:[%s3 + $0xe8] sm:$0xff] %vm923, %v903
  %954 = vst.msk [vmem:[%s3 + $0xf0] sm:$0xff] %vm923, %v904
  %955 = vst.msk [vmem:[%s3 + $0xf8] sm:$0xff] %vm923, %v905
  %956 = vst.msk [vmem:[%s3 + $0x100] sm:$0xff] %vm923, %v906
  %957 = vst.msk [vmem:[%s3 + $0x108] sm:$0xff] %vm923, %v907
  %958 = vst.msk [vmem:[%s3 + $0x110] sm:$0xff] %vm923, %v908
  %959 = vst.msk [vmem:[%s3 + $0x118] sm:$0xff] %vm923, %v909
  %960 = vst.msk [vmem:[%s3 + $0x120] sm:$0xff] %vm923, %v910
  %961 = vst.msk [vmem:[%s3 + $0x128] sm:$0xff] %vm923, %v911
  %962 = vst.msk [vmem:[%s3 + $0x130] sm:$0xff] %vm923, %v912
  %963 = vst.msk [vmem:[%s3 + $0x138] sm:$0xff] %vm923, %v913
  %964 = vst.msk [vmem:[%s3 + $0x140] sm:$0xff] %vm923, %v914
  %965 = vst.msk [vmem:[%s3 + $0x148] sm:$0xff] %vm923, %v915
  %966 = vst.msk [vmem:[%s3 + $0x150] sm:$0xff] %vm923, %v916
  %967 = vst.msk [vmem:[%s3 + $0x158] sm:$0xff] %vm923, %v917
  %968 = vst.msk [vmem:[%s3 + $0x160] sm:$0xff] %vm923, %v918
  %969 = vst.msk [vmem:[%s3 + $0x168] sm:$0xff] %vm923, %v919
  %970 = vst.msk [vmem:[%s3 + $0x170] sm:$0xff] %vm923, %v920
  %971 = vst.msk [vmem:[%s3 + $0x178] sm:$0xff] %vm923, %v921
  %972 = vst.msk [vmem:[%s3 + $0x180] sm:$0xff] %vm923, %v922
  // Predicated region
  $region14: #{decoder_forward.13} parent=0 // pred_check
    _
  $region15: #{decoder_forward.13} parent=0 // pred_check_branch
    %974 = sbr.rel (0) target = $region17
  $region16: #{decoder_forward.13} parent=0 // pred_region
    _
  $region17: #{decoder_forward.13} parent=0 // pred_fallthru
    _
  // Predicated region
  $region18: #{decoder_forward.13} parent=0 // pred_check
    _
  $region19: #{decoder_forward.13} parent=0 // pred_check_branch
    %976 = sbr.rel (0) target = $region21
  $region20: #{decoder_forward.13} parent=0 // pred_region
    _
  $region21: #{decoder_forward.13} parent=0 // pred_fallthru
    _

</llo_original>
